<compile_context>
chip_gen: v5e
topology: v5e:2x2
jax: 0.10.0
libtpu: 0.0.40
codegen_flags: <defaults>
</compile_context>

<pallas_src>
import math

import jax
import jax.numpy as jnp
from jax.experimental import pallas as pl
from jax.experimental.pallas import tpu as pltpu


C1P = 16      # conv1 out channels 10 -> padded to 16 lanes per ow group
C2P = 32      # conv2 out channels 20 -> padded to 32 lanes per ow2 group
F1P = 64      # fc1 out features   50 -> padded to 64
NCLS = 10     # real number of classes
NCLS_P = 128  # fc2 / output lane width (lane-dense store)


# ------------------------------ fused kernel -------------------------------

def _fused_forward_kernel(x_ref, m1_ref, b1p_ref, m2_ref, b2p_ref,
                          w1e_ref, b1e_ref, w2e_ref, b2e_ref, o_ref):
    f32 = jnp.float32
    bf16 = jnp.bfloat16
    b = x_ref.shape[0]                               # images per grid step
    x = x_ref[...]                                   # (B, 28, 28) f32

    # ---- conv1: ONE merged-K banded matmul ---------------------------------
    # LHS row (b, oh) holds input rows oh..oh+4 concatenated (K = 5*28 = 140).
    # Result lanes are ow*16 + co  (ow in [0,24), co < 10 valid).
    lhs1 = jnp.concatenate([x[:, kh:kh + 24, :] for kh in range(5)], axis=2)
    lhs1 = lhs1.reshape(b * 24, 5 * 28).astype(bf16)            # (B*24, 140)
    z1 = jnp.dot(lhs1, m1_ref[...], preferred_element_type=f32)
    z1 = z1 + b1p_ref[...]                                      # (B*24, 384)

    # ---- maxpool1 2x2 + relu (uncompacted: valid at even rows / even ow) ---
    rsh = jnp.concatenate([z1[1:, :], z1[:1, :]], axis=0)       # row u -> u+1
    rmax = jnp.maximum(z1, rsh)
    lsh = jnp.concatenate([rmax[:, C1P:], rmax[:, :C1P]], axis=1)   # lane+16
    p1 = jnp.maximum(jnp.maximum(rmax, lsh), 0.0).astype(bf16)  # (B*24, 384)

    # ---- conv2: ONE merged-K banded matmul over the uncompacted layout -----
    # Band kh uses rows 2*kh .. 2*kh+16 of each image's 24-row block; valid
    # conv2 outputs land on the even rows of the 16-row result blocks, and
    # the discarded (odd-row / odd-ow-group) inputs hit zero rows of m2.
    p1_3d = p1.reshape(b, 24, 24 * C1P)
    lhs2 = jnp.concatenate(
        [p1_3d[:, 2 * kh:2 * kh + 16, :] for kh in range(5)], axis=2)
    lhs2 = lhs2.reshape(b * 16, 5 * 24 * C1P)                   # (B*16, 1920)
    z2 = jnp.dot(lhs2, m2_ref[...], preferred_element_type=f32)
    z2 = z2 + b2p_ref[...]                                      # (B*16, 256)

    # ---- maxpool2 2x2 + relu (valid rows 4*ph2, valid even ow2 groups) -----
    rsh2 = jnp.concatenate([z2[2:, :], z2[:2, :]], axis=0)      # row r -> r+2
    rmax2 = jnp.maximum(z2, rsh2)
    lsh2 = jnp.concatenate([rmax2[:, C2P:], rmax2[:, :C2P]], axis=1)
    p2 = jnp.maximum(jnp.maximum(rmax2, lsh2), 0.0)             # (B*16, 256)
    # TODO(synk): Dropout2d(p=0.2) train-mode channel mask not implemented;
    # eval-mode (identity) semantics are used.

    # ---- fc1 + relu: gather the 4 valid pooled rows per image into lanes ---
    # (PyTorch NCHW .view(-1, 320) flatten order is folded into w1e.)
    p2_3d = p2.astype(bf16).reshape(b, 16, 8 * C2P)
    hin = jnp.concatenate([p2_3d[:, 4 * r, :] for r in range(4)], axis=1)
    h = jnp.dot(hin, w1e_ref[...], preferred_element_type=f32)  # (B, 64)
    h = jnp.maximum(h + b1e_ref[...], 0.0)
    # TODO(synk): Dropout(p=0.5) train-mode mask not implemented (eval identity).

    # ---- fc2 + log_softmax over the 10 real classes ------------------------
    logits = jnp.dot(h.astype(bf16), w2e_ref[...],
                     preferred_element_type=f32) + b2e_ref[...]  # (B, 128)
    col = jax.lax.broadcasted_iota(jnp.int32, logits.shape, 1)
    logits = jnp.where(col < NCLS, logits, jnp.float32(-1e30))   # mask padding
    mx = jnp.max(logits, axis=1, keepdims=True)
    zc = logits - mx
    lse = jnp.log(jnp.sum(jnp.exp(zc), axis=1, keepdims=True))
    o_ref[...] = zc - lse                                        # dense (B,128)


# --------------------- weight repacking (plain JAX glue) --------------------

def _build_kernel_constants(params):
    """Repack PyTorch-layout params into VMEM-resident bf16 matmul constants.

    (Tiny; runs inside the jitted forward.  Could be hoisted/cached if the
    same params are reused across many calls.)
    """
    f32 = jnp.float32
    bf16 = jnp.bfloat16
    w1 = params["conv1_w"].astype(f32)      # (10, 1, 5, 5)
    b1 = params["conv1_b"].astype(f32)      # (10,)
    w2 = params["conv2_w"].astype(f32)      # (20, 10, 5, 5)
    b2 = params["conv2_b"].astype(f32)      # (20,)
    fw1 = params["fc1_w"].astype(f32)       # (50, 320)  (out, in)
    fb1 = params["fc1_b"].astype(f32)       # (50,)
    fw2 = params["fc2_w"].astype(f32)       # (10, 50)   (out, in)
    fb2 = params["fc2_b"].astype(f32)       # (10,)

    # m1: (5*28, 24*16); m1[kh*28 + iw, ow*16 + co] = w1[co, 0, kh, iw - ow]
    w1s = w1[:, 0, :, :]                                        # (10, 5, 5)
    kh = jnp.arange(5)[:, None, None, None]
    iw = jnp.arange(28)[None, :, None, None]
    ow = jnp.arange(24)[None, None, :, None]
    co = jnp.arange(C1P)[None, None, None, :]
    kw = iw - ow
    valid = (kw >= 0) & (kw < 5) & (co < 10)
    vals = w1s[jnp.clip(co, 0, 9), kh, jnp.clip(kw, 0, 4)]
    m1 = jnp.where(valid, vals, 0.0).reshape(5 * 28, 24 * C1P).astype(bf16)
    b1p = jnp.tile(jnp.pad(b1, (0, C1P - 10)), 24)[None, :]     # (1, 384) f32

    # m2: (5*384, 8*32); row = kh*384 + ow1*16 + ci (uncompacted pool1 lanes),
    # col = ow2*32 + co2; nonzero only for even ow1 (= 2*pw) with
    # kw = ow1//2 - ow2 in [0,5), ci < 10, co2 < 20.
    kh = jnp.arange(5)[:, None, None, None, None]
    ow1 = jnp.arange(24)[None, :, None, None, None]
    ci = jnp.arange(C1P)[None, None, :, None, None]
    ow2 = jnp.arange(8)[None, None, None, :, None]
    co2 = jnp.arange(C2P)[None, None, None, None, :]
    kw = ow1 // 2 - ow2
    valid = ((ow1 % 2 == 0) & (kw >= 0) & (kw < 5) & (ci < 10) & (co2 < 20))
    vals = w2[jnp.clip(co2, 0, 19), jnp.clip(ci, 0, 9), kh, jnp.clip(kw, 0, 4)]
    m2 = jnp.where(valid, vals, 0.0).reshape(5 * 24 * C1P,
                                             8 * C2P).astype(bf16)
    b2p = jnp.tile(jnp.pad(b2, (0, C2P - 20)), 8)[None, :]      # (1, 256) f32

    # w1e: (4*256, 64); row = ph2*256 + ow2*32 + co2 maps to PyTorch flat
    # feature f = co2*16 + ph2*4 + ow2//2 (valid only for even ow2, co2<20).
    ph2 = jnp.arange(4)[:, None, None, None]
    ow2 = jnp.arange(8)[None, :, None, None]
    co2 = jnp.arange(C2P)[None, None, :, None]
    j = jnp.arange(F1P)[None, None, None, :]
    f = co2 * 16 + ph2 * 4 + ow2 // 2
    valid = (ow2 % 2 == 0) & (co2 < 20) & (j < 50)
    vals = fw1[jnp.clip(j, 0, 49), jnp.clip(f, 0, 319)]
    w1e = jnp.where(valid, vals, 0.0).reshape(4 * 8 * C2P, F1P).astype(bf16)
    b1e = jnp.pad(fb1, (0, F1P - 50))[None, :]                  # (1, 64) f32

    w2e = jnp.zeros((F1P, NCLS_P), f32).at[:50, :NCLS].set(fw2.T).astype(bf16)
    b2e = jnp.pad(fb2, (0, NCLS_P - NCLS))[None, :]             # (1, 128) f32

    return (m1, b1p, m2, b2p, w1e, b1e, w2e, b2e)


# ------------------------------- full forward -------------------------------

def _const_spec(arr):
    # Constant index map + single buffer: weights stay resident in VMEM.
    return pl.BlockSpec(arr.shape, lambda i: (0, 0),
                        pipeline_mode=pl.Buffered(1))


def mnist_net_dropout_forward(x_nchw, params, *, block_b=16):
    """Matches MNISTNetDropout.forward in eval mode (dropout = identity)."""
    assert block_b % 8 == 0, "block_b must be a multiple of 8"
    n = x_nchw.shape[0]
    x = x_nchw.reshape(n, 28, 28).astype(jnp.float32)   # Cin == 1, squeezed
    n_pad = ((n + block_b - 1) // block_b) * block_b
    if n_pad != n:
        x = jnp.pad(x, ((0, n_pad - n), (0, 0), (0, 0)))

    consts = _build_kernel_constants(params)

    out = pl.pallas_call(
        _fused_forward_kernel,
        out_shape=jax.ShapeDtypeStruct((n_pad, NCLS_P), jnp.float32),
        grid=(n_pad // block_b,),
        in_specs=([pl.BlockSpec((block_b, 28, 28), lambda i: (i, 0, 0))] +
                  [_const_spec(c) for c in consts]),
        out_specs=pl.BlockSpec((block_b, NCLS_P), lambda i: (i, 0)),
        compiler_params=pltpu.CompilerParams(
            dimension_semantics=("parallel",)),
    )(x, *consts)

    return out[:n, :NCLS]


# --------------------------- pure-JAX reference -----------------------------

def _reference_forward(x_nchw, params):
    x = x_nchw.astype(jnp.float32)
    dn = ("NCHW", "OIHW", "NCHW")
    y = jax.lax.conv_general_dilated(x, params["conv1_w"], (1, 1), "VALID",
                                     dimension_numbers=dn)
    y = y + params["conv1_b"][None, :, None, None]
    y = jax.lax.reduce_window(y, -jnp.inf, jax.lax.max,
                              (1, 1, 2, 2), (1, 1, 2, 2), "VALID")
    y = jnp.maximum(y, 0.0)
    y = jax.lax.conv_general_dilated(y, params["conv2_w"], (1, 1), "VALID",
                                     dimension_numbers=dn)
    y = y + params["conv2_b"][None, :, None, None]
    y = jax.lax.reduce_window(y, -jnp.inf, jax.lax.max,
                              (1, 1, 2, 2), (1, 1, 2, 2), "VALID")
    y = jnp.maximum(y, 0.0)
    y = y.reshape(y.shape[0], 320)
    y = jnp.maximum(y @ params["fc1_w"].T + params["fc1_b"], 0.0)
    y = y @ params["fc2_w"].T + params["fc2_b"]
    return y - jax.scipy.special.logsumexp(y, axis=1, keepdims=True)


# ------------------------------ param creation ------------------------------

def init_params(key):
    """Deterministic xavier-normal-style init, PyTorch weight layouts."""
    ks = jax.random.split(key, 6)

    def xavier(k, shape, fan_in, fan_out):
        std = math.sqrt(2.0 / (fan_in + fan_out))
        return std * jax.random.normal(k, shape, dtype=jnp.float32)

    return {
        "conv1_w": xavier(ks[0], (10, 1, 5, 5), 1 * 5 * 5, 10 * 5 * 5),
        "conv1_b": jnp.zeros((10,), jnp.float32),
        "conv2_w": xavier(ks[1], (20, 10, 5, 5), 10 * 5 * 5, 20 * 5 * 5),
        "conv2_b": jnp.zeros((20,), jnp.float32),
        "fc1_w": xavier(ks[2], (50, 320), 320, 50),
        "fc1_b": 0.01 * jax.random.normal(ks[4], (50,), dtype=jnp.float32),
        "fc2_w": xavier(ks[3], (10, 50), 50, 10),
        "fc2_b": 0.01 * jax.random.normal(ks[5], (10,), dtype=jnp.float32),
    }


if __name__ == "__main__":
    key = jax.random.PRNGKey(0)
    pkey, xkey = jax.random.split(key)
    params = init_params(pkey)
    x = jax.random.normal(xkey, (2, 1, 28, 28), dtype=jnp.float32)

    fwd = jax.jit(mnist_net_dropout_forward)
    out = jax.block_until_ready(fwd(x, params))

    assert out.shape == (2, 10)
    # log-softmax rows exponentiate-sum to ~1
    assert jnp.allclose(jnp.sum(jnp.exp(out), axis=1), 1.0, atol=1e-2)
    # end-to-end check against a pure-JAX f32 reference of the PyTorch forward
    # (kernel matmuls run with bf16 operands, hence the loose-ish tolerance)
    ref = _reference_forward(x, params)
    assert jnp.allclose(out, ref, atol=5e-2, rtol=5e-2), (
        "max abs err", float(jnp.max(jnp.abs(out - ref))))
    print("KERNEL_OK")
</pallas_src>

<mosaic_0001>
module attributes {stable_mosaic.version = 11 : i64} {
  func.func @_fused_forward_kernel(%arg0: i32, %arg1: memref<16x28x28xf32, #tpu.memory_space<vmem>>, %arg2: memref<140x384xbf16, #tpu.memory_space<vmem>>, %arg3: memref<1x384xf32, #tpu.memory_space<vmem>>, %arg4: memref<1920x256xbf16, #tpu.memory_space<vmem>>, %arg5: memref<1x256xf32, #tpu.memory_space<vmem>>, %arg6: memref<1024x64xbf16, #tpu.memory_space<vmem>>, %arg7: memref<1x64xf32, #tpu.memory_space<vmem>>, %arg8: memref<64x128xbf16, #tpu.memory_space<vmem>>, %arg9: memref<1x128xf32, #tpu.memory_space<vmem>>, %arg10: memref<16x128xf32, #tpu.memory_space<vmem>>) attributes {dimension_semantics = [#tpu.dimension_semantics<parallel>], iteration_bounds = array<i64: 1>, scalar_prefetch = 0 : i64, scratch_operands = 0 : i64, tpu.core_type = #tpu.core_type<tc>, window_params = [{transform_indices = @transform_0, window_bounds = array<i64: 16, 28, 28>}, {pipeline_mode = #tpu.pipeline_mode<synchronous>, transform_indices = @transform_1, window_bounds = array<i64: 140, 384>}, {pipeline_mode = #tpu.pipeline_mode<synchronous>, transform_indices = @transform_2, window_bounds = array<i64: 1, 384>}, {pipeline_mode = #tpu.pipeline_mode<synchronous>, transform_indices = @transform_3, window_bounds = array<i64: 1920, 256>}, {pipeline_mode = #tpu.pipeline_mode<synchronous>, transform_indices = @transform_4, window_bounds = array<i64: 1, 256>}, {pipeline_mode = #tpu.pipeline_mode<synchronous>, transform_indices = @transform_5, window_bounds = array<i64: 1024, 64>}, {pipeline_mode = #tpu.pipeline_mode<synchronous>, transform_indices = @transform_6, window_bounds = array<i64: 1, 64>}, {pipeline_mode = #tpu.pipeline_mode<synchronous>, transform_indices = @transform_7, window_bounds = array<i64: 64, 128>}, {pipeline_mode = #tpu.pipeline_mode<synchronous>, transform_indices = @transform_8, window_bounds = array<i64: 1, 128>}, {transform_indices = @transform_9, window_bounds = array<i64: 16, 128>}]} {
    %c0 = arith.constant 0 : index
    %c0_0 = arith.constant 0 : index
    %c0_1 = arith.constant 0 : index
    %0 = vector.load %arg1[%c0, %c0_0, %c0_1] : memref<16x28x28xf32, #tpu.memory_space<vmem>>, vector<16x28x28xf32>
    %1 = vector.extract_strided_slice %0 {offsets = [0, 0, 0], sizes = [16, 24, 28], strides = [1, 1, 1]} : vector<16x28x28xf32> to vector<16x24x28xf32>
    %2 = vector.extract_strided_slice %0 {offsets = [0, 1, 0], sizes = [16, 24, 28], strides = [1, 1, 1]} : vector<16x28x28xf32> to vector<16x24x28xf32>
    %3 = vector.extract_strided_slice %0 {offsets = [0, 2, 0], sizes = [16, 24, 28], strides = [1, 1, 1]} : vector<16x28x28xf32> to vector<16x24x28xf32>
    %4 = vector.extract_strided_slice %0 {offsets = [0, 3, 0], sizes = [16, 24, 28], strides = [1, 1, 1]} : vector<16x28x28xf32> to vector<16x24x28xf32>
    %5 = vector.extract_strided_slice %0 {offsets = [0, 4, 0], sizes = [16, 24, 28], strides = [1, 1, 1]} : vector<16x28x28xf32> to vector<16x24x28xf32>
    %6 = tpu.concatenate %1, %2, %3, %4, %5 in 2 : vector<16x24x28xf32>, vector<16x24x28xf32>, vector<16x24x28xf32>, vector<16x24x28xf32>, vector<16x24x28xf32> -> vector<16x24x140xf32>
    %7 = vector.shape_cast %6 : vector<16x24x140xf32> to vector<384x140xf32>
    %8 = arith.truncf %7 : vector<384x140xf32> to vector<384x140xbf16>
    %c0_2 = arith.constant 0 : index
    %c0_3 = arith.constant 0 : index
    %9 = vector.load %arg2[%c0_2, %c0_3] : memref<140x384xbf16, #tpu.memory_space<vmem>>, vector<140x384xbf16>
    %cst = arith.constant dense<0.000000e+00> : vector<384x384xf32>
    %10 = tpu.matmul %8, %9, %cst {dimension_numbers = #tpu.dot_dimension_numbers<[1], [0], [0], [1], [0, 0, 1, 1], [], []>} : vector<384x140xbf16>, vector<140x384xbf16>, vector<384x384xf32> -> vector<384x384xf32>
    %c0_4 = arith.constant 0 : index
    %c0_5 = arith.constant 0 : index
    %11 = vector.load %arg3[%c0_4, %c0_5] : memref<1x384xf32, #tpu.memory_space<vmem>>, vector<1x384xf32>
    %12 = vector.broadcast %11 : vector<1x384xf32> to vector<384x384xf32>
    %13 = arith.addf %10, %12 : vector<384x384xf32>
    %14 = vector.extract_strided_slice %13 {offsets = [1, 0], sizes = [383, 384], strides = [1, 1]} : vector<384x384xf32> to vector<383x384xf32>
    %15 = vector.extract_strided_slice %13 {offsets = [0, 0], sizes = [1, 384], strides = [1, 1]} : vector<384x384xf32> to vector<1x384xf32>
    %16 = tpu.concatenate %14, %15 in 0 : vector<383x384xf32>, vector<1x384xf32> -> vector<384x384xf32>
    %17 = arith.maximumf %13, %16 : vector<384x384xf32>
    %18 = vector.extract_strided_slice %17 {offsets = [0, 16], sizes = [384, 368], strides = [1, 1]} : vector<384x384xf32> to vector<384x368xf32>
    %19 = vector.extract_strided_slice %17 {offsets = [0, 0], sizes = [384, 16], strides = [1, 1]} : vector<384x384xf32> to vector<384x16xf32>
    %20 = tpu.concatenate %18, %19 in 1 : vector<384x368xf32>, vector<384x16xf32> -> vector<384x384xf32>
    %21 = arith.maximumf %17, %20 : vector<384x384xf32>
    %cst_6 = arith.constant 0.000000e+00 : f32
    %22 = vector.broadcast %cst_6 : f32 to vector<384x384xf32>
    %23 = arith.maximumf %21, %22 : vector<384x384xf32>
    %24 = arith.truncf %23 : vector<384x384xf32> to vector<384x384xbf16>
    %25 = vector.shape_cast %24 : vector<384x384xbf16> to vector<16x24x384xbf16>
    %26 = vector.extract_strided_slice %25 {offsets = [0, 0, 0], sizes = [16, 16, 384], strides = [1, 1, 1]} : vector<16x24x384xbf16> to vector<16x16x384xbf16>
    %27 = vector.extract_strided_slice %25 {offsets = [0, 2, 0], sizes = [16, 16, 384], strides = [1, 1, 1]} : vector<16x24x384xbf16> to vector<16x16x384xbf16>
    %28 = vector.extract_strided_slice %25 {offsets = [0, 4, 0], sizes = [16, 16, 384], strides = [1, 1, 1]} : vector<16x24x384xbf16> to vector<16x16x384xbf16>
    %29 = vector.extract_strided_slice %25 {offsets = [0, 6, 0], sizes = [16, 16, 384], strides = [1, 1, 1]} : vector<16x24x384xbf16> to vector<16x16x384xbf16>
    %30 = vector.extract_strided_slice %25 {offsets = [0, 8, 0], sizes = [16, 16, 384], strides = [1, 1, 1]} : vector<16x24x384xbf16> to vector<16x16x384xbf16>
    %31 = tpu.concatenate %26, %27, %28, %29, %30 in 2 : vector<16x16x384xbf16>, vector<16x16x384xbf16>, vector<16x16x384xbf16>, vector<16x16x384xbf16>, vector<16x16x384xbf16> -> vector<16x16x1920xbf16>
    %32 = vector.shape_cast %31 : vector<16x16x1920xbf16> to vector<256x1920xbf16>
    %c0_7 = arith.constant 0 : index
    %c0_8 = arith.constant 0 : index
    %33 = vector.load %arg4[%c0_7, %c0_8] : memref<1920x256xbf16, #tpu.memory_space<vmem>>, vector<1920x256xbf16>
    %cst_9 = arith.constant dense<0.000000e+00> : vector<256x256xf32>
    %34 = tpu.matmul %32, %33, %cst_9 {dimension_numbers = #tpu.dot_dimension_numbers<[1], [0], [0], [1], [0, 0, 1, 1], [], []>} : vector<256x1920xbf16>, vector<1920x256xbf16>, vector<256x256xf32> -> vector<256x256xf32>
    %c0_10 = arith.constant 0 : index
    %c0_11 = arith.constant 0 : index
    %35 = vector.load %arg5[%c0_10, %c0_11] : memref<1x256xf32, #tpu.memory_space<vmem>>, vector<1x256xf32>
    %36 = vector.broadcast %35 : vector<1x256xf32> to vector<256x256xf32>
    %37 = arith.addf %34, %36 : vector<256x256xf32>
    %38 = vector.extract_strided_slice %37 {offsets = [2, 0], sizes = [254, 256], strides = [1, 1]} : vector<256x256xf32> to vector<254x256xf32>
    %39 = vector.extract_strided_slice %37 {offsets = [0, 0], sizes = [2, 256], strides = [1, 1]} : vector<256x256xf32> to vector<2x256xf32>
    %40 = tpu.concatenate %38, %39 in 0 : vector<254x256xf32>, vector<2x256xf32> -> vector<256x256xf32>
    %41 = arith.maximumf %37, %40 : vector<256x256xf32>
    %42 = vector.extract_strided_slice %41 {offsets = [0, 32], sizes = [256, 224], strides = [1, 1]} : vector<256x256xf32> to vector<256x224xf32>
    %43 = vector.extract_strided_slice %41 {offsets = [0, 0], sizes = [256, 32], strides = [1, 1]} : vector<256x256xf32> to vector<256x32xf32>
    %44 = tpu.concatenate %42, %43 in 1 : vector<256x224xf32>, vector<256x32xf32> -> vector<256x256xf32>
    %45 = arith.maximumf %41, %44 : vector<256x256xf32>
    %cst_12 = arith.constant 0.000000e+00 : f32
    %46 = vector.broadcast %cst_12 : f32 to vector<256x256xf32>
    %47 = arith.maximumf %45, %46 : vector<256x256xf32>
    %48 = arith.truncf %47 : vector<256x256xf32> to vector<256x256xbf16>
    %49 = vector.shape_cast %48 : vector<256x256xbf16> to vector<16x16x256xbf16>
    %50 = vector.extract_strided_slice %49 {offsets = [0, 0, 0], sizes = [16, 1, 256], strides = [1, 1, 1]} : vector<16x16x256xbf16> to vector<16x1x256xbf16>
    %51 = vector.shape_cast %50 : vector<16x1x256xbf16> to vector<16x256xbf16>
    %52 = vector.extract_strided_slice %49 {offsets = [0, 4, 0], sizes = [16, 1, 256], strides = [1, 1, 1]} : vector<16x16x256xbf16> to vector<16x1x256xbf16>
    %53 = vector.shape_cast %52 : vector<16x1x256xbf16> to vector<16x256xbf16>
    %54 = vector.extract_strided_slice %49 {offsets = [0, 8, 0], sizes = [16, 1, 256], strides = [1, 1, 1]} : vector<16x16x256xbf16> to vector<16x1x256xbf16>
    %55 = vector.shape_cast %54 : vector<16x1x256xbf16> to vector<16x256xbf16>
    %56 = vector.extract_strided_slice %49 {offsets = [0, 12, 0], sizes = [16, 1, 256], strides = [1, 1, 1]} : vector<16x16x256xbf16> to vector<16x1x256xbf16>
    %57 = vector.shape_cast %56 : vector<16x1x256xbf16> to vector<16x256xbf16>
    %58 = tpu.concatenate %51, %53, %55, %57 in 1 : vector<16x256xbf16>, vector<16x256xbf16>, vector<16x256xbf16>, vector<16x256xbf16> -> vector<16x1024xbf16>
    %c0_13 = arith.constant 0 : index
    %c0_14 = arith.constant 0 : index
    %59 = vector.load %arg6[%c0_13, %c0_14] : memref<1024x64xbf16, #tpu.memory_space<vmem>>, vector<1024x64xbf16>
    %cst_15 = arith.constant dense<0.000000e+00> : vector<16x64xf32>
    %60 = tpu.matmul %58, %59, %cst_15 {dimension_numbers = #tpu.dot_dimension_numbers<[1], [0], [0], [1], [0, 0, 1, 1], [], []>} : vector<16x1024xbf16>, vector<1024x64xbf16>, vector<16x64xf32> -> vector<16x64xf32>
    %c0_16 = arith.constant 0 : index
    %c0_17 = arith.constant 0 : index
    %61 = vector.load %arg7[%c0_16, %c0_17] : memref<1x64xf32, #tpu.memory_space<vmem>>, vector<1x64xf32>
    %62 = vector.broadcast %61 : vector<1x64xf32> to vector<16x64xf32>
    %63 = arith.addf %60, %62 : vector<16x64xf32>
    %cst_18 = arith.constant 0.000000e+00 : f32
    %64 = vector.broadcast %cst_18 : f32 to vector<16x64xf32>
    %65 = arith.maximumf %63, %64 : vector<16x64xf32>
    %66 = arith.truncf %65 : vector<16x64xf32> to vector<16x64xbf16>
    %c0_19 = arith.constant 0 : index
    %c0_20 = arith.constant 0 : index
    %67 = vector.load %arg8[%c0_19, %c0_20] : memref<64x128xbf16, #tpu.memory_space<vmem>>, vector<64x128xbf16>
    %cst_21 = arith.constant dense<0.000000e+00> : vector<16x128xf32>
    %68 = tpu.matmul %66, %67, %cst_21 {dimension_numbers = #tpu.dot_dimension_numbers<[1], [0], [0], [1], [0, 0, 1, 1], [], []>} : vector<16x64xbf16>, vector<64x128xbf16>, vector<16x128xf32> -> vector<16x128xf32>
    %c0_22 = arith.constant 0 : index
    %c0_23 = arith.constant 0 : index
    %69 = vector.load %arg9[%c0_22, %c0_23] : memref<1x128xf32, #tpu.memory_space<vmem>>, vector<1x128xf32>
    %70 = vector.broadcast %69 : vector<1x128xf32> to vector<16x128xf32>
    %71 = arith.addf %68, %70 : vector<16x128xf32>
    %72 = tpu.iota {dimensions = array<i32: 1>} : vector<16x128xi32>
    %c10_i32 = arith.constant 10 : i32
    %73 = vector.broadcast %c10_i32 : i32 to vector<16x128xi32>
    %74 = arith.cmpi slt, %72, %73 : vector<16x128xi32>
    %cst_24 = arith.constant -1.000000e+30 : f32
    %75 = vector.broadcast %cst_24 : f32 to vector<16x128xf32>
    %76 = arith.select %74, %71, %75 : vector<16x128xi1>, vector<16x128xf32>
    %cst_25 = arith.constant dense<0xFF800000> : vector<16xf32>
    %77 = vector.multi_reduction <maximumf>, %76, %cst_25 [1] : vector<16x128xf32> to vector<16xf32>
    %78 = vector.shape_cast %77 : vector<16xf32> to vector<16x1xf32>
    %79 = vector.broadcast %78 : vector<16x1xf32> to vector<16x128xf32>
    %80 = arith.subf %76, %79 : vector<16x128xf32>
    %81 = math.exp %80 : vector<16x128xf32>
    %cst_26 = arith.constant dense<0.000000e+00> : vector<16xf32>
    %82 = vector.multi_reduction <add>, %81, %cst_26 [1] : vector<16x128xf32> to vector<16xf32>
    %83 = vector.shape_cast %82 : vector<16xf32> to vector<16x1xf32>
    %84 = math.log %83 : vector<16x1xf32>
    %85 = vector.broadcast %84 : vector<16x1xf32> to vector<16x128xf32>
    %86 = arith.subf %80, %85 : vector<16x128xf32>
    %c0_27 = arith.constant 0 : index
    %c0_28 = arith.constant 0 : index
    %87 = vector.load %arg10[%c0_27, %c0_28] : memref<16x128xf32, #tpu.memory_space<vmem>>, vector<16x128xf32>
    tpu.vector_store %arg10[%c0_27, %c0_28], %86 {strides = array<i32>} : memref<16x128xf32, #tpu.memory_space<vmem>>, vector<16x128xf32>,
    return
  }
  func.func @transform_0(%arg0: i32) -> (i32, i32, i32) {
    %c0_i32 = arith.constant 0 : i32
    %c0_i32_0 = arith.constant 0 : i32
    %c0_i32_1 = arith.constant 0 : i32
    return %arg0, %c0_i32, %c0_i32_0 : i32, i32, i32
  }
  func.func @transform_1(%arg0: i32) -> (i32, i32) {
    %c0_i32 = arith.constant 0 : i32
    %c0_i32_0 = arith.constant 0 : i32
    %c0_i32_1 = arith.constant 0 : i32
    return %c0_i32, %c0_i32_0 : i32, i32
  }
  func.func @transform_2(%arg0: i32) -> (i32, i32) {
    %c0_i32 = arith.constant 0 : i32
    %c0_i32_0 = arith.constant 0 : i32
    %c0_i32_1 = arith.constant 0 : i32
    return %c0_i32, %c0_i32_0 : i32, i32
  }
  func.func @transform_3(%arg0: i32) -> (i32, i32) {
    %c0_i32 = arith.constant 0 : i32
    %c0_i32_0 = arith.constant 0 : i32
    %c0_i32_1 = arith.constant 0 : i32
    return %c0_i32, %c0_i32_0 : i32, i32
  }
  func.func @transform_4(%arg0: i32) -> (i32, i32) {
    %c0_i32 = arith.constant 0 : i32
    %c0_i32_0 = arith.constant 0 : i32
    %c0_i32_1 = arith.constant 0 : i32
    return %c0_i32, %c0_i32_0 : i32, i32
  }
  func.func @transform_5(%arg0: i32) -> (i32, i32) {
    %c0_i32 = arith.constant 0 : i32
    %c0_i32_0 = arith.constant 0 : i32
    %c0_i32_1 = arith.constant 0 : i32
    return %c0_i32, %c0_i32_0 : i32, i32
  }
  func.func @transform_6(%arg0: i32) -> (i32, i32) {
    %c0_i32 = arith.constant 0 : i32
    %c0_i32_0 = arith.constant 0 : i32
    %c0_i32_1 = arith.constant 0 : i32
    return %c0_i32, %c0_i32_0 : i32, i32
  }
  func.func @transform_7(%arg0: i32) -> (i32, i32) {
    %c0_i32 = arith.constant 0 : i32
    %c0_i32_0 = arith.constant 0 : i32
    %c0_i32_1 = arith.constant 0 : i32
    return %c0_i32, %c0_i32_0 : i32, i32
  }
  func.func @transform_8(%arg0: i32) -> (i32, i32) {
    %c0_i32 = arith.constant 0 : i32
    %c0_i32_0 = arith.constant 0 : i32
    %c0_i32_1 = arith.constant 0 : i32
    return %c0_i32, %c0_i32_0 : i32, i32
  }
  func.func @transform_9(%arg0: i32) -> (i32, i32) {
    %c0_i32 = arith.constant 0 : i32
    %c0_i32_0 = arith.constant 0 : i32
    return %arg0, %c0_i32 : i32, i32
  }
}

</mosaic_0001>

<llo_original>
// kernel: tile.13
$region0: #{tile.13}
  #allocation0 [shape = 's32[1]{0}', space=sflag, size = 0x4, scoped, tag = 'scoped memory for tile.13']
  %s0 = inlined_call_operand.vmem [shape: f32[16], index: 0, kind: input, shape index: {}]
  %s1 = inlined_call_operand.vmem [shape: f32[24,16], index: 1, kind: output, shape index: {}]
  // Predicated region
  $region2: #{tile.13} parent=0 // pred_check
    _
  $region3: #{tile.13} parent=0 // pred_check_branch
    %3 = sbr.rel (0) target = $region5
  $region4: #{tile.13} parent=0 // pred_region
    _
  $region5: #{tile.13} parent=0 // pred_fallthru
    _
  %v4 = vld [vmem:[%s0] ss:$0 sm:$0xff]
  %5 = vst [vmem:[%s1] sm:$0xff] %v4
  %s6 = scalar_lea.vmem %s1, 8
  %7 = vst [vmem:[%s6] sm:$0xff] %v4
  %s8 = scalar_lea.vmem %s1, 16
  %9 = vst [vmem:[%s8] sm:$0xff] %v4

// kernel: tile.14
$region0: #{tile.14}
  %s0 = inlined_call_operand.vmem [shape: f32[24,16], index: 0, kind: input, shape index: {}]
  %s1 = inlined_call_operand.hbm [shape: f32[1,384], index: 1, kind: output, shape index: {}]
  $region1: #{tile.14} parent=0
    #allocation0 [shape = 'u8[1536]{0}', space=vmem, size = 0x800, scoped, tag = 'operand span for operand 1']
    #allocation1 [shape = 's32[1]{0}', space=sflag, size = 0x4, scoped, tag = 'scoped memory for tile.14']
    #allocation2 [shape = 'u8[12288]{0}', space=vmem, size = 0x3000, scoped, tag = 'scoped mem for output reshape']
    %2 = vsyncpa [#allocation1], 0
    %v3 = vld [vmem:[%s0] ss:$8 sm:$0x7]
    %vm4 = vcmask 130048
    %5 = vst.msk [vmem:[#allocation2] ss:$8 sm:$0x7] %vm4, %v3
    %s6 = scalar_lea.vmem %s0, 7
    %v7 = vld [vmem:[%s6] ss:$8 sm:$0x7]
    %8 = vrot.lane.b32.xlu0 %v7, 112
    %v9 = vpop.permute.xlu0 %8
    %vm10 = vcmask 1048448
    %11 = vst.msk [vmem:[#allocation2] ss:$8 sm:$0x7] %vm10, %v9
    %s12 = scalar_lea.vmem %s0, 6
    %v13 = vld [vmem:[%s12] ss:$8 sm:$0x7]
    %14 = vrot.lane.b32.xlu0 %v13, 96
    %v15 = vpop.permute.xlu0 %14
    %vm16 = vcmask 917248
    %17 = vst.msk [vmem:[#allocation2] ss:$8 sm:$0x7] %vm16, %v15
    %s18 = scalar_lea.vmem %s0, 5
    %v19 = vld [vmem:[%s18] ss:$8 sm:$0x7]
    %20 = vrot.lane.b32.xlu0 %v19, 80
    %v21 = vpop.permute.xlu0 %20
    %vm22 = vcmask 786048
    %23 = vst.msk [vmem:[#allocation2] ss:$8 sm:$0x7] %vm22, %v21
    %s24 = scalar_lea.vmem %s0, 4
    %v25 = vld [vmem:[%s24] ss:$8 sm:$0x7]
    %26 = vrot.lane.b32.xlu0 %v25, 64
    %v27 = vpop.permute.xlu0 %26
    %vm28 = vcmask 654848
    %29 = vst.msk [vmem:[#allocation2] ss:$8 sm:$0x7] %vm28, %v27
    %s30 = scalar_lea.vmem %s0, 3
    %v31 = vld [vmem:[%s30] ss:$8 sm:$0x7]
    %32 = vrot.lane.b32.xlu0 %v31, 48
    %v33 = vpop.permute.xlu0 %32
    %vm34 = vcmask 523648
    %35 = vst.msk [vmem:[#allocation2] ss:$8 sm:$0x7] %vm34, %v33
    %s36 = scalar_lea.vmem %s0, 2
    %v37 = vld [vmem:[%s36] ss:$8 sm:$0x7]
    %38 = vrot.lane.b32.xlu0 %v37, 32
    %v39 = vpop.permute.xlu0 %38
    %vm40 = vcmask 392448
    %41 = vst.msk [vmem:[#allocation2] ss:$8 sm:$0x7] %vm40, %v39
    %s42 = scalar_lea.vmem %s0, 1
    %v43 = vld [vmem:[%s42] ss:$8 sm:$0x7]
    %44 = vrot.lane.b32.xlu0 %v43, 16
    %v45 = vpop.permute.xlu0 %44
    %vm46 = vcmask 261248
    %47 = vst.msk [vmem:[#allocation2] ss:$8 sm:$0x7] %vm46, %v45
    %s49 = ssub.s32 2, 1
    %v50 = vld [vmem:[#allocation2] sm:%s49]
    %s52 = ssub.s32 2, 1
    %53 = vst [vmem:[#allocation0] sm:%s52] %v50
    %s54 = scalar_lea.vmem [#allocation2], 8
    %v55 = vld [vmem:[%s54] sm:%s49]
    %s57 = ssub.s32 2, 1
    %s58 = scalar_lea.vmem [#allocation0], 1
    %59 = vst [vmem:[%s58] sm:%s57] %v55
    %s60 = scalar_lea.vmem [#allocation2], 16
    %v61 = vld [vmem:[%s60] sm:%s49]
    %s63 = ssub.s32 2, 1
    %s64 = scalar_lea.vmem [#allocation0], 2
    %65 = vst [vmem:[%s64] sm:%s63] %v61
    %67 = vsyncadd [#allocation1], 0
    %s69 = sshll.u32 [#allocation0], 4
    %s70 = int_to_ptr.vmem [resolvable:$true] %s69
    %s71 = sshll.u32 %s1, 4
    %s72 = int_to_ptr.hbm [resolvable:$true] %s71
    %74 = dma.vmem_to_hbm [thread:$0]  %s70, 48, %s72, [#allocation1]
    %76 = dma.done [#allocation1], 48
    %77 = vsyncpa [#allocation1], 1

// kernel: tile.18
$region0: #{tile.18}
  #allocation0 [shape = 's32[1]{0}', space=sflag, size = 0x4, scoped, tag = 'scoped memory for tile.18']
  %s0 = inlined_call_operand.vmem [shape: f32[32], index: 0, kind: input, shape index: {}]
  %s1 = inlined_call_operand.vmem [shape: f32[8,32], index: 1, kind: output, shape index: {}]
  // Predicated region
  $region2: #{tile.18} parent=0 // pred_check
    _
  $region3: #{tile.18} parent=0 // pred_check_branch
    %3 = sbr.rel (0) target = $region5
  $region4: #{tile.18} parent=0 // pred_region
    _
  $region5: #{tile.18} parent=0 // pred_fallthru
    _
  %v4 = vld [vmem:[%s0] ss:$0 sm:$0xff]
  %5 = vst [vmem:[%s1] sm:$0xff] %v4

// kernel: tile.19
$region0: #{tile.19}
  %s0 = inlined_call_operand.vmem [shape: f32[8,32], index: 0, kind: input, shape index: {}]
  %s1 = inlined_call_operand.vmem [shape: f32[1,256], index: 1, kind: output, shape index: {}]
  $region1: #{tile.19} parent=0
    #allocation0 [shape = 'u8[8192]{0}', space=vmem, size = 0x2000, scoped, tag = 'scoped mem for output reshape']
    %s2 = smov 3
    %v3 = vld [vmem:[%s0] ss:$4 sm:%s2]
    %vm4 = vcmask 261120
    %5 = vst.msk [vmem:[#allocation0] ss:$8 sm:$0x3] %vm4, %v3
    %s6 = scalar_lea.vmem %s0, 3
    %s7 = smov 3
    %v8 = vld [vmem:[%s6] ss:$4 sm:%s7]
    %9 = vrot.lane.b32.xlu0 %v8, 96
    %v10 = vpop.permute.xlu0 %9
    %vm11 = vcmask 1048320
    %12 = vst.msk [vmem:[#allocation0] ss:$8 sm:$0x3] %vm11, %v10
    %s13 = scalar_lea.vmem %s0, 2
    %s14 = smov 3
    %v15 = vld [vmem:[%s13] ss:$4 sm:%s14]
    %16 = vrot.lane.b32.xlu0 %v15, 64
    %v17 = vpop.permute.xlu0 %16
    %vm18 = vcmask 785920
    %19 = vst.msk [vmem:[#allocation0] ss:$8 sm:$0x3] %vm18, %v17
    %s20 = scalar_lea.vmem %s0, 1
    %s21 = smov 3
    %v22 = vld [vmem:[%s20] ss:$4 sm:%s21]
    %23 = vrot.lane.b32.xlu0 %v22, 32
    %v24 = vpop.permute.xlu0 %23
    %vm25 = vcmask 523520
    %26 = vst.msk [vmem:[#allocation0] ss:$8 sm:$0x3] %vm25, %v24
    %s28 = ssub.s32 2, 1
    %v29 = vld [vmem:[#allocation0] sm:%s28]
    %s31 = ssub.s32 2, 1
    %32 = vst [vmem:[%s1] sm:%s31] %v29
    %s33 = scalar_lea.vmem [#allocation0], 8
    %v34 = vld [vmem:[%s33] sm:%s28]
    %s36 = ssub.s32 2, 1
    %s37 = scalar_lea.vmem %s1, 1
    %38 = vst [vmem:[%s37] sm:%s36] %v34

// kernel: mnist_net_dropout_forward.1
$region0: #{mnist_net_dropout_forward.1}
  #allocation0 [shape = 'u32[]', space=smem, size = 0x4, offset = 0x4, fixed_abs, tag = 'smem constant byte address 0x4 - core index']
  #allocation1 [shape = 'u32[72,128]{1,0:T(1,128)}', space=vmem, size = 0x9000, scoped, tag = 'internal scratch']
  %s0 = inlined_call_operand.vmem [shape: f32[16,28,28], index: 0, kind: input, shape index: {}]
  %s1 = inlined_call_operand.vmem [shape: bf16[140,384], index: 1, kind: input, shape index: {}]
  %s2 = inlined_call_operand.vmem [shape: f32[1,384], index: 2, kind: input, shape index: {}]
  %s3 = inlined_call_operand.vmem [shape: bf16[1920,256], index: 3, kind: input, shape index: {}]
  %s4 = inlined_call_operand.vmem [shape: f32[1,256], index: 4, kind: input, shape index: {}]
  %s5 = inlined_call_operand.vmem [shape: bf16[1024,64], index: 5, kind: input, shape index: {}]
  %s6 = inlined_call_operand.vmem [shape: f32[1,64], index: 6, kind: input, shape index: {}]
  %s7 = inlined_call_operand.vmem [shape: bf16[64,128], index: 7, kind: input, shape index: {}]
  %s8 = inlined_call_operand.vmem [shape: f32[1,128], index: 8, kind: input, shape index: {}]
  %s9 = inlined_call_operand.vmem [shape: f32[16,128], index: 9, kind: output, shape index: {}]
  %s10 = sld [smem:[#allocation0]]
  $region46: #{mnist_net_dropout_forward.1} parent=0
    _
  %s12 = ssub.s32 1, %s10
  %s13 = scalar_select 0, %s12, %s10
  // Predicated region
  $region2: #{mnist_net_dropout_forward.1} parent=0 // pred_check
    _
  $region3: #{mnist_net_dropout_forward.1} parent=0 // pred_check_branch
    %15 = sbr.rel (0) target = $region5
  $region4: #{mnist_net_dropout_forward.1} parent=0 // pred_region
    _
  $region5: #{mnist_net_dropout_forward.1} parent=0 // pred_fallthru
    _
  // Predicated region
  $region6: #{mnist_net_dropout_forward.1} parent=0 // pred_check
    _
  $region7: #{mnist_net_dropout_forward.1} parent=0 // pred_check_branch
    %17 = sbr.rel (0) target = $region9
  $region8: #{mnist_net_dropout_forward.1} parent=0 // pred_region
    _
  $region9: #{mnist_net_dropout_forward.1} parent=0 // pred_fallthru
    _
  // Predicated region
  $region10: #{mnist_net_dropout_forward.1} parent=0 // pred_check
    _
  $region11: #{mnist_net_dropout_forward.1} parent=0 // pred_check_branch
    %19 = sbr.rel (0) target = $region13
  $region12: #{mnist_net_dropout_forward.1} parent=0 // pred_region
    _
  $region13: #{mnist_net_dropout_forward.1} parent=0 // pred_fallthru
    _
  // Predicated region
  $region14: #{mnist_net_dropout_forward.1} parent=0 // pred_check
    _
  $region15: #{mnist_net_dropout_forward.1} parent=0 // pred_check_branch
    %21 = sbr.rel (0) target = $region17
  $region16: #{mnist_net_dropout_forward.1} parent=0 // pred_region
    _
  $region17: #{mnist_net_dropout_forward.1} parent=0 // pred_fallthru
    _
  // Predicated region
  $region18: #{mnist_net_dropout_forward.1} parent=0 // pred_check
    _
  $region19: #{mnist_net_dropout_forward.1} parent=0 // pred_check_branch
    %23 = sbr.rel (0) target = $region21
  $region20: #{mnist_net_dropout_forward.1} parent=0 // pred_region
    _
  $region21: #{mnist_net_dropout_forward.1} parent=0 // pred_fallthru
    _
  // Predicated region
  $region22: #{mnist_net_dropout_forward.1} parent=0 // pred_check
    _
  $region23: #{mnist_net_dropout_forward.1} parent=0 // pred_check_branch
    %25 = sbr.rel (0) target = $region25
  $region24: #{mnist_net_dropout_forward.1} parent=0 // pred_region
    _
  $region25: #{mnist_net_dropout_forward.1} parent=0 // pred_fallthru
    _
  // Predicated region
  $region26: #{mnist_net_dropout_forward.1} parent=0 // pred_check
    _
  $region27: #{mnist_net_dropout_forward.1} parent=0 // pred_check_branch
    %27 = sbr.rel (0) target = $region29
  $region28: #{mnist_net_dropout_forward.1} parent=0 // pred_region
    _
  $region29: #{mnist_net_dropout_forward.1} parent=0 // pred_fallthru
    _
  // Predicated region
  $region30: #{mnist_net_dropout_forward.1} parent=0 // pred_check
    _
  $region31: #{mnist_net_dropout_forward.1} parent=0 // pred_check_branch
    %29 = sbr.rel (0) target = $region33
  $region32: #{mnist_net_dropout_forward.1} parent=0 // pred_region
    _
  $region33: #{mnist_net_dropout_forward.1} parent=0 // pred_fallthru
    _
  // Predicated region
  $region34: #{mnist_net_dropout_forward.1} parent=0 // pred_check
    _
  $region35: #{mnist_net_dropout_forward.1} parent=0 // pred_check_branch
    %31 = sbr.rel (0) target = $region37
  $region36: #{mnist_net_dropout_forward.1} parent=0 // pred_region
    _
  $region37: #{mnist_net_dropout_forward.1} parent=0 // pred_fallthru
    _
  %v33 = vld [vmem:[%s0] sm:$0xff]
  %v34 = vld [vmem:[%s0 + $0x8] sm:$0xff]
  %v35 = vld [vmem:[%s0 + $0x10] sm:$0xff]
  %v36 = vld [vmem:[%s0 + $0x18] sm:$0xf]
  %v37 = vld [vmem:[%s0 + $0x20] sm:$0xff]
  %v38 = vld [vmem:[%s0 + $0x28] sm:$0xff]
  %v39 = vld [vmem:[%s0 + $0x30] sm:$0xff]
  %v40 = vld [vmem:[%s0 + $0x38] sm:$0xf]
  %v41 = vld [vmem:[%s0 + $0x40] sm:$0xff]
  %v42 = vld [vmem:[%s0 + $0x48] sm:$0xff]
  %v43 = vld [vmem:[%s0 + $0x50] sm:$0xff]
  %v44 = vld [vmem:[%s0 + $0x58] sm:$0xf]
  %v45 = vld [vmem:[%s0 + $0x60] sm:$0xff]
  %v46 = vld [vmem:[%s0 + $0x68] sm:$0xff]
  %v47 = vld [vmem:[%s0 + $0x70] sm:$0xff]
  %v48 = vld [vmem:[%s0 + $0x78] sm:$0xf]
  %v49 = vld [vmem:[%s0 + $0x80] sm:$0xff]
  %v50 = vld [vmem:[%s0 + $0x88] sm:$0xff]
  %v51 = vld [vmem:[%s0 + $0x90] sm:$0xff]
  %v52 = vld [vmem:[%s0 + $0x98] sm:$0xf]
  %v53 = vld [vmem:[%s0 + $0xa0] sm:$0xff]
  %v54 = vld [vmem:[%s0 + $0xa8] sm:$0xff]
  %v55 = vld [vmem:[%s0 + $0xb0] sm:$0xff]
  %v56 = vld [vmem:[%s0 + $0xb8] sm:$0xf]
  %v57 = vld [vmem:[%s0 + $0xc0] sm:$0xff]
  %v58 = vld [vmem:[%s0 + $0xc8] sm:$0xff]
  %v59 = vld [vmem:[%s0 + $0xd0] sm:$0xff]
  %v60 = vld [vmem:[%s0 + $0xd8] sm:$0xf]
  %v61 = vld [vmem:[%s0 + $0xe0] sm:$0xff]
  %v62 = vld [vmem:[%s0 + $0xe8] sm:$0xff]
  %v63 = vld [vmem:[%s0 + $0xf0] sm:$0xff]
  %v64 = vld [vmem:[%s0 + $0xf8] sm:$0xf]
  %v65 = vld [vmem:[%s0 + $0x100] sm:$0xff]
  %v66 = vld [vmem:[%s0 + $0x108] sm:$0xff]
  %v67 = vld [vmem:[%s0 + $0x110] sm:$0xff]
  %v68 = vld [vmem:[%s0 + $0x118] sm:$0xf]
  %v69 = vld [vmem:[%s0 + $0x120] sm:$0xff]
  %v70 = vld [vmem:[%s0 + $0x128] sm:$0xff]
  %v71 = vld [vmem:[%s0 + $0x130] sm:$0xff]
  %v72 = vld [vmem:[%s0 + $0x138] sm:$0xf]
  %v73 = vld [vmem:[%s0 + $0x140] sm:$0xff]
  %v74 = vld [vmem:[%s0 + $0x148] sm:$0xff]
  %v75 = vld [vmem:[%s0 + $0x150] sm:$0xff]
  %v76 = vld [vmem:[%s0 + $0x158] sm:$0xf]
  %v77 = vld [vmem:[%s0 + $0x160] sm:$0xff]
  %v78 = vld [vmem:[%s0 + $0x168] sm:$0xff]
  %v79 = vld [vmem:[%s0 + $0x170] sm:$0xff]
  %v80 = vld [vmem:[%s0 + $0x178] sm:$0xf]
  %v81 = vld [vmem:[%s0 + $0x180] sm:$0xff]
  %v82 = vld [vmem:[%s0 + $0x188] sm:$0xff]
  %v83 = vld [vmem:[%s0 + $0x190] sm:$0xff]
  %v84 = vld [vmem:[%s0 + $0x198] sm:$0xf]
  %v85 = vld [vmem:[%s0 + $0x1a0] sm:$0xff]
  %v86 = vld [vmem:[%s0 + $0x1a8] sm:$0xff]
  %v87 = vld [vmem:[%s0 + $0x1b0] sm:$0xff]
  %v88 = vld [vmem:[%s0 + $0x1b8] sm:$0xf]
  %v89 = vld [vmem:[%s0 + $0x1c0] sm:$0xff]
  %v90 = vld [vmem:[%s0 + $0x1c8] sm:$0xff]
  %v91 = vld [vmem:[%s0 + $0x1d0] sm:$0xff]
  %v92 = vld [vmem:[%s0 + $0x1d8] sm:$0xf]
  %v93 = vld [vmem:[%s0 + $0x1e0] sm:$0xff]
  %v94 = vld [vmem:[%s0 + $0x1e8] sm:$0xff]
  %v95 = vld [vmem:[%s0 + $0x1f0] sm:$0xff]
  %v96 = vld [vmem:[%s0 + $0x1f8] sm:$0xf]
  %vm161 = vcmask 1046528
  %v162 = vrot.slane %v33, 1
  %v163 = vrot.slane %v34, 1
  %v164 = vsel %vm161, %v162, %v163
  %v165 = vrot.slane %v35, 1
  %v166 = vsel %vm161, %v163, %v165
  %v167 = vrot.slane %v36, 1
  %v168 = vsel %vm161, %v165, %v167
  %v169 = vrot.slane %v37, 1
  %v170 = vrot.slane %v38, 1
  %v171 = vsel %vm161, %v169, %v170
  %v172 = vrot.slane %v39, 1
  %v173 = vsel %vm161, %v170, %v172
  %v174 = vrot.slane %v40, 1
  %v175 = vsel %vm161, %v172, %v174
  %v176 = vrot.slane %v41, 1
  %v177 = vrot.slane %v42, 1
  %v178 = vsel %vm161, %v176, %v177
  %v179 = vrot.slane %v43, 1
  %v180 = vsel %vm161, %v177, %v179
  %v181 = vrot.slane %v44, 1
  %v182 = vsel %vm161, %v179, %v181
  %v183 = vrot.slane %v45, 1
  %v184 = vrot.slane %v46, 1
  %v185 = vsel %vm161, %v183, %v184
  %v186 = vrot.slane %v47, 1
  %v187 = vsel %vm161, %v184, %v186
  %v188 = vrot.slane %v48, 1
  %v189 = vsel %vm161, %v186, %v188
  %v190 = vrot.slane %v49, 1
  %v191 = vrot.slane %v50, 1
  %v192 = vsel %vm161, %v190, %v191
  %v193 = vrot.slane %v51, 1
  %v194 = vsel %vm161, %v191, %v193
  %v195 = vrot.slane %v52, 1
  %v196 = vsel %vm161, %v193, %v195
  %v197 = vrot.slane %v53, 1
  %v198 = vrot.slane %v54, 1
  %v199 = vsel %vm161, %v197, %v198
  %v200 = vrot.slane %v55, 1
  %v201 = vsel %vm161, %v198, %v200
  %v202 = vrot.slane %v56, 1
  %v203 = vsel %vm161, %v200, %v202
  %v204 = vrot.slane %v57, 1
  %v205 = vrot.slane %v58, 1
  %v206 = vsel %vm161, %v204, %v205
  %v207 = vrot.slane %v59, 1
  %v208 = vsel %vm161, %v205, %v207
  %v209 = vrot.slane %v60, 1
  %v210 = vsel %vm161, %v207, %v209
  %v211 = vrot.slane %v61, 1
  %v212 = vrot.slane %v62, 1
  %v213 = vsel %vm161, %v211, %v212
  %v214 = vrot.slane %v63, 1
  %v215 = vsel %vm161, %v212, %v214
  %v216 = vrot.slane %v64, 1
  %v217 = vsel %vm161, %v214, %v216
  %v218 = vrot.slane %v65, 1
  %v219 = vrot.slane %v66, 1
  %v220 = vsel %vm161, %v218, %v219
  %v221 = vrot.slane %v67, 1
  %v222 = vsel %vm161, %v219, %v221
  %v223 = vrot.slane %v68, 1
  %v224 = vsel %vm161, %v221, %v223
  %v225 = vrot.slane %v69, 1
  %v226 = vrot.slane %v70, 1
  %v227 = vsel %vm161, %v225, %v226
  %v228 = vrot.slane %v71, 1
  %v229 = vsel %vm161, %v226, %v228
  %v230 = vrot.slane %v72, 1
  %v231 = vsel %vm161, %v228, %v230
  %v232 = vrot.slane %v73, 1
  %v233 = vrot.slane %v74, 1
  %v234 = vsel %vm161, %v232, %v233
  %v235 = vrot.slane %v75, 1
  %v236 = vsel %vm161, %v233, %v235
  %v237 = vrot.slane %v76, 1
  %v238 = vsel %vm161, %v235, %v237
  %v239 = vrot.slane %v77, 1
  %v240 = vrot.slane %v78, 1
  %v241 = vsel %vm161, %v239, %v240
  %v242 = vrot.slane %v79, 1
  %v243 = vsel %vm161, %v240, %v242
  %v244 = vrot.slane %v80, 1
  %v245 = vsel %vm161, %v242, %v244
  %v246 = vrot.slane %v81, 1
  %v247 = vrot.slane %v82, 1
  %v248 = vsel %vm161, %v246, %v247
  %v249 = vrot.slane %v83, 1
  %v250 = vsel %vm161, %v247, %v249
  %v251 = vrot.slane %v84, 1
  %v252 = vsel %vm161, %v249, %v251
  %v253 = vrot.slane %v85, 1
  %v254 = vrot.slane %v86, 1
  %v255 = vsel %vm161, %v253, %v254
  %v256 = vrot.slane %v87, 1
  %v257 = vsel %vm161, %v254, %v256
  %v258 = vrot.slane %v88, 1
  %v259 = vsel %vm161, %v256, %v258
  %v260 = vrot.slane %v89, 1
  %v261 = vrot.slane %v90, 1
  %v262 = vsel %vm161, %v260, %v261
  %v263 = vrot.slane %v91, 1
  %v264 = vsel %vm161, %v261, %v263
  %v265 = vrot.slane %v92, 1
  %v266 = vsel %vm161, %v263, %v265
  %v267 = vrot.slane %v93, 1
  %v268 = vrot.slane %v94, 1
  %v269 = vsel %vm161, %v267, %v268
  %v270 = vrot.slane %v95, 1
  %v271 = vsel %vm161, %v268, %v270
  %v272 = vrot.slane %v96, 1
  %v273 = vsel %vm161, %v270, %v272
  %274 = vrot.lane.b32.xlu0 %v164, 28
  %v275 = vpop.permute.xlu0 %274
  %276 = vrot.lane.b32.xlu0 %v166, 28
  %v277 = vpop.permute.xlu0 %276
  %278 = vrot.lane.b32.xlu0 %v168, 28
  %v279 = vpop.permute.xlu0 %278
  %280 = vrot.lane.b32.xlu0 %v171, 28
  %v281 = vpop.permute.xlu0 %280
  %282 = vrot.lane.b32.xlu0 %v173, 28
  %v283 = vpop.permute.xlu0 %282
  %284 = vrot.lane.b32.xlu0 %v175, 28
  %v285 = vpop.permute.xlu0 %284
  %286 = vrot.lane.b32.xlu0 %v178, 28
  %v287 = vpop.permute.xlu0 %286
  %288 = vrot.lane.b32.xlu0 %v180, 28
  %v289 = vpop.permute.xlu0 %288
  %290 = vrot.lane.b32.xlu0 %v182, 28
  %v291 = vpop.permute.xlu0 %290
  %292 = vrot.lane.b32.xlu0 %v185, 28
  %v293 = vpop.permute.xlu0 %292
  %294 = vrot.lane.b32.xlu0 %v187, 28
  %v295 = vpop.permute.xlu0 %294
  %296 = vrot.lane.b32.xlu0 %v189, 28
  %v297 = vpop.permute.xlu0 %296
  %298 = vrot.lane.b32.xlu0 %v192, 28
  %v299 = vpop.permute.xlu0 %298
  %300 = vrot.lane.b32.xlu0 %v194, 28
  %v301 = vpop.permute.xlu0 %300
  %302 = vrot.lane.b32.xlu0 %v196, 28
  %v303 = vpop.permute.xlu0 %302
  %304 = vrot.lane.b32.xlu0 %v199, 28
  %v305 = vpop.permute.xlu0 %304
  %306 = vrot.lane.b32.xlu0 %v201, 28
  %v307 = vpop.permute.xlu0 %306
  %308 = vrot.lane.b32.xlu0 %v203, 28
  %v309 = vpop.permute.xlu0 %308
  %310 = vrot.lane.b32.xlu0 %v206, 28
  %v311 = vpop.permute.xlu0 %310
  %312 = vrot.lane.b32.xlu0 %v208, 28
  %v313 = vpop.permute.xlu0 %312
  %314 = vrot.lane.b32.xlu0 %v210, 28
  %v315 = vpop.permute.xlu0 %314
  %316 = vrot.lane.b32.xlu0 %v213, 28
  %v317 = vpop.permute.xlu0 %316
  %318 = vrot.lane.b32.xlu0 %v215, 28
  %v319 = vpop.permute.xlu0 %318
  %320 = vrot.lane.b32.xlu0 %v217, 28
  %v321 = vpop.permute.xlu0 %320
  %322 = vrot.lane.b32.xlu0 %v220, 28
  %v323 = vpop.permute.xlu0 %322
  %324 = vrot.lane.b32.xlu0 %v222, 28
  %v325 = vpop.permute.xlu0 %324
  %326 = vrot.lane.b32.xlu0 %v224, 28
  %v327 = vpop.permute.xlu0 %326
  %328 = vrot.lane.b32.xlu0 %v227, 28
  %v329 = vpop.permute.xlu0 %328
  %330 = vrot.lane.b32.xlu0 %v229, 28
  %v331 = vpop.permute.xlu0 %330
  %332 = vrot.lane.b32.xlu0 %v231, 28
  %v333 = vpop.permute.xlu0 %332
  %334 = vrot.lane.b32.xlu0 %v234, 28
  %v335 = vpop.permute.xlu0 %334
  %336 = vrot.lane.b32.xlu0 %v236, 28
  %v337 = vpop.permute.xlu0 %336
  %338 = vrot.lane.b32.xlu0 %v238, 28
  %v339 = vpop.permute.xlu0 %338
  %340 = vrot.lane.b32.xlu0 %v241, 28
  %v341 = vpop.permute.xlu0 %340
  %342 = vrot.lane.b32.xlu0 %v243, 28
  %v343 = vpop.permute.xlu0 %342
  %344 = vrot.lane.b32.xlu0 %v245, 28
  %v345 = vpop.permute.xlu0 %344
  %346 = vrot.lane.b32.xlu0 %v248, 28
  %v347 = vpop.permute.xlu0 %346
  %348 = vrot.lane.b32.xlu0 %v250, 28
  %v349 = vpop.permute.xlu0 %348
  %350 = vrot.lane.b32.xlu0 %v252, 28
  %v351 = vpop.permute.xlu0 %350
  %352 = vrot.lane.b32.xlu0 %v255, 28
  %v353 = vpop.permute.xlu0 %352
  %354 = vrot.lane.b32.xlu0 %v257, 28
  %v355 = vpop.permute.xlu0 %354
  %356 = vrot.lane.b32.xlu0 %v259, 28
  %v357 = vpop.permute.xlu0 %356
  %358 = vrot.lane.b32.xlu0 %v262, 28
  %v359 = vpop.permute.xlu0 %358
  %360 = vrot.lane.b32.xlu0 %v264, 28
  %v361 = vpop.permute.xlu0 %360
  %362 = vrot.lane.b32.xlu0 %v266, 28
  %v363 = vpop.permute.xlu0 %362
  %364 = vrot.lane.b32.xlu0 %v269, 28
  %v365 = vpop.permute.xlu0 %364
  %366 = vrot.lane.b32.xlu0 %v271, 28
  %v367 = vpop.permute.xlu0 %366
  %368 = vrot.lane.b32.xlu0 %v273, 28
  %v369 = vpop.permute.xlu0 %368
  %vm418 = vcmask 1045504
  %v419 = vrot.slane %v33, 2
  %v420 = vrot.slane %v34, 2
  %v421 = vsel %vm418, %v419, %v420
  %v422 = vrot.slane %v35, 2
  %v423 = vsel %vm418, %v420, %v422
  %v424 = vrot.slane %v36, 2
  %v425 = vsel %vm418, %v422, %v424
  %v426 = vrot.slane %v37, 2
  %v427 = vrot.slane %v38, 2
  %v428 = vsel %vm418, %v426, %v427
  %v429 = vrot.slane %v39, 2
  %v430 = vsel %vm418, %v427, %v429
  %v431 = vrot.slane %v40, 2
  %v432 = vsel %vm418, %v429, %v431
  %v433 = vrot.slane %v41, 2
  %v434 = vrot.slane %v42, 2
  %v435 = vsel %vm418, %v433, %v434
  %v436 = vrot.slane %v43, 2
  %v437 = vsel %vm418, %v434, %v436
  %v438 = vrot.slane %v44, 2
  %v439 = vsel %vm418, %v436, %v438
  %v440 = vrot.slane %v45, 2
  %v441 = vrot.slane %v46, 2
  %v442 = vsel %vm418, %v440, %v441
  %v443 = vrot.slane %v47, 2
  %v444 = vsel %vm418, %v441, %v443
  %v445 = vrot.slane %v48, 2
  %v446 = vsel %vm418, %v443, %v445
  %v447 = vrot.slane %v49, 2
  %v448 = vrot.slane %v50, 2
  %v449 = vsel %vm418, %v447, %v448
  %v450 = vrot.slane %v51, 2
  %v451 = vsel %vm418, %v448, %v450
  %v452 = vrot.slane %v52, 2
  %v453 = vsel %vm418, %v450, %v452
  %v454 = vrot.slane %v53, 2
  %v455 = vrot.slane %v54, 2
  %v456 = vsel %vm418, %v454, %v455
  %v457 = vrot.slane %v55, 2
  %v458 = vsel %vm418, %v455, %v457
  %v459 = vrot.slane %v56, 2
  %v460 = vsel %vm418, %v457, %v459
  %v461 = vrot.slane %v57, 2
  %v462 = vrot.slane %v58, 2
  %v463 = vsel %vm418, %v461, %v462
  %v464 = vrot.slane %v59, 2
  %v465 = vsel %vm418, %v462, %v464
  %v466 = vrot.slane %v60, 2
  %v467 = vsel %vm418, %v464, %v466
  %v468 = vrot.slane %v61, 2
  %v469 = vrot.slane %v62, 2
  %v470 = vsel %vm418, %v468, %v469
  %v471 = vrot.slane %v63, 2
  %v472 = vsel %vm418, %v469, %v471
  %v473 = vrot.slane %v64, 2
  %v474 = vsel %vm418, %v471, %v473
  %v475 = vrot.slane %v65, 2
  %v476 = vrot.slane %v66, 2
  %v477 = vsel %vm418, %v475, %v476
  %v478 = vrot.slane %v67, 2
  %v479 = vsel %vm418, %v476, %v478
  %v480 = vrot.slane %v68, 2
  %v481 = vsel %vm418, %v478, %v480
  %v482 = vrot.slane %v69, 2
  %v483 = vrot.slane %v70, 2
  %v484 = vsel %vm418, %v482, %v483
  %v485 = vrot.slane %v71, 2
  %v486 = vsel %vm418, %v483, %v485
  %v487 = vrot.slane %v72, 2
  %v488 = vsel %vm418, %v485, %v487
  %v489 = vrot.slane %v73, 2
  %v490 = vrot.slane %v74, 2
  %v491 = vsel %vm418, %v489, %v490
  %v492 = vrot.slane %v75, 2
  %v493 = vsel %vm418, %v490, %v492
  %v494 = vrot.slane %v76, 2
  %v495 = vsel %vm418, %v492, %v494
  %v496 = vrot.slane %v77, 2
  %v497 = vrot.slane %v78, 2
  %v498 = vsel %vm418, %v496, %v497
  %v499 = vrot.slane %v79, 2
  %v500 = vsel %vm418, %v497, %v499
  %v501 = vrot.slane %v80, 2
  %v502 = vsel %vm418, %v499, %v501
  %v503 = vrot.slane %v81, 2
  %v504 = vrot.slane %v82, 2
  %v505 = vsel %vm418, %v503, %v504
  %v506 = vrot.slane %v83, 2
  %v507 = vsel %vm418, %v504, %v506
  %v508 = vrot.slane %v84, 2
  %v509 = vsel %vm418, %v506, %v508
  %v510 = vrot.slane %v85, 2
  %v511 = vrot.slane %v86, 2
  %v512 = vsel %vm418, %v510, %v511
  %v513 = vrot.slane %v87, 2
  %v514 = vsel %vm418, %v511, %v513
  %v515 = vrot.slane %v88, 2
  %v516 = vsel %vm418, %v513, %v515
  %v517 = vrot.slane %v89, 2
  %v518 = vrot.slane %v90, 2
  %v519 = vsel %vm418, %v517, %v518
  %v520 = vrot.slane %v91, 2
  %v521 = vsel %vm418, %v518, %v520
  %v522 = vrot.slane %v92, 2
  %v523 = vsel %vm418, %v520, %v522
  %v524 = vrot.slane %v93, 2
  %v525 = vrot.slane %v94, 2
  %v526 = vsel %vm418, %v524, %v525
  %v527 = vrot.slane %v95, 2
  %v528 = vsel %vm418, %v525, %v527
  %v529 = vrot.slane %v96, 2
  %v530 = vsel %vm418, %v527, %v529
  %531 = vrot.lane.b32.xlu0 %v421, 56
  %v532 = vpop.permute.xlu0 %531
  %533 = vrot.lane.b32.xlu0 %v423, 56
  %v534 = vpop.permute.xlu0 %533
  %535 = vrot.lane.b32.xlu0 %v425, 56
  %v536 = vpop.permute.xlu0 %535
  %537 = vrot.lane.b32.xlu0 %v428, 56
  %v538 = vpop.permute.xlu0 %537
  %539 = vrot.lane.b32.xlu0 %v430, 56
  %v540 = vpop.permute.xlu0 %539
  %541 = vrot.lane.b32.xlu0 %v432, 56
  %v542 = vpop.permute.xlu0 %541
  %543 = vrot.lane.b32.xlu0 %v435, 56
  %v544 = vpop.permute.xlu0 %543
  %545 = vrot.lane.b32.xlu0 %v437, 56
  %v546 = vpop.permute.xlu0 %545
  %547 = vrot.lane.b32.xlu0 %v439, 56
  %v548 = vpop.permute.xlu0 %547
  %549 = vrot.lane.b32.xlu0 %v442, 56
  %v550 = vpop.permute.xlu0 %549
  %551 = vrot.lane.b32.xlu0 %v444, 56
  %v552 = vpop.permute.xlu0 %551
  %553 = vrot.lane.b32.xlu0 %v446, 56
  %v554 = vpop.permute.xlu0 %553
  %555 = vrot.lane.b32.xlu0 %v449, 56
  %v556 = vpop.permute.xlu0 %555
  %557 = vrot.lane.b32.xlu0 %v451, 56
  %v558 = vpop.permute.xlu0 %557
  %559 = vrot.lane.b32.xlu0 %v453, 56
  %v560 = vpop.permute.xlu0 %559
  %561 = vrot.lane.b32.xlu0 %v456, 56
  %v562 = vpop.permute.xlu0 %561
  %563 = vrot.lane.b32.xlu0 %v458, 56
  %v564 = vpop.permute.xlu0 %563
  %565 = vrot.lane.b32.xlu0 %v460, 56
  %v566 = vpop.permute.xlu0 %565
  %567 = vrot.lane.b32.xlu0 %v463, 56
  %v568 = vpop.permute.xlu0 %567
  %569 = vrot.lane.b32.xlu0 %v465, 56
  %v570 = vpop.permute.xlu0 %569
  %571 = vrot.lane.b32.xlu0 %v467, 56
  %v572 = vpop.permute.xlu0 %571
  %573 = vrot.lane.b32.xlu0 %v470, 56
  %v574 = vpop.permute.xlu0 %573
  %575 = vrot.lane.b32.xlu0 %v472, 56
  %v576 = vpop.permute.xlu0 %575
  %577 = vrot.lane.b32.xlu0 %v474, 56
  %v578 = vpop.permute.xlu0 %577
  %579 = vrot.lane.b32.xlu0 %v477, 56
  %v580 = vpop.permute.xlu0 %579
  %581 = vrot.lane.b32.xlu0 %v479, 56
  %v582 = vpop.permute.xlu0 %581
  %583 = vrot.lane.b32.xlu0 %v481, 56
  %v584 = vpop.permute.xlu0 %583
  %585 = vrot.lane.b32.xlu0 %v484, 56
  %v586 = vpop.permute.xlu0 %585
  %587 = vrot.lane.b32.xlu0 %v486, 56
  %v588 = vpop.permute.xlu0 %587
  %589 = vrot.lane.b32.xlu0 %v488, 56
  %v590 = vpop.permute.xlu0 %589
  %591 = vrot.lane.b32.xlu0 %v491, 56
  %v592 = vpop.permute.xlu0 %591
  %593 = vrot.lane.b32.xlu0 %v493, 56
  %v594 = vpop.permute.xlu0 %593
  %595 = vrot.lane.b32.xlu0 %v495, 56
  %v596 = vpop.permute.xlu0 %595
  %597 = vrot.lane.b32.xlu0 %v498, 56
  %v598 = vpop.permute.xlu0 %597
  %599 = vrot.lane.b32.xlu0 %v500, 56
  %v600 = vpop.permute.xlu0 %599
  %601 = vrot.lane.b32.xlu0 %v502, 56
  %v602 = vpop.permute.xlu0 %601
  %603 = vrot.lane.b32.xlu0 %v505, 56
  %v604 = vpop.permute.xlu0 %603
  %605 = vrot.lane.b32.xlu0 %v507, 56
  %v606 = vpop.permute.xlu0 %605
  %607 = vrot.lane.b32.xlu0 %v509, 56
  %v608 = vpop.permute.xlu0 %607
  %609 = vrot.lane.b32.xlu0 %v512, 56
  %v610 = vpop.permute.xlu0 %609
  %611 = vrot.lane.b32.xlu0 %v514, 56
  %v612 = vpop.permute.xlu0 %611
  %613 = vrot.lane.b32.xlu0 %v516, 56
  %v614 = vpop.permute.xlu0 %613
  %615 = vrot.lane.b32.xlu0 %v519, 56
  %v616 = vpop.permute.xlu0 %615
  %617 = vrot.lane.b32.xlu0 %v521, 56
  %v618 = vpop.permute.xlu0 %617
  %619 = vrot.lane.b32.xlu0 %v523, 56
  %v620 = vpop.permute.xlu0 %619
  %621 = vrot.lane.b32.xlu0 %v526, 56
  %v622 = vpop.permute.xlu0 %621
  %623 = vrot.lane.b32.xlu0 %v528, 56
  %v624 = vpop.permute.xlu0 %623
  %625 = vrot.lane.b32.xlu0 %v530, 56
  %v626 = vpop.permute.xlu0 %625
  %vm675 = vcmask 1044480
  %v676 = vrot.slane %v33, 3
  %v677 = vrot.slane %v34, 3
  %v678 = vsel %vm675, %v676, %v677
  %v679 = vrot.slane %v35, 3
  %v680 = vsel %vm675, %v677, %v679
  %v681 = vrot.slane %v36, 3
  %v682 = vsel %vm675, %v679, %v681
  %v683 = vrot.slane %v37, 3
  %v684 = vrot.slane %v38, 3
  %v685 = vsel %vm675, %v683, %v684
  %v686 = vrot.slane %v39, 3
  %v687 = vsel %vm675, %v684, %v686
  %v688 = vrot.slane %v40, 3
  %v689 = vsel %vm675, %v686, %v688
  %v690 = vrot.slane %v41, 3
  %v691 = vrot.slane %v42, 3
  %v692 = vsel %vm675, %v690, %v691
  %v693 = vrot.slane %v43, 3
  %v694 = vsel %vm675, %v691, %v693
  %v695 = vrot.slane %v44, 3
  %v696 = vsel %vm675, %v693, %v695
  %v697 = vrot.slane %v45, 3
  %v698 = vrot.slane %v46, 3
  %v699 = vsel %vm675, %v697, %v698
  %v700 = vrot.slane %v47, 3
  %v701 = vsel %vm675, %v698, %v700
  %v702 = vrot.slane %v48, 3
  %v703 = vsel %vm675, %v700, %v702
  %v704 = vrot.slane %v49, 3
  %v705 = vrot.slane %v50, 3
  %v706 = vsel %vm675, %v704, %v705
  %v707 = vrot.slane %v51, 3
  %v708 = vsel %vm675, %v705, %v707
  %v709 = vrot.slane %v52, 3
  %v710 = vsel %vm675, %v707, %v709
  %v711 = vrot.slane %v53, 3
  %v712 = vrot.slane %v54, 3
  %v713 = vsel %vm675, %v711, %v712
  %v714 = vrot.slane %v55, 3
  %v715 = vsel %vm675, %v712, %v714
  %v716 = vrot.slane %v56, 3
  %v717 = vsel %vm675, %v714, %v716
  %v718 = vrot.slane %v57, 3
  %v719 = vrot.slane %v58, 3
  %v720 = vsel %vm675, %v718, %v719
  %v721 = vrot.slane %v59, 3
  %v722 = vsel %vm675, %v719, %v721
  %v723 = vrot.slane %v60, 3
  %v724 = vsel %vm675, %v721, %v723
  %v725 = vrot.slane %v61, 3
  %v726 = vrot.slane %v62, 3
  %v727 = vsel %vm675, %v725, %v726
  %v728 = vrot.slane %v63, 3
  %v729 = vsel %vm675, %v726, %v728
  %v730 = vrot.slane %v64, 3
  %v731 = vsel %vm675, %v728, %v730
  %v732 = vrot.slane %v65, 3
  %v733 = vrot.slane %v66, 3
  %v734 = vsel %vm675, %v732, %v733
  %v735 = vrot.slane %v67, 3
  %v736 = vsel %vm675, %v733, %v735
  %v737 = vrot.slane %v68, 3
  %v738 = vsel %vm675, %v735, %v737
  %v739 = vrot.slane %v69, 3
  %v740 = vrot.slane %v70, 3
  %v741 = vsel %vm675, %v739, %v740
  %v742 = vrot.slane %v71, 3
  %v743 = vsel %vm675, %v740, %v742
  %v744 = vrot.slane %v72, 3
  %v745 = vsel %vm675, %v742, %v744
  %v746 = vrot.slane %v73, 3
  %v747 = vrot.slane %v74, 3
  %v748 = vsel %vm675, %v746, %v747
  %v749 = vrot.slane %v75, 3
  %v750 = vsel %vm675, %v747, %v749
  %v751 = vrot.slane %v76, 3
  %v752 = vsel %vm675, %v749, %v751
  %v753 = vrot.slane %v77, 3
  %v754 = vrot.slane %v78, 3
  %v755 = vsel %vm675, %v753, %v754
  %v756 = vrot.slane %v79, 3
  %v757 = vsel %vm675, %v754, %v756
  %v758 = vrot.slane %v80, 3
  %v759 = vsel %vm675, %v756, %v758
  %v760 = vrot.slane %v81, 3
  %v761 = vrot.slane %v82, 3
  %v762 = vsel %vm675, %v760, %v761
  %v763 = vrot.slane %v83, 3
  %v764 = vsel %vm675, %v761, %v763
  %v765 = vrot.slane %v84, 3
  %v766 = vsel %vm675, %v763, %v765
  %v767 = vrot.slane %v85, 3
  %v768 = vrot.slane %v86, 3
  %v769 = vsel %vm675, %v767, %v768
  %v770 = vrot.slane %v87, 3
  %v771 = vsel %vm675, %v768, %v770
  %v772 = vrot.slane %v88, 3
  %v773 = vsel %vm675, %v770, %v772
  %v774 = vrot.slane %v89, 3
  %v775 = vrot.slane %v90, 3
  %v776 = vsel %vm675, %v774, %v775
  %v777 = vrot.slane %v91, 3
  %v778 = vsel %vm675, %v775, %v777
  %v779 = vrot.slane %v92, 3
  %v780 = vsel %vm675, %v777, %v779
  %v781 = vrot.slane %v93, 3
  %v782 = vrot.slane %v94, 3
  %v783 = vsel %vm675, %v781, %v782
  %v784 = vrot.slane %v95, 3
  %v785 = vsel %vm675, %v782, %v784
  %v786 = vrot.slane %v96, 3
  %v787 = vsel %vm675, %v784, %v786
  %788 = vrot.lane.b32.xlu0 %v678, 84
  %v789 = vpop.permute.xlu0 %788
  %790 = vrot.lane.b32.xlu0 %v680, 84
  %v791 = vpop.permute.xlu0 %790
  %792 = vrot.lane.b32.xlu0 %v682, 84
  %v793 = vpop.permute.xlu0 %792
  %794 = vrot.lane.b32.xlu0 %v685, 84
  %v795 = vpop.permute.xlu0 %794
  %796 = vrot.lane.b32.xlu0 %v687, 84
  %v797 = vpop.permute.xlu0 %796
  %798 = vrot.lane.b32.xlu0 %v689, 84
  %v799 = vpop.permute.xlu0 %798
  %800 = vrot.lane.b32.xlu0 %v692, 84
  %v801 = vpop.permute.xlu0 %800
  %802 = vrot.lane.b32.xlu0 %v694, 84
  %v803 = vpop.permute.xlu0 %802
  %804 = vrot.lane.b32.xlu0 %v696, 84
  %v805 = vpop.permute.xlu0 %804
  %806 = vrot.lane.b32.xlu0 %v699, 84
  %v807 = vpop.permute.xlu0 %806
  %808 = vrot.lane.b32.xlu0 %v701, 84
  %v809 = vpop.permute.xlu0 %808
  %810 = vrot.lane.b32.xlu0 %v703, 84
  %v811 = vpop.permute.xlu0 %810
  %812 = vrot.lane.b32.xlu0 %v706, 84
  %v813 = vpop.permute.xlu0 %812
  %814 = vrot.lane.b32.xlu0 %v708, 84
  %v815 = vpop.permute.xlu0 %814
  %816 = vrot.lane.b32.xlu0 %v710, 84
  %v817 = vpop.permute.xlu0 %816
  %818 = vrot.lane.b32.xlu0 %v713, 84
  %v819 = vpop.permute.xlu0 %818
  %820 = vrot.lane.b32.xlu0 %v715, 84
  %v821 = vpop.permute.xlu0 %820
  %822 = vrot.lane.b32.xlu0 %v717, 84
  %v823 = vpop.permute.xlu0 %822
  %824 = vrot.lane.b32.xlu0 %v720, 84
  %v825 = vpop.permute.xlu0 %824
  %826 = vrot.lane.b32.xlu0 %v722, 84
  %v827 = vpop.permute.xlu0 %826
  %828 = vrot.lane.b32.xlu0 %v724, 84
  %v829 = vpop.permute.xlu0 %828
  %830 = vrot.lane.b32.xlu0 %v727, 84
  %v831 = vpop.permute.xlu0 %830
  %832 = vrot.lane.b32.xlu0 %v729, 84
  %v833 = vpop.permute.xlu0 %832
  %834 = vrot.lane.b32.xlu0 %v731, 84
  %v835 = vpop.permute.xlu0 %834
  %836 = vrot.lane.b32.xlu0 %v734, 84
  %v837 = vpop.permute.xlu0 %836
  %838 = vrot.lane.b32.xlu0 %v736, 84
  %v839 = vpop.permute.xlu0 %838
  %840 = vrot.lane.b32.xlu0 %v738, 84
  %v841 = vpop.permute.xlu0 %840
  %842 = vrot.lane.b32.xlu0 %v741, 84
  %v843 = vpop.permute.xlu0 %842
  %844 = vrot.lane.b32.xlu0 %v743, 84
  %v845 = vpop.permute.xlu0 %844
  %846 = vrot.lane.b32.xlu0 %v745, 84
  %v847 = vpop.permute.xlu0 %846
  %848 = vrot.lane.b32.xlu0 %v748, 84
  %v849 = vpop.permute.xlu0 %848
  %850 = vrot.lane.b32.xlu0 %v750, 84
  %v851 = vpop.permute.xlu0 %850
  %852 = vrot.lane.b32.xlu0 %v752, 84
  %v853 = vpop.permute.xlu0 %852
  %854 = vrot.lane.b32.xlu0 %v755, 84
  %v855 = vpop.permute.xlu0 %854
  %856 = vrot.lane.b32.xlu0 %v757, 84
  %v857 = vpop.permute.xlu0 %856
  %858 = vrot.lane.b32.xlu0 %v759, 84
  %v859 = vpop.permute.xlu0 %858
  %860 = vrot.lane.b32.xlu0 %v762, 84
  %v861 = vpop.permute.xlu0 %860
  %862 = vrot.lane.b32.xlu0 %v764, 84
  %v863 = vpop.permute.xlu0 %862
  %864 = vrot.lane.b32.xlu0 %v766, 84
  %v865 = vpop.permute.xlu0 %864
  %866 = vrot.lane.b32.xlu0 %v769, 84
  %v867 = vpop.permute.xlu0 %866
  %868 = vrot.lane.b32.xlu0 %v771, 84
  %v869 = vpop.permute.xlu0 %868
  %870 = vrot.lane.b32.xlu0 %v773, 84
  %v871 = vpop.permute.xlu0 %870
  %872 = vrot.lane.b32.xlu0 %v776, 84
  %v873 = vpop.permute.xlu0 %872
  %874 = vrot.lane.b32.xlu0 %v778, 84
  %v875 = vpop.permute.xlu0 %874
  %876 = vrot.lane.b32.xlu0 %v780, 84
  %v877 = vpop.permute.xlu0 %876
  %878 = vrot.lane.b32.xlu0 %v783, 84
  %v879 = vpop.permute.xlu0 %878
  %880 = vrot.lane.b32.xlu0 %v785, 84
  %v881 = vpop.permute.xlu0 %880
  %882 = vrot.lane.b32.xlu0 %v787, 84
  %v883 = vpop.permute.xlu0 %882
  %vm932 = vcmask 1043456
  %v933 = vrot.slane %v33, 4
  %v934 = vrot.slane %v34, 4
  %v935 = vsel %vm932, %v933, %v934
  %v936 = vrot.slane %v35, 4
  %v937 = vsel %vm932, %v934, %v936
  %v938 = vrot.slane %v36, 4
  %v939 = vsel %vm932, %v936, %v938
  %v940 = vrot.slane %v37, 4
  %v941 = vrot.slane %v38, 4
  %v942 = vsel %vm932, %v940, %v941
  %v943 = vrot.slane %v39, 4
  %v944 = vsel %vm932, %v941, %v943
  %v945 = vrot.slane %v40, 4
  %v946 = vsel %vm932, %v943, %v945
  %v947 = vrot.slane %v41, 4
  %v948 = vrot.slane %v42, 4
  %v949 = vsel %vm932, %v947, %v948
  %v950 = vrot.slane %v43, 4
  %v951 = vsel %vm932, %v948, %v950
  %v952 = vrot.slane %v44, 4
  %v953 = vsel %vm932, %v950, %v952
  %v954 = vrot.slane %v45, 4
  %v955 = vrot.slane %v46, 4
  %v956 = vsel %vm932, %v954, %v955
  %v957 = vrot.slane %v47, 4
  %v958 = vsel %vm932, %v955, %v957
  %v959 = vrot.slane %v48, 4
  %v960 = vsel %vm932, %v957, %v959
  %v961 = vrot.slane %v49, 4
  %v962 = vrot.slane %v50, 4
  %v963 = vsel %vm932, %v961, %v962
  %v964 = vrot.slane %v51, 4
  %v965 = vsel %vm932, %v962, %v964
  %v966 = vrot.slane %v52, 4
  %v967 = vsel %vm932, %v964, %v966
  %v968 = vrot.slane %v53, 4
  %v969 = vrot.slane %v54, 4
  %v970 = vsel %vm932, %v968, %v969
  %v971 = vrot.slane %v55, 4
  %v972 = vsel %vm932, %v969, %v971
  %v973 = vrot.slane %v56, 4
  %v974 = vsel %vm932, %v971, %v973
  %v975 = vrot.slane %v57, 4
  %v976 = vrot.slane %v58, 4
  %v977 = vsel %vm932, %v975, %v976
  %v978 = vrot.slane %v59, 4
  %v979 = vsel %vm932, %v976, %v978
  %v980 = vrot.slane %v60, 4
  %v981 = vsel %vm932, %v978, %v980
  %v982 = vrot.slane %v61, 4
  %v983 = vrot.slane %v62, 4
  %v984 = vsel %vm932, %v982, %v983
  %v985 = vrot.slane %v63, 4
  %v986 = vsel %vm932, %v983, %v985
  %v987 = vrot.slane %v64, 4
  %v988 = vsel %vm932, %v985, %v987
  %v989 = vrot.slane %v65, 4
  %v990 = vrot.slane %v66, 4
  %v991 = vsel %vm932, %v989, %v990
  %v992 = vrot.slane %v67, 4
  %v993 = vsel %vm932, %v990, %v992
  %v994 = vrot.slane %v68, 4
  %v995 = vsel %vm932, %v992, %v994
  %v996 = vrot.slane %v69, 4
  %v997 = vrot.slane %v70, 4
  %v998 = vsel %vm932, %v996, %v997
  %v999 = vrot.slane %v71, 4
  %v1000 = vsel %vm932, %v997, %v999
  %v1001 = vrot.slane %v72, 4
  %v1002 = vsel %vm932, %v999, %v1001
  %v1003 = vrot.slane %v73, 4
  %v1004 = vrot.slane %v74, 4
  %v1005 = vsel %vm932, %v1003, %v1004
  %v1006 = vrot.slane %v75, 4
  %v1007 = vsel %vm932, %v1004, %v1006
  %v1008 = vrot.slane %v76, 4
  %v1009 = vsel %vm932, %v1006, %v1008
  %v1010 = vrot.slane %v77, 4
  %v1011 = vrot.slane %v78, 4
  %v1012 = vsel %vm932, %v1010, %v1011
  %v1013 = vrot.slane %v79, 4
  %v1014 = vsel %vm932, %v1011, %v1013
  %v1015 = vrot.slane %v80, 4
  %v1016 = vsel %vm932, %v1013, %v1015
  %v1017 = vrot.slane %v81, 4
  %v1018 = vrot.slane %v82, 4
  %v1019 = vsel %vm932, %v1017, %v1018
  %v1020 = vrot.slane %v83, 4
  %v1021 = vsel %vm932, %v1018, %v1020
  %v1022 = vrot.slane %v84, 4
  %v1023 = vsel %vm932, %v1020, %v1022
  %v1024 = vrot.slane %v85, 4
  %v1025 = vrot.slane %v86, 4
  %v1026 = vsel %vm932, %v1024, %v1025
  %v1027 = vrot.slane %v87, 4
  %v1028 = vsel %vm932, %v1025, %v1027
  %v1029 = vrot.slane %v88, 4
  %v1030 = vsel %vm932, %v1027, %v1029
  %v1031 = vrot.slane %v89, 4
  %v1032 = vrot.slane %v90, 4
  %v1033 = vsel %vm932, %v1031, %v1032
  %v1034 = vrot.slane %v91, 4
  %v1035 = vsel %vm932, %v1032, %v1034
  %v1036 = vrot.slane %v92, 4
  %v1037 = vsel %vm932, %v1034, %v1036
  %v1038 = vrot.slane %v93, 4
  %v1039 = vrot.slane %v94, 4
  %v1040 = vsel %vm932, %v1038, %v1039
  %v1041 = vrot.slane %v95, 4
  %v1042 = vsel %vm932, %v1039, %v1041
  %v1043 = vrot.slane %v96, 4
  %v1044 = vsel %vm932, %v1041, %v1043
  %1045 = vrot.lane.b32.xlu0 %v935, 112
  %v1046 = vpop.permute.xlu0 %1045
  %1047 = vrot.lane.b32.xlu0 %v937, 112
  %v1048 = vpop.permute.xlu0 %1047
  %1049 = vrot.lane.b32.xlu0 %v939, 112
  %v1050 = vpop.permute.xlu0 %1049
  %1051 = vrot.lane.b32.xlu0 %v942, 112
  %v1052 = vpop.permute.xlu0 %1051
  %1053 = vrot.lane.b32.xlu0 %v944, 112
  %v1054 = vpop.permute.xlu0 %1053
  %1055 = vrot.lane.b32.xlu0 %v946, 112
  %v1056 = vpop.permute.xlu0 %1055
  %1057 = vrot.lane.b32.xlu0 %v949, 112
  %v1058 = vpop.permute.xlu0 %1057
  %1059 = vrot.lane.b32.xlu0 %v951, 112
  %v1060 = vpop.permute.xlu0 %1059
  %1061 = vrot.lane.b32.xlu0 %v953, 112
  %v1062 = vpop.permute.xlu0 %1061
  %1063 = vrot.lane.b32.xlu0 %v956, 112
  %v1064 = vpop.permute.xlu0 %1063
  %1065 = vrot.lane.b32.xlu0 %v958, 112
  %v1066 = vpop.permute.xlu0 %1065
  %1067 = vrot.lane.b32.xlu0 %v960, 112
  %v1068 = vpop.permute.xlu0 %1067
  %1069 = vrot.lane.b32.xlu0 %v963, 112
  %v1070 = vpop.permute.xlu0 %1069
  %1071 = vrot.lane.b32.xlu0 %v965, 112
  %v1072 = vpop.permute.xlu0 %1071
  %1073 = vrot.lane.b32.xlu0 %v967, 112
  %v1074 = vpop.permute.xlu0 %1073
  %1075 = vrot.lane.b32.xlu0 %v970, 112
  %v1076 = vpop.permute.xlu0 %1075
  %1077 = vrot.lane.b32.xlu0 %v972, 112
  %v1078 = vpop.permute.xlu0 %1077
  %1079 = vrot.lane.b32.xlu0 %v974, 112
  %v1080 = vpop.permute.xlu0 %1079
  %1081 = vrot.lane.b32.xlu0 %v977, 112
  %v1082 = vpop.permute.xlu0 %1081
  %1083 = vrot.lane.b32.xlu0 %v979, 112
  %v1084 = vpop.permute.xlu0 %1083
  %1085 = vrot.lane.b32.xlu0 %v981, 112
  %v1086 = vpop.permute.xlu0 %1085
  %1087 = vrot.lane.b32.xlu0 %v984, 112
  %v1088 = vpop.permute.xlu0 %1087
  %1089 = vrot.lane.b32.xlu0 %v986, 112
  %v1090 = vpop.permute.xlu0 %1089
  %1091 = vrot.lane.b32.xlu0 %v988, 112
  %v1092 = vpop.permute.xlu0 %1091
  %1093 = vrot.lane.b32.xlu0 %v991, 112
  %v1094 = vpop.permute.xlu0 %1093
  %1095 = vrot.lane.b32.xlu0 %v993, 112
  %v1096 = vpop.permute.xlu0 %1095
  %1097 = vrot.lane.b32.xlu0 %v995, 112
  %v1098 = vpop.permute.xlu0 %1097
  %1099 = vrot.lane.b32.xlu0 %v998, 112
  %v1100 = vpop.permute.xlu0 %1099
  %1101 = vrot.lane.b32.xlu0 %v1000, 112
  %v1102 = vpop.permute.xlu0 %1101
  %1103 = vrot.lane.b32.xlu0 %v1002, 112
  %v1104 = vpop.permute.xlu0 %1103
  %1105 = vrot.lane.b32.xlu0 %v1005, 112
  %v1106 = vpop.permute.xlu0 %1105
  %1107 = vrot.lane.b32.xlu0 %v1007, 112
  %v1108 = vpop.permute.xlu0 %1107
  %1109 = vrot.lane.b32.xlu0 %v1009, 112
  %v1110 = vpop.permute.xlu0 %1109
  %1111 = vrot.lane.b32.xlu0 %v1012, 112
  %v1112 = vpop.permute.xlu0 %1111
  %1113 = vrot.lane.b32.xlu0 %v1014, 112
  %v1114 = vpop.permute.xlu0 %1113
  %1115 = vrot.lane.b32.xlu0 %v1016, 112
  %v1116 = vpop.permute.xlu0 %1115
  %1117 = vrot.lane.b32.xlu0 %v1019, 112
  %v1118 = vpop.permute.xlu0 %1117
  %1119 = vrot.lane.b32.xlu0 %v1021, 112
  %v1120 = vpop.permute.xlu0 %1119
  %1121 = vrot.lane.b32.xlu0 %v1023, 112
  %v1122 = vpop.permute.xlu0 %1121
  %1123 = vrot.lane.b32.xlu0 %v1026, 112
  %v1124 = vpop.permute.xlu0 %1123
  %1125 = vrot.lane.b32.xlu0 %v1028, 112
  %v1126 = vpop.permute.xlu0 %1125
  %1127 = vrot.lane.b32.xlu0 %v1030, 112
  %v1128 = vpop.permute.xlu0 %1127
  %1129 = vrot.lane.b32.xlu0 %v1033, 112
  %v1130 = vpop.permute.xlu0 %1129
  %1131 = vrot.lane.b32.xlu0 %v1035, 112
  %v1132 = vpop.permute.xlu0 %1131
  %1133 = vrot.lane.b32.xlu0 %v1037, 112
  %v1134 = vpop.permute.xlu0 %1133
  %1135 = vrot.lane.b32.xlu0 %v1040, 112
  %v1136 = vpop.permute.xlu0 %1135
  %1137 = vrot.lane.b32.xlu0 %v1042, 112
  %v1138 = vpop.permute.xlu0 %1137
  %1139 = vrot.lane.b32.xlu0 %v1044, 112
  %v1140 = vpop.permute.xlu0 %1139
  %vm1189 = vcmask 228352
  %v1190 = vsel %vm1189, %v33, %v275
  %v1191 = vsel %vm1189, %v34, %v277
  %v1192 = vsel %vm1189, %v35, %v279
  %v1193 = vsel %vm1189, %v37, %v281
  %v1194 = vsel %vm1189, %v38, %v283
  %v1195 = vsel %vm1189, %v39, %v285
  %v1196 = vsel %vm1189, %v41, %v287
  %v1197 = vsel %vm1189, %v42, %v289
  %v1198 = vsel %vm1189, %v43, %v291
  %v1199 = vsel %vm1189, %v45, %v293
  %v1200 = vsel %vm1189, %v46, %v295
  %v1201 = vsel %vm1189, %v47, %v297
  %v1202 = vsel %vm1189, %v49, %v299
  %v1203 = vsel %vm1189, %v50, %v301
  %v1204 = vsel %vm1189, %v51, %v303
  %v1205 = vsel %vm1189, %v53, %v305
  %v1206 = vsel %vm1189, %v54, %v307
  %v1207 = vsel %vm1189, %v55, %v309
  %v1208 = vsel %vm1189, %v57, %v311
  %v1209 = vsel %vm1189, %v58, %v313
  %v1210 = vsel %vm1189, %v59, %v315
  %v1211 = vsel %vm1189, %v61, %v317
  %v1212 = vsel %vm1189, %v62, %v319
  %v1213 = vsel %vm1189, %v63, %v321
  %v1214 = vsel %vm1189, %v65, %v323
  %v1215 = vsel %vm1189, %v66, %v325
  %v1216 = vsel %vm1189, %v67, %v327
  %v1217 = vsel %vm1189, %v69, %v329
  %v1218 = vsel %vm1189, %v70, %v331
  %v1219 = vsel %vm1189, %v71, %v333
  %v1220 = vsel %vm1189, %v73, %v335
  %v1221 = vsel %vm1189, %v74, %v337
  %v1222 = vsel %vm1189, %v75, %v339
  %v1223 = vsel %vm1189, %v77, %v341
  %v1224 = vsel %vm1189, %v78, %v343
  %v1225 = vsel %vm1189, %v79, %v345
  %v1226 = vsel %vm1189, %v81, %v347
  %v1227 = vsel %vm1189, %v82, %v349
  %v1228 = vsel %vm1189, %v83, %v351
  %v1229 = vsel %vm1189, %v85, %v353
  %v1230 = vsel %vm1189, %v86, %v355
  %v1231 = vsel %vm1189, %v87, %v357
  %v1232 = vsel %vm1189, %v89, %v359
  %v1233 = vsel %vm1189, %v90, %v361
  %v1234 = vsel %vm1189, %v91, %v363
  %v1235 = vsel %vm1189, %v93, %v365
  %v1236 = vsel %vm1189, %v94, %v367
  %v1237 = vsel %vm1189, %v95, %v369
  %vm1238 = vcmask 457728
  %v1239 = vsel %vm1238, %v1190, %v532
  %v1240 = vsel %vm1238, %v1191, %v534
  %v1241 = vsel %vm1238, %v1192, %v536
  %v1242 = vsel %vm1238, %v1193, %v538
  %v1243 = vsel %vm1238, %v1194, %v540
  %v1244 = vsel %vm1238, %v1195, %v542
  %v1245 = vsel %vm1238, %v1196, %v544
  %v1246 = vsel %vm1238, %v1197, %v546
  %v1247 = vsel %vm1238, %v1198, %v548
  %v1248 = vsel %vm1238, %v1199, %v550
  %v1249 = vsel %vm1238, %v1200, %v552
  %v1250 = vsel %vm1238, %v1201, %v554
  %v1251 = vsel %vm1238, %v1202, %v556
  %v1252 = vsel %vm1238, %v1203, %v558
  %v1253 = vsel %vm1238, %v1204, %v560
  %v1254 = vsel %vm1238, %v1205, %v562
  %v1255 = vsel %vm1238, %v1206, %v564
  %v1256 = vsel %vm1238, %v1207, %v566
  %v1257 = vsel %vm1238, %v1208, %v568
  %v1258 = vsel %vm1238, %v1209, %v570
  %v1259 = vsel %vm1238, %v1210, %v572
  %v1260 = vsel %vm1238, %v1211, %v574
  %v1261 = vsel %vm1238, %v1212, %v576
  %v1262 = vsel %vm1238, %v1213, %v578
  %v1263 = vsel %vm1238, %v1214, %v580
  %v1264 = vsel %vm1238, %v1215, %v582
  %v1265 = vsel %vm1238, %v1216, %v584
  %v1266 = vsel %vm1238, %v1217, %v586
  %v1267 = vsel %vm1238, %v1218, %v588
  %v1268 = vsel %vm1238, %v1219, %v590
  %v1269 = vsel %vm1238, %v1220, %v592
  %v1270 = vsel %vm1238, %v1221, %v594
  %v1271 = vsel %vm1238, %v1222, %v596
  %v1272 = vsel %vm1238, %v1223, %v598
  %v1273 = vsel %vm1238, %v1224, %v600
  %v1274 = vsel %vm1238, %v1225, %v602
  %v1275 = vsel %vm1238, %v1226, %v604
  %v1276 = vsel %vm1238, %v1227, %v606
  %v1277 = vsel %vm1238, %v1228, %v608
  %v1278 = vsel %vm1238, %v1229, %v610
  %v1279 = vsel %vm1238, %v1230, %v612
  %v1280 = vsel %vm1238, %v1231, %v614
  %v1281 = vsel %vm1238, %v1232, %v616
  %v1282 = vsel %vm1238, %v1233, %v618
  %v1283 = vsel %vm1238, %v1234, %v620
  %v1284 = vsel %vm1238, %v1235, %v622
  %v1285 = vsel %vm1238, %v1236, %v624
  %v1286 = vsel %vm1238, %v1237, %v626
  %vm1287 = vcmask 687104
  %v1288 = vsel %vm1287, %v1239, %v789
  %v1289 = vsel %vm1287, %v1240, %v791
  %v1290 = vsel %vm1287, %v1241, %v793
  %v1291 = vsel %vm1287, %v1242, %v795
  %v1292 = vsel %vm1287, %v1243, %v797
  %v1293 = vsel %vm1287, %v1244, %v799
  %v1294 = vsel %vm1287, %v1245, %v801
  %v1295 = vsel %vm1287, %v1246, %v803
  %v1296 = vsel %vm1287, %v1247, %v805
  %v1297 = vsel %vm1287, %v1248, %v807
  %v1298 = vsel %vm1287, %v1249, %v809
  %v1299 = vsel %vm1287, %v1250, %v811
  %v1300 = vsel %vm1287, %v1251, %v813
  %v1301 = vsel %vm1287, %v1252, %v815
  %v1302 = vsel %vm1287, %v1253, %v817
  %v1303 = vsel %vm1287, %v1254, %v819
  %v1304 = vsel %vm1287, %v1255, %v821
  %v1305 = vsel %vm1287, %v1256, %v823
  %v1306 = vsel %vm1287, %v1257, %v825
  %v1307 = vsel %vm1287, %v1258, %v827
  %v1308 = vsel %vm1287, %v1259, %v829
  %v1309 = vsel %vm1287, %v1260, %v831
  %v1310 = vsel %vm1287, %v1261, %v833
  %v1311 = vsel %vm1287, %v1262, %v835
  %v1312 = vsel %vm1287, %v1263, %v837
  %v1313 = vsel %vm1287, %v1264, %v839
  %v1314 = vsel %vm1287, %v1265, %v841
  %v1315 = vsel %vm1287, %v1266, %v843
  %v1316 = vsel %vm1287, %v1267, %v845
  %v1317 = vsel %vm1287, %v1268, %v847
  %v1318 = vsel %vm1287, %v1269, %v849
  %v1319 = vsel %vm1287, %v1270, %v851
  %v1320 = vsel %vm1287, %v1271, %v853
  %v1321 = vsel %vm1287, %v1272, %v855
  %v1322 = vsel %vm1287, %v1273, %v857
  %v1323 = vsel %vm1287, %v1274, %v859
  %v1324 = vsel %vm1287, %v1275, %v861
  %v1325 = vsel %vm1287, %v1276, %v863
  %v1326 = vsel %vm1287, %v1277, %v865
  %v1327 = vsel %vm1287, %v1278, %v867
  %v1328 = vsel %vm1287, %v1279, %v869
  %v1329 = vsel %vm1287, %v1280, %v871
  %v1330 = vsel %vm1287, %v1281, %v873
  %v1331 = vsel %vm1287, %v1282, %v875
  %v1332 = vsel %vm1287, %v1283, %v877
  %v1333 = vsel %vm1287, %v1284, %v879
  %v1334 = vsel %vm1287, %v1285, %v881
  %v1335 = vsel %vm1287, %v1286, %v883
  %vm1336 = vcmask 916480
  %v1337 = vsel %vm1336, %v1288, %v1046
  %v1338 = vsel %vm1336, %v1289, %v1048
  %v1339 = vsel %vm1336, %v1290, %v1050
  %v1340 = vsel %vm1336, %v1291, %v1052
  %v1341 = vsel %vm1336, %v1292, %v1054
  %v1342 = vsel %vm1336, %v1293, %v1056
  %v1343 = vsel %vm1336, %v1294, %v1058
  %v1344 = vsel %vm1336, %v1295, %v1060
  %v1345 = vsel %vm1336, %v1296, %v1062
  %v1346 = vsel %vm1336, %v1297, %v1064
  %v1347 = vsel %vm1336, %v1298, %v1066
  %v1348 = vsel %vm1336, %v1299, %v1068
  %v1349 = vsel %vm1336, %v1300, %v1070
  %v1350 = vsel %vm1336, %v1301, %v1072
  %v1351 = vsel %vm1336, %v1302, %v1074
  %v1352 = vsel %vm1336, %v1303, %v1076
  %v1353 = vsel %vm1336, %v1304, %v1078
  %v1354 = vsel %vm1336, %v1305, %v1080
  %v1355 = vsel %vm1336, %v1306, %v1082
  %v1356 = vsel %vm1336, %v1307, %v1084
  %v1357 = vsel %vm1336, %v1308, %v1086
  %v1358 = vsel %vm1336, %v1309, %v1088
  %v1359 = vsel %vm1336, %v1310, %v1090
  %v1360 = vsel %vm1336, %v1311, %v1092
  %v1361 = vsel %vm1336, %v1312, %v1094
  %v1362 = vsel %vm1336, %v1313, %v1096
  %v1363 = vsel %vm1336, %v1314, %v1098
  %v1364 = vsel %vm1336, %v1315, %v1100
  %v1365 = vsel %vm1336, %v1316, %v1102
  %v1366 = vsel %vm1336, %v1317, %v1104
  %v1367 = vsel %vm1336, %v1318, %v1106
  %v1368 = vsel %vm1336, %v1319, %v1108
  %v1369 = vsel %vm1336, %v1320, %v1110
  %v1370 = vsel %vm1336, %v1321, %v1112
  %v1371 = vsel %vm1336, %v1322, %v1114
  %v1372 = vsel %vm1336, %v1323, %v1116
  %v1373 = vsel %vm1336, %v1324, %v1118
  %v1374 = vsel %vm1336, %v1325, %v1120
  %v1375 = vsel %vm1336, %v1326, %v1122
  %v1376 = vsel %vm1336, %v1327, %v1124
  %v1377 = vsel %vm1336, %v1328, %v1126
  %v1378 = vsel %vm1336, %v1329, %v1128
  %v1379 = vsel %vm1336, %v1330, %v1130
  %v1380 = vsel %vm1336, %v1331, %v1132
  %v1381 = vsel %vm1336, %v1332, %v1134
  %v1382 = vsel %vm1336, %v1333, %v1136
  %v1383 = vsel %vm1336, %v1334, %v1138
  %v1384 = vsel %vm1336, %v1335, %v1140
  %v1385 = vpack.c.bf16 %v1338, %v1337
  %v1386 = vpack.c.bf16 %v1048, %v1046
  %v1387 = vpack.c.bf16 %v1340, %v1339
  %v1388 = vpack.c.bf16 %v1052, %v1050
  %v1389 = vpack.c.bf16 %v1342, %v1341
  %v1390 = vpack.c.bf16 %v1056, %v1054
  %v1391 = vpack.c.bf16 %v1344, %v1343
  %v1392 = vpack.c.bf16 %v1060, %v1058
  %v1393 = vpack.c.bf16 %v1346, %v1345
  %v1394 = vpack.c.bf16 %v1064, %v1062
  %v1395 = vpack.c.bf16 %v1348, %v1347
  %v1396 = vpack.c.bf16 %v1068, %v1066
  %v1397 = vpack.c.bf16 %v1350, %v1349
  %v1398 = vpack.c.bf16 %v1072, %v1070
  %v1399 = vpack.c.bf16 %v1352, %v1351
  %v1400 = vpack.c.bf16 %v1076, %v1074
  %v1401 = vpack.c.bf16 %v1354, %v1353
  %v1402 = vpack.c.bf16 %v1080, %v1078
  %v1403 = vpack.c.bf16 %v1356, %v1355
  %v1404 = vpack.c.bf16 %v1084, %v1082
  %v1405 = vpack.c.bf16 %v1358, %v1357
  %v1406 = vpack.c.bf16 %v1088, %v1086
  %v1407 = vpack.c.bf16 %v1360, %v1359
  %v1408 = vpack.c.bf16 %v1092, %v1090
  %v1409 = vpack.c.bf16 %v1362, %v1361
  %v1410 = vpack.c.bf16 %v1096, %v1094
  %v1411 = vpack.c.bf16 %v1364, %v1363
  %v1412 = vpack.c.bf16 %v1100, %v1098
  %v1413 = vpack.c.bf16 %v1366, %v1365
  %v1414 = vpack.c.bf16 %v1104, %v1102
  %v1415 = vpack.c.bf16 %v1368, %v1367
  %v1416 = vpack.c.bf16 %v1108, %v1106
  %v1417 = vpack.c.bf16 %v1370, %v1369
  %v1418 = vpack.c.bf16 %v1112, %v1110
  %v1419 = vpack.c.bf16 %v1372, %v1371
  %v1420 = vpack.c.bf16 %v1116, %v1114
  %v1421 = vpack.c.bf16 %v1374, %v1373
  %v1422 = vpack.c.bf16 %v1120, %v1118
  %v1423 = vpack.c.bf16 %v1376, %v1375
  %v1424 = vpack.c.bf16 %v1124, %v1122
  %v1425 = vpack.c.bf16 %v1378, %v1377
  %v1426 = vpack.c.bf16 %v1128, %v1126
  %v1427 = vpack.c.bf16 %v1380, %v1379
  %v1428 = vpack.c.bf16 %v1132, %v1130
  %v1429 = vpack.c.bf16 %v1382, %v1381
  %v1430 = vpack.c.bf16 %v1136, %v1134
  %v1431 = vpack.c.bf16 %v1384, %v1383
  %v1432 = vpack.c.bf16 %v1140, %v1138
  %v1433 = vld [vmem:[%s1] sm:$0xff]
  %v1434 = vld [vmem:[%s1 + $0x8] sm:$0xf]
  %v1435 = vld [vmem:[%s1 + $0xc] sm:$0xff]
  %v1436 = vld [vmem:[%s1 + $0x14] sm:$0xf]
  %v1437 = vld [vmem:[%s1 + $0x18] sm:$0xff]
  %v1438 = vld [vmem:[%s1 + $0x20] sm:$0xf]
  %v1439 = vld [vmem:[%s1 + $0x24] sm:$0xff]
  %v1440 = vld [vmem:[%s1 + $0x2c] sm:$0xf]
  %v1441 = vld [vmem:[%s1 + $0x30] sm:$0xff]
  %v1442 = vld [vmem:[%s1 + $0x38] sm:$0xf]
  %v1443 = vld [vmem:[%s1 + $0x3c] sm:$0xff]
  %v1444 = vld [vmem:[%s1 + $0x44] sm:$0xf]
  %v1445 = vld [vmem:[%s1 + $0x48] sm:$0xff]
  %v1446 = vld [vmem:[%s1 + $0x50] sm:$0xf]
  %v1447 = vld [vmem:[%s1 + $0x54] sm:$0xff]
  %v1448 = vld [vmem:[%s1 + $0x5c] sm:$0xf]
  %v1449 = vld [vmem:[%s1 + $0x60] sm:$0xff]
  %v1450 = vld [vmem:[%s1 + $0x68] sm:$0xf]
  %v1451 = vld [vmem:[%s1 + $0x6c] sm:$0xff]
  %v1452 = vld [vmem:[%s1 + $0x74] sm:$0xf]
  %v1453 = vld [vmem:[%s1 + $0x78] sm:$0xff]
  %v1454 = vld [vmem:[%s1 + $0x80] sm:$0xf]
  %v1455 = vld [vmem:[%s1 + $0x84] sm:$0xff]
  %v1456 = vld [vmem:[%s1 + $0x8c] sm:$0xf]
  %v1457 = vld [vmem:[%s1 + $0x90] sm:$0xff]
  %v1458 = vld [vmem:[%s1 + $0x98] sm:$0xf]
  %v1459 = vld [vmem:[%s1 + $0x9c] sm:$0xff]
  %v1460 = vld [vmem:[%s1 + $0xa4] sm:$0xf]
  %v1461 = vld [vmem:[%s1 + $0xa8] sm:$0xff]
  %v1462 = vld [vmem:[%s1 + $0xb0] sm:$0xf]
  %v1463 = vld [vmem:[%s1 + $0xb4] sm:$0xff]
  %v1464 = vld [vmem:[%s1 + $0xbc] sm:$0xf]
  %v1465 = vld [vmem:[%s1 + $0xc0] sm:$0xff]
  %v1466 = vld [vmem:[%s1 + $0xc8] sm:$0xf]
  %v1467 = vld [vmem:[%s1 + $0xcc] sm:$0x33]
  %v1468 = vld [vmem:[%s1 + $0xd4] sm:$0x3]
  %v1469 = vld [vmem:[%s2] sm:$0x7]
  %v1471 = vperm.slane %v1469, 0
  %v1472 = vperm.slane %v1469, 1
  %v1473 = vperm.slane %v1469, 2
  %v1513 = vunpack.c.l.b16 %v1433
  %v1514 = vunpack.c.h.b16 %v1433
  %v1515 = vunpack.c.l.b16 %v1434
  %v1516 = vunpack.c.l.b16 %v1435
  %v1517 = vunpack.c.h.b16 %v1435
  %v1518 = vunpack.c.l.b16 %v1436
  %v1519 = vunpack.c.l.b16 %v1437
  %v1520 = vunpack.c.h.b16 %v1437
  %v1521 = vunpack.c.l.b16 %v1438
  %v1522 = vunpack.c.l.b16 %v1439
  %v1523 = vunpack.c.h.b16 %v1439
  %v1524 = vunpack.c.l.b16 %v1440
  %v1525 = vunpack.c.l.b16 %v1441
  %v1526 = vunpack.c.h.b16 %v1441
  %v1527 = vunpack.c.l.b16 %v1442
  %v1528 = vunpack.c.l.b16 %v1443
  %v1529 = vunpack.c.h.b16 %v1443
  %v1530 = vunpack.c.l.b16 %v1444
  %v1531 = vunpack.c.l.b16 %v1445
  %v1532 = vunpack.c.h.b16 %v1445
  %v1533 = vunpack.c.l.b16 %v1446
  %v1534 = vunpack.c.l.b16 %v1447
  %v1535 = vunpack.c.h.b16 %v1447
  %v1536 = vunpack.c.l.b16 %v1448
  %v1537 = vunpack.c.l.b16 %v1449
  %v1538 = vunpack.c.h.b16 %v1449
  %v1539 = vunpack.c.l.b16 %v1450
  %v1540 = vunpack.c.l.b16 %v1451
  %v1541 = vunpack.c.h.b16 %v1451
  %v1542 = vunpack.c.l.b16 %v1452
  %v1543 = vunpack.c.l.b16 %v1453
  %v1544 = vunpack.c.h.b16 %v1453
  %v1545 = vunpack.c.l.b16 %v1454
  %v1546 = vunpack.c.l.b16 %v1455
  %v1547 = vunpack.c.h.b16 %v1455
  %v1548 = vunpack.c.l.b16 %v1456
  %v1549 = vunpack.c.l.b16 %v1457
  %v1550 = vunpack.c.h.b16 %v1457
  %v1551 = vunpack.c.l.b16 %v1458
  %v1552 = vunpack.c.l.b16 %v1459
  %v1553 = vunpack.c.h.b16 %v1459
  %v1554 = vunpack.c.l.b16 %v1460
  %v1555 = vunpack.c.l.b16 %v1461
  %v1556 = vunpack.c.h.b16 %v1461
  %v1557 = vunpack.c.l.b16 %v1462
  %v1558 = vunpack.c.l.b16 %v1463
  %v1559 = vunpack.c.h.b16 %v1463
  %v1560 = vunpack.c.l.b16 %v1464
  %v1561 = vunpack.c.l.b16 %v1465
  %v1562 = vunpack.c.h.b16 %v1465
  %v1563 = vunpack.c.l.b16 %v1466
  %v1564 = vunpack.c.l.b16 %v1467
  %v1565 = vunpack.c.h.b16 %v1467
  %v1566 = vunpack.c.l.b16 %v1468
  %v1567 = vpack.c.b16 %v1516, %v1513
  %v1568 = vpack.c.b16 %v1517, %v1514
  %v1569 = vpack.c.b16 %v1518, %v1515
  %v1570 = vpack.c.b16 %v1522, %v1519
  %v1571 = vpack.c.b16 %v1523, %v1520
  %v1572 = vpack.c.b16 %v1524, %v1521
  %v1573 = vpack.c.b16 %v1528, %v1525
  %v1574 = vpack.c.b16 %v1529, %v1526
  %v1575 = vpack.c.b16 %v1530, %v1527
  %v1576 = vpack.c.b16 %v1534, %v1531
  %v1577 = vpack.c.b16 %v1535, %v1532
  %v1578 = vpack.c.b16 %v1536, %v1533
  %v1579 = vpack.c.b16 %v1540, %v1537
  %v1580 = vpack.c.b16 %v1541, %v1538
  %v1581 = vpack.c.b16 %v1542, %v1539
  %v1582 = vpack.c.b16 %v1546, %v1543
  %v1583 = vpack.c.b16 %v1547, %v1544
  %v1584 = vpack.c.b16 %v1548, %v1545
  %v1585 = vpack.c.b16 %v1552, %v1549
  %v1586 = vpack.c.b16 %v1553, %v1550
  %v1587 = vpack.c.b16 %v1554, %v1551
  %v1588 = vpack.c.b16 %v1558, %v1555
  %v1589 = vpack.c.b16 %v1559, %v1556
  %v1590 = vpack.c.b16 %v1560, %v1557
  %v1591 = vpack.c.b16 %v1564, %v1561
  %v1592 = vpack.c.b16 %v1565, %v1562
  %v1593 = vpack.c.b16 %v1566, %v1563
  %vm1618 = vcmask 97280
  %v1620 = vsel %vm1618, %v1386, 0
  %v1623 = vsel %vm1618, %v1388, 0
  %v1626 = vsel %vm1618, %v1390, 0
  %v1629 = vsel %vm1618, %v1392, 0
  %v1632 = vsel %vm1618, %v1394, 0
  %v1635 = vsel %vm1618, %v1396, 0
  %v1638 = vsel %vm1618, %v1398, 0
  %v1641 = vsel %vm1618, %v1400, 0
  %v1644 = vsel %vm1618, %v1402, 0
  %v1647 = vsel %vm1618, %v1404, 0
  %v1650 = vsel %vm1618, %v1406, 0
  %v1653 = vsel %vm1618, %v1408, 0
  %v1656 = vsel %vm1618, %v1410, 0
  %v1659 = vsel %vm1618, %v1412, 0
  %v1662 = vsel %vm1618, %v1414, 0
  %v1665 = vsel %vm1618, %v1416, 0
  %v1668 = vsel %vm1618, %v1418, 0
  %v1671 = vsel %vm1618, %v1420, 0
  %v1674 = vsel %vm1618, %v1422, 0
  %v1677 = vsel %vm1618, %v1424, 0
  %v1680 = vsel %vm1618, %v1426, 0
  %v1683 = vsel %vm1618, %v1428, 0
  %v1686 = vsel %vm1618, %v1430, 0
  %v1689 = vsel %vm1618, %v1432, 0
  %v1692 = vsel %vm418, %v1591, 0
  %v1695 = vsel %vm418, %v1592, 0
  %v1698 = vsel %vm418, %v1593, 0
  %1700 = vmatpush.bf16.msra.mxu0 %v1588
  %1701 = vmatpush.bf16.msra.mxu0 %v1585
  %1702 = vmatpush.bf16.msra.mxu0 %v1582
  %1703 = vmatpush.bf16.msra.mxu0 %v1579
  %1704 = vmatpush.bf16.msra.mxu0 %v1576
  %1705 = vmatpush.bf16.msra.mxu0 %v1573
  %1706 = vmatpush.bf16.msra.mxu0 %v1570
  %1707 = vmatpush.bf16.msra.mxu0 %v1567
  %1708 = vmatmul.bf16.gmra.mxu0 %v1385
  %v1709 = vpop.f32.mrf.mxu0
  %v1710 = vadd.f32 %v1471, %v1709
  %v1711 = vpop.f32.mrf.mxu0
  %v1712 = vadd.f32 %v1471, %v1711
  %1713 = vmatmul.bf16.gmra.mxu0 %v1387
  %v1714 = vpop.f32.mrf.mxu0
  %v1715 = vadd.f32 %v1471, %v1714
  %v1716 = vpop.f32.mrf.mxu0
  %v1717 = vadd.f32 %v1471, %v1716
  %1718 = vmatmul.bf16.gmra.mxu0 %v1389
  %v1719 = vpop.f32.mrf.mxu0
  %v1720 = vadd.f32 %v1471, %v1719
  %v1721 = vpop.f32.mrf.mxu0
  %v1722 = vadd.f32 %v1471, %v1721
  %1723 = vmatmul.bf16.gmra.mxu0 %v1391
  %v1724 = vpop.f32.mrf.mxu0
  %v1725 = vadd.f32 %v1471, %v1724
  %v1726 = vpop.f32.mrf.mxu0
  %v1727 = vadd.f32 %v1471, %v1726
  %1728 = vmatmul.bf16.gmra.mxu0 %v1393
  %v1729 = vpop.f32.mrf.mxu0
  %v1730 = vadd.f32 %v1471, %v1729
  %v1731 = vpop.f32.mrf.mxu0
  %v1732 = vadd.f32 %v1471, %v1731
  %1733 = vmatmul.bf16.gmra.mxu0 %v1395
  %v1734 = vpop.f32.mrf.mxu0
  %v1735 = vadd.f32 %v1471, %v1734
  %v1736 = vpop.f32.mrf.mxu0
  %v1737 = vadd.f32 %v1471, %v1736
  %1738 = vmatmul.bf16.gmra.mxu0 %v1397
  %v1739 = vpop.f32.mrf.mxu0
  %v1740 = vadd.f32 %v1471, %v1739
  %v1741 = vpop.f32.mrf.mxu0
  %v1742 = vadd.f32 %v1471, %v1741
  %1743 = vmatmul.bf16.gmra.mxu0 %v1399
  %v1744 = vpop.f32.mrf.mxu0
  %v1745 = vadd.f32 %v1471, %v1744
  %v1746 = vpop.f32.mrf.mxu0
  %v1747 = vadd.f32 %v1471, %v1746
  %1748 = vmatmul.bf16.gmra.mxu0 %v1401
  %v1749 = vpop.f32.mrf.mxu0
  %v1750 = vadd.f32 %v1471, %v1749
  %v1751 = vpop.f32.mrf.mxu0
  %v1752 = vadd.f32 %v1471, %v1751
  %1753 = vmatmul.bf16.gmra.mxu0 %v1403
  %v1754 = vpop.f32.mrf.mxu0
  %v1755 = vadd.f32 %v1471, %v1754
  %v1756 = vpop.f32.mrf.mxu0
  %v1757 = vadd.f32 %v1471, %v1756
  %1758 = vmatmul.bf16.gmra.mxu0 %v1405
  %v1759 = vpop.f32.mrf.mxu0
  %v1760 = vadd.f32 %v1471, %v1759
  %v1761 = vpop.f32.mrf.mxu0
  %v1762 = vadd.f32 %v1471, %v1761
  %1763 = vmatmul.bf16.gmra.mxu0 %v1407
  %v1764 = vpop.f32.mrf.mxu0
  %v1765 = vadd.f32 %v1471, %v1764
  %v1766 = vpop.f32.mrf.mxu0
  %v1767 = vadd.f32 %v1471, %v1766
  %1768 = vmatmul.bf16.gmra.mxu0 %v1409
  %v1769 = vpop.f32.mrf.mxu0
  %v1770 = vadd.f32 %v1471, %v1769
  %v1771 = vpop.f32.mrf.mxu0
  %v1772 = vadd.f32 %v1471, %v1771
  %1773 = vmatmul.bf16.gmra.mxu0 %v1411
  %v1774 = vpop.f32.mrf.mxu0
  %v1775 = vadd.f32 %v1471, %v1774
  %v1776 = vpop.f32.mrf.mxu0
  %v1777 = vadd.f32 %v1471, %v1776
  %1778 = vmatmul.bf16.gmra.mxu0 %v1413
  %v1779 = vpop.f32.mrf.mxu0
  %v1780 = vadd.f32 %v1471, %v1779
  %v1781 = vpop.f32.mrf.mxu0
  %v1782 = vadd.f32 %v1471, %v1781
  %1783 = vmatmul.bf16.gmra.mxu0 %v1415
  %v1784 = vpop.f32.mrf.mxu0
  %v1785 = vadd.f32 %v1471, %v1784
  %v1786 = vpop.f32.mrf.mxu0
  %v1787 = vadd.f32 %v1471, %v1786
  %1788 = vmatmul.bf16.gmra.mxu0 %v1417
  %v1789 = vpop.f32.mrf.mxu0
  %v1790 = vadd.f32 %v1471, %v1789
  %v1791 = vpop.f32.mrf.mxu0
  %v1792 = vadd.f32 %v1471, %v1791
  %1793 = vmatmul.bf16.gmra.mxu0 %v1419
  %v1794 = vpop.f32.mrf.mxu0
  %v1795 = vadd.f32 %v1471, %v1794
  %v1796 = vpop.f32.mrf.mxu0
  %v1797 = vadd.f32 %v1471, %v1796
  %1798 = vmatmul.bf16.gmra.mxu0 %v1421
  %v1799 = vpop.f32.mrf.mxu0
  %v1800 = vadd.f32 %v1471, %v1799
  %v1801 = vpop.f32.mrf.mxu0
  %v1802 = vadd.f32 %v1471, %v1801
  %1803 = vmatmul.bf16.gmra.mxu0 %v1423
  %v1804 = vpop.f32.mrf.mxu0
  %v1805 = vadd.f32 %v1471, %v1804
  %v1806 = vpop.f32.mrf.mxu0
  %v1807 = vadd.f32 %v1471, %v1806
  %1808 = vmatmul.bf16.gmra.mxu0 %v1425
  %v1809 = vpop.f32.mrf.mxu0
  %v1810 = vadd.f32 %v1471, %v1809
  %v1811 = vpop.f32.mrf.mxu0
  %v1812 = vadd.f32 %v1471, %v1811
  %1813 = vmatmul.bf16.gmra.mxu0 %v1427
  %v1814 = vpop.f32.mrf.mxu0
  %v1815 = vadd.f32 %v1471, %v1814
  %v1816 = vpop.f32.mrf.mxu0
  %v1817 = vadd.f32 %v1471, %v1816
  %1818 = vmatmul.bf16.gmra.mxu0 %v1429
  %v1819 = vpop.f32.mrf.mxu0
  %v1820 = vadd.f32 %v1471, %v1819
  %v1821 = vpop.f32.mrf.mxu0
  %v1822 = vadd.f32 %v1471, %v1821
  %1823 = vmatmul.bf16.gmra.mxu0 %v1431
  %v1824 = vpop.f32.mrf.mxu0
  %v1825 = vadd.f32 %v1471, %v1824
  %v1826 = vpop.f32.mrf.mxu0
  %v1827 = vadd.f32 %v1471, %v1826
  %1828 = vdwg.mxu0
  %1829 = vmatpush.bf16.msra.mxu0 0
  %1830 = vmatpush.bf16.msra.mxu0 0
  %1831 = vmatpush.bf16.msra.mxu0 0
  %1832 = vmatpush.bf16.msra.mxu0 0
  %1833 = vmatpush.bf16.msra.mxu0 0
  %1834 = vmatpush.bf16.msra.mxu0 0
  %1835 = vmatpush.bf16.msra.mxu0 0
  %1836 = vmatpush.bf16.msra.mxu0 %v1692
  %1837 = vmatmul.bf16.gmra.mxu0 %v1620
  %v1838 = vpop.f32.mrf.mxu0
  %v1839 = vadd.f32 %v1710, %v1838
  %v1840 = vpop.f32.mrf.mxu0
  %v1841 = vadd.f32 %v1712, %v1840
  %1842 = vmatmul.bf16.gmra.mxu0 %v1623
  %v1843 = vpop.f32.mrf.mxu0
  %v1844 = vadd.f32 %v1715, %v1843
  %v1845 = vpop.f32.mrf.mxu0
  %v1846 = vadd.f32 %v1717, %v1845
  %1847 = vmatmul.bf16.gmra.mxu0 %v1626
  %v1848 = vpop.f32.mrf.mxu0
  %v1849 = vadd.f32 %v1720, %v1848
  %v1850 = vpop.f32.mrf.mxu0
  %v1851 = vadd.f32 %v1722, %v1850
  %1852 = vmatmul.bf16.gmra.mxu0 %v1629
  %v1853 = vpop.f32.mrf.mxu0
  %v1854 = vadd.f32 %v1725, %v1853
  %v1855 = vpop.f32.mrf.mxu0
  %v1856 = vadd.f32 %v1727, %v1855
  %1857 = vmatmul.bf16.gmra.mxu0 %v1632
  %v1858 = vpop.f32.mrf.mxu0
  %v1859 = vadd.f32 %v1730, %v1858
  %v1860 = vpop.f32.mrf.mxu0
  %v1861 = vadd.f32 %v1732, %v1860
  %1862 = vmatmul.bf16.gmra.mxu0 %v1635
  %v1863 = vpop.f32.mrf.mxu0
  %v1864 = vadd.f32 %v1735, %v1863
  %v1865 = vpop.f32.mrf.mxu0
  %v1866 = vadd.f32 %v1737, %v1865
  %1867 = vmatmul.bf16.gmra.mxu0 %v1638
  %v1868 = vpop.f32.mrf.mxu0
  %v1869 = vadd.f32 %v1740, %v1868
  %v1870 = vpop.f32.mrf.mxu0
  %v1871 = vadd.f32 %v1742, %v1870
  %1872 = vmatmul.bf16.gmra.mxu0 %v1641
  %v1873 = vpop.f32.mrf.mxu0
  %v1874 = vadd.f32 %v1745, %v1873
  %v1875 = vpop.f32.mrf.mxu0
  %v1876 = vadd.f32 %v1747, %v1875
  %1877 = vmatmul.bf16.gmra.mxu0 %v1644
  %v1878 = vpop.f32.mrf.mxu0
  %v1879 = vadd.f32 %v1750, %v1878
  %v1880 = vpop.f32.mrf.mxu0
  %v1881 = vadd.f32 %v1752, %v1880
  %1882 = vmatmul.bf16.gmra.mxu0 %v1647
  %v1883 = vpop.f32.mrf.mxu0
  %v1884 = vadd.f32 %v1755, %v1883
  %v1885 = vpop.f32.mrf.mxu0
  %v1886 = vadd.f32 %v1757, %v1885
  %1887 = vmatmul.bf16.gmra.mxu0 %v1650
  %v1888 = vpop.f32.mrf.mxu0
  %v1889 = vadd.f32 %v1760, %v1888
  %v1890 = vpop.f32.mrf.mxu0
  %v1891 = vadd.f32 %v1762, %v1890
  %1892 = vmatmul.bf16.gmra.mxu0 %v1653
  %v1893 = vpop.f32.mrf.mxu0
  %v1894 = vadd.f32 %v1765, %v1893
  %v1895 = vpop.f32.mrf.mxu0
  %v1896 = vadd.f32 %v1767, %v1895
  %1897 = vmatmul.bf16.gmra.mxu0 %v1656
  %v1898 = vpop.f32.mrf.mxu0
  %v1899 = vadd.f32 %v1770, %v1898
  %v1900 = vpop.f32.mrf.mxu0
  %v1901 = vadd.f32 %v1772, %v1900
  %1902 = vmatmul.bf16.gmra.mxu0 %v1659
  %v1903 = vpop.f32.mrf.mxu0
  %v1904 = vadd.f32 %v1775, %v1903
  %v1905 = vpop.f32.mrf.mxu0
  %v1906 = vadd.f32 %v1777, %v1905
  %1907 = vmatmul.bf16.gmra.mxu0 %v1662
  %v1908 = vpop.f32.mrf.mxu0
  %v1909 = vadd.f32 %v1780, %v1908
  %v1910 = vpop.f32.mrf.mxu0
  %v1911 = vadd.f32 %v1782, %v1910
  %1912 = vmatmul.bf16.gmra.mxu0 %v1665
  %v1913 = vpop.f32.mrf.mxu0
  %v1914 = vadd.f32 %v1785, %v1913
  %v1915 = vpop.f32.mrf.mxu0
  %v1916 = vadd.f32 %v1787, %v1915
  %1917 = vmatmul.bf16.gmra.mxu0 %v1668
  %v1918 = vpop.f32.mrf.mxu0
  %v1919 = vadd.f32 %v1790, %v1918
  %v1920 = vpop.f32.mrf.mxu0
  %v1921 = vadd.f32 %v1792, %v1920
  %1922 = vmatmul.bf16.gmra.mxu0 %v1671
  %v1923 = vpop.f32.mrf.mxu0
  %v1924 = vadd.f32 %v1795, %v1923
  %v1925 = vpop.f32.mrf.mxu0
  %v1926 = vadd.f32 %v1797, %v1925
  %1927 = vmatmul.bf16.gmra.mxu0 %v1674
  %v1928 = vpop.f32.mrf.mxu0
  %v1929 = vadd.f32 %v1800, %v1928
  %v1930 = vpop.f32.mrf.mxu0
  %v1931 = vadd.f32 %v1802, %v1930
  %1932 = vmatmul.bf16.gmra.mxu0 %v1677
  %v1933 = vpop.f32.mrf.mxu0
  %v1934 = vadd.f32 %v1805, %v1933
  %v1935 = vpop.f32.mrf.mxu0
  %v1936 = vadd.f32 %v1807, %v1935
  %1937 = vmatmul.bf16.gmra.mxu0 %v1680
  %v1938 = vpop.f32.mrf.mxu0
  %v1939 = vadd.f32 %v1810, %v1938
  %v1940 = vpop.f32.mrf.mxu0
  %v1941 = vadd.f32 %v1812, %v1940
  %1942 = vmatmul.bf16.gmra.mxu0 %v1683
  %v1943 = vpop.f32.mrf.mxu0
  %v1944 = vadd.f32 %v1815, %v1943
  %v1945 = vpop.f32.mrf.mxu0
  %v1946 = vadd.f32 %v1817, %v1945
  %1947 = vmatmul.bf16.gmra.mxu0 %v1686
  %v1948 = vpop.f32.mrf.mxu0
  %v1949 = vadd.f32 %v1820, %v1948
  %v1950 = vpop.f32.mrf.mxu0
  %v1951 = vadd.f32 %v1822, %v1950
  %1952 = vmatmul.bf16.gmra.mxu0 %v1689
  %v1953 = vpop.f32.mrf.mxu0
  %v1954 = vadd.f32 %v1825, %v1953
  %v1955 = vpop.f32.mrf.mxu0
  %v1956 = vadd.f32 %v1827, %v1955
  %1957 = vdwg.mxu0
  %1958 = vmatpush.bf16.msra.mxu0 %v1589
  %1959 = vmatpush.bf16.msra.mxu0 %v1586
  %1960 = vmatpush.bf16.msra.mxu0 %v1583
  %1961 = vmatpush.bf16.msra.mxu0 %v1580
  %1962 = vmatpush.bf16.msra.mxu0 %v1577
  %1963 = vmatpush.bf16.msra.mxu0 %v1574
  %1964 = vmatpush.bf16.msra.mxu0 %v1571
  %1965 = vmatpush.bf16.msra.mxu0 %v1568
  %1966 = vmatmul.bf16.gmra.mxu0 %v1385
  %v1967 = vpop.f32.mrf.mxu0
  %v1968 = vadd.f32 %v1472, %v1967
  %v1969 = vpop.f32.mrf.mxu0
  %v1970 = vadd.f32 %v1472, %v1969
  %1971 = vmatmul.bf16.gmra.mxu0 %v1387
  %v1972 = vpop.f32.mrf.mxu0
  %v1973 = vadd.f32 %v1472, %v1972
  %v1974 = vpop.f32.mrf.mxu0
  %v1975 = vadd.f32 %v1472, %v1974
  %1976 = vmatmul.bf16.gmra.mxu0 %v1389
  %v1977 = vpop.f32.mrf.mxu0
  %v1978 = vadd.f32 %v1472, %v1977
  %v1979 = vpop.f32.mrf.mxu0
  %v1980 = vadd.f32 %v1472, %v1979
  %1981 = vmatmul.bf16.gmra.mxu0 %v1391
  %v1982 = vpop.f32.mrf.mxu0
  %v1983 = vadd.f32 %v1472, %v1982
  %v1984 = vpop.f32.mrf.mxu0
  %v1985 = vadd.f32 %v1472, %v1984
  %1986 = vmatmul.bf16.gmra.mxu0 %v1393
  %v1987 = vpop.f32.mrf.mxu0
  %v1988 = vadd.f32 %v1472, %v1987
  %v1989 = vpop.f32.mrf.mxu0
  %v1990 = vadd.f32 %v1472, %v1989
  %1991 = vmatmul.bf16.gmra.mxu0 %v1395
  %v1992 = vpop.f32.mrf.mxu0
  %v1993 = vadd.f32 %v1472, %v1992
  %v1994 = vpop.f32.mrf.mxu0
  %v1995 = vadd.f32 %v1472, %v1994
  %1996 = vmatmul.bf16.gmra.mxu0 %v1397
  %v1997 = vpop.f32.mrf.mxu0
  %v1998 = vadd.f32 %v1472, %v1997
  %v1999 = vpop.f32.mrf.mxu0
  %v2000 = vadd.f32 %v1472, %v1999
  %2001 = vmatmul.bf16.gmra.mxu0 %v1399
  %v2002 = vpop.f32.mrf.mxu0
  %v2003 = vadd.f32 %v1472, %v2002
  %v2004 = vpop.f32.mrf.mxu0
  %v2005 = vadd.f32 %v1472, %v2004
  %2006 = vmatmul.bf16.gmra.mxu0 %v1401
  %v2007 = vpop.f32.mrf.mxu0
  %v2008 = vadd.f32 %v1472, %v2007
  %v2009 = vpop.f32.mrf.mxu0
  %v2010 = vadd.f32 %v1472, %v2009
  %2011 = vmatmul.bf16.gmra.mxu0 %v1403
  %v2012 = vpop.f32.mrf.mxu0
  %v2013 = vadd.f32 %v1472, %v2012
  %v2014 = vpop.f32.mrf.mxu0
  %v2015 = vadd.f32 %v1472, %v2014
  %2016 = vmatmul.bf16.gmra.mxu0 %v1405
  %v2017 = vpop.f32.mrf.mxu0
  %v2018 = vadd.f32 %v1472, %v2017
  %v2019 = vpop.f32.mrf.mxu0
  %v2020 = vadd.f32 %v1472, %v2019
  %2021 = vmatmul.bf16.gmra.mxu0 %v1407
  %v2022 = vpop.f32.mrf.mxu0
  %v2023 = vadd.f32 %v1472, %v2022
  %v2024 = vpop.f32.mrf.mxu0
  %v2025 = vadd.f32 %v1472, %v2024
  %2026 = vmatmul.bf16.gmra.mxu0 %v1409
  %v2027 = vpop.f32.mrf.mxu0
  %v2028 = vadd.f32 %v1472, %v2027
  %v2029 = vpop.f32.mrf.mxu0
  %v2030 = vadd.f32 %v1472, %v2029
  %2031 = vmatmul.bf16.gmra.mxu0 %v1411
  %v2032 = vpop.f32.mrf.mxu0
  %v2033 = vadd.f32 %v1472, %v2032
  %v2034 = vpop.f32.mrf.mxu0
  %v2035 = vadd.f32 %v1472, %v2034
  %2036 = vmatmul.bf16.gmra.mxu0 %v1413
  %v2037 = vpop.f32.mrf.mxu0
  %v2038 = vadd.f32 %v1472, %v2037
  %v2039 = vpop.f32.mrf.mxu0
  %v2040 = vadd.f32 %v1472, %v2039
  %2041 = vmatmul.bf16.gmra.mxu0 %v1415
  %v2042 = vpop.f32.mrf.mxu0
  %v2043 = vadd.f32 %v1472, %v2042
  %v2044 = vpop.f32.mrf.mxu0
  %v2045 = vadd.f32 %v1472, %v2044
  %2046 = vmatmul.bf16.gmra.mxu0 %v1417
  %v2047 = vpop.f32.mrf.mxu0
  %v2048 = vadd.f32 %v1472, %v2047
  %v2049 = vpop.f32.mrf.mxu0
  %v2050 = vadd.f32 %v1472, %v2049
  %2051 = vmatmul.bf16.gmra.mxu0 %v1419
  %v2052 = vpop.f32.mrf.mxu0
  %v2053 = vadd.f32 %v1472, %v2052
  %v2054 = vpop.f32.mrf.mxu0
  %v2055 = vadd.f32 %v1472, %v2054
  %2056 = vmatmul.bf16.gmra.mxu0 %v1421
  %v2057 = vpop.f32.mrf.mxu0
  %v2058 = vadd.f32 %v1472, %v2057
  %v2059 = vpop.f32.mrf.mxu0
  %v2060 = vadd.f32 %v1472, %v2059
  %2061 = vmatmul.bf16.gmra.mxu0 %v1423
  %v2062 = vpop.f32.mrf.mxu0
  %v2063 = vadd.f32 %v1472, %v2062
  %v2064 = vpop.f32.mrf.mxu0
  %v2065 = vadd.f32 %v1472, %v2064
  %2066 = vmatmul.bf16.gmra.mxu0 %v1425
  %v2067 = vpop.f32.mrf.mxu0
  %v2068 = vadd.f32 %v1472, %v2067
  %v2069 = vpop.f32.mrf.mxu0
  %v2070 = vadd.f32 %v1472, %v2069
  %2071 = vmatmul.bf16.gmra.mxu0 %v1427
  %v2072 = vpop.f32.mrf.mxu0
  %v2073 = vadd.f32 %v1472, %v2072
  %v2074 = vpop.f32.mrf.mxu0
  %v2075 = vadd.f32 %v1472, %v2074
  %2076 = vmatmul.bf16.gmra.mxu0 %v1429
  %v2077 = vpop.f32.mrf.mxu0
  %v2078 = vadd.f32 %v1472, %v2077
  %v2079 = vpop.f32.mrf.mxu0
  %v2080 = vadd.f32 %v1472, %v2079
  %2081 = vmatmul.bf16.gmra.mxu0 %v1431
  %v2082 = vpop.f32.mrf.mxu0
  %v2083 = vadd.f32 %v1472, %v2082
  %v2084 = vpop.f32.mrf.mxu0
  %v2085 = vadd.f32 %v1472, %v2084
  %2086 = vdwg.mxu0
  %2087 = vmatpush.bf16.msra.mxu0 0
  %2088 = vmatpush.bf16.msra.mxu0 0
  %2089 = vmatpush.bf16.msra.mxu0 0
  %2090 = vmatpush.bf16.msra.mxu0 0
  %2091 = vmatpush.bf16.msra.mxu0 0
  %2092 = vmatpush.bf16.msra.mxu0 0
  %2093 = vmatpush.bf16.msra.mxu0 0
  %2094 = vmatpush.bf16.msra.mxu0 %v1695
  %2095 = vmatmul.bf16.gmra.mxu0 %v1620
  %v2096 = vpop.f32.mrf.mxu0
  %v2097 = vadd.f32 %v1968, %v2096
  %v2098 = vpop.f32.mrf.mxu0
  %v2099 = vadd.f32 %v1970, %v2098
  %2100 = vmatmul.bf16.gmra.mxu0 %v1623
  %v2101 = vpop.f32.mrf.mxu0
  %v2102 = vadd.f32 %v1973, %v2101
  %v2103 = vpop.f32.mrf.mxu0
  %v2104 = vadd.f32 %v1975, %v2103
  %2105 = vmatmul.bf16.gmra.mxu0 %v1626
  %v2106 = vpop.f32.mrf.mxu0
  %v2107 = vadd.f32 %v1978, %v2106
  %v2108 = vpop.f32.mrf.mxu0
  %v2109 = vadd.f32 %v1980, %v2108
  %2110 = vmatmul.bf16.gmra.mxu0 %v1629
  %v2111 = vpop.f32.mrf.mxu0
  %v2112 = vadd.f32 %v1983, %v2111
  %v2113 = vpop.f32.mrf.mxu0
  %v2114 = vadd.f32 %v1985, %v2113
  %2115 = vmatmul.bf16.gmra.mxu0 %v1632
  %v2116 = vpop.f32.mrf.mxu0
  %v2117 = vadd.f32 %v1988, %v2116
  %v2118 = vpop.f32.mrf.mxu0
  %v2119 = vadd.f32 %v1990, %v2118
  %2120 = vmatmul.bf16.gmra.mxu0 %v1635
  %v2121 = vpop.f32.mrf.mxu0
  %v2122 = vadd.f32 %v1993, %v2121
  %v2123 = vpop.f32.mrf.mxu0
  %v2124 = vadd.f32 %v1995, %v2123
  %2125 = vmatmul.bf16.gmra.mxu0 %v1638
  %v2126 = vpop.f32.mrf.mxu0
  %v2127 = vadd.f32 %v1998, %v2126
  %v2128 = vpop.f32.mrf.mxu0
  %v2129 = vadd.f32 %v2000, %v2128
  %2130 = vmatmul.bf16.gmra.mxu0 %v1641
  %v2131 = vpop.f32.mrf.mxu0
  %v2132 = vadd.f32 %v2003, %v2131
  %v2133 = vpop.f32.mrf.mxu0
  %v2134 = vadd.f32 %v2005, %v2133
  %2135 = vmatmul.bf16.gmra.mxu0 %v1644
  %v2136 = vpop.f32.mrf.mxu0
  %v2137 = vadd.f32 %v2008, %v2136
  %v2138 = vpop.f32.mrf.mxu0
  %v2139 = vadd.f32 %v2010, %v2138
  %2140 = vmatmul.bf16.gmra.mxu0 %v1647
  %v2141 = vpop.f32.mrf.mxu0
  %v2142 = vadd.f32 %v2013, %v2141
  %v2143 = vpop.f32.mrf.mxu0
  %v2144 = vadd.f32 %v2015, %v2143
  %2145 = vmatmul.bf16.gmra.mxu0 %v1650
  %v2146 = vpop.f32.mrf.mxu0
  %v2147 = vadd.f32 %v2018, %v2146
  %v2148 = vpop.f32.mrf.mxu0
  %v2149 = vadd.f32 %v2020, %v2148
  %2150 = vmatmul.bf16.gmra.mxu0 %v1653
  %v2151 = vpop.f32.mrf.mxu0
  %v2152 = vadd.f32 %v2023, %v2151
  %v2153 = vpop.f32.mrf.mxu0
  %v2154 = vadd.f32 %v2025, %v2153
  %2155 = vmatmul.bf16.gmra.mxu0 %v1656
  %v2156 = vpop.f32.mrf.mxu0
  %v2157 = vadd.f32 %v2028, %v2156
  %v2158 = vpop.f32.mrf.mxu0
  %v2159 = vadd.f32 %v2030, %v2158
  %2160 = vmatmul.bf16.gmra.mxu0 %v1659
  %v2161 = vpop.f32.mrf.mxu0
  %v2162 = vadd.f32 %v2033, %v2161
  %v2163 = vpop.f32.mrf.mxu0
  %v2164 = vadd.f32 %v2035, %v2163
  %2165 = vmatmul.bf16.gmra.mxu0 %v1662
  %v2166 = vpop.f32.mrf.mxu0
  %v2167 = vadd.f32 %v2038, %v2166
  %v2168 = vpop.f32.mrf.mxu0
  %v2169 = vadd.f32 %v2040, %v2168
  %2170 = vmatmul.bf16.gmra.mxu0 %v1665
  %v2171 = vpop.f32.mrf.mxu0
  %v2172 = vadd.f32 %v2043, %v2171
  %v2173 = vpop.f32.mrf.mxu0
  %v2174 = vadd.f32 %v2045, %v2173
  %2175 = vmatmul.bf16.gmra.mxu0 %v1668
  %v2176 = vpop.f32.mrf.mxu0
  %v2177 = vadd.f32 %v2048, %v2176
  %v2178 = vpop.f32.mrf.mxu0
  %v2179 = vadd.f32 %v2050, %v2178
  %2180 = vmatmul.bf16.gmra.mxu0 %v1671
  %v2181 = vpop.f32.mrf.mxu0
  %v2182 = vadd.f32 %v2053, %v2181
  %v2183 = vpop.f32.mrf.mxu0
  %v2184 = vadd.f32 %v2055, %v2183
  %2185 = vmatmul.bf16.gmra.mxu0 %v1674
  %v2186 = vpop.f32.mrf.mxu0
  %v2187 = vadd.f32 %v2058, %v2186
  %v2188 = vpop.f32.mrf.mxu0
  %v2189 = vadd.f32 %v2060, %v2188
  %2190 = vmatmul.bf16.gmra.mxu0 %v1677
  %v2191 = vpop.f32.mrf.mxu0
  %v2192 = vadd.f32 %v2063, %v2191
  %v2193 = vpop.f32.mrf.mxu0
  %v2194 = vadd.f32 %v2065, %v2193
  %2195 = vmatmul.bf16.gmra.mxu0 %v1680
  %v2196 = vpop.f32.mrf.mxu0
  %v2197 = vadd.f32 %v2068, %v2196
  %v2198 = vpop.f32.mrf.mxu0
  %v2199 = vadd.f32 %v2070, %v2198
  %2200 = vmatmul.bf16.gmra.mxu0 %v1683
  %v2201 = vpop.f32.mrf.mxu0
  %v2202 = vadd.f32 %v2073, %v2201
  %v2203 = vpop.f32.mrf.mxu0
  %v2204 = vadd.f32 %v2075, %v2203
  %2205 = vmatmul.bf16.gmra.mxu0 %v1686
  %v2206 = vpop.f32.mrf.mxu0
  %v2207 = vadd.f32 %v2078, %v2206
  %v2208 = vpop.f32.mrf.mxu0
  %v2209 = vadd.f32 %v2080, %v2208
  %2210 = vmatmul.bf16.gmra.mxu0 %v1689
  %v2211 = vpop.f32.mrf.mxu0
  %v2212 = vadd.f32 %v2083, %v2211
  %v2213 = vpop.f32.mrf.mxu0
  %v2214 = vadd.f32 %v2085, %v2213
  %2215 = vdwg.mxu0
  %2216 = vmatpush.bf16.msra.mxu0 %v1590
  %2217 = vmatpush.bf16.msra.mxu0 %v1587
  %2218 = vmatpush.bf16.msra.mxu0 %v1584
  %2219 = vmatpush.bf16.msra.mxu0 %v1581
  %2220 = vmatpush.bf16.msra.mxu0 %v1578
  %2221 = vmatpush.bf16.msra.mxu0 %v1575
  %2222 = vmatpush.bf16.msra.mxu0 %v1572
  %2223 = vmatpush.bf16.msra.mxu0 %v1569
  %2224 = vmatmul.bf16.gmra.mxu0 %v1385
  %v2225 = vpop.f32.mrf.mxu0
  %v2226 = vadd.f32 %v1473, %v2225
  %v2227 = vpop.f32.mrf.mxu0
  %v2228 = vadd.f32 %v1473, %v2227
  %2229 = vmatmul.bf16.gmra.mxu0 %v1387
  %v2230 = vpop.f32.mrf.mxu0
  %v2231 = vadd.f32 %v1473, %v2230
  %v2232 = vpop.f32.mrf.mxu0
  %v2233 = vadd.f32 %v1473, %v2232
  %2234 = vmatmul.bf16.gmra.mxu0 %v1389
  %v2235 = vpop.f32.mrf.mxu0
  %v2236 = vadd.f32 %v1473, %v2235
  %v2237 = vpop.f32.mrf.mxu0
  %v2238 = vadd.f32 %v1473, %v2237
  %2239 = vmatmul.bf16.gmra.mxu0 %v1391
  %v2240 = vpop.f32.mrf.mxu0
  %v2241 = vadd.f32 %v1473, %v2240
  %v2242 = vpop.f32.mrf.mxu0
  %v2243 = vadd.f32 %v1473, %v2242
  %2244 = vmatmul.bf16.gmra.mxu0 %v1393
  %v2245 = vpop.f32.mrf.mxu0
  %v2246 = vadd.f32 %v1473, %v2245
  %v2247 = vpop.f32.mrf.mxu0
  %v2248 = vadd.f32 %v1473, %v2247
  %2249 = vmatmul.bf16.gmra.mxu0 %v1395
  %v2250 = vpop.f32.mrf.mxu0
  %v2251 = vadd.f32 %v1473, %v2250
  %v2252 = vpop.f32.mrf.mxu0
  %v2253 = vadd.f32 %v1473, %v2252
  %2254 = vmatmul.bf16.gmra.mxu0 %v1397
  %v2255 = vpop.f32.mrf.mxu0
  %v2256 = vadd.f32 %v1473, %v2255
  %v2257 = vpop.f32.mrf.mxu0
  %v2258 = vadd.f32 %v1473, %v2257
  %2259 = vmatmul.bf16.gmra.mxu0 %v1399
  %v2260 = vpop.f32.mrf.mxu0
  %v2261 = vadd.f32 %v1473, %v2260
  %v2262 = vpop.f32.mrf.mxu0
  %v2263 = vadd.f32 %v1473, %v2262
  %2264 = vmatmul.bf16.gmra.mxu0 %v1401
  %v2265 = vpop.f32.mrf.mxu0
  %v2266 = vadd.f32 %v1473, %v2265
  %v2267 = vpop.f32.mrf.mxu0
  %v2268 = vadd.f32 %v1473, %v2267
  %2269 = vmatmul.bf16.gmra.mxu0 %v1403
  %v2270 = vpop.f32.mrf.mxu0
  %v2271 = vadd.f32 %v1473, %v2270
  %v2272 = vpop.f32.mrf.mxu0
  %v2273 = vadd.f32 %v1473, %v2272
  %2274 = vmatmul.bf16.gmra.mxu0 %v1405
  %v2275 = vpop.f32.mrf.mxu0
  %v2276 = vadd.f32 %v1473, %v2275
  %v2277 = vpop.f32.mrf.mxu0
  %v2278 = vadd.f32 %v1473, %v2277
  %2279 = vmatmul.bf16.gmra.mxu0 %v1407
  %v2280 = vpop.f32.mrf.mxu0
  %v2281 = vadd.f32 %v1473, %v2280
  %v2282 = vpop.f32.mrf.mxu0
  %v2283 = vadd.f32 %v1473, %v2282
  %2284 = vmatmul.bf16.gmra.mxu0 %v1409
  %v2285 = vpop.f32.mrf.mxu0
  %v2286 = vadd.f32 %v1473, %v2285
  %v2287 = vpop.f32.mrf.mxu0
  %v2288 = vadd.f32 %v1473, %v2287
  %2289 = vmatmul.bf16.gmra.mxu0 %v1411
  %v2290 = vpop.f32.mrf.mxu0
  %v2291 = vadd.f32 %v1473, %v2290
  %v2292 = vpop.f32.mrf.mxu0
  %v2293 = vadd.f32 %v1473, %v2292
  %2294 = vmatmul.bf16.gmra.mxu0 %v1413
  %v2295 = vpop.f32.mrf.mxu0
  %v2296 = vadd.f32 %v1473, %v2295
  %v2297 = vpop.f32.mrf.mxu0
  %v2298 = vadd.f32 %v1473, %v2297
  %2299 = vmatmul.bf16.gmra.mxu0 %v1415
  %v2300 = vpop.f32.mrf.mxu0
  %v2301 = vadd.f32 %v1473, %v2300
  %v2302 = vpop.f32.mrf.mxu0
  %v2303 = vadd.f32 %v1473, %v2302
  %2304 = vmatmul.bf16.gmra.mxu0 %v1417
  %v2305 = vpop.f32.mrf.mxu0
  %v2306 = vadd.f32 %v1473, %v2305
  %v2307 = vpop.f32.mrf.mxu0
  %v2308 = vadd.f32 %v1473, %v2307
  %2309 = vmatmul.bf16.gmra.mxu0 %v1419
  %v2310 = vpop.f32.mrf.mxu0
  %v2311 = vadd.f32 %v1473, %v2310
  %v2312 = vpop.f32.mrf.mxu0
  %v2313 = vadd.f32 %v1473, %v2312
  %2314 = vmatmul.bf16.gmra.mxu0 %v1421
  %v2315 = vpop.f32.mrf.mxu0
  %v2316 = vadd.f32 %v1473, %v2315
  %v2317 = vpop.f32.mrf.mxu0
  %v2318 = vadd.f32 %v1473, %v2317
  %2319 = vmatmul.bf16.gmra.mxu0 %v1423
  %v2320 = vpop.f32.mrf.mxu0
  %v2321 = vadd.f32 %v1473, %v2320
  %v2322 = vpop.f32.mrf.mxu0
  %v2323 = vadd.f32 %v1473, %v2322
  %2324 = vmatmul.bf16.gmra.mxu0 %v1425
  %v2325 = vpop.f32.mrf.mxu0
  %v2326 = vadd.f32 %v1473, %v2325
  %v2327 = vpop.f32.mrf.mxu0
  %v2328 = vadd.f32 %v1473, %v2327
  %2329 = vmatmul.bf16.gmra.mxu0 %v1427
  %v2330 = vpop.f32.mrf.mxu0
  %v2331 = vadd.f32 %v1473, %v2330
  %v2332 = vpop.f32.mrf.mxu0
  %v2333 = vadd.f32 %v1473, %v2332
  %2334 = vmatmul.bf16.gmra.mxu0 %v1429
  %v2335 = vpop.f32.mrf.mxu0
  %v2336 = vadd.f32 %v1473, %v2335
  %v2337 = vpop.f32.mrf.mxu0
  %v2338 = vadd.f32 %v1473, %v2337
  %2339 = vmatmul.bf16.gmra.mxu0 %v1431
  %v2340 = vpop.f32.mrf.mxu0
  %v2341 = vadd.f32 %v1473, %v2340
  %v2342 = vpop.f32.mrf.mxu0
  %v2343 = vadd.f32 %v1473, %v2342
  %2344 = vdwg.mxu0
  %2345 = vmatpush.bf16.msra.mxu0 0
  %2346 = vmatpush.bf16.msra.mxu0 0
  %2347 = vmatpush.bf16.msra.mxu0 0
  %2348 = vmatpush.bf16.msra.mxu0 0
  %2349 = vmatpush.bf16.msra.mxu0 0
  %2350 = vmatpush.bf16.msra.mxu0 0
  %2351 = vmatpush.bf16.msra.mxu0 0
  %2352 = vmatpush.bf16.msra.mxu0 %v1698
  %2353 = vmatmul.bf16.gmra.mxu0 %v1620
  %v2354 = vpop.f32.mrf.mxu0
  %v2355 = vadd.f32 %v2226, %v2354
  %v2356 = vpop.f32.mrf.mxu0
  %v2357 = vadd.f32 %v2228, %v2356
  %2358 = vmatmul.bf16.gmra.mxu0 %v1623
  %v2359 = vpop.f32.mrf.mxu0
  %v2360 = vadd.f32 %v2231, %v2359
  %v2361 = vpop.f32.mrf.mxu0
  %v2362 = vadd.f32 %v2233, %v2361
  %2363 = vmatmul.bf16.gmra.mxu0 %v1626
  %v2364 = vpop.f32.mrf.mxu0
  %v2365 = vadd.f32 %v2236, %v2364
  %v2366 = vpop.f32.mrf.mxu0
  %v2367 = vadd.f32 %v2238, %v2366
  %2368 = vmatmul.bf16.gmra.mxu0 %v1629
  %v2369 = vpop.f32.mrf.mxu0
  %v2370 = vadd.f32 %v2241, %v2369
  %v2371 = vpop.f32.mrf.mxu0
  %v2372 = vadd.f32 %v2243, %v2371
  %2373 = vmatmul.bf16.gmra.mxu0 %v1632
  %v2374 = vpop.f32.mrf.mxu0
  %v2375 = vadd.f32 %v2246, %v2374
  %v2376 = vpop.f32.mrf.mxu0
  %v2377 = vadd.f32 %v2248, %v2376
  %2378 = vmatmul.bf16.gmra.mxu0 %v1635
  %v2379 = vpop.f32.mrf.mxu0
  %v2380 = vadd.f32 %v2251, %v2379
  %v2381 = vpop.f32.mrf.mxu0
  %v2382 = vadd.f32 %v2253, %v2381
  %2383 = vmatmul.bf16.gmra.mxu0 %v1638
  %v2384 = vpop.f32.mrf.mxu0
  %v2385 = vadd.f32 %v2256, %v2384
  %v2386 = vpop.f32.mrf.mxu0
  %v2387 = vadd.f32 %v2258, %v2386
  %2388 = vmatmul.bf16.gmra.mxu0 %v1641
  %v2389 = vpop.f32.mrf.mxu0
  %v2390 = vadd.f32 %v2261, %v2389
  %v2391 = vpop.f32.mrf.mxu0
  %v2392 = vadd.f32 %v2263, %v2391
  %2393 = vmatmul.bf16.gmra.mxu0 %v1644
  %v2394 = vpop.f32.mrf.mxu0
  %v2395 = vadd.f32 %v2266, %v2394
  %v2396 = vpop.f32.mrf.mxu0
  %v2397 = vadd.f32 %v2268, %v2396
  %2398 = vmatmul.bf16.gmra.mxu0 %v1647
  %v2399 = vpop.f32.mrf.mxu0
  %v2400 = vadd.f32 %v2271, %v2399
  %v2401 = vpop.f32.mrf.mxu0
  %v2402 = vadd.f32 %v2273, %v2401
  %2403 = vmatmul.bf16.gmra.mxu0 %v1650
  %v2404 = vpop.f32.mrf.mxu0
  %v2405 = vadd.f32 %v2276, %v2404
  %v2406 = vpop.f32.mrf.mxu0
  %v2407 = vadd.f32 %v2278, %v2406
  %2408 = vmatmul.bf16.gmra.mxu0 %v1653
  %v2409 = vpop.f32.mrf.mxu0
  %v2410 = vadd.f32 %v2281, %v2409
  %v2411 = vpop.f32.mrf.mxu0
  %v2412 = vadd.f32 %v2283, %v2411
  %2413 = vmatmul.bf16.gmra.mxu0 %v1656
  %v2414 = vpop.f32.mrf.mxu0
  %v2415 = vadd.f32 %v2286, %v2414
  %v2416 = vpop.f32.mrf.mxu0
  %v2417 = vadd.f32 %v2288, %v2416
  %2418 = vmatmul.bf16.gmra.mxu0 %v1659
  %v2419 = vpop.f32.mrf.mxu0
  %v2420 = vadd.f32 %v2291, %v2419
  %v2421 = vpop.f32.mrf.mxu0
  %v2422 = vadd.f32 %v2293, %v2421
  %2423 = vmatmul.bf16.gmra.mxu0 %v1662
  %v2424 = vpop.f32.mrf.mxu0
  %v2425 = vadd.f32 %v2296, %v2424
  %v2426 = vpop.f32.mrf.mxu0
  %v2427 = vadd.f32 %v2298, %v2426
  %2428 = vmatmul.bf16.gmra.mxu0 %v1665
  %v2429 = vpop.f32.mrf.mxu0
  %v2430 = vadd.f32 %v2301, %v2429
  %v2431 = vpop.f32.mrf.mxu0
  %v2432 = vadd.f32 %v2303, %v2431
  %2433 = vmatmul.bf16.gmra.mxu0 %v1668
  %v2434 = vpop.f32.mrf.mxu0
  %v2435 = vadd.f32 %v2306, %v2434
  %v2436 = vpop.f32.mrf.mxu0
  %v2437 = vadd.f32 %v2308, %v2436
  %2438 = vmatmul.bf16.gmra.mxu0 %v1671
  %v2439 = vpop.f32.mrf.mxu0
  %v2440 = vadd.f32 %v2311, %v2439
  %v2441 = vpop.f32.mrf.mxu0
  %v2442 = vadd.f32 %v2313, %v2441
  %2443 = vmatmul.bf16.gmra.mxu0 %v1674
  %v2444 = vpop.f32.mrf.mxu0
  %v2445 = vadd.f32 %v2316, %v2444
  %v2446 = vpop.f32.mrf.mxu0
  %v2447 = vadd.f32 %v2318, %v2446
  %2448 = vmatmul.bf16.gmra.mxu0 %v1677
  %v2449 = vpop.f32.mrf.mxu0
  %v2450 = vadd.f32 %v2321, %v2449
  %v2451 = vpop.f32.mrf.mxu0
  %v2452 = vadd.f32 %v2323, %v2451
  %2453 = vmatmul.bf16.gmra.mxu0 %v1680
  %v2454 = vpop.f32.mrf.mxu0
  %v2455 = vadd.f32 %v2326, %v2454
  %v2456 = vpop.f32.mrf.mxu0
  %v2457 = vadd.f32 %v2328, %v2456
  %2458 = vmatmul.bf16.gmra.mxu0 %v1683
  %v2459 = vpop.f32.mrf.mxu0
  %v2460 = vadd.f32 %v2331, %v2459
  %v2461 = vpop.f32.mrf.mxu0
  %v2462 = vadd.f32 %v2333, %v2461
  %2463 = vmatmul.bf16.gmra.mxu0 %v1686
  %v2464 = vpop.f32.mrf.mxu0
  %v2465 = vadd.f32 %v2336, %v2464
  %v2466 = vpop.f32.mrf.mxu0
  %v2467 = vadd.f32 %v2338, %v2466
  %2468 = vmatmul.bf16.gmra.mxu0 %v1689
  %v2469 = vpop.f32.mrf.mxu0
  %v2470 = vadd.f32 %v2341, %v2469
  %v2471 = vpop.f32.mrf.mxu0
  %v2472 = vadd.f32 %v2343, %v2471
  %2473 = vdwg.mxu0
  %v2618 = vrot.slane %v1839, 1
  %v2619 = vrot.slane %v1841, 1
  %v2620 = vsel %vm161, %v2618, %v2619
  %v2621 = vrot.slane %v2097, 1
  %v2622 = vrot.slane %v2099, 1
  %v2623 = vsel %vm161, %v2621, %v2622
  %v2624 = vrot.slane %v2355, 1
  %v2625 = vrot.slane %v2357, 1
  %v2626 = vsel %vm161, %v2624, %v2625
  %v2627 = vrot.slane %v1844, 1
  %v2628 = vsel %vm161, %v2619, %v2627
  %v2629 = vrot.slane %v2102, 1
  %v2630 = vsel %vm161, %v2622, %v2629
  %v2631 = vrot.slane %v2360, 1
  %v2632 = vsel %vm161, %v2625, %v2631
  %v2633 = vrot.slane %v1846, 1
  %v2634 = vsel %vm161, %v2627, %v2633
  %v2635 = vrot.slane %v2104, 1
  %v2636 = vsel %vm161, %v2629, %v2635
  %v2637 = vrot.slane %v2362, 1
  %v2638 = vsel %vm161, %v2631, %v2637
  %v2639 = vrot.slane %v1849, 1
  %v2640 = vsel %vm161, %v2633, %v2639
  %v2641 = vrot.slane %v2107, 1
  %v2642 = vsel %vm161, %v2635, %v2641
  %v2643 = vrot.slane %v2365, 1
  %v2644 = vsel %vm161, %v2637, %v2643
  %v2645 = vrot.slane %v1851, 1
  %v2646 = vsel %vm161, %v2639, %v2645
  %v2647 = vrot.slane %v2109, 1
  %v2648 = vsel %vm161, %v2641, %v2647
  %v2649 = vrot.slane %v2367, 1
  %v2650 = vsel %vm161, %v2643, %v2649
  %v2651 = vrot.slane %v1854, 1
  %v2652 = vsel %vm161, %v2645, %v2651
  %v2653 = vrot.slane %v2112, 1
  %v2654 = vsel %vm161, %v2647, %v2653
  %v2655 = vrot.slane %v2370, 1
  %v2656 = vsel %vm161, %v2649, %v2655
  %v2657 = vrot.slane %v1856, 1
  %v2658 = vsel %vm161, %v2651, %v2657
  %v2659 = vrot.slane %v2114, 1
  %v2660 = vsel %vm161, %v2653, %v2659
  %v2661 = vrot.slane %v2372, 1
  %v2662 = vsel %vm161, %v2655, %v2661
  %v2663 = vrot.slane %v1859, 1
  %v2664 = vsel %vm161, %v2657, %v2663
  %v2665 = vrot.slane %v2117, 1
  %v2666 = vsel %vm161, %v2659, %v2665
  %v2667 = vrot.slane %v2375, 1
  %v2668 = vsel %vm161, %v2661, %v2667
  %v2669 = vrot.slane %v1861, 1
  %v2670 = vsel %vm161, %v2663, %v2669
  %v2671 = vrot.slane %v2119, 1
  %v2672 = vsel %vm161, %v2665, %v2671
  %v2673 = vrot.slane %v2377, 1
  %v2674 = vsel %vm161, %v2667, %v2673
  %v2675 = vrot.slane %v1864, 1
  %v2676 = vsel %vm161, %v2669, %v2675
  %v2677 = vrot.slane %v2122, 1
  %v2678 = vsel %vm161, %v2671, %v2677
  %v2679 = vrot.slane %v2380, 1
  %v2680 = vsel %vm161, %v2673, %v2679
  %v2681 = vrot.slane %v1866, 1
  %v2682 = vsel %vm161, %v2675, %v2681
  %v2683 = vrot.slane %v2124, 1
  %v2684 = vsel %vm161, %v2677, %v2683
  %v2685 = vrot.slane %v2382, 1
  %v2686 = vsel %vm161, %v2679, %v2685
  %v2687 = vrot.slane %v1869, 1
  %v2688 = vsel %vm161, %v2681, %v2687
  %v2689 = vrot.slane %v2127, 1
  %v2690 = vsel %vm161, %v2683, %v2689
  %v2691 = vrot.slane %v2385, 1
  %v2692 = vsel %vm161, %v2685, %v2691
  %v2693 = vrot.slane %v1871, 1
  %v2694 = vsel %vm161, %v2687, %v2693
  %v2695 = vrot.slane %v2129, 1
  %v2696 = vsel %vm161, %v2689, %v2695
  %v2697 = vrot.slane %v2387, 1
  %v2698 = vsel %vm161, %v2691, %v2697
  %v2699 = vrot.slane %v1874, 1
  %v2700 = vsel %vm161, %v2693, %v2699
  %v2701 = vrot.slane %v2132, 1
  %v2702 = vsel %vm161, %v2695, %v2701
  %v2703 = vrot.slane %v2390, 1
  %v2704 = vsel %vm161, %v2697, %v2703
  %v2705 = vrot.slane %v1876, 1
  %v2706 = vsel %vm161, %v2699, %v2705
  %v2707 = vrot.slane %v2134, 1
  %v2708 = vsel %vm161, %v2701, %v2707
  %v2709 = vrot.slane %v2392, 1
  %v2710 = vsel %vm161, %v2703, %v2709
  %v2711 = vrot.slane %v1879, 1
  %v2712 = vsel %vm161, %v2705, %v2711
  %v2713 = vrot.slane %v2137, 1
  %v2714 = vsel %vm161, %v2707, %v2713
  %v2715 = vrot.slane %v2395, 1
  %v2716 = vsel %vm161, %v2709, %v2715
  %v2717 = vrot.slane %v1881, 1
  %v2718 = vsel %vm161, %v2711, %v2717
  %v2719 = vrot.slane %v2139, 1
  %v2720 = vsel %vm161, %v2713, %v2719
  %v2721 = vrot.slane %v2397, 1
  %v2722 = vsel %vm161, %v2715, %v2721
  %v2723 = vrot.slane %v1884, 1
  %v2724 = vsel %vm161, %v2717, %v2723
  %v2725 = vrot.slane %v2142, 1
  %v2726 = vsel %vm161, %v2719, %v2725
  %v2727 = vrot.slane %v2400, 1
  %v2728 = vsel %vm161, %v2721, %v2727
  %v2729 = vrot.slane %v1886, 1
  %v2730 = vsel %vm161, %v2723, %v2729
  %v2731 = vrot.slane %v2144, 1
  %v2732 = vsel %vm161, %v2725, %v2731
  %v2733 = vrot.slane %v2402, 1
  %v2734 = vsel %vm161, %v2727, %v2733
  %v2735 = vrot.slane %v1889, 1
  %v2736 = vsel %vm161, %v2729, %v2735
  %v2737 = vrot.slane %v2147, 1
  %v2738 = vsel %vm161, %v2731, %v2737
  %v2739 = vrot.slane %v2405, 1
  %v2740 = vsel %vm161, %v2733, %v2739
  %v2741 = vrot.slane %v1891, 1
  %v2742 = vsel %vm161, %v2735, %v2741
  %v2743 = vrot.slane %v2149, 1
  %v2744 = vsel %vm161, %v2737, %v2743
  %v2745 = vrot.slane %v2407, 1
  %v2746 = vsel %vm161, %v2739, %v2745
  %v2747 = vrot.slane %v1894, 1
  %v2748 = vsel %vm161, %v2741, %v2747
  %v2749 = vrot.slane %v2152, 1
  %v2750 = vsel %vm161, %v2743, %v2749
  %v2751 = vrot.slane %v2410, 1
  %v2752 = vsel %vm161, %v2745, %v2751
  %v2753 = vrot.slane %v1896, 1
  %v2754 = vsel %vm161, %v2747, %v2753
  %v2755 = vrot.slane %v2154, 1
  %v2756 = vsel %vm161, %v2749, %v2755
  %v2757 = vrot.slane %v2412, 1
  %v2758 = vsel %vm161, %v2751, %v2757
  %v2759 = vrot.slane %v1899, 1
  %v2760 = vsel %vm161, %v2753, %v2759
  %v2761 = vrot.slane %v2157, 1
  %v2762 = vsel %vm161, %v2755, %v2761
  %v2763 = vrot.slane %v2415, 1
  %v2764 = vsel %vm161, %v2757, %v2763
  %v2765 = vrot.slane %v1901, 1
  %v2766 = vsel %vm161, %v2759, %v2765
  %v2767 = vrot.slane %v2159, 1
  %v2768 = vsel %vm161, %v2761, %v2767
  %v2769 = vrot.slane %v2417, 1
  %v2770 = vsel %vm161, %v2763, %v2769
  %v2771 = vrot.slane %v1904, 1
  %v2772 = vsel %vm161, %v2765, %v2771
  %v2773 = vrot.slane %v2162, 1
  %v2774 = vsel %vm161, %v2767, %v2773
  %v2775 = vrot.slane %v2420, 1
  %v2776 = vsel %vm161, %v2769, %v2775
  %v2777 = vrot.slane %v1906, 1
  %v2778 = vsel %vm161, %v2771, %v2777
  %v2779 = vrot.slane %v2164, 1
  %v2780 = vsel %vm161, %v2773, %v2779
  %v2781 = vrot.slane %v2422, 1
  %v2782 = vsel %vm161, %v2775, %v2781
  %v2783 = vrot.slane %v1909, 1
  %v2784 = vsel %vm161, %v2777, %v2783
  %v2785 = vrot.slane %v2167, 1
  %v2786 = vsel %vm161, %v2779, %v2785
  %v2787 = vrot.slane %v2425, 1
  %v2788 = vsel %vm161, %v2781, %v2787
  %v2789 = vrot.slane %v1911, 1
  %v2790 = vsel %vm161, %v2783, %v2789
  %v2791 = vrot.slane %v2169, 1
  %v2792 = vsel %vm161, %v2785, %v2791
  %v2793 = vrot.slane %v2427, 1
  %v2794 = vsel %vm161, %v2787, %v2793
  %v2795 = vrot.slane %v1914, 1
  %v2796 = vsel %vm161, %v2789, %v2795
  %v2797 = vrot.slane %v2172, 1
  %v2798 = vsel %vm161, %v2791, %v2797
  %v2799 = vrot.slane %v2430, 1
  %v2800 = vsel %vm161, %v2793, %v2799
  %v2801 = vrot.slane %v1916, 1
  %v2802 = vsel %vm161, %v2795, %v2801
  %v2803 = vrot.slane %v2174, 1
  %v2804 = vsel %vm161, %v2797, %v2803
  %v2805 = vrot.slane %v2432, 1
  %v2806 = vsel %vm161, %v2799, %v2805
  %v2807 = vrot.slane %v1919, 1
  %v2808 = vsel %vm161, %v2801, %v2807
  %v2809 = vrot.slane %v2177, 1
  %v2810 = vsel %vm161, %v2803, %v2809
  %v2811 = vrot.slane %v2435, 1
  %v2812 = vsel %vm161, %v2805, %v2811
  %v2813 = vrot.slane %v1921, 1
  %v2814 = vsel %vm161, %v2807, %v2813
  %v2815 = vrot.slane %v2179, 1
  %v2816 = vsel %vm161, %v2809, %v2815
  %v2817 = vrot.slane %v2437, 1
  %v2818 = vsel %vm161, %v2811, %v2817
  %v2819 = vrot.slane %v1924, 1
  %v2820 = vsel %vm161, %v2813, %v2819
  %v2821 = vrot.slane %v2182, 1
  %v2822 = vsel %vm161, %v2815, %v2821
  %v2823 = vrot.slane %v2440, 1
  %v2824 = vsel %vm161, %v2817, %v2823
  %v2825 = vrot.slane %v1926, 1
  %v2826 = vsel %vm161, %v2819, %v2825
  %v2827 = vrot.slane %v2184, 1
  %v2828 = vsel %vm161, %v2821, %v2827
  %v2829 = vrot.slane %v2442, 1
  %v2830 = vsel %vm161, %v2823, %v2829
  %v2831 = vrot.slane %v1929, 1
  %v2832 = vsel %vm161, %v2825, %v2831
  %v2833 = vrot.slane %v2187, 1
  %v2834 = vsel %vm161, %v2827, %v2833
  %v2835 = vrot.slane %v2445, 1
  %v2836 = vsel %vm161, %v2829, %v2835
  %v2837 = vrot.slane %v1931, 1
  %v2838 = vsel %vm161, %v2831, %v2837
  %v2839 = vrot.slane %v2189, 1
  %v2840 = vsel %vm161, %v2833, %v2839
  %v2841 = vrot.slane %v2447, 1
  %v2842 = vsel %vm161, %v2835, %v2841
  %v2843 = vrot.slane %v1934, 1
  %v2844 = vsel %vm161, %v2837, %v2843
  %v2845 = vrot.slane %v2192, 1
  %v2846 = vsel %vm161, %v2839, %v2845
  %v2847 = vrot.slane %v2450, 1
  %v2848 = vsel %vm161, %v2841, %v2847
  %v2849 = vrot.slane %v1936, 1
  %v2850 = vsel %vm161, %v2843, %v2849
  %v2851 = vrot.slane %v2194, 1
  %v2852 = vsel %vm161, %v2845, %v2851
  %v2853 = vrot.slane %v2452, 1
  %v2854 = vsel %vm161, %v2847, %v2853
  %v2855 = vrot.slane %v1939, 1
  %v2856 = vsel %vm161, %v2849, %v2855
  %v2857 = vrot.slane %v2197, 1
  %v2858 = vsel %vm161, %v2851, %v2857
  %v2859 = vrot.slane %v2455, 1
  %v2860 = vsel %vm161, %v2853, %v2859
  %v2861 = vrot.slane %v1941, 1
  %v2862 = vsel %vm161, %v2855, %v2861
  %v2863 = vrot.slane %v2199, 1
  %v2864 = vsel %vm161, %v2857, %v2863
  %v2865 = vrot.slane %v2457, 1
  %v2866 = vsel %vm161, %v2859, %v2865
  %v2867 = vrot.slane %v1944, 1
  %v2868 = vsel %vm161, %v2861, %v2867
  %v2869 = vrot.slane %v2202, 1
  %v2870 = vsel %vm161, %v2863, %v2869
  %v2871 = vrot.slane %v2460, 1
  %v2872 = vsel %vm161, %v2865, %v2871
  %v2873 = vrot.slane %v1946, 1
  %v2874 = vsel %vm161, %v2867, %v2873
  %v2875 = vrot.slane %v2204, 1
  %v2876 = vsel %vm161, %v2869, %v2875
  %v2877 = vrot.slane %v2462, 1
  %v2878 = vsel %vm161, %v2871, %v2877
  %v2879 = vrot.slane %v1949, 1
  %v2880 = vsel %vm161, %v2873, %v2879
  %v2881 = vrot.slane %v2207, 1
  %v2882 = vsel %vm161, %v2875, %v2881
  %v2883 = vrot.slane %v2465, 1
  %v2884 = vsel %vm161, %v2877, %v2883
  %v2885 = vrot.slane %v1951, 1
  %v2886 = vsel %vm161, %v2879, %v2885
  %v2887 = vrot.slane %v2209, 1
  %v2888 = vsel %vm161, %v2881, %v2887
  %v2889 = vrot.slane %v2467, 1
  %v2890 = vsel %vm161, %v2883, %v2889
  %v2891 = vrot.slane %v1954, 1
  %v2892 = vsel %vm161, %v2885, %v2891
  %v2893 = vrot.slane %v2212, 1
  %v2894 = vsel %vm161, %v2887, %v2893
  %v2895 = vrot.slane %v2470, 1
  %v2896 = vsel %vm161, %v2889, %v2895
  %v2897 = vrot.slane %v1956, 1
  %v2898 = vsel %vm161, %v2891, %v2897
  %v2899 = vrot.slane %v2214, 1
  %v2900 = vsel %vm161, %v2893, %v2899
  %v2901 = vrot.slane %v2472, 1
  %v2902 = vsel %vm161, %v2895, %v2901
  %v3050 = vsel %vm161, %v2897, %v2618
  %v3051 = vsel %vm161, %v2899, %v2621
  %v3052 = vsel %vm161, %v2901, %v2624
  %v3053 = vmax.f32 %v1839, %v2620
  %v3054 = vmax.f32 %v2097, %v2623
  %v3055 = vmax.f32 %v2355, %v2626
  %v3056 = vmax.f32 %v1841, %v2628
  %v3057 = vmax.f32 %v2099, %v2630
  %v3058 = vmax.f32 %v2357, %v2632
  %v3059 = vmax.f32 %v1844, %v2634
  %v3060 = vmax.f32 %v2102, %v2636
  %v3061 = vmax.f32 %v2360, %v2638
  %v3062 = vmax.f32 %v1846, %v2640
  %v3063 = vmax.f32 %v2104, %v2642
  %v3064 = vmax.f32 %v2362, %v2644
  %v3065 = vmax.f32 %v1849, %v2646
  %v3066 = vmax.f32 %v2107, %v2648
  %v3067 = vmax.f32 %v2365, %v2650
  %v3068 = vmax.f32 %v1851, %v2652
  %v3069 = vmax.f32 %v2109, %v2654
  %v3070 = vmax.f32 %v2367, %v2656
  %v3071 = vmax.f32 %v1854, %v2658
  %v3072 = vmax.f32 %v2112, %v2660
  %v3073 = vmax.f32 %v2370, %v2662
  %v3074 = vmax.f32 %v1856, %v2664
  %v3075 = vmax.f32 %v2114, %v2666
  %v3076 = vmax.f32 %v2372, %v2668
  %v3077 = vmax.f32 %v1859, %v2670
  %v3078 = vmax.f32 %v2117, %v2672
  %v3079 = vmax.f32 %v2375, %v2674
  %v3080 = vmax.f32 %v1861, %v2676
  %v3081 = vmax.f32 %v2119, %v2678
  %v3082 = vmax.f32 %v2377, %v2680
  %v3083 = vmax.f32 %v1864, %v2682
  %v3084 = vmax.f32 %v2122, %v2684
  %v3085 = vmax.f32 %v2380, %v2686
  %v3086 = vmax.f32 %v1866, %v2688
  %v3087 = vmax.f32 %v2124, %v2690
  %v3088 = vmax.f32 %v2382, %v2692
  %v3089 = vmax.f32 %v1869, %v2694
  %v3090 = vmax.f32 %v2127, %v2696
  %v3091 = vmax.f32 %v2385, %v2698
  %v3092 = vmax.f32 %v1871, %v2700
  %v3093 = vmax.f32 %v2129, %v2702
  %v3094 = vmax.f32 %v2387, %v2704
  %v3095 = vmax.f32 %v1874, %v2706
  %v3096 = vmax.f32 %v2132, %v2708
  %v3097 = vmax.f32 %v2390, %v2710
  %v3098 = vmax.f32 %v1876, %v2712
  %v3099 = vmax.f32 %v2134, %v2714
  %v3100 = vmax.f32 %v2392, %v2716
  %v3101 = vmax.f32 %v1879, %v2718
  %v3102 = vmax.f32 %v2137, %v2720
  %v3103 = vmax.f32 %v2395, %v2722
  %v3104 = vmax.f32 %v1881, %v2724
  %v3105 = vmax.f32 %v2139, %v2726
  %v3106 = vmax.f32 %v2397, %v2728
  %v3107 = vmax.f32 %v1884, %v2730
  %v3108 = vmax.f32 %v2142, %v2732
  %v3109 = vmax.f32 %v2400, %v2734
  %v3110 = vmax.f32 %v1886, %v2736
  %v3111 = vmax.f32 %v2144, %v2738
  %v3112 = vmax.f32 %v2402, %v2740
  %v3113 = vmax.f32 %v1889, %v2742
  %v3114 = vmax.f32 %v2147, %v2744
  %v3115 = vmax.f32 %v2405, %v2746
  %v3116 = vmax.f32 %v1891, %v2748
  %v3117 = vmax.f32 %v2149, %v2750
  %v3118 = vmax.f32 %v2407, %v2752
  %v3119 = vmax.f32 %v1894, %v2754
  %v3120 = vmax.f32 %v2152, %v2756
  %v3121 = vmax.f32 %v2410, %v2758
  %v3122 = vmax.f32 %v1896, %v2760
  %v3123 = vmax.f32 %v2154, %v2762
  %v3124 = vmax.f32 %v2412, %v2764
  %v3125 = vmax.f32 %v1899, %v2766
  %v3126 = vmax.f32 %v2157, %v2768
  %v3127 = vmax.f32 %v2415, %v2770
  %v3128 = vmax.f32 %v1901, %v2772
  %v3129 = vmax.f32 %v2159, %v2774
  %v3130 = vmax.f32 %v2417, %v2776
  %v3131 = vmax.f32 %v1904, %v2778
  %v3132 = vmax.f32 %v2162, %v2780
  %v3133 = vmax.f32 %v2420, %v2782
  %v3134 = vmax.f32 %v1906, %v2784
  %v3135 = vmax.f32 %v2164, %v2786
  %v3136 = vmax.f32 %v2422, %v2788
  %v3137 = vmax.f32 %v1909, %v2790
  %v3138 = vmax.f32 %v2167, %v2792
  %v3139 = vmax.f32 %v2425, %v2794
  %v3140 = vmax.f32 %v1911, %v2796
  %v3141 = vmax.f32 %v2169, %v2798
  %v3142 = vmax.f32 %v2427, %v2800
  %v3143 = vmax.f32 %v1914, %v2802
  %v3144 = vmax.f32 %v2172, %v2804
  %v3145 = vmax.f32 %v2430, %v2806
  %v3146 = vmax.f32 %v1916, %v2808
  %v3147 = vmax.f32 %v2174, %v2810
  %v3148 = vmax.f32 %v2432, %v2812
  %v3149 = vmax.f32 %v1919, %v2814
  %v3150 = vmax.f32 %v2177, %v2816
  %v3151 = vmax.f32 %v2435, %v2818
  %v3152 = vmax.f32 %v1921, %v2820
  %v3153 = vmax.f32 %v2179, %v2822
  %v3154 = vmax.f32 %v2437, %v2824
  %v3155 = vmax.f32 %v1924, %v2826
  %v3156 = vmax.f32 %v2182, %v2828
  %v3157 = vmax.f32 %v2440, %v2830
  %v3158 = vmax.f32 %v1926, %v2832
  %v3159 = vmax.f32 %v2184, %v2834
  %v3160 = vmax.f32 %v2442, %v2836
  %v3161 = vmax.f32 %v1929, %v2838
  %v3162 = vmax.f32 %v2187, %v2840
  %v3163 = vmax.f32 %v2445, %v2842
  %v3164 = vmax.f32 %v1931, %v2844
  %v3165 = vmax.f32 %v2189, %v2846
  %v3166 = vmax.f32 %v2447, %v2848
  %v3167 = vmax.f32 %v1934, %v2850
  %v3168 = vmax.f32 %v2192, %v2852
  %v3169 = vmax.f32 %v2450, %v2854
  %v3170 = vmax.f32 %v1936, %v2856
  %v3171 = vmax.f32 %v2194, %v2858
  %v3172 = vmax.f32 %v2452, %v2860
  %v3173 = vmax.f32 %v1939, %v2862
  %v3174 = vmax.f32 %v2197, %v2864
  %v3175 = vmax.f32 %v2455, %v2866
  %v3176 = vmax.f32 %v1941, %v2868
  %v3177 = vmax.f32 %v2199, %v2870
  %v3178 = vmax.f32 %v2457, %v2872
  %v3179 = vmax.f32 %v1944, %v2874
  %v3180 = vmax.f32 %v2202, %v2876
  %v3181 = vmax.f32 %v2460, %v2878
  %v3182 = vmax.f32 %v1946, %v2880
  %v3183 = vmax.f32 %v2204, %v2882
  %v3184 = vmax.f32 %v2462, %v2884
  %v3185 = vmax.f32 %v1949, %v2886
  %v3186 = vmax.f32 %v2207, %v2888
  %v3187 = vmax.f32 %v2465, %v2890
  %v3188 = vmax.f32 %v1951, %v2892
  %v3189 = vmax.f32 %v2209, %v2894
  %v3190 = vmax.f32 %v2467, %v2896
  %v3191 = vmax.f32 %v1954, %v2898
  %v3192 = vmax.f32 %v2212, %v2900
  %v3193 = vmax.f32 %v2470, %v2902
  %v3194 = vmax.f32 %v1956, %v3050
  %v3195 = vmax.f32 %v2214, %v3051
  %v3196 = vmax.f32 %v2472, %v3052
  %3341 = vrot.lane.b32.xlu0 %v3053, 112
  %v3342 = vpop.permute.xlu0 %3341
  %3343 = vrot.lane.b32.xlu0 %v3054, 112
  %v3344 = vpop.permute.xlu0 %3343
  %3345 = vrot.lane.b32.xlu0 %v3055, 112
  %v3346 = vpop.permute.xlu0 %3345
  %3347 = vrot.lane.b32.xlu0 %v3056, 112
  %v3348 = vpop.permute.xlu0 %3347
  %3349 = vrot.lane.b32.xlu0 %v3057, 112
  %v3350 = vpop.permute.xlu0 %3349
  %3351 = vrot.lane.b32.xlu0 %v3058, 112
  %v3352 = vpop.permute.xlu0 %3351
  %3353 = vrot.lane.b32.xlu0 %v3059, 112
  %v3354 = vpop.permute.xlu0 %3353
  %3355 = vrot.lane.b32.xlu0 %v3060, 112
  %v3356 = vpop.permute.xlu0 %3355
  %3357 = vrot.lane.b32.xlu0 %v3061, 112
  %v3358 = vpop.permute.xlu0 %3357
  %3359 = vrot.lane.b32.xlu0 %v3062, 112
  %v3360 = vpop.permute.xlu0 %3359
  %3361 = vrot.lane.b32.xlu0 %v3063, 112
  %v3362 = vpop.permute.xlu0 %3361
  %3363 = vrot.lane.b32.xlu0 %v3064, 112
  %v3364 = vpop.permute.xlu0 %3363
  %3365 = vrot.lane.b32.xlu0 %v3065, 112
  %v3366 = vpop.permute.xlu0 %3365
  %3367 = vrot.lane.b32.xlu0 %v3066, 112
  %v3368 = vpop.permute.xlu0 %3367
  %3369 = vrot.lane.b32.xlu0 %v3067, 112
  %v3370 = vpop.permute.xlu0 %3369
  %3371 = vrot.lane.b32.xlu0 %v3068, 112
  %v3372 = vpop.permute.xlu0 %3371
  %3373 = vrot.lane.b32.xlu0 %v3069, 112
  %v3374 = vpop.permute.xlu0 %3373
  %3375 = vrot.lane.b32.xlu0 %v3070, 112
  %v3376 = vpop.permute.xlu0 %3375
  %3377 = vrot.lane.b32.xlu0 %v3071, 112
  %v3378 = vpop.permute.xlu0 %3377
  %3379 = vrot.lane.b32.xlu0 %v3072, 112
  %v3380 = vpop.permute.xlu0 %3379
  %3381 = vrot.lane.b32.xlu0 %v3073, 112
  %v3382 = vpop.permute.xlu0 %3381
  %3383 = vrot.lane.b32.xlu0 %v3074, 112
  %v3384 = vpop.permute.xlu0 %3383
  %3385 = vrot.lane.b32.xlu0 %v3075, 112
  %v3386 = vpop.permute.xlu0 %3385
  %3387 = vrot.lane.b32.xlu0 %v3076, 112
  %v3388 = vpop.permute.xlu0 %3387
  %3389 = vrot.lane.b32.xlu0 %v3077, 112
  %v3390 = vpop.permute.xlu0 %3389
  %3391 = vrot.lane.b32.xlu0 %v3078, 112
  %v3392 = vpop.permute.xlu0 %3391
  %3393 = vrot.lane.b32.xlu0 %v3079, 112
  %v3394 = vpop.permute.xlu0 %3393
  %3395 = vrot.lane.b32.xlu0 %v3080, 112
  %v3396 = vpop.permute.xlu0 %3395
  %3397 = vrot.lane.b32.xlu0 %v3081, 112
  %v3398 = vpop.permute.xlu0 %3397
  %3399 = vrot.lane.b32.xlu0 %v3082, 112
  %v3400 = vpop.permute.xlu0 %3399
  %3401 = vrot.lane.b32.xlu0 %v3083, 112
  %v3402 = vpop.permute.xlu0 %3401
  %3403 = vrot.lane.b32.xlu0 %v3084, 112
  %v3404 = vpop.permute.xlu0 %3403
  %3405 = vrot.lane.b32.xlu0 %v3085, 112
  %v3406 = vpop.permute.xlu0 %3405
  %3407 = vrot.lane.b32.xlu0 %v3086, 112
  %v3408 = vpop.permute.xlu0 %3407
  %3409 = vrot.lane.b32.xlu0 %v3087, 112
  %v3410 = vpop.permute.xlu0 %3409
  %3411 = vrot.lane.b32.xlu0 %v3088, 112
  %v3412 = vpop.permute.xlu0 %3411
  %3413 = vrot.lane.b32.xlu0 %v3089, 112
  %v3414 = vpop.permute.xlu0 %3413
  %3415 = vrot.lane.b32.xlu0 %v3090, 112
  %v3416 = vpop.permute.xlu0 %3415
  %3417 = vrot.lane.b32.xlu0 %v3091, 112
  %v3418 = vpop.permute.xlu0 %3417
  %3419 = vrot.lane.b32.xlu0 %v3092, 112
  %v3420 = vpop.permute.xlu0 %3419
  %3421 = vrot.lane.b32.xlu0 %v3093, 112
  %v3422 = vpop.permute.xlu0 %3421
  %3423 = vrot.lane.b32.xlu0 %v3094, 112
  %v3424 = vpop.permute.xlu0 %3423
  %3425 = vrot.lane.b32.xlu0 %v3095, 112
  %v3426 = vpop.permute.xlu0 %3425
  %3427 = vrot.lane.b32.xlu0 %v3096, 112
  %v3428 = vpop.permute.xlu0 %3427
  %3429 = vrot.lane.b32.xlu0 %v3097, 112
  %v3430 = vpop.permute.xlu0 %3429
  %3431 = vrot.lane.b32.xlu0 %v3098, 112
  %v3432 = vpop.permute.xlu0 %3431
  %3433 = vrot.lane.b32.xlu0 %v3099, 112
  %v3434 = vpop.permute.xlu0 %3433
  %3435 = vrot.lane.b32.xlu0 %v3100, 112
  %v3436 = vpop.permute.xlu0 %3435
  %3437 = vrot.lane.b32.xlu0 %v3101, 112
  %v3438 = vpop.permute.xlu0 %3437
  %3439 = vrot.lane.b32.xlu0 %v3102, 112
  %v3440 = vpop.permute.xlu0 %3439
  %3441 = vrot.lane.b32.xlu0 %v3103, 112
  %v3442 = vpop.permute.xlu0 %3441
  %3443 = vrot.lane.b32.xlu0 %v3104, 112
  %v3444 = vpop.permute.xlu0 %3443
  %3445 = vrot.lane.b32.xlu0 %v3105, 112
  %v3446 = vpop.permute.xlu0 %3445
  %3447 = vrot.lane.b32.xlu0 %v3106, 112
  %v3448 = vpop.permute.xlu0 %3447
  %3449 = vrot.lane.b32.xlu0 %v3107, 112
  %v3450 = vpop.permute.xlu0 %3449
  %3451 = vrot.lane.b32.xlu0 %v3108, 112
  %v3452 = vpop.permute.xlu0 %3451
  %3453 = vrot.lane.b32.xlu0 %v3109, 112
  %v3454 = vpop.permute.xlu0 %3453
  %3455 = vrot.lane.b32.xlu0 %v3110, 112
  %v3456 = vpop.permute.xlu0 %3455
  %3457 = vrot.lane.b32.xlu0 %v3111, 112
  %v3458 = vpop.permute.xlu0 %3457
  %3459 = vrot.lane.b32.xlu0 %v3112, 112
  %v3460 = vpop.permute.xlu0 %3459
  %3461 = vrot.lane.b32.xlu0 %v3113, 112
  %v3462 = vpop.permute.xlu0 %3461
  %3463 = vrot.lane.b32.xlu0 %v3114, 112
  %v3464 = vpop.permute.xlu0 %3463
  %3465 = vrot.lane.b32.xlu0 %v3115, 112
  %v3466 = vpop.permute.xlu0 %3465
  %3467 = vrot.lane.b32.xlu0 %v3116, 112
  %v3468 = vpop.permute.xlu0 %3467
  %3469 = vrot.lane.b32.xlu0 %v3117, 112
  %v3470 = vpop.permute.xlu0 %3469
  %3471 = vrot.lane.b32.xlu0 %v3118, 112
  %v3472 = vpop.permute.xlu0 %3471
  %3473 = vrot.lane.b32.xlu0 %v3119, 112
  %v3474 = vpop.permute.xlu0 %3473
  %3475 = vrot.lane.b32.xlu0 %v3120, 112
  %v3476 = vpop.permute.xlu0 %3475
  %3477 = vrot.lane.b32.xlu0 %v3121, 112
  %v3478 = vpop.permute.xlu0 %3477
  %3479 = vrot.lane.b32.xlu0 %v3122, 112
  %v3480 = vpop.permute.xlu0 %3479
  %3481 = vrot.lane.b32.xlu0 %v3123, 112
  %v3482 = vpop.permute.xlu0 %3481
  %3483 = vrot.lane.b32.xlu0 %v3124, 112
  %v3484 = vpop.permute.xlu0 %3483
  %3485 = vrot.lane.b32.xlu0 %v3125, 112
  %v3486 = vpop.permute.xlu0 %3485
  %3487 = vrot.lane.b32.xlu0 %v3126, 112
  %v3488 = vpop.permute.xlu0 %3487
  %3489 = vrot.lane.b32.xlu0 %v3127, 112
  %v3490 = vpop.permute.xlu0 %3489
  %3491 = vrot.lane.b32.xlu0 %v3128, 112
  %v3492 = vpop.permute.xlu0 %3491
  %3493 = vrot.lane.b32.xlu0 %v3129, 112
  %v3494 = vpop.permute.xlu0 %3493
  %3495 = vrot.lane.b32.xlu0 %v3130, 112
  %v3496 = vpop.permute.xlu0 %3495
  %3497 = vrot.lane.b32.xlu0 %v3131, 112
  %v3498 = vpop.permute.xlu0 %3497
  %3499 = vrot.lane.b32.xlu0 %v3132, 112
  %v3500 = vpop.permute.xlu0 %3499
  %3501 = vrot.lane.b32.xlu0 %v3133, 112
  %v3502 = vpop.permute.xlu0 %3501
  %3503 = vrot.lane.b32.xlu0 %v3134, 112
  %v3504 = vpop.permute.xlu0 %3503
  %3505 = vrot.lane.b32.xlu0 %v3135, 112
  %v3506 = vpop.permute.xlu0 %3505
  %3507 = vrot.lane.b32.xlu0 %v3136, 112
  %v3508 = vpop.permute.xlu0 %3507
  %3509 = vrot.lane.b32.xlu0 %v3137, 112
  %v3510 = vpop.permute.xlu0 %3509
  %3511 = vrot.lane.b32.xlu0 %v3138, 112
  %v3512 = vpop.permute.xlu0 %3511
  %3513 = vrot.lane.b32.xlu0 %v3139, 112
  %v3514 = vpop.permute.xlu0 %3513
  %3515 = vrot.lane.b32.xlu0 %v3140, 112
  %v3516 = vpop.permute.xlu0 %3515
  %3517 = vrot.lane.b32.xlu0 %v3141, 112
  %v3518 = vpop.permute.xlu0 %3517
  %3519 = vrot.lane.b32.xlu0 %v3142, 112
  %v3520 = vpop.permute.xlu0 %3519
  %3521 = vrot.lane.b32.xlu0 %v3143, 112
  %v3522 = vpop.permute.xlu0 %3521
  %3523 = vrot.lane.b32.xlu0 %v3144, 112
  %v3524 = vpop.permute.xlu0 %3523
  %3525 = vrot.lane.b32.xlu0 %v3145, 112
  %v3526 = vpop.permute.xlu0 %3525
  %3527 = vrot.lane.b32.xlu0 %v3146, 112
  %v3528 = vpop.permute.xlu0 %3527
  %3529 = vrot.lane.b32.xlu0 %v3147, 112
  %v3530 = vpop.permute.xlu0 %3529
  %3531 = vrot.lane.b32.xlu0 %v3148, 112
  %v3532 = vpop.permute.xlu0 %3531
  %3533 = vrot.lane.b32.xlu0 %v3149, 112
  %v3534 = vpop.permute.xlu0 %3533
  %3535 = vrot.lane.b32.xlu0 %v3150, 112
  %v3536 = vpop.permute.xlu0 %3535
  %3537 = vrot.lane.b32.xlu0 %v3151, 112
  %v3538 = vpop.permute.xlu0 %3537
  %3539 = vrot.lane.b32.xlu0 %v3152, 112
  %v3540 = vpop.permute.xlu0 %3539
  %3541 = vrot.lane.b32.xlu0 %v3153, 112
  %v3542 = vpop.permute.xlu0 %3541
  %3543 = vrot.lane.b32.xlu0 %v3154, 112
  %v3544 = vpop.permute.xlu0 %3543
  %3545 = vrot.lane.b32.xlu0 %v3155, 112
  %v3546 = vpop.permute.xlu0 %3545
  %3547 = vrot.lane.b32.xlu0 %v3156, 112
  %v3548 = vpop.permute.xlu0 %3547
  %3549 = vrot.lane.b32.xlu0 %v3157, 112
  %v3550 = vpop.permute.xlu0 %3549
  %3551 = vrot.lane.b32.xlu0 %v3158, 112
  %v3552 = vpop.permute.xlu0 %3551
  %3553 = vrot.lane.b32.xlu0 %v3159, 112
  %v3554 = vpop.permute.xlu0 %3553
  %3555 = vrot.lane.b32.xlu0 %v3160, 112
  %v3556 = vpop.permute.xlu0 %3555
  %3557 = vrot.lane.b32.xlu0 %v3161, 112
  %v3558 = vpop.permute.xlu0 %3557
  %3559 = vrot.lane.b32.xlu0 %v3162, 112
  %v3560 = vpop.permute.xlu0 %3559
  %3561 = vrot.lane.b32.xlu0 %v3163, 112
  %v3562 = vpop.permute.xlu0 %3561
  %3563 = vrot.lane.b32.xlu0 %v3164, 112
  %v3564 = vpop.permute.xlu0 %3563
  %3565 = vrot.lane.b32.xlu0 %v3165, 112
  %v3566 = vpop.permute.xlu0 %3565
  %3567 = vrot.lane.b32.xlu0 %v3166, 112
  %v3568 = vpop.permute.xlu0 %3567
  %3569 = vrot.lane.b32.xlu0 %v3167, 112
  %v3570 = vpop.permute.xlu0 %3569
  %3571 = vrot.lane.b32.xlu0 %v3168, 112
  %v3572 = vpop.permute.xlu0 %3571
  %3573 = vrot.lane.b32.xlu0 %v3169, 112
  %v3574 = vpop.permute.xlu0 %3573
  %3575 = vrot.lane.b32.xlu0 %v3170, 112
  %v3576 = vpop.permute.xlu0 %3575
  %3577 = vrot.lane.b32.xlu0 %v3171, 112
  %v3578 = vpop.permute.xlu0 %3577
  %3579 = vrot.lane.b32.xlu0 %v3172, 112
  %v3580 = vpop.permute.xlu0 %3579
  %3581 = vrot.lane.b32.xlu0 %v3173, 112
  %v3582 = vpop.permute.xlu0 %3581
  %3583 = vrot.lane.b32.xlu0 %v3174, 112
  %v3584 = vpop.permute.xlu0 %3583
  %3585 = vrot.lane.b32.xlu0 %v3175, 112
  %v3586 = vpop.permute.xlu0 %3585
  %3587 = vrot.lane.b32.xlu0 %v3176, 112
  %v3588 = vpop.permute.xlu0 %3587
  %3589 = vrot.lane.b32.xlu0 %v3177, 112
  %v3590 = vpop.permute.xlu0 %3589
  %3591 = vrot.lane.b32.xlu0 %v3178, 112
  %v3592 = vpop.permute.xlu0 %3591
  %3593 = vrot.lane.b32.xlu0 %v3179, 112
  %v3594 = vpop.permute.xlu0 %3593
  %3595 = vrot.lane.b32.xlu0 %v3180, 112
  %v3596 = vpop.permute.xlu0 %3595
  %3597 = vrot.lane.b32.xlu0 %v3181, 112
  %v3598 = vpop.permute.xlu0 %3597
  %3599 = vrot.lane.b32.xlu0 %v3182, 112
  %v3600 = vpop.permute.xlu0 %3599
  %3601 = vrot.lane.b32.xlu0 %v3183, 112
  %v3602 = vpop.permute.xlu0 %3601
  %3603 = vrot.lane.b32.xlu0 %v3184, 112
  %v3604 = vpop.permute.xlu0 %3603
  %3605 = vrot.lane.b32.xlu0 %v3185, 112
  %v3606 = vpop.permute.xlu0 %3605
  %3607 = vrot.lane.b32.xlu0 %v3186, 112
  %v3608 = vpop.permute.xlu0 %3607
  %3609 = vrot.lane.b32.xlu0 %v3187, 112
  %v3610 = vpop.permute.xlu0 %3609
  %3611 = vrot.lane.b32.xlu0 %v3188, 112
  %v3612 = vpop.permute.xlu0 %3611
  %3613 = vrot.lane.b32.xlu0 %v3189, 112
  %v3614 = vpop.permute.xlu0 %3613
  %3615 = vrot.lane.b32.xlu0 %v3190, 112
  %v3616 = vpop.permute.xlu0 %3615
  %3617 = vrot.lane.b32.xlu0 %v3191, 112
  %v3618 = vpop.permute.xlu0 %3617
  %3619 = vrot.lane.b32.xlu0 %v3192, 112
  %v3620 = vpop.permute.xlu0 %3619
  %3621 = vrot.lane.b32.xlu0 %v3193, 112
  %v3622 = vpop.permute.xlu0 %3621
  %3623 = vrot.lane.b32.xlu0 %v3194, 112
  %v3624 = vpop.permute.xlu0 %3623
  %3625 = vrot.lane.b32.xlu0 %v3195, 112
  %v3626 = vpop.permute.xlu0 %3625
  %3627 = vrot.lane.b32.xlu0 %v3196, 112
  %v3628 = vpop.permute.xlu0 %3627
  %v3629 = vsel %vm1336, %v3342, %v3344
  %v3630 = vsel %vm1336, %v3344, %v3346
  %v3631 = vsel %vm1336, %v3348, %v3350
  %v3632 = vsel %vm1336, %v3350, %v3352
  %v3633 = vsel %vm1336, %v3354, %v3356
  %v3634 = vsel %vm1336, %v3356, %v3358
  %v3635 = vsel %vm1336, %v3360, %v3362
  %v3636 = vsel %vm1336, %v3362, %v3364
  %v3637 = vsel %vm1336, %v3366, %v3368
  %v3638 = vsel %vm1336, %v3368, %v3370
  %v3639 = vsel %vm1336, %v3372, %v3374
  %v3640 = vsel %vm1336, %v3374, %v3376
  %v3641 = vsel %vm1336, %v3378, %v3380
  %v3642 = vsel %vm1336, %v3380, %v3382
  %v3643 = vsel %vm1336, %v3384, %v3386
  %v3644 = vsel %vm1336, %v3386, %v3388
  %v3645 = vsel %vm1336, %v3390, %v3392
  %v3646 = vsel %vm1336, %v3392, %v3394
  %v3647 = vsel %vm1336, %v3396, %v3398
  %v3648 = vsel %vm1336, %v3398, %v3400
  %v3649 = vsel %vm1336, %v3402, %v3404
  %v3650 = vsel %vm1336, %v3404, %v3406
  %v3651 = vsel %vm1336, %v3408, %v3410
  %v3652 = vsel %vm1336, %v3410, %v3412
  %v3653 = vsel %vm1336, %v3414, %v3416
  %v3654 = vsel %vm1336, %v3416, %v3418
  %v3655 = vsel %vm1336, %v3420, %v3422
  %v3656 = vsel %vm1336, %v3422, %v3424
  %v3657 = vsel %vm1336, %v3426, %v3428
  %v3658 = vsel %vm1336, %v3428, %v3430
  %v3659 = vsel %vm1336, %v3432, %v3434
  %v3660 = vsel %vm1336, %v3434, %v3436
  %v3661 = vsel %vm1336, %v3438, %v3440
  %v3662 = vsel %vm1336, %v3440, %v3442
  %v3663 = vsel %vm1336, %v3444, %v3446
  %v3664 = vsel %vm1336, %v3446, %v3448
  %v3665 = vsel %vm1336, %v3450, %v3452
  %v3666 = vsel %vm1336, %v3452, %v3454
  %v3667 = vsel %vm1336, %v3456, %v3458
  %v3668 = vsel %vm1336, %v3458, %v3460
  %v3669 = vsel %vm1336, %v3462, %v3464
  %v3670 = vsel %vm1336, %v3464, %v3466
  %v3671 = vsel %vm1336, %v3468, %v3470
  %v3672 = vsel %vm1336, %v3470, %v3472
  %v3673 = vsel %vm1336, %v3474, %v3476
  %v3674 = vsel %vm1336, %v3476, %v3478
  %v3675 = vsel %vm1336, %v3480, %v3482
  %v3676 = vsel %vm1336, %v3482, %v3484
  %v3677 = vsel %vm1336, %v3486, %v3488
  %v3678 = vsel %vm1336, %v3488, %v3490
  %v3679 = vsel %vm1336, %v3492, %v3494
  %v3680 = vsel %vm1336, %v3494, %v3496
  %v3681 = vsel %vm1336, %v3498, %v3500
  %v3682 = vsel %vm1336, %v3500, %v3502
  %v3683 = vsel %vm1336, %v3504, %v3506
  %v3684 = vsel %vm1336, %v3506, %v3508
  %v3685 = vsel %vm1336, %v3510, %v3512
  %v3686 = vsel %vm1336, %v3512, %v3514
  %v3687 = vsel %vm1336, %v3516, %v3518
  %v3688 = vsel %vm1336, %v3518, %v3520
  %v3689 = vsel %vm1336, %v3522, %v3524
  %v3690 = vsel %vm1336, %v3524, %v3526
  %v3691 = vsel %vm1336, %v3528, %v3530
  %v3692 = vsel %vm1336, %v3530, %v3532
  %v3693 = vsel %vm1336, %v3534, %v3536
  %v3694 = vsel %vm1336, %v3536, %v3538
  %v3695 = vsel %vm1336, %v3540, %v3542
  %v3696 = vsel %vm1336, %v3542, %v3544
  %v3697 = vsel %vm1336, %v3546, %v3548
  %v3698 = vsel %vm1336, %v3548, %v3550
  %v3699 = vsel %vm1336, %v3552, %v3554
  %v3700 = vsel %vm1336, %v3554, %v3556
  %v3701 = vsel %vm1336, %v3558, %v3560
  %v3702 = vsel %vm1336, %v3560, %v3562
  %v3703 = vsel %vm1336, %v3564, %v3566
  %v3704 = vsel %vm1336, %v3566, %v3568
  %v3705 = vsel %vm1336, %v3570, %v3572
  %v3706 = vsel %vm1336, %v3572, %v3574
  %v3707 = vsel %vm1336, %v3576, %v3578
  %v3708 = vsel %vm1336, %v3578, %v3580
  %v3709 = vsel %vm1336, %v3582, %v3584
  %v3710 = vsel %vm1336, %v3584, %v3586
  %v3711 = vsel %vm1336, %v3588, %v3590
  %v3712 = vsel %vm1336, %v3590, %v3592
  %v3713 = vsel %vm1336, %v3594, %v3596
  %v3714 = vsel %vm1336, %v3596, %v3598
  %v3715 = vsel %vm1336, %v3600, %v3602
  %v3716 = vsel %vm1336, %v3602, %v3604
  %v3717 = vsel %vm1336, %v3606, %v3608
  %v3718 = vsel %vm1336, %v3608, %v3610
  %v3719 = vsel %vm1336, %v3612, %v3614
  %v3720 = vsel %vm1336, %v3614, %v3616
  %v3721 = vsel %vm1336, %v3618, %v3620
  %v3722 = vsel %vm1336, %v3620, %v3622
  %v3723 = vsel %vm1336, %v3624, %v3626
  %v3724 = vsel %vm1336, %v3626, %v3628
  %v3917 = vsel %vm1336, %v3346, %v3342
  %v3918 = vsel %vm1336, %v3352, %v3348
  %v3919 = vsel %vm1336, %v3358, %v3354
  %v3920 = vsel %vm1336, %v3364, %v3360
  %v3921 = vsel %vm1336, %v3370, %v3366
  %v3922 = vsel %vm1336, %v3376, %v3372
  %v3923 = vsel %vm1336, %v3382, %v3378
  %v3924 = vsel %vm1336, %v3388, %v3384
  %v3925 = vsel %vm1336, %v3394, %v3390
  %v3926 = vsel %vm1336, %v3400, %v3396
  %v3927 = vsel %vm1336, %v3406, %v3402
  %v3928 = vsel %vm1336, %v3412, %v3408
  %v3929 = vsel %vm1336, %v3418, %v3414
  %v3930 = vsel %vm1336, %v3424, %v3420
  %v3931 = vsel %vm1336, %v3430, %v3426
  %v3932 = vsel %vm1336, %v3436, %v3432
  %v3933 = vsel %vm1336, %v3442, %v3438
  %v3934 = vsel %vm1336, %v3448, %v3444
  %v3935 = vsel %vm1336, %v3454, %v3450
  %v3936 = vsel %vm1336, %v3460, %v3456
  %v3937 = vsel %vm1336, %v3466, %v3462
  %v3938 = vsel %vm1336, %v3472, %v3468
  %v3939 = vsel %vm1336, %v3478, %v3474
  %v3940 = vsel %vm1336, %v3484, %v3480
  %v3941 = vsel %vm1336, %v3490, %v3486
  %v3942 = vsel %vm1336, %v3496, %v3492
  %v3943 = vsel %vm1336, %v3502, %v3498
  %v3944 = vsel %vm1336, %v3508, %v3504
  %v3945 = vsel %vm1336, %v3514, %v3510
  %v3946 = vsel %vm1336, %v3520, %v3516
  %v3947 = vsel %vm1336, %v3526, %v3522
  %v3948 = vsel %vm1336, %v3532, %v3528
  %v3949 = vsel %vm1336, %v3538, %v3534
  %v3950 = vsel %vm1336, %v3544, %v3540
  %v3951 = vsel %vm1336, %v3550, %v3546
  %v3952 = vsel %vm1336, %v3556, %v3552
  %v3953 = vsel %vm1336, %v3562, %v3558
  %v3954 = vsel %vm1336, %v3568, %v3564
  %v3955 = vsel %vm1336, %v3574, %v3570
  %v3956 = vsel %vm1336, %v3580, %v3576
  %v3957 = vsel %vm1336, %v3586, %v3582
  %v3958 = vsel %vm1336, %v3592, %v3588
  %v3959 = vsel %vm1336, %v3598, %v3594
  %v3960 = vsel %vm1336, %v3604, %v3600
  %v3961 = vsel %vm1336, %v3610, %v3606
  %v3962 = vsel %vm1336, %v3616, %v3612
  %v3963 = vsel %vm1336, %v3622, %v3618
  %v3964 = vsel %vm1336, %v3628, %v3624
  %v3965 = vmax.f32 %v3053, %v3629
  %v3966 = vmax.f32 %v3054, %v3630
  %v3967 = vmax.f32 %v3055, %v3917
  %v3968 = vmax.f32 %v3056, %v3631
  %v3969 = vmax.f32 %v3057, %v3632
  %v3970 = vmax.f32 %v3058, %v3918
  %v3971 = vmax.f32 %v3059, %v3633
  %v3972 = vmax.f32 %v3060, %v3634
  %v3973 = vmax.f32 %v3061, %v3919
  %v3974 = vmax.f32 %v3062, %v3635
  %v3975 = vmax.f32 %v3063, %v3636
  %v3976 = vmax.f32 %v3064, %v3920
  %v3977 = vmax.f32 %v3065, %v3637
  %v3978 = vmax.f32 %v3066, %v3638
  %v3979 = vmax.f32 %v3067, %v3921
  %v3980 = vmax.f32 %v3068, %v3639
  %v3981 = vmax.f32 %v3069, %v3640
  %v3982 = vmax.f32 %v3070, %v3922
  %v3983 = vmax.f32 %v3071, %v3641
  %v3984 = vmax.f32 %v3072, %v3642
  %v3985 = vmax.f32 %v3073, %v3923
  %v3986 = vmax.f32 %v3074, %v3643
  %v3987 = vmax.f32 %v3075, %v3644
  %v3988 = vmax.f32 %v3076, %v3924
  %v3989 = vmax.f32 %v3077, %v3645
  %v3990 = vmax.f32 %v3078, %v3646
  %v3991 = vmax.f32 %v3079, %v3925
  %v3992 = vmax.f32 %v3080, %v3647
  %v3993 = vmax.f32 %v3081, %v3648
  %v3994 = vmax.f32 %v3082, %v3926
  %v3995 = vmax.f32 %v3083, %v3649
  %v3996 = vmax.f32 %v3084, %v3650
  %v3997 = vmax.f32 %v3085, %v3927
  %v3998 = vmax.f32 %v3086, %v3651
  %v3999 = vmax.f32 %v3087, %v3652
  %v4000 = vmax.f32 %v3088, %v3928
  %v4001 = vmax.f32 %v3089, %v3653
  %v4002 = vmax.f32 %v3090, %v3654
  %v4003 = vmax.f32 %v3091, %v3929
  %v4004 = vmax.f32 %v3092, %v3655
  %v4005 = vmax.f32 %v3093, %v3656
  %v4006 = vmax.f32 %v3094, %v3930
  %v4007 = vmax.f32 %v3095, %v3657
  %v4008 = vmax.f32 %v3096, %v3658
  %v4009 = vmax.f32 %v3097, %v3931
  %v4010 = vmax.f32 %v3098, %v3659
  %v4011 = vmax.f32 %v3099, %v3660
  %v4012 = vmax.f32 %v3100, %v3932
  %v4013 = vmax.f32 %v3101, %v3661
  %v4014 = vmax.f32 %v3102, %v3662
  %v4015 = vmax.f32 %v3103, %v3933
  %v4016 = vmax.f32 %v3104, %v3663
  %v4017 = vmax.f32 %v3105, %v3664
  %v4018 = vmax.f32 %v3106, %v3934
  %v4019 = vmax.f32 %v3107, %v3665
  %v4020 = vmax.f32 %v3108, %v3666
  %v4021 = vmax.f32 %v3109, %v3935
  %v4022 = vmax.f32 %v3110, %v3667
  %v4023 = vmax.f32 %v3111, %v3668
  %v4024 = vmax.f32 %v3112, %v3936
  %v4025 = vmax.f32 %v3113, %v3669
  %v4026 = vmax.f32 %v3114, %v3670
  %v4027 = vmax.f32 %v3115, %v3937
  %v4028 = vmax.f32 %v3116, %v3671
  %v4029 = vmax.f32 %v3117, %v3672
  %v4030 = vmax.f32 %v3118, %v3938
  %v4031 = vmax.f32 %v3119, %v3673
  %v4032 = vmax.f32 %v3120, %v3674
  %v4033 = vmax.f32 %v3121, %v3939
  %v4034 = vmax.f32 %v3122, %v3675
  %v4035 = vmax.f32 %v3123, %v3676
  %v4036 = vmax.f32 %v3124, %v3940
  %v4037 = vmax.f32 %v3125, %v3677
  %v4038 = vmax.f32 %v3126, %v3678
  %v4039 = vmax.f32 %v3127, %v3941
  %v4040 = vmax.f32 %v3128, %v3679
  %v4041 = vmax.f32 %v3129, %v3680
  %v4042 = vmax.f32 %v3130, %v3942
  %v4043 = vmax.f32 %v3131, %v3681
  %v4044 = vmax.f32 %v3132, %v3682
  %v4045 = vmax.f32 %v3133, %v3943
  %v4046 = vmax.f32 %v3134, %v3683
  %v4047 = vmax.f32 %v3135, %v3684
  %v4048 = vmax.f32 %v3136, %v3944
  %v4049 = vmax.f32 %v3137, %v3685
  %v4050 = vmax.f32 %v3138, %v3686
  %v4051 = vmax.f32 %v3139, %v3945
  %v4052 = vmax.f32 %v3140, %v3687
  %v4053 = vmax.f32 %v3141, %v3688
  %v4054 = vmax.f32 %v3142, %v3946
  %v4055 = vmax.f32 %v3143, %v3689
  %v4056 = vmax.f32 %v3144, %v3690
  %v4057 = vmax.f32 %v3145, %v3947
  %v4058 = vmax.f32 %v3146, %v3691
  %v4059 = vmax.f32 %v3147, %v3692
  %v4060 = vmax.f32 %v3148, %v3948
  %v4061 = vmax.f32 %v3149, %v3693
  %v4062 = vmax.f32 %v3150, %v3694
  %v4063 = vmax.f32 %v3151, %v3949
  %v4064 = vmax.f32 %v3152, %v3695
  %v4065 = vmax.f32 %v3153, %v3696
  %v4066 = vmax.f32 %v3154, %v3950
  %v4067 = vmax.f32 %v3155, %v3697
  %v4068 = vmax.f32 %v3156, %v3698
  %v4069 = vmax.f32 %v3157, %v3951
  %v4070 = vmax.f32 %v3158, %v3699
  %v4071 = vmax.f32 %v3159, %v3700
  %v4072 = vmax.f32 %v3160, %v3952
  %v4073 = vmax.f32 %v3161, %v3701
  %v4074 = vmax.f32 %v3162, %v3702
  %v4075 = vmax.f32 %v3163, %v3953
  %v4076 = vmax.f32 %v3164, %v3703
  %v4077 = vmax.f32 %v3165, %v3704
  %v4078 = vmax.f32 %v3166, %v3954
  %v4079 = vmax.f32 %v3167, %v3705
  %v4080 = vmax.f32 %v3168, %v3706
  %v4081 = vmax.f32 %v3169, %v3955
  %v4082 = vmax.f32 %v3170, %v3707
  %v4083 = vmax.f32 %v3171, %v3708
  %v4084 = vmax.f32 %v3172, %v3956
  %v4085 = vmax.f32 %v3173, %v3709
  %v4086 = vmax.f32 %v3174, %v3710
  %v4087 = vmax.f32 %v3175, %v3957
  %v4088 = vmax.f32 %v3176, %v3711
  %v4089 = vmax.f32 %v3177, %v3712
  %v4090 = vmax.f32 %v3178, %v3958
  %v4091 = vmax.f32 %v3179, %v3713
  %v4092 = vmax.f32 %v3180, %v3714
  %v4093 = vmax.f32 %v3181, %v3959
  %v4094 = vmax.f32 %v3182, %v3715
  %v4095 = vmax.f32 %v3183, %v3716
  %v4096 = vmax.f32 %v3184, %v3960
  %v4097 = vmax.f32 %v3185, %v3717
  %v4098 = vmax.f32 %v3186, %v3718
  %v4099 = vmax.f32 %v3187, %v3961
  %v4100 = vmax.f32 %v3188, %v3719
  %v4101 = vmax.f32 %v3189, %v3720
  %v4102 = vmax.f32 %v3190, %v3962
  %v4103 = vmax.f32 %v3191, %v3721
  %v4104 = vmax.f32 %v3192, %v3722
  %v4105 = vmax.f32 %v3193, %v3963
  %v4106 = vmax.f32 %v3194, %v3723
  %v4107 = vmax.f32 %v3195, %v3724
  %v4108 = vmax.f32 %v3196, %v3964
  %v4109 = vmax.f32 %v3965, 0.0
  %v4110 = vmax.f32 %v3966, 0.0
  %v4111 = vmax.f32 %v3967, 0.0
  %v4112 = vmax.f32 %v3968, 0.0
  %v4113 = vmax.f32 %v3969, 0.0
  %v4114 = vmax.f32 %v3970, 0.0
  %v4115 = vmax.f32 %v3971, 0.0
  %v4116 = vmax.f32 %v3972, 0.0
  %v4117 = vmax.f32 %v3973, 0.0
  %v4118 = vmax.f32 %v3974, 0.0
  %v4119 = vmax.f32 %v3975, 0.0
  %v4120 = vmax.f32 %v3976, 0.0
  %v4121 = vmax.f32 %v3977, 0.0
  %v4122 = vmax.f32 %v3978, 0.0
  %v4123 = vmax.f32 %v3979, 0.0
  %v4124 = vmax.f32 %v3980, 0.0
  %v4125 = vmax.f32 %v3981, 0.0
  %v4126 = vmax.f32 %v3982, 0.0
  %v4127 = vmax.f32 %v3983, 0.0
  %v4128 = vmax.f32 %v3984, 0.0
  %v4129 = vmax.f32 %v3985, 0.0
  %v4130 = vmax.f32 %v3986, 0.0
  %v4131 = vmax.f32 %v3987, 0.0
  %v4132 = vmax.f32 %v3988, 0.0
  %v4133 = vmax.f32 %v3989, 0.0
  %v4134 = vmax.f32 %v3990, 0.0
  %v4135 = vmax.f32 %v3991, 0.0
  %v4136 = vmax.f32 %v3992, 0.0
  %v4137 = vmax.f32 %v3993, 0.0
  %v4138 = vmax.f32 %v3994, 0.0
  %v4139 = vmax.f32 %v3995, 0.0
  %v4140 = vmax.f32 %v3996, 0.0
  %v4141 = vmax.f32 %v3997, 0.0
  %v4142 = vmax.f32 %v3998, 0.0
  %v4143 = vmax.f32 %v3999, 0.0
  %v4144 = vmax.f32 %v4000, 0.0
  %v4145 = vmax.f32 %v4001, 0.0
  %v4146 = vmax.f32 %v4002, 0.0
  %v4147 = vmax.f32 %v4003, 0.0
  %v4148 = vmax.f32 %v4004, 0.0
  %v4149 = vmax.f32 %v4005, 0.0
  %v4150 = vmax.f32 %v4006, 0.0
  %v4151 = vmax.f32 %v4007, 0.0
  %v4152 = vmax.f32 %v4008, 0.0
  %v4153 = vmax.f32 %v4009, 0.0
  %v4154 = vmax.f32 %v4010, 0.0
  %v4155 = vmax.f32 %v4011, 0.0
  %v4156 = vmax.f32 %v4012, 0.0
  %v4157 = vmax.f32 %v4013, 0.0
  %v4158 = vmax.f32 %v4014, 0.0
  %v4159 = vmax.f32 %v4015, 0.0
  %v4160 = vmax.f32 %v4016, 0.0
  %v4161 = vmax.f32 %v4017, 0.0
  %v4162 = vmax.f32 %v4018, 0.0
  %v4163 = vmax.f32 %v4019, 0.0
  %v4164 = vmax.f32 %v4020, 0.0
  %v4165 = vmax.f32 %v4021, 0.0
  %v4166 = vmax.f32 %v4022, 0.0
  %v4167 = vmax.f32 %v4023, 0.0
  %v4168 = vmax.f32 %v4024, 0.0
  %v4169 = vmax.f32 %v4025, 0.0
  %v4170 = vmax.f32 %v4026, 0.0
  %v4171 = vmax.f32 %v4027, 0.0
  %v4172 = vmax.f32 %v4028, 0.0
  %v4173 = vmax.f32 %v4029, 0.0
  %v4174 = vmax.f32 %v4030, 0.0
  %v4175 = vmax.f32 %v4031, 0.0
  %v4176 = vmax.f32 %v4032, 0.0
  %v4177 = vmax.f32 %v4033, 0.0
  %v4178 = vmax.f32 %v4034, 0.0
  %v4179 = vmax.f32 %v4035, 0.0
  %v4180 = vmax.f32 %v4036, 0.0
  %v4181 = vmax.f32 %v4037, 0.0
  %v4182 = vmax.f32 %v4038, 0.0
  %v4183 = vmax.f32 %v4039, 0.0
  %v4184 = vmax.f32 %v4040, 0.0
  %v4185 = vmax.f32 %v4041, 0.0
  %v4186 = vmax.f32 %v4042, 0.0
  %v4187 = vmax.f32 %v4043, 0.0
  %v4188 = vmax.f32 %v4044, 0.0
  %v4189 = vmax.f32 %v4045, 0.0
  %v4190 = vmax.f32 %v4046, 0.0
  %v4191 = vmax.f32 %v4047, 0.0
  %v4192 = vmax.f32 %v4048, 0.0
  %v4193 = vmax.f32 %v4049, 0.0
  %v4194 = vmax.f32 %v4050, 0.0
  %v4195 = vmax.f32 %v4051, 0.0
  %v4196 = vmax.f32 %v4052, 0.0
  %v4197 = vmax.f32 %v4053, 0.0
  %v4198 = vmax.f32 %v4054, 0.0
  %v4199 = vmax.f32 %v4055, 0.0
  %v4200 = vmax.f32 %v4056, 0.0
  %v4201 = vmax.f32 %v4057, 0.0
  %v4202 = vmax.f32 %v4058, 0.0
  %v4203 = vmax.f32 %v4059, 0.0
  %v4204 = vmax.f32 %v4060, 0.0
  %v4205 = vmax.f32 %v4061, 0.0
  %v4206 = vmax.f32 %v4062, 0.0
  %v4207 = vmax.f32 %v4063, 0.0
  %v4208 = vmax.f32 %v4064, 0.0
  %v4209 = vmax.f32 %v4065, 0.0
  %v4210 = vmax.f32 %v4066, 0.0
  %v4211 = vmax.f32 %v4067, 0.0
  %v4212 = vmax.f32 %v4068, 0.0
  %v4213 = vmax.f32 %v4069, 0.0
  %v4214 = vmax.f32 %v4070, 0.0
  %v4215 = vmax.f32 %v4071, 0.0
  %v4216 = vmax.f32 %v4072, 0.0
  %v4217 = vmax.f32 %v4073, 0.0
  %v4218 = vmax.f32 %v4074, 0.0
  %v4219 = vmax.f32 %v4075, 0.0
  %v4220 = vmax.f32 %v4076, 0.0
  %v4221 = vmax.f32 %v4077, 0.0
  %v4222 = vmax.f32 %v4078, 0.0
  %v4223 = vmax.f32 %v4079, 0.0
  %v4224 = vmax.f32 %v4080, 0.0
  %v4225 = vmax.f32 %v4081, 0.0
  %v4226 = vmax.f32 %v4082, 0.0
  %v4227 = vmax.f32 %v4083, 0.0
  %v4228 = vmax.f32 %v4084, 0.0
  %v4229 = vmax.f32 %v4085, 0.0
  %v4230 = vmax.f32 %v4086, 0.0
  %v4231 = vmax.f32 %v4087, 0.0
  %v4232 = vmax.f32 %v4088, 0.0
  %v4233 = vmax.f32 %v4089, 0.0
  %v4234 = vmax.f32 %v4090, 0.0
  %v4235 = vmax.f32 %v4091, 0.0
  %v4236 = vmax.f32 %v4092, 0.0
  %v4237 = vmax.f32 %v4093, 0.0
  %v4238 = vmax.f32 %v4094, 0.0
  %v4239 = vmax.f32 %v4095, 0.0
  %v4240 = vmax.f32 %v4096, 0.0
  %v4241 = vmax.f32 %v4097, 0.0
  %v4242 = vmax.f32 %v4098, 0.0
  %v4243 = vmax.f32 %v4099, 0.0
  %v4244 = vmax.f32 %v4100, 0.0
  %v4245 = vmax.f32 %v4101, 0.0
  %v4246 = vmax.f32 %v4102, 0.0
  %v4247 = vmax.f32 %v4103, 0.0
  %v4248 = vmax.f32 %v4104, 0.0
  %v4249 = vmax.f32 %v4105, 0.0
  %v4250 = vmax.f32 %v4106, 0.0
  %v4251 = vmax.f32 %v4107, 0.0
  %v4252 = vmax.f32 %v4108, 0.0
  %v4253 = vpack.c.bf16 %v4110, %v4109
  %v4254 = vpack.c.bf16 %v4111, %v4111
  %v4255 = vpack.c.bf16 %v4113, %v4112
  %v4256 = vpack.c.bf16 %v4114, %v4114
  %v4257 = vpack.c.bf16 %v4116, %v4115
  %v4258 = vpack.c.bf16 %v4117, %v4117
  %v4259 = vpack.c.bf16 %v4119, %v4118
  %v4260 = vpack.c.bf16 %v4120, %v4120
  %v4261 = vpack.c.bf16 %v4122, %v4121
  %v4262 = vpack.c.bf16 %v4123, %v4123
  %v4263 = vpack.c.bf16 %v4125, %v4124
  %v4264 = vpack.c.bf16 %v4126, %v4126
  %v4265 = vpack.c.bf16 %v4128, %v4127
  %v4266 = vpack.c.bf16 %v4129, %v4129
  %v4267 = vpack.c.bf16 %v4131, %v4130
  %v4268 = vpack.c.bf16 %v4132, %v4132
  %v4269 = vpack.c.bf16 %v4134, %v4133
  %v4270 = vpack.c.bf16 %v4135, %v4135
  %v4271 = vpack.c.bf16 %v4137, %v4136
  %v4272 = vpack.c.bf16 %v4138, %v4138
  %v4273 = vpack.c.bf16 %v4140, %v4139
  %v4274 = vpack.c.bf16 %v4141, %v4141
  %v4275 = vpack.c.bf16 %v4143, %v4142
  %v4276 = vpack.c.bf16 %v4144, %v4144
  %v4277 = vpack.c.bf16 %v4146, %v4145
  %v4278 = vpack.c.bf16 %v4147, %v4147
  %v4279 = vpack.c.bf16 %v4149, %v4148
  %v4280 = vpack.c.bf16 %v4150, %v4150
  %v4281 = vpack.c.bf16 %v4152, %v4151
  %v4282 = vpack.c.bf16 %v4153, %v4153
  %v4283 = vpack.c.bf16 %v4155, %v4154
  %v4284 = vpack.c.bf16 %v4156, %v4156
  %v4285 = vpack.c.bf16 %v4158, %v4157
  %v4286 = vpack.c.bf16 %v4159, %v4159
  %v4287 = vpack.c.bf16 %v4161, %v4160
  %v4288 = vpack.c.bf16 %v4162, %v4162
  %v4289 = vpack.c.bf16 %v4164, %v4163
  %v4290 = vpack.c.bf16 %v4165, %v4165
  %v4291 = vpack.c.bf16 %v4167, %v4166
  %v4292 = vpack.c.bf16 %v4168, %v4168
  %v4293 = vpack.c.bf16 %v4170, %v4169
  %v4294 = vpack.c.bf16 %v4171, %v4171
  %v4295 = vpack.c.bf16 %v4173, %v4172
  %v4296 = vpack.c.bf16 %v4174, %v4174
  %v4297 = vpack.c.bf16 %v4176, %v4175
  %v4298 = vpack.c.bf16 %v4177, %v4177
  %v4299 = vpack.c.bf16 %v4179, %v4178
  %v4300 = vpack.c.bf16 %v4180, %v4180
  %v4301 = vpack.c.bf16 %v4182, %v4181
  %v4302 = vpack.c.bf16 %v4183, %v4183
  %v4303 = vpack.c.bf16 %v4185, %v4184
  %v4304 = vpack.c.bf16 %v4186, %v4186
  %v4305 = vpack.c.bf16 %v4188, %v4187
  %v4306 = vpack.c.bf16 %v4189, %v4189
  %v4307 = vpack.c.bf16 %v4191, %v4190
  %v4308 = vpack.c.bf16 %v4192, %v4192
  %v4309 = vpack.c.bf16 %v4194, %v4193
  %v4310 = vpack.c.bf16 %v4195, %v4195
  %v4311 = vpack.c.bf16 %v4197, %v4196
  %v4312 = vpack.c.bf16 %v4198, %v4198
  %v4313 = vpack.c.bf16 %v4200, %v4199
  %v4314 = vpack.c.bf16 %v4201, %v4201
  %v4315 = vpack.c.bf16 %v4203, %v4202
  %v4316 = vpack.c.bf16 %v4204, %v4204
  %v4317 = vpack.c.bf16 %v4206, %v4205
  %v4318 = vpack.c.bf16 %v4207, %v4207
  %v4319 = vpack.c.bf16 %v4209, %v4208
  %v4320 = vpack.c.bf16 %v4210, %v4210
  %v4321 = vpack.c.bf16 %v4212, %v4211
  %v4322 = vpack.c.bf16 %v4213, %v4213
  %v4323 = vpack.c.bf16 %v4215, %v4214
  %v4324 = vpack.c.bf16 %v4216, %v4216
  %v4325 = vpack.c.bf16 %v4218, %v4217
  %v4326 = vpack.c.bf16 %v4219, %v4219
  %v4327 = vpack.c.bf16 %v4221, %v4220
  %v4328 = vpack.c.bf16 %v4222, %v4222
  %v4329 = vpack.c.bf16 %v4224, %v4223
  %v4330 = vpack.c.bf16 %v4225, %v4225
  %v4331 = vpack.c.bf16 %v4227, %v4226
  %v4332 = vpack.c.bf16 %v4228, %v4228
  %v4333 = vpack.c.bf16 %v4230, %v4229
  %v4334 = vpack.c.bf16 %v4231, %v4231
  %v4335 = vpack.c.bf16 %v4233, %v4232
  %v4336 = vpack.c.bf16 %v4234, %v4234
  %v4337 = vpack.c.bf16 %v4236, %v4235
  %v4338 = vpack.c.bf16 %v4237, %v4237
  %v4339 = vpack.c.bf16 %v4239, %v4238
  %v4340 = vpack.c.bf16 %v4240, %v4240
  %v4341 = vpack.c.bf16 %v4242, %v4241
  %v4342 = vpack.c.bf16 %v4243, %v4243
  %v4343 = vpack.c.bf16 %v4245, %v4244
  %v4344 = vpack.c.bf16 %v4246, %v4246
  %v4345 = vpack.c.bf16 %v4248, %v4247
  %v4346 = vpack.c.bf16 %v4249, %v4249
  %v4347 = vpack.c.bf16 %v4251, %v4250
  %v4348 = vpack.c.bf16 %v4252, %v4252
  %v4413 = vunpack.c.l.b16 %v4253
  %v4414 = vunpack.c.h.b16 %v4253
  %v4415 = vunpack.c.l.b16 %v4254
  %v4416 = vunpack.c.l.b16 %v4255
  %v4417 = vunpack.c.h.b16 %v4255
  %v4418 = vunpack.c.l.b16 %v4256
  %v4419 = vunpack.c.l.b16 %v4259
  %v4420 = vunpack.c.h.b16 %v4259
  %v4421 = vunpack.c.l.b16 %v4260
  %v4422 = vunpack.c.l.b16 %v4261
  %v4423 = vunpack.c.h.b16 %v4261
  %v4424 = vunpack.c.l.b16 %v4262
  %v4425 = vunpack.c.l.b16 %v4265
  %v4426 = vunpack.c.h.b16 %v4265
  %v4427 = vunpack.c.l.b16 %v4266
  %v4428 = vunpack.c.l.b16 %v4267
  %v4429 = vunpack.c.h.b16 %v4267
  %v4430 = vunpack.c.l.b16 %v4268
  %v4431 = vunpack.c.l.b16 %v4271
  %v4432 = vunpack.c.h.b16 %v4271
  %v4433 = vunpack.c.l.b16 %v4272
  %v4434 = vunpack.c.l.b16 %v4273
  %v4435 = vunpack.c.h.b16 %v4273
  %v4436 = vunpack.c.l.b16 %v4274
  %v4437 = vunpack.c.l.b16 %v4277
  %v4438 = vunpack.c.h.b16 %v4277
  %v4439 = vunpack.c.l.b16 %v4278
  %v4440 = vunpack.c.l.b16 %v4279
  %v4441 = vunpack.c.h.b16 %v4279
  %v4442 = vunpack.c.l.b16 %v4280
  %v4443 = vunpack.c.l.b16 %v4283
  %v4444 = vunpack.c.h.b16 %v4283
  %v4445 = vunpack.c.l.b16 %v4284
  %v4446 = vunpack.c.l.b16 %v4285
  %v4447 = vunpack.c.h.b16 %v4285
  %v4448 = vunpack.c.l.b16 %v4286
  %v4449 = vunpack.c.l.b16 %v4289
  %v4450 = vunpack.c.h.b16 %v4289
  %v4451 = vunpack.c.l.b16 %v4290
  %v4452 = vunpack.c.l.b16 %v4291
  %v4453 = vunpack.c.h.b16 %v4291
  %v4454 = vunpack.c.l.b16 %v4292
  %v4455 = vunpack.c.l.b16 %v4295
  %v4456 = vunpack.c.h.b16 %v4295
  %v4457 = vunpack.c.l.b16 %v4296
  %v4458 = vunpack.c.l.b16 %v4297
  %v4459 = vunpack.c.h.b16 %v4297
  %v4460 = vunpack.c.l.b16 %v4298
  %v4461 = vunpack.c.l.b16 %v4301
  %v4462 = vunpack.c.h.b16 %v4301
  %v4463 = vunpack.c.l.b16 %v4302
  %v4464 = vunpack.c.l.b16 %v4303
  %v4465 = vunpack.c.h.b16 %v4303
  %v4466 = vunpack.c.l.b16 %v4304
  %v4467 = vunpack.c.l.b16 %v4307
  %v4468 = vunpack.c.h.b16 %v4307
  %v4469 = vunpack.c.l.b16 %v4308
  %v4470 = vunpack.c.l.b16 %v4309
  %v4471 = vunpack.c.h.b16 %v4309
  %v4472 = vunpack.c.l.b16 %v4310
  %v4473 = vunpack.c.l.b16 %v4313
  %v4474 = vunpack.c.h.b16 %v4313
  %v4475 = vunpack.c.l.b16 %v4314
  %v4476 = vunpack.c.l.b16 %v4315
  %v4477 = vunpack.c.h.b16 %v4315
  %v4478 = vunpack.c.l.b16 %v4316
  %v4479 = vunpack.c.l.b16 %v4319
  %v4480 = vunpack.c.h.b16 %v4319
  %v4481 = vunpack.c.l.b16 %v4320
  %v4482 = vunpack.c.l.b16 %v4321
  %v4483 = vunpack.c.h.b16 %v4321
  %v4484 = vunpack.c.l.b16 %v4322
  %v4485 = vunpack.c.l.b16 %v4325
  %v4486 = vunpack.c.h.b16 %v4325
  %v4487 = vunpack.c.l.b16 %v4326
  %v4488 = vunpack.c.l.b16 %v4327
  %v4489 = vunpack.c.h.b16 %v4327
  %v4490 = vunpack.c.l.b16 %v4328
  %v4491 = vunpack.c.l.b16 %v4331
  %v4492 = vunpack.c.h.b16 %v4331
  %v4493 = vunpack.c.l.b16 %v4332
  %v4494 = vunpack.c.l.b16 %v4333
  %v4495 = vunpack.c.h.b16 %v4333
  %v4496 = vunpack.c.l.b16 %v4334
  %v4497 = vunpack.c.l.b16 %v4337
  %v4498 = vunpack.c.h.b16 %v4337
  %v4499 = vunpack.c.l.b16 %v4338
  %v4500 = vunpack.c.l.b16 %v4339
  %v4501 = vunpack.c.h.b16 %v4339
  %v4502 = vunpack.c.l.b16 %v4340
  %v4503 = vunpack.c.l.b16 %v4343
  %v4504 = vunpack.c.h.b16 %v4343
  %v4505 = vunpack.c.l.b16 %v4344
  %v4506 = vunpack.c.l.b16 %v4345
  %v4507 = vunpack.c.h.b16 %v4345
  %v4508 = vunpack.c.l.b16 %v4346
  %v4509 = vpack.c.b16 %v4416, %v4413
  %v4510 = vpack.c.b16 %v4417, %v4414
  %v4511 = vpack.c.b16 %v4418, %v4415
  %v4512 = vpack.c.b16 %v4422, %v4419
  %v4513 = vpack.c.b16 %v4423, %v4420
  %v4514 = vpack.c.b16 %v4424, %v4421
  %v4515 = vpack.c.b16 %v4428, %v4425
  %v4516 = vpack.c.b16 %v4429, %v4426
  %v4517 = vpack.c.b16 %v4430, %v4427
  %v4518 = vpack.c.b16 %v4434, %v4431
  %v4519 = vpack.c.b16 %v4435, %v4432
  %v4520 = vpack.c.b16 %v4436, %v4433
  %v4521 = vpack.c.b16 %v4440, %v4437
  %v4522 = vpack.c.b16 %v4441, %v4438
  %v4523 = vpack.c.b16 %v4442, %v4439
  %v4524 = vpack.c.b16 %v4446, %v4443
  %v4525 = vpack.c.b16 %v4447, %v4444
  %v4526 = vpack.c.b16 %v4448, %v4445
  %v4527 = vpack.c.b16 %v4452, %v4449
  %v4528 = vpack.c.b16 %v4453, %v4450
  %v4529 = vpack.c.b16 %v4454, %v4451
  %v4530 = vpack.c.b16 %v4458, %v4455
  %v4531 = vpack.c.b16 %v4459, %v4456
  %v4532 = vpack.c.b16 %v4460, %v4457
  %v4533 = vpack.c.b16 %v4464, %v4461
  %v4534 = vpack.c.b16 %v4465, %v4462
  %v4535 = vpack.c.b16 %v4466, %v4463
  %v4536 = vpack.c.b16 %v4470, %v4467
  %v4537 = vpack.c.b16 %v4471, %v4468
  %v4538 = vpack.c.b16 %v4472, %v4469
  %v4539 = vpack.c.b16 %v4476, %v4473
  %v4540 = vpack.c.b16 %v4477, %v4474
  %v4541 = vpack.c.b16 %v4478, %v4475
  %v4542 = vpack.c.b16 %v4482, %v4479
  %v4543 = vpack.c.b16 %v4483, %v4480
  %v4544 = vpack.c.b16 %v4484, %v4481
  %v4545 = vpack.c.b16 %v4488, %v4485
  %v4546 = vpack.c.b16 %v4489, %v4486
  %v4547 = vpack.c.b16 %v4490, %v4487
  %v4548 = vpack.c.b16 %v4494, %v4491
  %v4549 = vpack.c.b16 %v4495, %v4492
  %v4550 = vpack.c.b16 %v4496, %v4493
  %v4551 = vpack.c.b16 %v4500, %v4497
  %v4552 = vpack.c.b16 %v4501, %v4498
  %v4553 = vpack.c.b16 %v4502, %v4499
  %v4554 = vpack.c.b16 %v4506, %v4503
  %v4555 = vpack.c.b16 %v4507, %v4504
  %v4556 = vpack.c.b16 %v4508, %v4505
  %v4637 = vunpack.c.l.b16 %v4257
  %v4638 = vunpack.c.h.b16 %v4257
  %v4639 = vunpack.c.l.b16 %v4258
  %v4640 = vunpack.c.l.b16 %v4263
  %v4641 = vunpack.c.h.b16 %v4263
  %v4642 = vunpack.c.l.b16 %v4264
  %v4643 = vunpack.c.l.b16 %v4269
  %v4644 = vunpack.c.h.b16 %v4269
  %v4645 = vunpack.c.l.b16 %v4270
  %v4646 = vunpack.c.l.b16 %v4275
  %v4647 = vunpack.c.h.b16 %v4275
  %v4648 = vunpack.c.l.b16 %v4276
  %v4649 = vunpack.c.l.b16 %v4281
  %v4650 = vunpack.c.h.b16 %v4281
  %v4651 = vunpack.c.l.b16 %v4282
  %v4652 = vunpack.c.l.b16 %v4287
  %v4653 = vunpack.c.h.b16 %v4287
  %v4654 = vunpack.c.l.b16 %v4288
  %v4655 = vunpack.c.l.b16 %v4293
  %v4656 = vunpack.c.h.b16 %v4293
  %v4657 = vunpack.c.l.b16 %v4294
  %v4658 = vunpack.c.l.b16 %v4299
  %v4659 = vunpack.c.h.b16 %v4299
  %v4660 = vunpack.c.l.b16 %v4300
  %v4661 = vunpack.c.l.b16 %v4305
  %v4662 = vunpack.c.h.b16 %v4305
  %v4663 = vunpack.c.l.b16 %v4306
  %v4664 = vunpack.c.l.b16 %v4311
  %v4665 = vunpack.c.h.b16 %v4311
  %v4666 = vunpack.c.l.b16 %v4312
  %v4667 = vunpack.c.l.b16 %v4317
  %v4668 = vunpack.c.h.b16 %v4317
  %v4669 = vunpack.c.l.b16 %v4318
  %v4670 = vunpack.c.l.b16 %v4323
  %v4671 = vunpack.c.h.b16 %v4323
  %v4672 = vunpack.c.l.b16 %v4324
  %v4673 = vunpack.c.l.b16 %v4329
  %v4674 = vunpack.c.h.b16 %v4329
  %v4675 = vunpack.c.l.b16 %v4330
  %v4676 = vunpack.c.l.b16 %v4335
  %v4677 = vunpack.c.h.b16 %v4335
  %v4678 = vunpack.c.l.b16 %v4336
  %v4679 = vunpack.c.l.b16 %v4341
  %v4680 = vunpack.c.h.b16 %v4341
  %v4681 = vunpack.c.l.b16 %v4342
  %v4682 = vunpack.c.l.b16 %v4347
  %v4683 = vunpack.c.h.b16 %v4347
  %v4684 = vunpack.c.l.b16 %v4348
  %v4685 = vpack.c.b16 %v4637, %v4637
  %v4686 = vpack.c.b16 %v4638, %v4638
  %v4687 = vpack.c.b16 %v4639, %v4639
  %v4688 = vpack.c.b16 %v4640, %v4640
  %v4689 = vpack.c.b16 %v4641, %v4641
  %v4690 = vpack.c.b16 %v4642, %v4642
  %v4691 = vpack.c.b16 %v4643, %v4643
  %v4692 = vpack.c.b16 %v4644, %v4644
  %v4693 = vpack.c.b16 %v4645, %v4645
  %v4694 = vpack.c.b16 %v4646, %v4646
  %v4695 = vpack.c.b16 %v4647, %v4647
  %v4696 = vpack.c.b16 %v4648, %v4648
  %v4697 = vpack.c.b16 %v4649, %v4649
  %v4698 = vpack.c.b16 %v4650, %v4650
  %v4699 = vpack.c.b16 %v4651, %v4651
  %v4700 = vpack.c.b16 %v4652, %v4652
  %v4701 = vpack.c.b16 %v4653, %v4653
  %v4702 = vpack.c.b16 %v4654, %v4654
  %v4703 = vpack.c.b16 %v4655, %v4655
  %v4704 = vpack.c.b16 %v4656, %v4656
  %v4705 = vpack.c.b16 %v4657, %v4657
  %v4706 = vpack.c.b16 %v4658, %v4658
  %v4707 = vpack.c.b16 %v4659, %v4659
  %v4708 = vpack.c.b16 %v4660, %v4660
  %v4709 = vpack.c.b16 %v4661, %v4661
  %v4710 = vpack.c.b16 %v4662, %v4662
  %v4711 = vpack.c.b16 %v4663, %v4663
  %v4712 = vpack.c.b16 %v4664, %v4664
  %v4713 = vpack.c.b16 %v4665, %v4665
  %v4714 = vpack.c.b16 %v4666, %v4666
  %v4715 = vpack.c.b16 %v4667, %v4667
  %v4716 = vpack.c.b16 %v4668, %v4668
  %v4717 = vpack.c.b16 %v4669, %v4669
  %v4718 = vpack.c.b16 %v4670, %v4670
  %v4719 = vpack.c.b16 %v4671, %v4671
  %v4720 = vpack.c.b16 %v4672, %v4672
  %v4721 = vpack.c.b16 %v4673, %v4673
  %v4722 = vpack.c.b16 %v4674, %v4674
  %v4723 = vpack.c.b16 %v4675, %v4675
  %v4724 = vpack.c.b16 %v4676, %v4676
  %v4725 = vpack.c.b16 %v4677, %v4677
  %v4726 = vpack.c.b16 %v4678, %v4678
  %v4727 = vpack.c.b16 %v4679, %v4679
  %v4728 = vpack.c.b16 %v4680, %v4680
  %v4729 = vpack.c.b16 %v4681, %v4681
  %v4730 = vpack.c.b16 %v4682, %v4682
  %v4731 = vpack.c.b16 %v4683, %v4683
  %v4732 = vpack.c.b16 %v4684, %v4684
  %vm4733 = vcmask 1046528
  %v4734 = vrot.slane %v4509, 1
  %v4735 = vrot.slane %v4685, 1
  %v4736 = vsel %vm4733, %v4734, %v4735
  %v4737 = vrot.slane %v4510, 1
  %v4738 = vrot.slane %v4686, 1
  %v4739 = vsel %vm4733, %v4737, %v4738
  %v4740 = vrot.slane %v4511, 1
  %v4741 = vrot.slane %v4687, 1
  %v4742 = vsel %vm4733, %v4740, %v4741
  %v4743 = vrot.slane %v4512, 1
  %v4744 = vrot.slane %v4688, 1
  %v4745 = vsel %vm4733, %v4743, %v4744
  %v4746 = vrot.slane %v4513, 1
  %v4747 = vrot.slane %v4689, 1
  %v4748 = vsel %vm4733, %v4746, %v4747
  %v4749 = vrot.slane %v4514, 1
  %v4750 = vrot.slane %v4690, 1
  %v4751 = vsel %vm4733, %v4749, %v4750
  %v4752 = vrot.slane %v4515, 1
  %v4753 = vrot.slane %v4691, 1
  %v4754 = vsel %vm4733, %v4752, %v4753
  %v4755 = vrot.slane %v4516, 1
  %v4756 = vrot.slane %v4692, 1
  %v4757 = vsel %vm4733, %v4755, %v4756
  %v4758 = vrot.slane %v4517, 1
  %v4759 = vrot.slane %v4693, 1
  %v4760 = vsel %vm4733, %v4758, %v4759
  %v4761 = vrot.slane %v4518, 1
  %v4762 = vrot.slane %v4694, 1
  %v4763 = vsel %vm4733, %v4761, %v4762
  %v4764 = vrot.slane %v4519, 1
  %v4765 = vrot.slane %v4695, 1
  %v4766 = vsel %vm4733, %v4764, %v4765
  %v4767 = vrot.slane %v4520, 1
  %v4768 = vrot.slane %v4696, 1
  %v4769 = vsel %vm4733, %v4767, %v4768
  %v4770 = vrot.slane %v4521, 1
  %v4771 = vrot.slane %v4697, 1
  %v4772 = vsel %vm4733, %v4770, %v4771
  %v4773 = vrot.slane %v4522, 1
  %v4774 = vrot.slane %v4698, 1
  %v4775 = vsel %vm4733, %v4773, %v4774
  %v4776 = vrot.slane %v4523, 1
  %v4777 = vrot.slane %v4699, 1
  %v4778 = vsel %vm4733, %v4776, %v4777
  %v4779 = vrot.slane %v4524, 1
  %v4780 = vrot.slane %v4700, 1
  %v4781 = vsel %vm4733, %v4779, %v4780
  %v4782 = vrot.slane %v4525, 1
  %v4783 = vrot.slane %v4701, 1
  %v4784 = vsel %vm4733, %v4782, %v4783
  %v4785 = vrot.slane %v4526, 1
  %v4786 = vrot.slane %v4702, 1
  %v4787 = vsel %vm4733, %v4785, %v4786
  %v4788 = vrot.slane %v4527, 1
  %v4789 = vrot.slane %v4703, 1
  %v4790 = vsel %vm4733, %v4788, %v4789
  %v4791 = vrot.slane %v4528, 1
  %v4792 = vrot.slane %v4704, 1
  %v4793 = vsel %vm4733, %v4791, %v4792
  %v4794 = vrot.slane %v4529, 1
  %v4795 = vrot.slane %v4705, 1
  %v4796 = vsel %vm4733, %v4794, %v4795
  %v4797 = vrot.slane %v4530, 1
  %v4798 = vrot.slane %v4706, 1
  %v4799 = vsel %vm4733, %v4797, %v4798
  %v4800 = vrot.slane %v4531, 1
  %v4801 = vrot.slane %v4707, 1
  %v4802 = vsel %vm4733, %v4800, %v4801
  %v4803 = vrot.slane %v4532, 1
  %v4804 = vrot.slane %v4708, 1
  %v4805 = vsel %vm4733, %v4803, %v4804
  %v4806 = vrot.slane %v4533, 1
  %v4807 = vrot.slane %v4709, 1
  %v4808 = vsel %vm4733, %v4806, %v4807
  %v4809 = vrot.slane %v4534, 1
  %v4810 = vrot.slane %v4710, 1
  %v4811 = vsel %vm4733, %v4809, %v4810
  %v4812 = vrot.slane %v4535, 1
  %v4813 = vrot.slane %v4711, 1
  %v4814 = vsel %vm4733, %v4812, %v4813
  %v4815 = vrot.slane %v4536, 1
  %v4816 = vrot.slane %v4712, 1
  %v4817 = vsel %vm4733, %v4815, %v4816
  %v4818 = vrot.slane %v4537, 1
  %v4819 = vrot.slane %v4713, 1
  %v4820 = vsel %vm4733, %v4818, %v4819
  %v4821 = vrot.slane %v4538, 1
  %v4822 = vrot.slane %v4714, 1
  %v4823 = vsel %vm4733, %v4821, %v4822
  %v4824 = vrot.slane %v4539, 1
  %v4825 = vrot.slane %v4715, 1
  %v4826 = vsel %vm4733, %v4824, %v4825
  %v4827 = vrot.slane %v4540, 1
  %v4828 = vrot.slane %v4716, 1
  %v4829 = vsel %vm4733, %v4827, %v4828
  %v4830 = vrot.slane %v4541, 1
  %v4831 = vrot.slane %v4717, 1
  %v4832 = vsel %vm4733, %v4830, %v4831
  %v4833 = vrot.slane %v4542, 1
  %v4834 = vrot.slane %v4718, 1
  %v4835 = vsel %vm4733, %v4833, %v4834
  %v4836 = vrot.slane %v4543, 1
  %v4837 = vrot.slane %v4719, 1
  %v4838 = vsel %vm4733, %v4836, %v4837
  %v4839 = vrot.slane %v4544, 1
  %v4840 = vrot.slane %v4720, 1
  %v4841 = vsel %vm4733, %v4839, %v4840
  %v4842 = vrot.slane %v4545, 1
  %v4843 = vrot.slane %v4721, 1
  %v4844 = vsel %vm4733, %v4842, %v4843
  %v4845 = vrot.slane %v4546, 1
  %v4846 = vrot.slane %v4722, 1
  %v4847 = vsel %vm4733, %v4845, %v4846
  %v4848 = vrot.slane %v4547, 1
  %v4849 = vrot.slane %v4723, 1
  %v4850 = vsel %vm4733, %v4848, %v4849
  %v4851 = vrot.slane %v4548, 1
  %v4852 = vrot.slane %v4724, 1
  %v4853 = vsel %vm4733, %v4851, %v4852
  %v4854 = vrot.slane %v4549, 1
  %v4855 = vrot.slane %v4725, 1
  %v4856 = vsel %vm4733, %v4854, %v4855
  %v4857 = vrot.slane %v4550, 1
  %v4858 = vrot.slane %v4726, 1
  %v4859 = vsel %vm4733, %v4857, %v4858
  %v4860 = vrot.slane %v4551, 1
  %v4861 = vrot.slane %v4727, 1
  %v4862 = vsel %vm4733, %v4860, %v4861
  %v4863 = vrot.slane %v4552, 1
  %v4864 = vrot.slane %v4728, 1
  %v4865 = vsel %vm4733, %v4863, %v4864
  %v4866 = vrot.slane %v4553, 1
  %v4867 = vrot.slane %v4729, 1
  %v4868 = vsel %vm4733, %v4866, %v4867
  %v4869 = vrot.slane %v4554, 1
  %v4870 = vrot.slane %v4730, 1
  %v4871 = vsel %vm4733, %v4869, %v4870
  %v4872 = vrot.slane %v4555, 1
  %v4873 = vrot.slane %v4731, 1
  %v4874 = vsel %vm4733, %v4872, %v4873
  %v4875 = vrot.slane %v4556, 1
  %v4876 = vrot.slane %v4732, 1
  %v4877 = vsel %vm4733, %v4875, %v4876
  %vm4926 = vcmask 1045504
  %v4927 = vrot.slane %v4509, 2
  %v4928 = vrot.slane %v4685, 2
  %v4929 = vsel %vm4926, %v4927, %v4928
  %v4930 = vrot.slane %v4510, 2
  %v4931 = vrot.slane %v4686, 2
  %v4932 = vsel %vm4926, %v4930, %v4931
  %v4933 = vrot.slane %v4511, 2
  %v4934 = vrot.slane %v4687, 2
  %v4935 = vsel %vm4926, %v4933, %v4934
  %v4936 = vrot.slane %v4512, 2
  %v4937 = vrot.slane %v4688, 2
  %v4938 = vsel %vm4926, %v4936, %v4937
  %v4939 = vrot.slane %v4513, 2
  %v4940 = vrot.slane %v4689, 2
  %v4941 = vsel %vm4926, %v4939, %v4940
  %v4942 = vrot.slane %v4514, 2
  %v4943 = vrot.slane %v4690, 2
  %v4944 = vsel %vm4926, %v4942, %v4943
  %v4945 = vrot.slane %v4515, 2
  %v4946 = vrot.slane %v4691, 2
  %v4947 = vsel %vm4926, %v4945, %v4946
  %v4948 = vrot.slane %v4516, 2
  %v4949 = vrot.slane %v4692, 2
  %v4950 = vsel %vm4926, %v4948, %v4949
  %v4951 = vrot.slane %v4517, 2
  %v4952 = vrot.slane %v4693, 2
  %v4953 = vsel %vm4926, %v4951, %v4952
  %v4954 = vrot.slane %v4518, 2
  %v4955 = vrot.slane %v4694, 2
  %v4956 = vsel %vm4926, %v4954, %v4955
  %v4957 = vrot.slane %v4519, 2
  %v4958 = vrot.slane %v4695, 2
  %v4959 = vsel %vm4926, %v4957, %v4958
  %v4960 = vrot.slane %v4520, 2
  %v4961 = vrot.slane %v4696, 2
  %v4962 = vsel %vm4926, %v4960, %v4961
  %v4963 = vrot.slane %v4521, 2
  %v4964 = vrot.slane %v4697, 2
  %v4965 = vsel %vm4926, %v4963, %v4964
  %v4966 = vrot.slane %v4522, 2
  %v4967 = vrot.slane %v4698, 2
  %v4968 = vsel %vm4926, %v4966, %v4967
  %v4969 = vrot.slane %v4523, 2
  %v4970 = vrot.slane %v4699, 2
  %v4971 = vsel %vm4926, %v4969, %v4970
  %v4972 = vrot.slane %v4524, 2
  %v4973 = vrot.slane %v4700, 2
  %v4974 = vsel %vm4926, %v4972, %v4973
  %v4975 = vrot.slane %v4525, 2
  %v4976 = vrot.slane %v4701, 2
  %v4977 = vsel %vm4926, %v4975, %v4976
  %v4978 = vrot.slane %v4526, 2
  %v4979 = vrot.slane %v4702, 2
  %v4980 = vsel %vm4926, %v4978, %v4979
  %v4981 = vrot.slane %v4527, 2
  %v4982 = vrot.slane %v4703, 2
  %v4983 = vsel %vm4926, %v4981, %v4982
  %v4984 = vrot.slane %v4528, 2
  %v4985 = vrot.slane %v4704, 2
  %v4986 = vsel %vm4926, %v4984, %v4985
  %v4987 = vrot.slane %v4529, 2
  %v4988 = vrot.slane %v4705, 2
  %v4989 = vsel %vm4926, %v4987, %v4988
  %v4990 = vrot.slane %v4530, 2
  %v4991 = vrot.slane %v4706, 2
  %v4992 = vsel %vm4926, %v4990, %v4991
  %v4993 = vrot.slane %v4531, 2
  %v4994 = vrot.slane %v4707, 2
  %v4995 = vsel %vm4926, %v4993, %v4994
  %v4996 = vrot.slane %v4532, 2
  %v4997 = vrot.slane %v4708, 2
  %v4998 = vsel %vm4926, %v4996, %v4997
  %v4999 = vrot.slane %v4533, 2
  %v5000 = vrot.slane %v4709, 2
  %v5001 = vsel %vm4926, %v4999, %v5000
  %v5002 = vrot.slane %v4534, 2
  %v5003 = vrot.slane %v4710, 2
  %v5004 = vsel %vm4926, %v5002, %v5003
  %v5005 = vrot.slane %v4535, 2
  %v5006 = vrot.slane %v4711, 2
  %v5007 = vsel %vm4926, %v5005, %v5006
  %v5008 = vrot.slane %v4536, 2
  %v5009 = vrot.slane %v4712, 2
  %v5010 = vsel %vm4926, %v5008, %v5009
  %v5011 = vrot.slane %v4537, 2
  %v5012 = vrot.slane %v4713, 2
  %v5013 = vsel %vm4926, %v5011, %v5012
  %v5014 = vrot.slane %v4538, 2
  %v5015 = vrot.slane %v4714, 2
  %v5016 = vsel %vm4926, %v5014, %v5015
  %v5017 = vrot.slane %v4539, 2
  %v5018 = vrot.slane %v4715, 2
  %v5019 = vsel %vm4926, %v5017, %v5018
  %v5020 = vrot.slane %v4540, 2
  %v5021 = vrot.slane %v4716, 2
  %v5022 = vsel %vm4926, %v5020, %v5021
  %v5023 = vrot.slane %v4541, 2
  %v5024 = vrot.slane %v4717, 2
  %v5025 = vsel %vm4926, %v5023, %v5024
  %v5026 = vrot.slane %v4542, 2
  %v5027 = vrot.slane %v4718, 2
  %v5028 = vsel %vm4926, %v5026, %v5027
  %v5029 = vrot.slane %v4543, 2
  %v5030 = vrot.slane %v4719, 2
  %v5031 = vsel %vm4926, %v5029, %v5030
  %v5032 = vrot.slane %v4544, 2
  %v5033 = vrot.slane %v4720, 2
  %v5034 = vsel %vm4926, %v5032, %v5033
  %v5035 = vrot.slane %v4545, 2
  %v5036 = vrot.slane %v4721, 2
  %v5037 = vsel %vm4926, %v5035, %v5036
  %v5038 = vrot.slane %v4546, 2
  %v5039 = vrot.slane %v4722, 2
  %v5040 = vsel %vm4926, %v5038, %v5039
  %v5041 = vrot.slane %v4547, 2
  %v5042 = vrot.slane %v4723, 2
  %v5043 = vsel %vm4926, %v5041, %v5042
  %v5044 = vrot.slane %v4548, 2
  %v5045 = vrot.slane %v4724, 2
  %v5046 = vsel %vm4926, %v5044, %v5045
  %v5047 = vrot.slane %v4549, 2
  %v5048 = vrot.slane %v4725, 2
  %v5049 = vsel %vm4926, %v5047, %v5048
  %v5050 = vrot.slane %v4550, 2
  %v5051 = vrot.slane %v4726, 2
  %v5052 = vsel %vm4926, %v5050, %v5051
  %v5053 = vrot.slane %v4551, 2
  %v5054 = vrot.slane %v4727, 2
  %v5055 = vsel %vm4926, %v5053, %v5054
  %v5056 = vrot.slane %v4552, 2
  %v5057 = vrot.slane %v4728, 2
  %v5058 = vsel %vm4926, %v5056, %v5057
  %v5059 = vrot.slane %v4553, 2
  %v5060 = vrot.slane %v4729, 2
  %v5061 = vsel %vm4926, %v5059, %v5060
  %v5062 = vrot.slane %v4554, 2
  %v5063 = vrot.slane %v4730, 2
  %v5064 = vsel %vm4926, %v5062, %v5063
  %v5065 = vrot.slane %v4555, 2
  %v5066 = vrot.slane %v4731, 2
  %v5067 = vsel %vm4926, %v5065, %v5066
  %v5068 = vrot.slane %v4556, 2
  %v5069 = vrot.slane %v4732, 2
  %v5070 = vsel %vm4926, %v5068, %v5069
  %vm5119 = vcmask 1044480
  %v5120 = vrot.slane %v4509, 3
  %v5121 = vrot.slane %v4685, 3
  %v5122 = vsel %vm5119, %v5120, %v5121
  %v5123 = vrot.slane %v4510, 3
  %v5124 = vrot.slane %v4686, 3
  %v5125 = vsel %vm5119, %v5123, %v5124
  %v5126 = vrot.slane %v4511, 3
  %v5127 = vrot.slane %v4687, 3
  %v5128 = vsel %vm5119, %v5126, %v5127
  %v5129 = vrot.slane %v4512, 3
  %v5130 = vrot.slane %v4688, 3
  %v5131 = vsel %vm5119, %v5129, %v5130
  %v5132 = vrot.slane %v4513, 3
  %v5133 = vrot.slane %v4689, 3
  %v5134 = vsel %vm5119, %v5132, %v5133
  %v5135 = vrot.slane %v4514, 3
  %v5136 = vrot.slane %v4690, 3
  %v5137 = vsel %vm5119, %v5135, %v5136
  %v5138 = vrot.slane %v4515, 3
  %v5139 = vrot.slane %v4691, 3
  %v5140 = vsel %vm5119, %v5138, %v5139
  %v5141 = vrot.slane %v4516, 3
  %v5142 = vrot.slane %v4692, 3
  %v5143 = vsel %vm5119, %v5141, %v5142
  %v5144 = vrot.slane %v4517, 3
  %v5145 = vrot.slane %v4693, 3
  %v5146 = vsel %vm5119, %v5144, %v5145
  %v5147 = vrot.slane %v4518, 3
  %v5148 = vrot.slane %v4694, 3
  %v5149 = vsel %vm5119, %v5147, %v5148
  %v5150 = vrot.slane %v4519, 3
  %v5151 = vrot.slane %v4695, 3
  %v5152 = vsel %vm5119, %v5150, %v5151
  %v5153 = vrot.slane %v4520, 3
  %v5154 = vrot.slane %v4696, 3
  %v5155 = vsel %vm5119, %v5153, %v5154
  %v5156 = vrot.slane %v4521, 3
  %v5157 = vrot.slane %v4697, 3
  %v5158 = vsel %vm5119, %v5156, %v5157
  %v5159 = vrot.slane %v4522, 3
  %v5160 = vrot.slane %v4698, 3
  %v5161 = vsel %vm5119, %v5159, %v5160
  %v5162 = vrot.slane %v4523, 3
  %v5163 = vrot.slane %v4699, 3
  %v5164 = vsel %vm5119, %v5162, %v5163
  %v5165 = vrot.slane %v4524, 3
  %v5166 = vrot.slane %v4700, 3
  %v5167 = vsel %vm5119, %v5165, %v5166
  %v5168 = vrot.slane %v4525, 3
  %v5169 = vrot.slane %v4701, 3
  %v5170 = vsel %vm5119, %v5168, %v5169
  %v5171 = vrot.slane %v4526, 3
  %v5172 = vrot.slane %v4702, 3
  %v5173 = vsel %vm5119, %v5171, %v5172
  %v5174 = vrot.slane %v4527, 3
  %v5175 = vrot.slane %v4703, 3
  %v5176 = vsel %vm5119, %v5174, %v5175
  %v5177 = vrot.slane %v4528, 3
  %v5178 = vrot.slane %v4704, 3
  %v5179 = vsel %vm5119, %v5177, %v5178
  %v5180 = vrot.slane %v4529, 3
  %v5181 = vrot.slane %v4705, 3
  %v5182 = vsel %vm5119, %v5180, %v5181
  %v5183 = vrot.slane %v4530, 3
  %v5184 = vrot.slane %v4706, 3
  %v5185 = vsel %vm5119, %v5183, %v5184
  %v5186 = vrot.slane %v4531, 3
  %v5187 = vrot.slane %v4707, 3
  %v5188 = vsel %vm5119, %v5186, %v5187
  %v5189 = vrot.slane %v4532, 3
  %v5190 = vrot.slane %v4708, 3
  %v5191 = vsel %vm5119, %v5189, %v5190
  %v5192 = vrot.slane %v4533, 3
  %v5193 = vrot.slane %v4709, 3
  %v5194 = vsel %vm5119, %v5192, %v5193
  %v5195 = vrot.slane %v4534, 3
  %v5196 = vrot.slane %v4710, 3
  %v5197 = vsel %vm5119, %v5195, %v5196
  %v5198 = vrot.slane %v4535, 3
  %v5199 = vrot.slane %v4711, 3
  %v5200 = vsel %vm5119, %v5198, %v5199
  %v5201 = vrot.slane %v4536, 3
  %v5202 = vrot.slane %v4712, 3
  %v5203 = vsel %vm5119, %v5201, %v5202
  %v5204 = vrot.slane %v4537, 3
  %v5205 = vrot.slane %v4713, 3
  %v5206 = vsel %vm5119, %v5204, %v5205
  %v5207 = vrot.slane %v4538, 3
  %v5208 = vrot.slane %v4714, 3
  %v5209 = vsel %vm5119, %v5207, %v5208
  %v5210 = vrot.slane %v4539, 3
  %v5211 = vrot.slane %v4715, 3
  %v5212 = vsel %vm5119, %v5210, %v5211
  %v5213 = vrot.slane %v4540, 3
  %v5214 = vrot.slane %v4716, 3
  %v5215 = vsel %vm5119, %v5213, %v5214
  %v5216 = vrot.slane %v4541, 3
  %v5217 = vrot.slane %v4717, 3
  %v5218 = vsel %vm5119, %v5216, %v5217
  %v5219 = vrot.slane %v4542, 3
  %v5220 = vrot.slane %v4718, 3
  %v5221 = vsel %vm5119, %v5219, %v5220
  %v5222 = vrot.slane %v4543, 3
  %v5223 = vrot.slane %v4719, 3
  %v5224 = vsel %vm5119, %v5222, %v5223
  %v5225 = vrot.slane %v4544, 3
  %v5226 = vrot.slane %v4720, 3
  %v5227 = vsel %vm5119, %v5225, %v5226
  %v5228 = vrot.slane %v4545, 3
  %v5229 = vrot.slane %v4721, 3
  %v5230 = vsel %vm5119, %v5228, %v5229
  %v5231 = vrot.slane %v4546, 3
  %v5232 = vrot.slane %v4722, 3
  %v5233 = vsel %vm5119, %v5231, %v5232
  %v5234 = vrot.slane %v4547, 3
  %v5235 = vrot.slane %v4723, 3
  %v5236 = vsel %vm5119, %v5234, %v5235
  %v5237 = vrot.slane %v4548, 3
  %v5238 = vrot.slane %v4724, 3
  %v5239 = vsel %vm5119, %v5237, %v5238
  %v5240 = vrot.slane %v4549, 3
  %v5241 = vrot.slane %v4725, 3
  %v5242 = vsel %vm5119, %v5240, %v5241
  %v5243 = vrot.slane %v4550, 3
  %v5244 = vrot.slane %v4726, 3
  %v5245 = vsel %vm5119, %v5243, %v5244
  %v5246 = vrot.slane %v4551, 3
  %v5247 = vrot.slane %v4727, 3
  %v5248 = vsel %vm5119, %v5246, %v5247
  %v5249 = vrot.slane %v4552, 3
  %v5250 = vrot.slane %v4728, 3
  %v5251 = vsel %vm5119, %v5249, %v5250
  %v5252 = vrot.slane %v4553, 3
  %v5253 = vrot.slane %v4729, 3
  %v5254 = vsel %vm5119, %v5252, %v5253
  %v5255 = vrot.slane %v4554, 3
  %v5256 = vrot.slane %v4730, 3
  %v5257 = vsel %vm5119, %v5255, %v5256
  %v5258 = vrot.slane %v4555, 3
  %v5259 = vrot.slane %v4731, 3
  %v5260 = vsel %vm5119, %v5258, %v5259
  %v5261 = vrot.slane %v4556, 3
  %v5262 = vrot.slane %v4732, 3
  %v5263 = vsel %vm5119, %v5261, %v5262
  %v5312 = vpack.c.b16 %v4637, %v4416
  %v5313 = vpack.c.b16 %v4638, %v4417
  %v5314 = vpack.c.b16 %v4639, %v4418
  %v5315 = vpack.c.b16 %v4640, %v4422
  %v5316 = vpack.c.b16 %v4641, %v4423
  %v5317 = vpack.c.b16 %v4642, %v4424
  %v5318 = vpack.c.b16 %v4643, %v4428
  %v5319 = vpack.c.b16 %v4644, %v4429
  %v5320 = vpack.c.b16 %v4645, %v4430
  %v5321 = vpack.c.b16 %v4646, %v4434
  %v5322 = vpack.c.b16 %v4647, %v4435
  %v5323 = vpack.c.b16 %v4648, %v4436
  %v5324 = vpack.c.b16 %v4649, %v4440
  %v5325 = vpack.c.b16 %v4650, %v4441
  %v5326 = vpack.c.b16 %v4651, %v4442
  %v5327 = vpack.c.b16 %v4652, %v4446
  %v5328 = vpack.c.b16 %v4653, %v4447
  %v5329 = vpack.c.b16 %v4654, %v4448
  %v5330 = vpack.c.b16 %v4655, %v4452
  %v5331 = vpack.c.b16 %v4656, %v4453
  %v5332 = vpack.c.b16 %v4657, %v4454
  %v5333 = vpack.c.b16 %v4658, %v4458
  %v5334 = vpack.c.b16 %v4659, %v4459
  %v5335 = vpack.c.b16 %v4660, %v4460
  %v5336 = vpack.c.b16 %v4661, %v4464
  %v5337 = vpack.c.b16 %v4662, %v4465
  %v5338 = vpack.c.b16 %v4663, %v4466
  %v5339 = vpack.c.b16 %v4664, %v4470
  %v5340 = vpack.c.b16 %v4665, %v4471
  %v5341 = vpack.c.b16 %v4666, %v4472
  %v5342 = vpack.c.b16 %v4667, %v4476
  %v5343 = vpack.c.b16 %v4668, %v4477
  %v5344 = vpack.c.b16 %v4669, %v4478
  %v5345 = vpack.c.b16 %v4670, %v4482
  %v5346 = vpack.c.b16 %v4671, %v4483
  %v5347 = vpack.c.b16 %v4672, %v4484
  %v5348 = vpack.c.b16 %v4673, %v4488
  %v5349 = vpack.c.b16 %v4674, %v4489
  %v5350 = vpack.c.b16 %v4675, %v4490
  %v5351 = vpack.c.b16 %v4676, %v4494
  %v5352 = vpack.c.b16 %v4677, %v4495
  %v5353 = vpack.c.b16 %v4678, %v4496
  %v5354 = vpack.c.b16 %v4679, %v4500
  %v5355 = vpack.c.b16 %v4680, %v4501
  %v5356 = vpack.c.b16 %v4681, %v4502
  %v5357 = vpack.c.b16 %v4682, %v4506
  %v5358 = vpack.c.b16 %v4683, %v4507
  %v5359 = vpack.c.b16 %v4684, %v4508
  %v5408 = vld [vmem:[%s3] sm:$0xff]
  %v5409 = vld [vmem:[%s3 + $0x8] sm:$0xff]
  %v5410 = vld [vmem:[%s3 + $0x10] sm:$0xff]
  %v5411 = vld [vmem:[%s3 + $0x18] sm:$0xff]
  %v5412 = vld [vmem:[%s3 + $0x20] sm:$0xff]
  %v5413 = vld [vmem:[%s3 + $0x28] sm:$0xff]
  %v5414 = vld [vmem:[%s3 + $0x30] sm:$0xff]
  %v5415 = vld [vmem:[%s3 + $0x38] sm:$0xff]
  %v5416 = vld [vmem:[%s3 + $0x40] sm:$0xff]
  %v5417 = vld [vmem:[%s3 + $0x48] sm:$0xff]
  %v5418 = vld [vmem:[%s3 + $0x50] sm:$0xff]
  %v5419 = vld [vmem:[%s3 + $0x58] sm:$0xff]
  %v5420 = vld [vmem:[%s3 + $0x60] sm:$0xff]
  %v5421 = vld [vmem:[%s3 + $0x68] sm:$0xff]
  %v5422 = vld [vmem:[%s3 + $0x70] sm:$0xff]
  %v5423 = vld [vmem:[%s3 + $0x78] sm:$0xff]
  %v5424 = vld [vmem:[%s3 + $0x80] sm:$0xff]
  %v5425 = vld [vmem:[%s3 + $0x88] sm:$0xff]
  %v5426 = vld [vmem:[%s3 + $0x90] sm:$0xff]
  %v5427 = vld [vmem:[%s3 + $0x98] sm:$0xff]
  %v5428 = vld [vmem:[%s3 + $0xa0] sm:$0xff]
  %v5429 = vld [vmem:[%s3 + $0xa8] sm:$0xff]
  %v5430 = vld [vmem:[%s3 + $0xb0] sm:$0xff]
  %v5431 = vld [vmem:[%s3 + $0xb8] sm:$0xff]
  %v5432 = vld [vmem:[%s3 + $0xc0] sm:$0xff]
  %v5433 = vld [vmem:[%s3 + $0xc8] sm:$0xff]
  %v5434 = vld [vmem:[%s3 + $0xd0] sm:$0xff]
  %v5435 = vld [vmem:[%s3 + $0xd8] sm:$0xff]
  %v5436 = vld [vmem:[%s3 + $0xe0] sm:$0xff]
  %v5437 = vld [vmem:[%s3 + $0xe8] sm:$0xff]
  %v5438 = vld [vmem:[%s3 + $0xf0] sm:$0xff]
  %v5439 = vld [vmem:[%s3 + $0xf8] sm:$0xff]
  %v5440 = vld [vmem:[%s3 + $0x100] sm:$0xff]
  %v5441 = vld [vmem:[%s3 + $0x108] sm:$0xff]
  %v5442 = vld [vmem:[%s3 + $0x110] sm:$0xff]
  %v5443 = vld [vmem:[%s3 + $0x118] sm:$0xff]
  %v5444 = vld [vmem:[%s3 + $0x120] sm:$0xff]
  %v5445 = vld [vmem:[%s3 + $0x128] sm:$0xff]
  %v5446 = vld [vmem:[%s3 + $0x130] sm:$0xff]
  %v5447 = vld [vmem:[%s3 + $0x138] sm:$0xff]
  %v5448 = vld [vmem:[%s3 + $0x140] sm:$0xff]
  %v5449 = vld [vmem:[%s3 + $0x148] sm:$0xff]
  %v5450 = vld [vmem:[%s3 + $0x150] sm:$0xff]
  %v5451 = vld [vmem:[%s3 + $0x158] sm:$0xff]
  %v5452 = vld [vmem:[%s3 + $0x160] sm:$0xff]
  %v5453 = vld [vmem:[%s3 + $0x168] sm:$0xff]
  %v5454 = vld [vmem:[%s3 + $0x170] sm:$0xff]
  %v5455 = vld [vmem:[%s3 + $0x178] sm:$0xff]
  %v5456 = vld [vmem:[%s3 + $0x180] sm:$0xff]
  %v5457 = vld [vmem:[%s3 + $0x188] sm:$0xff]
  %v5458 = vld [vmem:[%s3 + $0x190] sm:$0xff]
  %v5459 = vld [vmem:[%s3 + $0x198] sm:$0xff]
  %v5460 = vld [vmem:[%s3 + $0x1a0] sm:$0xff]
  %v5461 = vld [vmem:[%s3 + $0x1a8] sm:$0xff]
  %v5462 = vld [vmem:[%s3 + $0x1b0] sm:$0xff]
  %v5463 = vld [vmem:[%s3 + $0x1b8] sm:$0xff]
  %v5464 = vld [vmem:[%s3 + $0x1c0] sm:$0xff]
  %v5465 = vld [vmem:[%s3 + $0x1c8] sm:$0xff]
  %v5466 = vld [vmem:[%s3 + $0x1d0] sm:$0xff]
  %v5467 = vld [vmem:[%s3 + $0x1d8] sm:$0xff]
  %v5468 = vld [vmem:[%s3 + $0x1e0] sm:$0xff]
  %v5469 = vld [vmem:[%s3 + $0x1e8] sm:$0xff]
  %v5470 = vld [vmem:[%s3 + $0x1f0] sm:$0xff]
  %v5471 = vld [vmem:[%s3 + $0x1f8] sm:$0xff]
  %v5472 = vld [vmem:[%s3 + $0x200] sm:$0xff]
  %v5473 = vld [vmem:[%s3 + $0x208] sm:$0xff]
  %v5474 = vld [vmem:[%s3 + $0x210] sm:$0xff]
  %v5475 = vld [vmem:[%s3 + $0x218] sm:$0xff]
  %v5476 = vld [vmem:[%s3 + $0x220] sm:$0xff]
  %v5477 = vld [vmem:[%s3 + $0x228] sm:$0xff]
  %v5478 = vld [vmem:[%s3 + $0x230] sm:$0xff]
  %v5479 = vld [vmem:[%s3 + $0x238] sm:$0xff]
  %v5480 = vld [vmem:[%s3 + $0x240] sm:$0xff]
  %v5481 = vld [vmem:[%s3 + $0x248] sm:$0xff]
  %v5482 = vld [vmem:[%s3 + $0x250] sm:$0xff]
  %v5483 = vld [vmem:[%s3 + $0x258] sm:$0xff]
  %v5484 = vld [vmem:[%s3 + $0x260] sm:$0xff]
  %v5485 = vld [vmem:[%s3 + $0x268] sm:$0xff]
  %v5486 = vld [vmem:[%s3 + $0x270] sm:$0xff]
  %v5487 = vld [vmem:[%s3 + $0x278] sm:$0xff]
  %v5488 = vld [vmem:[%s3 + $0x280] sm:$0xff]
  %v5489 = vld [vmem:[%s3 + $0x288] sm:$0xff]
  %v5490 = vld [vmem:[%s3 + $0x290] sm:$0xff]
  %v5491 = vld [vmem:[%s3 + $0x298] sm:$0xff]
  %v5492 = vld [vmem:[%s3 + $0x2a0] sm:$0xff]
  %v5493 = vld [vmem:[%s3 + $0x2a8] sm:$0xff]
  %v5494 = vld [vmem:[%s3 + $0x2b0] sm:$0xff]
  %v5495 = vld [vmem:[%s3 + $0x2b8] sm:$0xff]
  %v5496 = vld [vmem:[%s3 + $0x2c0] sm:$0xff]
  %v5497 = vld [vmem:[%s3 + $0x2c8] sm:$0xff]
  %v5498 = vld [vmem:[%s3 + $0x2d0] sm:$0xff]
  %v5499 = vld [vmem:[%s3 + $0x2d8] sm:$0xff]
  %v5500 = vld [vmem:[%s3 + $0x2e0] sm:$0xff]
  %v5501 = vld [vmem:[%s3 + $0x2e8] sm:$0xff]
  %v5502 = vld [vmem:[%s3 + $0x2f0] sm:$0xff]
  %v5503 = vld [vmem:[%s3 + $0x2f8] sm:$0xff]
  %v5504 = vld [vmem:[%s3 + $0x300] sm:$0xff]
  %v5505 = vld [vmem:[%s3 + $0x308] sm:$0xff]
  %v5506 = vld [vmem:[%s3 + $0x310] sm:$0xff]
  %v5507 = vld [vmem:[%s3 + $0x318] sm:$0xff]
  %v5508 = vld [vmem:[%s3 + $0x320] sm:$0xff]
  %v5509 = vld [vmem:[%s3 + $0x328] sm:$0xff]
  %v5510 = vld [vmem:[%s3 + $0x330] sm:$0xff]
  %v5511 = vld [vmem:[%s3 + $0x338] sm:$0xff]
  %v5512 = vld [vmem:[%s3 + $0x340] sm:$0xff]
  %v5513 = vld [vmem:[%s3 + $0x348] sm:$0xff]
  %v5514 = vld [vmem:[%s3 + $0x350] sm:$0xff]
  %v5515 = vld [vmem:[%s3 + $0x358] sm:$0xff]
  %v5516 = vld [vmem:[%s3 + $0x360] sm:$0xff]
  %v5517 = vld [vmem:[%s3 + $0x368] sm:$0xff]
  %v5518 = vld [vmem:[%s3 + $0x370] sm:$0xff]
  %v5519 = vld [vmem:[%s3 + $0x378] sm:$0xff]
  %v5520 = vld [vmem:[%s3 + $0x380] sm:$0xff]
  %v5521 = vld [vmem:[%s3 + $0x388] sm:$0xff]
  %v5522 = vld [vmem:[%s3 + $0x390] sm:$0xff]
  %v5523 = vld [vmem:[%s3 + $0x398] sm:$0xff]
  %v5524 = vld [vmem:[%s3 + $0x3a0] sm:$0xff]
  %v5525 = vld [vmem:[%s3 + $0x3a8] sm:$0xff]
  %v5526 = vld [vmem:[%s3 + $0x3b0] sm:$0xff]
  %v5527 = vld [vmem:[%s3 + $0x3b8] sm:$0xff]
  %v5528 = vld [vmem:[%s3 + $0x3c0] sm:$0xff]
  %v5529 = vld [vmem:[%s3 + $0x3c8] sm:$0xff]
  %v5530 = vld [vmem:[%s3 + $0x3d0] sm:$0xff]
  %v5531 = vld [vmem:[%s3 + $0x3d8] sm:$0xff]
  %v5532 = vld [vmem:[%s3 + $0x3e0] sm:$0xff]
  %v5533 = vld [vmem:[%s3 + $0x3e8] sm:$0xff]
  %v5534 = vld [vmem:[%s3 + $0x3f0] sm:$0xff]
  %v5535 = vld [vmem:[%s3 + $0x3f8] sm:$0xff]
  %v5536 = vld [vmem:[%s3 + $0x400] sm:$0xff]
  %v5537 = vld [vmem:[%s3 + $0x408] sm:$0xff]
  %v5538 = vld [vmem:[%s3 + $0x410] sm:$0xff]
  %v5539 = vld [vmem:[%s3 + $0x418] sm:$0xff]
  %v5540 = vld [vmem:[%s3 + $0x420] sm:$0xff]
  %v5541 = vld [vmem:[%s3 + $0x428] sm:$0xff]
  %v5542 = vld [vmem:[%s3 + $0x430] sm:$0xff]
  %v5543 = vld [vmem:[%s3 + $0x438] sm:$0xff]
  %v5544 = vld [vmem:[%s3 + $0x440] sm:$0xff]
  %v5545 = vld [vmem:[%s3 + $0x448] sm:$0xff]
  %v5546 = vld [vmem:[%s3 + $0x450] sm:$0xff]
  %v5547 = vld [vmem:[%s3 + $0x458] sm:$0xff]
  %v5548 = vld [vmem:[%s3 + $0x460] sm:$0xff]
  %v5549 = vld [vmem:[%s3 + $0x468] sm:$0xff]
  %v5550 = vld [vmem:[%s3 + $0x470] sm:$0xff]
  %v5551 = vld [vmem:[%s3 + $0x478] sm:$0xff]
  %v5552 = vld [vmem:[%s3 + $0x480] sm:$0xff]
  %v5553 = vld [vmem:[%s3 + $0x488] sm:$0xff]
  %v5554 = vld [vmem:[%s3 + $0x490] sm:$0xff]
  %v5555 = vld [vmem:[%s3 + $0x498] sm:$0xff]
  %v5556 = vld [vmem:[%s3 + $0x4a0] sm:$0xff]
  %v5557 = vld [vmem:[%s3 + $0x4a8] sm:$0xff]
  %v5558 = vld [vmem:[%s3 + $0x4b0] sm:$0xff]
  %v5559 = vld [vmem:[%s3 + $0x4b8] sm:$0xff]
  %v5560 = vld [vmem:[%s3 + $0x4c0] sm:$0xff]
  %v5561 = vld [vmem:[%s3 + $0x4c8] sm:$0xff]
  %v5562 = vld [vmem:[%s3 + $0x4d0] sm:$0xff]
  %v5563 = vld [vmem:[%s3 + $0x4d8] sm:$0xff]
  %v5564 = vld [vmem:[%s3 + $0x4e0] sm:$0xff]
  %v5565 = vld [vmem:[%s3 + $0x4e8] sm:$0xff]
  %v5566 = vld [vmem:[%s3 + $0x4f0] sm:$0xff]
  %v5567 = vld [vmem:[%s3 + $0x4f8] sm:$0xff]
  %v5568 = vld [vmem:[%s3 + $0x500] sm:$0xff]
  %v5569 = vld [vmem:[%s3 + $0x508] sm:$0xff]
  %v5570 = vld [vmem:[%s3 + $0x510] sm:$0xff]
  %v5571 = vld [vmem:[%s3 + $0x518] sm:$0xff]
  %v5572 = vld [vmem:[%s3 + $0x520] sm:$0xff]
  %v5573 = vld [vmem:[%s3 + $0x528] sm:$0xff]
  %v5574 = vld [vmem:[%s3 + $0x530] sm:$0xff]
  %v5575 = vld [vmem:[%s3 + $0x538] sm:$0xff]
  %v5576 = vld [vmem:[%s3 + $0x540] sm:$0xff]
  %v5577 = vld [vmem:[%s3 + $0x548] sm:$0xff]
  %v5578 = vld [vmem:[%s3 + $0x550] sm:$0xff]
  %v5579 = vld [vmem:[%s3 + $0x558] sm:$0xff]
  %v5580 = vld [vmem:[%s3 + $0x560] sm:$0xff]
  %v5581 = vld [vmem:[%s3 + $0x568] sm:$0xff]
  %v5582 = vld [vmem:[%s3 + $0x570] sm:$0xff]
  %v5583 = vld [vmem:[%s3 + $0x578] sm:$0xff]
  %v5584 = vld [vmem:[%s3 + $0x580] sm:$0xff]
  %v5585 = vld [vmem:[%s3 + $0x588] sm:$0xff]
  %v5586 = vld [vmem:[%s3 + $0x590] sm:$0xff]
  %v5587 = vld [vmem:[%s3 + $0x598] sm:$0xff]
  %v5588 = vld [vmem:[%s3 + $0x5a0] sm:$0xff]
  %v5589 = vld [vmem:[%s3 + $0x5a8] sm:$0xff]
  %v5590 = vld [vmem:[%s3 + $0x5b0] sm:$0xff]
  %v5591 = vld [vmem:[%s3 + $0x5b8] sm:$0xff]
  %v5592 = vld [vmem:[%s3 + $0x5c0] sm:$0xff]
  %v5593 = vld [vmem:[%s3 + $0x5c8] sm:$0xff]
  %v5594 = vld [vmem:[%s3 + $0x5d0] sm:$0xff]
  %v5595 = vld [vmem:[%s3 + $0x5d8] sm:$0xff]
  %v5596 = vld [vmem:[%s3 + $0x5e0] sm:$0xff]
  %v5597 = vld [vmem:[%s3 + $0x5e8] sm:$0xff]
  %v5598 = vld [vmem:[%s3 + $0x5f0] sm:$0xff]
  %v5599 = vld [vmem:[%s3 + $0x5f8] sm:$0xff]
  %v5600 = vld [vmem:[%s3 + $0x600] sm:$0xff]
  %v5601 = vld [vmem:[%s3 + $0x608] sm:$0xff]
  %v5602 = vld [vmem:[%s3 + $0x610] sm:$0xff]
  %v5603 = vld [vmem:[%s3 + $0x618] sm:$0xff]
  %v5604 = vld [vmem:[%s3 + $0x620] sm:$0xff]
  %v5605 = vld [vmem:[%s3 + $0x628] sm:$0xff]
  %v5606 = vld [vmem:[%s3 + $0x630] sm:$0xff]
  %v5607 = vld [vmem:[%s3 + $0x638] sm:$0xff]
  %v5608 = vld [vmem:[%s3 + $0x640] sm:$0xff]
  %v5609 = vld [vmem:[%s3 + $0x648] sm:$0xff]
  %v5610 = vld [vmem:[%s3 + $0x650] sm:$0xff]
  %v5611 = vld [vmem:[%s3 + $0x658] sm:$0xff]
  %v5612 = vld [vmem:[%s3 + $0x660] sm:$0xff]
  %v5613 = vld [vmem:[%s3 + $0x668] sm:$0xff]
  %v5614 = vld [vmem:[%s3 + $0x670] sm:$0xff]
  %v5615 = vld [vmem:[%s3 + $0x678] sm:$0xff]
  %v5616 = vld [vmem:[%s3 + $0x680] sm:$0xff]
  %v5617 = vld [vmem:[%s3 + $0x688] sm:$0xff]
  %v5618 = vld [vmem:[%s3 + $0x690] sm:$0xff]
  %v5619 = vld [vmem:[%s3 + $0x698] sm:$0xff]
  %v5620 = vld [vmem:[%s3 + $0x6a0] sm:$0xff]
  %v5621 = vld [vmem:[%s3 + $0x6a8] sm:$0xff]
  %v5622 = vld [vmem:[%s3 + $0x6b0] sm:$0xff]
  %v5623 = vld [vmem:[%s3 + $0x6b8] sm:$0xff]
  %v5624 = vld [vmem:[%s3 + $0x6c0] sm:$0xff]
  %v5625 = vld [vmem:[%s3 + $0x6c8] sm:$0xff]
  %v5626 = vld [vmem:[%s3 + $0x6d0] sm:$0xff]
  %v5627 = vld [vmem:[%s3 + $0x6d8] sm:$0xff]
  %v5628 = vld [vmem:[%s3 + $0x6e0] sm:$0xff]
  %v5629 = vld [vmem:[%s3 + $0x6e8] sm:$0xff]
  %v5630 = vld [vmem:[%s3 + $0x6f0] sm:$0xff]
  %v5631 = vld [vmem:[%s3 + $0x6f8] sm:$0xff]
  %v5632 = vld [vmem:[%s3 + $0x700] sm:$0xff]
  %v5633 = vld [vmem:[%s3 + $0x708] sm:$0xff]
  %v5634 = vld [vmem:[%s3 + $0x710] sm:$0xff]
  %v5635 = vld [vmem:[%s3 + $0x718] sm:$0xff]
  %v5636 = vld [vmem:[%s3 + $0x720] sm:$0xff]
  %v5637 = vld [vmem:[%s3 + $0x728] sm:$0xff]
  %v5638 = vld [vmem:[%s3 + $0x730] sm:$0xff]
  %v5639 = vld [vmem:[%s3 + $0x738] sm:$0xff]
  %v5640 = vld [vmem:[%s3 + $0x740] sm:$0xff]
  %v5641 = vld [vmem:[%s3 + $0x748] sm:$0xff]
  %v5642 = vld [vmem:[%s3 + $0x750] sm:$0xff]
  %v5643 = vld [vmem:[%s3 + $0x758] sm:$0xff]
  %v5644 = vld [vmem:[%s3 + $0x760] sm:$0xff]
  %v5645 = vld [vmem:[%s3 + $0x768] sm:$0xff]
  %v5646 = vld [vmem:[%s3 + $0x770] sm:$0xff]
  %v5647 = vld [vmem:[%s3 + $0x778] sm:$0xff]
  %v5648 = vld [vmem:[%s4] sm:$0x3]
  %v5650 = vperm.slane %v5648, 0
  %v5651 = vperm.slane %v5648, 1
  %v5894 = vunpack.c.l.b16 %v5408
  %v5895 = vunpack.c.h.b16 %v5408
  %v5896 = vunpack.c.l.b16 %v5409
  %v5897 = vunpack.c.h.b16 %v5409
  %v5898 = vunpack.c.l.b16 %v5410
  %v5899 = vunpack.c.h.b16 %v5410
  %v5900 = vunpack.c.l.b16 %v5411
  %v5901 = vunpack.c.h.b16 %v5411
  %v5902 = vunpack.c.l.b16 %v5412
  %v5903 = vunpack.c.h.b16 %v5412
  %v5904 = vunpack.c.l.b16 %v5413
  %v5905 = vunpack.c.h.b16 %v5413
  %v5906 = vunpack.c.l.b16 %v5414
  %v5907 = vunpack.c.h.b16 %v5414
  %v5908 = vunpack.c.l.b16 %v5415
  %v5909 = vunpack.c.h.b16 %v5415
  %v5910 = vunpack.c.l.b16 %v5416
  %v5911 = vunpack.c.h.b16 %v5416
  %v5912 = vunpack.c.l.b16 %v5417
  %v5913 = vunpack.c.h.b16 %v5417
  %v5914 = vunpack.c.l.b16 %v5418
  %v5915 = vunpack.c.h.b16 %v5418
  %v5916 = vunpack.c.l.b16 %v5419
  %v5917 = vunpack.c.h.b16 %v5419
  %v5918 = vunpack.c.l.b16 %v5420
  %v5919 = vunpack.c.h.b16 %v5420
  %v5920 = vunpack.c.l.b16 %v5421
  %v5921 = vunpack.c.h.b16 %v5421
  %v5922 = vunpack.c.l.b16 %v5422
  %v5923 = vunpack.c.h.b16 %v5422
  %v5924 = vunpack.c.l.b16 %v5423
  %v5925 = vunpack.c.h.b16 %v5423
  %v5926 = vunpack.c.l.b16 %v5424
  %v5927 = vunpack.c.h.b16 %v5424
  %v5928 = vunpack.c.l.b16 %v5425
  %v5929 = vunpack.c.h.b16 %v5425
  %v5930 = vunpack.c.l.b16 %v5426
  %v5931 = vunpack.c.h.b16 %v5426
  %v5932 = vunpack.c.l.b16 %v5427
  %v5933 = vunpack.c.h.b16 %v5427
  %v5934 = vunpack.c.l.b16 %v5428
  %v5935 = vunpack.c.h.b16 %v5428
  %v5936 = vunpack.c.l.b16 %v5429
  %v5937 = vunpack.c.h.b16 %v5429
  %v5938 = vunpack.c.l.b16 %v5430
  %v5939 = vunpack.c.h.b16 %v5430
  %v5940 = vunpack.c.l.b16 %v5431
  %v5941 = vunpack.c.h.b16 %v5431
  %v5942 = vunpack.c.l.b16 %v5432
  %v5943 = vunpack.c.h.b16 %v5432
  %v5944 = vunpack.c.l.b16 %v5433
  %v5945 = vunpack.c.h.b16 %v5433
  %v5946 = vunpack.c.l.b16 %v5434
  %v5947 = vunpack.c.h.b16 %v5434
  %v5948 = vunpack.c.l.b16 %v5435
  %v5949 = vunpack.c.h.b16 %v5435
  %v5950 = vunpack.c.l.b16 %v5436
  %v5951 = vunpack.c.h.b16 %v5436
  %v5952 = vunpack.c.l.b16 %v5437
  %v5953 = vunpack.c.h.b16 %v5437
  %v5954 = vunpack.c.l.b16 %v5438
  %v5955 = vunpack.c.h.b16 %v5438
  %v5956 = vunpack.c.l.b16 %v5439
  %v5957 = vunpack.c.h.b16 %v5439
  %v5958 = vunpack.c.l.b16 %v5440
  %v5959 = vunpack.c.h.b16 %v5440
  %v5960 = vunpack.c.l.b16 %v5441
  %v5961 = vunpack.c.h.b16 %v5441
  %v5962 = vunpack.c.l.b16 %v5442
  %v5963 = vunpack.c.h.b16 %v5442
  %v5964 = vunpack.c.l.b16 %v5443
  %v5965 = vunpack.c.h.b16 %v5443
  %v5966 = vunpack.c.l.b16 %v5444
  %v5967 = vunpack.c.h.b16 %v5444
  %v5968 = vunpack.c.l.b16 %v5445
  %v5969 = vunpack.c.h.b16 %v5445
  %v5970 = vunpack.c.l.b16 %v5446
  %v5971 = vunpack.c.h.b16 %v5446
  %v5972 = vunpack.c.l.b16 %v5447
  %v5973 = vunpack.c.h.b16 %v5447
  %v5974 = vunpack.c.l.b16 %v5448
  %v5975 = vunpack.c.h.b16 %v5448
  %v5976 = vunpack.c.l.b16 %v5449
  %v5977 = vunpack.c.h.b16 %v5449
  %v5978 = vunpack.c.l.b16 %v5450
  %v5979 = vunpack.c.h.b16 %v5450
  %v5980 = vunpack.c.l.b16 %v5451
  %v5981 = vunpack.c.h.b16 %v5451
  %v5982 = vunpack.c.l.b16 %v5452
  %v5983 = vunpack.c.h.b16 %v5452
  %v5984 = vunpack.c.l.b16 %v5453
  %v5985 = vunpack.c.h.b16 %v5453
  %v5986 = vunpack.c.l.b16 %v5454
  %v5987 = vunpack.c.h.b16 %v5454
  %v5988 = vunpack.c.l.b16 %v5455
  %v5989 = vunpack.c.h.b16 %v5455
  %v5990 = vunpack.c.l.b16 %v5456
  %v5991 = vunpack.c.h.b16 %v5456
  %v5992 = vunpack.c.l.b16 %v5457
  %v5993 = vunpack.c.h.b16 %v5457
  %v5994 = vunpack.c.l.b16 %v5458
  %v5995 = vunpack.c.h.b16 %v5458
  %v5996 = vunpack.c.l.b16 %v5459
  %v5997 = vunpack.c.h.b16 %v5459
  %v5998 = vunpack.c.l.b16 %v5460
  %v5999 = vunpack.c.h.b16 %v5460
  %v6000 = vunpack.c.l.b16 %v5461
  %v6001 = vunpack.c.h.b16 %v5461
  %v6002 = vunpack.c.l.b16 %v5462
  %v6003 = vunpack.c.h.b16 %v5462
  %v6004 = vunpack.c.l.b16 %v5463
  %v6005 = vunpack.c.h.b16 %v5463
  %v6006 = vunpack.c.l.b16 %v5464
  %v6007 = vunpack.c.h.b16 %v5464
  %v6008 = vunpack.c.l.b16 %v5465
  %v6009 = vunpack.c.h.b16 %v5465
  %v6010 = vunpack.c.l.b16 %v5466
  %v6011 = vunpack.c.h.b16 %v5466
  %v6012 = vunpack.c.l.b16 %v5467
  %v6013 = vunpack.c.h.b16 %v5467
  %v6014 = vunpack.c.l.b16 %v5468
  %v6015 = vunpack.c.h.b16 %v5468
  %v6016 = vunpack.c.l.b16 %v5469
  %v6017 = vunpack.c.h.b16 %v5469
  %v6018 = vunpack.c.l.b16 %v5470
  %v6019 = vunpack.c.h.b16 %v5470
  %v6020 = vunpack.c.l.b16 %v5471
  %v6021 = vunpack.c.h.b16 %v5471
  %v6022 = vunpack.c.l.b16 %v5472
  %v6023 = vunpack.c.h.b16 %v5472
  %v6024 = vunpack.c.l.b16 %v5473
  %v6025 = vunpack.c.h.b16 %v5473
  %v6026 = vunpack.c.l.b16 %v5474
  %v6027 = vunpack.c.h.b16 %v5474
  %v6028 = vunpack.c.l.b16 %v5475
  %v6029 = vunpack.c.h.b16 %v5475
  %v6030 = vunpack.c.l.b16 %v5476
  %v6031 = vunpack.c.h.b16 %v5476
  %v6032 = vunpack.c.l.b16 %v5477
  %v6033 = vunpack.c.h.b16 %v5477
  %v6034 = vunpack.c.l.b16 %v5478
  %v6035 = vunpack.c.h.b16 %v5478
  %v6036 = vunpack.c.l.b16 %v5479
  %v6037 = vunpack.c.h.b16 %v5479
  %v6038 = vunpack.c.l.b16 %v5480
  %v6039 = vunpack.c.h.b16 %v5480
  %v6040 = vunpack.c.l.b16 %v5481
  %v6041 = vunpack.c.h.b16 %v5481
  %v6042 = vunpack.c.l.b16 %v5482
  %v6043 = vunpack.c.h.b16 %v5482
  %v6044 = vunpack.c.l.b16 %v5483
  %v6045 = vunpack.c.h.b16 %v5483
  %v6046 = vunpack.c.l.b16 %v5484
  %v6047 = vunpack.c.h.b16 %v5484
  %v6048 = vunpack.c.l.b16 %v5485
  %v6049 = vunpack.c.h.b16 %v5485
  %v6050 = vunpack.c.l.b16 %v5486
  %v6051 = vunpack.c.h.b16 %v5486
  %v6052 = vunpack.c.l.b16 %v5487
  %v6053 = vunpack.c.h.b16 %v5487
  %v6054 = vunpack.c.l.b16 %v5488
  %v6055 = vunpack.c.h.b16 %v5488
  %v6056 = vunpack.c.l.b16 %v5489
  %v6057 = vunpack.c.h.b16 %v5489
  %v6058 = vunpack.c.l.b16 %v5490
  %v6059 = vunpack.c.h.b16 %v5490
  %v6060 = vunpack.c.l.b16 %v5491
  %v6061 = vunpack.c.h.b16 %v5491
  %v6062 = vunpack.c.l.b16 %v5492
  %v6063 = vunpack.c.h.b16 %v5492
  %v6064 = vunpack.c.l.b16 %v5493
  %v6065 = vunpack.c.h.b16 %v5493
  %v6066 = vunpack.c.l.b16 %v5494
  %v6067 = vunpack.c.h.b16 %v5494
  %v6068 = vunpack.c.l.b16 %v5495
  %v6069 = vunpack.c.h.b16 %v5495
  %v6070 = vunpack.c.l.b16 %v5496
  %v6071 = vunpack.c.h.b16 %v5496
  %v6072 = vunpack.c.l.b16 %v5497
  %v6073 = vunpack.c.h.b16 %v5497
  %v6074 = vunpack.c.l.b16 %v5498
  %v6075 = vunpack.c.h.b16 %v5498
  %v6076 = vunpack.c.l.b16 %v5499
  %v6077 = vunpack.c.h.b16 %v5499
  %v6078 = vunpack.c.l.b16 %v5500
  %v6079 = vunpack.c.h.b16 %v5500
  %v6080 = vunpack.c.l.b16 %v5501
  %v6081 = vunpack.c.h.b16 %v5501
  %v6082 = vunpack.c.l.b16 %v5502
  %v6083 = vunpack.c.h.b16 %v5502
  %v6084 = vunpack.c.l.b16 %v5503
  %v6085 = vunpack.c.h.b16 %v5503
  %v6086 = vunpack.c.l.b16 %v5504
  %v6087 = vunpack.c.h.b16 %v5504
  %v6088 = vunpack.c.l.b16 %v5505
  %v6089 = vunpack.c.h.b16 %v5505
  %v6090 = vunpack.c.l.b16 %v5506
  %v6091 = vunpack.c.h.b16 %v5506
  %v6092 = vunpack.c.l.b16 %v5507
  %v6093 = vunpack.c.h.b16 %v5507
  %v6094 = vunpack.c.l.b16 %v5508
  %v6095 = vunpack.c.h.b16 %v5508
  %v6096 = vunpack.c.l.b16 %v5509
  %v6097 = vunpack.c.h.b16 %v5509
  %v6098 = vunpack.c.l.b16 %v5510
  %v6099 = vunpack.c.h.b16 %v5510
  %v6100 = vunpack.c.l.b16 %v5511
  %v6101 = vunpack.c.h.b16 %v5511
  %v6102 = vunpack.c.l.b16 %v5512
  %v6103 = vunpack.c.h.b16 %v5512
  %v6104 = vunpack.c.l.b16 %v5513
  %v6105 = vunpack.c.h.b16 %v5513
  %v6106 = vunpack.c.l.b16 %v5514
  %v6107 = vunpack.c.h.b16 %v5514
  %v6108 = vunpack.c.l.b16 %v5515
  %v6109 = vunpack.c.h.b16 %v5515
  %v6110 = vunpack.c.l.b16 %v5516
  %v6111 = vunpack.c.h.b16 %v5516
  %v6112 = vunpack.c.l.b16 %v5517
  %v6113 = vunpack.c.h.b16 %v5517
  %v6114 = vunpack.c.l.b16 %v5518
  %v6115 = vunpack.c.h.b16 %v5518
  %v6116 = vunpack.c.l.b16 %v5519
  %v6117 = vunpack.c.h.b16 %v5519
  %v6118 = vunpack.c.l.b16 %v5520
  %v6119 = vunpack.c.h.b16 %v5520
  %v6120 = vunpack.c.l.b16 %v5521
  %v6121 = vunpack.c.h.b16 %v5521
  %v6122 = vunpack.c.l.b16 %v5522
  %v6123 = vunpack.c.h.b16 %v5522
  %v6124 = vunpack.c.l.b16 %v5523
  %v6125 = vunpack.c.h.b16 %v5523
  %v6126 = vunpack.c.l.b16 %v5524
  %v6127 = vunpack.c.h.b16 %v5524
  %v6128 = vunpack.c.l.b16 %v5525
  %v6129 = vunpack.c.h.b16 %v5525
  %v6130 = vunpack.c.l.b16 %v5526
  %v6131 = vunpack.c.h.b16 %v5526
  %v6132 = vunpack.c.l.b16 %v5527
  %v6133 = vunpack.c.h.b16 %v5527
  %v6134 = vunpack.c.l.b16 %v5528
  %v6135 = vunpack.c.h.b16 %v5528
  %v6136 = vunpack.c.l.b16 %v5529
  %v6137 = vunpack.c.h.b16 %v5529
  %v6138 = vunpack.c.l.b16 %v5530
  %v6139 = vunpack.c.h.b16 %v5530
  %v6140 = vunpack.c.l.b16 %v5531
  %v6141 = vunpack.c.h.b16 %v5531
  %v6142 = vunpack.c.l.b16 %v5532
  %v6143 = vunpack.c.h.b16 %v5532
  %v6144 = vunpack.c.l.b16 %v5533
  %v6145 = vunpack.c.h.b16 %v5533
  %v6146 = vunpack.c.l.b16 %v5534
  %v6147 = vunpack.c.h.b16 %v5534
  %v6148 = vunpack.c.l.b16 %v5535
  %v6149 = vunpack.c.h.b16 %v5535
  %v6150 = vunpack.c.l.b16 %v5536
  %v6151 = vunpack.c.h.b16 %v5536
  %v6152 = vunpack.c.l.b16 %v5537
  %v6153 = vunpack.c.h.b16 %v5537
  %v6154 = vunpack.c.l.b16 %v5538
  %v6155 = vunpack.c.h.b16 %v5538
  %v6156 = vunpack.c.l.b16 %v5539
  %v6157 = vunpack.c.h.b16 %v5539
  %v6158 = vunpack.c.l.b16 %v5540
  %v6159 = vunpack.c.h.b16 %v5540
  %v6160 = vunpack.c.l.b16 %v5541
  %v6161 = vunpack.c.h.b16 %v5541
  %v6162 = vunpack.c.l.b16 %v5542
  %v6163 = vunpack.c.h.b16 %v5542
  %v6164 = vunpack.c.l.b16 %v5543
  %v6165 = vunpack.c.h.b16 %v5543
  %v6166 = vunpack.c.l.b16 %v5544
  %v6167 = vunpack.c.h.b16 %v5544
  %v6168 = vunpack.c.l.b16 %v5545
  %v6169 = vunpack.c.h.b16 %v5545
  %v6170 = vunpack.c.l.b16 %v5546
  %v6171 = vunpack.c.h.b16 %v5546
  %v6172 = vunpack.c.l.b16 %v5547
  %v6173 = vunpack.c.h.b16 %v5547
  %v6174 = vunpack.c.l.b16 %v5548
  %v6175 = vunpack.c.h.b16 %v5548
  %v6176 = vunpack.c.l.b16 %v5549
  %v6177 = vunpack.c.h.b16 %v5549
  %v6178 = vunpack.c.l.b16 %v5550
  %v6179 = vunpack.c.h.b16 %v5550
  %v6180 = vunpack.c.l.b16 %v5551
  %v6181 = vunpack.c.h.b16 %v5551
  %v6182 = vunpack.c.l.b16 %v5552
  %v6183 = vunpack.c.h.b16 %v5552
  %v6184 = vunpack.c.l.b16 %v5553
  %v6185 = vunpack.c.h.b16 %v5553
  %v6186 = vunpack.c.l.b16 %v5554
  %v6187 = vunpack.c.h.b16 %v5554
  %v6188 = vunpack.c.l.b16 %v5555
  %v6189 = vunpack.c.h.b16 %v5555
  %v6190 = vunpack.c.l.b16 %v5556
  %v6191 = vunpack.c.h.b16 %v5556
  %v6192 = vunpack.c.l.b16 %v5557
  %v6193 = vunpack.c.h.b16 %v5557
  %v6194 = vunpack.c.l.b16 %v5558
  %v6195 = vunpack.c.h.b16 %v5558
  %v6196 = vunpack.c.l.b16 %v5559
  %v6197 = vunpack.c.h.b16 %v5559
  %v6198 = vunpack.c.l.b16 %v5560
  %v6199 = vunpack.c.h.b16 %v5560
  %v6200 = vunpack.c.l.b16 %v5561
  %v6201 = vunpack.c.h.b16 %v5561
  %v6202 = vunpack.c.l.b16 %v5562
  %v6203 = vunpack.c.h.b16 %v5562
  %v6204 = vunpack.c.l.b16 %v5563
  %v6205 = vunpack.c.h.b16 %v5563
  %v6206 = vunpack.c.l.b16 %v5564
  %v6207 = vunpack.c.h.b16 %v5564
  %v6208 = vunpack.c.l.b16 %v5565
  %v6209 = vunpack.c.h.b16 %v5565
  %v6210 = vunpack.c.l.b16 %v5566
  %v6211 = vunpack.c.h.b16 %v5566
  %v6212 = vunpack.c.l.b16 %v5567
  %v6213 = vunpack.c.h.b16 %v5567
  %v6214 = vunpack.c.l.b16 %v5568
  %v6215 = vunpack.c.h.b16 %v5568
  %v6216 = vunpack.c.l.b16 %v5569
  %v6217 = vunpack.c.h.b16 %v5569
  %v6218 = vunpack.c.l.b16 %v5570
  %v6219 = vunpack.c.h.b16 %v5570
  %v6220 = vunpack.c.l.b16 %v5571
  %v6221 = vunpack.c.h.b16 %v5571
  %v6222 = vunpack.c.l.b16 %v5572
  %v6223 = vunpack.c.h.b16 %v5572
  %v6224 = vunpack.c.l.b16 %v5573
  %v6225 = vunpack.c.h.b16 %v5573
  %v6226 = vunpack.c.l.b16 %v5574
  %v6227 = vunpack.c.h.b16 %v5574
  %v6228 = vunpack.c.l.b16 %v5575
  %v6229 = vunpack.c.h.b16 %v5575
  %v6230 = vunpack.c.l.b16 %v5576
  %v6231 = vunpack.c.h.b16 %v5576
  %v6232 = vunpack.c.l.b16 %v5577
  %v6233 = vunpack.c.h.b16 %v5577
  %v6234 = vunpack.c.l.b16 %v5578
  %v6235 = vunpack.c.h.b16 %v5578
  %v6236 = vunpack.c.l.b16 %v5579
  %v6237 = vunpack.c.h.b16 %v5579
  %v6238 = vunpack.c.l.b16 %v5580
  %v6239 = vunpack.c.h.b16 %v5580
  %v6240 = vunpack.c.l.b16 %v5581
  %v6241 = vunpack.c.h.b16 %v5581
  %v6242 = vunpack.c.l.b16 %v5582
  %v6243 = vunpack.c.h.b16 %v5582
  %v6244 = vunpack.c.l.b16 %v5583
  %v6245 = vunpack.c.h.b16 %v5583
  %v6246 = vunpack.c.l.b16 %v5584
  %v6247 = vunpack.c.h.b16 %v5584
  %v6248 = vunpack.c.l.b16 %v5585
  %v6249 = vunpack.c.h.b16 %v5585
  %v6250 = vunpack.c.l.b16 %v5586
  %v6251 = vunpack.c.h.b16 %v5586
  %v6252 = vunpack.c.l.b16 %v5587
  %v6253 = vunpack.c.h.b16 %v5587
  %v6254 = vunpack.c.l.b16 %v5588
  %v6255 = vunpack.c.h.b16 %v5588
  %v6256 = vunpack.c.l.b16 %v5589
  %v6257 = vunpack.c.h.b16 %v5589
  %v6258 = vunpack.c.l.b16 %v5590
  %v6259 = vunpack.c.h.b16 %v5590
  %v6260 = vunpack.c.l.b16 %v5591
  %v6261 = vunpack.c.h.b16 %v5591
  %v6262 = vunpack.c.l.b16 %v5592
  %v6263 = vunpack.c.h.b16 %v5592
  %v6264 = vunpack.c.l.b16 %v5593
  %v6265 = vunpack.c.h.b16 %v5593
  %v6266 = vunpack.c.l.b16 %v5594
  %v6267 = vunpack.c.h.b16 %v5594
  %v6268 = vunpack.c.l.b16 %v5595
  %v6269 = vunpack.c.h.b16 %v5595
  %v6270 = vunpack.c.l.b16 %v5596
  %v6271 = vunpack.c.h.b16 %v5596
  %v6272 = vunpack.c.l.b16 %v5597
  %v6273 = vunpack.c.h.b16 %v5597
  %v6274 = vunpack.c.l.b16 %v5598
  %v6275 = vunpack.c.h.b16 %v5598
  %v6276 = vunpack.c.l.b16 %v5599
  %v6277 = vunpack.c.h.b16 %v5599
  %v6278 = vunpack.c.l.b16 %v5600
  %v6279 = vunpack.c.h.b16 %v5600
  %v6280 = vunpack.c.l.b16 %v5601
  %v6281 = vunpack.c.h.b16 %v5601
  %v6282 = vunpack.c.l.b16 %v5602
  %v6283 = vunpack.c.h.b16 %v5602
  %v6284 = vunpack.c.l.b16 %v5603
  %v6285 = vunpack.c.h.b16 %v5603
  %v6286 = vunpack.c.l.b16 %v5604
  %v6287 = vunpack.c.h.b16 %v5604
  %v6288 = vunpack.c.l.b16 %v5605
  %v6289 = vunpack.c.h.b16 %v5605
  %v6290 = vunpack.c.l.b16 %v5606
  %v6291 = vunpack.c.h.b16 %v5606
  %v6292 = vunpack.c.l.b16 %v5607
  %v6293 = vunpack.c.h.b16 %v5607
  %v6294 = vunpack.c.l.b16 %v5608
  %v6295 = vunpack.c.h.b16 %v5608
  %v6296 = vunpack.c.l.b16 %v5609
  %v6297 = vunpack.c.h.b16 %v5609
  %v6298 = vunpack.c.l.b16 %v5610
  %v6299 = vunpack.c.h.b16 %v5610
  %v6300 = vunpack.c.l.b16 %v5611
  %v6301 = vunpack.c.h.b16 %v5611
  %v6302 = vunpack.c.l.b16 %v5612
  %v6303 = vunpack.c.h.b16 %v5612
  %v6304 = vunpack.c.l.b16 %v5613
  %v6305 = vunpack.c.h.b16 %v5613
  %v6306 = vunpack.c.l.b16 %v5614
  %v6307 = vunpack.c.h.b16 %v5614
  %v6308 = vunpack.c.l.b16 %v5615
  %v6309 = vunpack.c.h.b16 %v5615
  %v6310 = vunpack.c.l.b16 %v5616
  %v6311 = vunpack.c.h.b16 %v5616
  %v6312 = vunpack.c.l.b16 %v5617
  %v6313 = vunpack.c.h.b16 %v5617
  %v6314 = vunpack.c.l.b16 %v5618
  %v6315 = vunpack.c.h.b16 %v5618
  %v6316 = vunpack.c.l.b16 %v5619
  %v6317 = vunpack.c.h.b16 %v5619
  %v6318 = vunpack.c.l.b16 %v5620
  %v6319 = vunpack.c.h.b16 %v5620
  %v6320 = vunpack.c.l.b16 %v5621
  %v6321 = vunpack.c.h.b16 %v5621
  %v6322 = vunpack.c.l.b16 %v5622
  %v6323 = vunpack.c.h.b16 %v5622
  %v6324 = vunpack.c.l.b16 %v5623
  %v6325 = vunpack.c.h.b16 %v5623
  %v6326 = vunpack.c.l.b16 %v5624
  %v6327 = vunpack.c.h.b16 %v5624
  %v6328 = vunpack.c.l.b16 %v5625
  %v6329 = vunpack.c.h.b16 %v5625
  %v6330 = vunpack.c.l.b16 %v5626
  %v6331 = vunpack.c.h.b16 %v5626
  %v6332 = vunpack.c.l.b16 %v5627
  %v6333 = vunpack.c.h.b16 %v5627
  %v6334 = vunpack.c.l.b16 %v5628
  %v6335 = vunpack.c.h.b16 %v5628
  %v6336 = vunpack.c.l.b16 %v5629
  %v6337 = vunpack.c.h.b16 %v5629
  %v6338 = vunpack.c.l.b16 %v5630
  %v6339 = vunpack.c.h.b16 %v5630
  %v6340 = vunpack.c.l.b16 %v5631
  %v6341 = vunpack.c.h.b16 %v5631
  %v6342 = vunpack.c.l.b16 %v5632
  %v6343 = vunpack.c.h.b16 %v5632
  %v6344 = vunpack.c.l.b16 %v5633
  %v6345 = vunpack.c.h.b16 %v5633
  %v6346 = vunpack.c.l.b16 %v5634
  %v6347 = vunpack.c.h.b16 %v5634
  %v6348 = vunpack.c.l.b16 %v5635
  %v6349 = vunpack.c.h.b16 %v5635
  %v6350 = vunpack.c.l.b16 %v5636
  %v6351 = vunpack.c.h.b16 %v5636
  %v6352 = vunpack.c.l.b16 %v5637
  %v6353 = vunpack.c.h.b16 %v5637
  %v6354 = vunpack.c.l.b16 %v5638
  %v6355 = vunpack.c.h.b16 %v5638
  %v6356 = vunpack.c.l.b16 %v5639
  %v6357 = vunpack.c.h.b16 %v5639
  %v6358 = vunpack.c.l.b16 %v5640
  %v6359 = vunpack.c.h.b16 %v5640
  %v6360 = vunpack.c.l.b16 %v5641
  %v6361 = vunpack.c.h.b16 %v5641
  %v6362 = vunpack.c.l.b16 %v5642
  %v6363 = vunpack.c.h.b16 %v5642
  %v6364 = vunpack.c.l.b16 %v5643
  %v6365 = vunpack.c.h.b16 %v5643
  %v6366 = vunpack.c.l.b16 %v5644
  %v6367 = vunpack.c.h.b16 %v5644
  %v6368 = vunpack.c.l.b16 %v5645
  %v6369 = vunpack.c.h.b16 %v5645
  %v6370 = vunpack.c.l.b16 %v5646
  %v6371 = vunpack.c.h.b16 %v5646
  %v6372 = vunpack.c.l.b16 %v5647
  %v6373 = vunpack.c.h.b16 %v5647
  %v6374 = vpack.c.b16 %v5896, %v5894
  %v6375 = vpack.c.b16 %v5897, %v5895
  %v6376 = vpack.c.b16 %v5900, %v5898
  %v6377 = vpack.c.b16 %v5901, %v5899
  %v6378 = vpack.c.b16 %v5904, %v5902
  %v6379 = vpack.c.b16 %v5905, %v5903
  %v6380 = vpack.c.b16 %v5908, %v5906
  %v6381 = vpack.c.b16 %v5909, %v5907
  %v6382 = vpack.c.b16 %v5912, %v5910
  %v6383 = vpack.c.b16 %v5913, %v5911
  %v6384 = vpack.c.b16 %v5916, %v5914
  %v6385 = vpack.c.b16 %v5917, %v5915
  %v6386 = vpack.c.b16 %v5920, %v5918
  %v6387 = vpack.c.b16 %v5921, %v5919
  %v6388 = vpack.c.b16 %v5924, %v5922
  %v6389 = vpack.c.b16 %v5925, %v5923
  %v6390 = vpack.c.b16 %v5928, %v5926
  %v6391 = vpack.c.b16 %v5929, %v5927
  %v6392 = vpack.c.b16 %v5932, %v5930
  %v6393 = vpack.c.b16 %v5933, %v5931
  %v6394 = vpack.c.b16 %v5936, %v5934
  %v6395 = vpack.c.b16 %v5937, %v5935
  %v6396 = vpack.c.b16 %v5940, %v5938
  %v6397 = vpack.c.b16 %v5941, %v5939
  %v6398 = vpack.c.b16 %v5944, %v5942
  %v6399 = vpack.c.b16 %v5945, %v5943
  %v6400 = vpack.c.b16 %v5948, %v5946
  %v6401 = vpack.c.b16 %v5949, %v5947
  %v6402 = vpack.c.b16 %v5952, %v5950
  %v6403 = vpack.c.b16 %v5953, %v5951
  %v6404 = vpack.c.b16 %v5956, %v5954
  %v6405 = vpack.c.b16 %v5957, %v5955
  %v6406 = vpack.c.b16 %v5960, %v5958
  %v6407 = vpack.c.b16 %v5961, %v5959
  %v6408 = vpack.c.b16 %v5964, %v5962
  %v6409 = vpack.c.b16 %v5965, %v5963
  %v6410 = vpack.c.b16 %v5968, %v5966
  %v6411 = vpack.c.b16 %v5969, %v5967
  %v6412 = vpack.c.b16 %v5972, %v5970
  %v6413 = vpack.c.b16 %v5973, %v5971
  %v6414 = vpack.c.b16 %v5976, %v5974
  %v6415 = vpack.c.b16 %v5977, %v5975
  %v6416 = vpack.c.b16 %v5980, %v5978
  %v6417 = vpack.c.b16 %v5981, %v5979
  %v6418 = vpack.c.b16 %v5984, %v5982
  %v6419 = vpack.c.b16 %v5985, %v5983
  %v6420 = vpack.c.b16 %v5988, %v5986
  %v6421 = vpack.c.b16 %v5989, %v5987
  %v6422 = vpack.c.b16 %v5992, %v5990
  %v6423 = vpack.c.b16 %v5993, %v5991
  %v6424 = vpack.c.b16 %v5996, %v5994
  %v6425 = vpack.c.b16 %v5997, %v5995
  %v6426 = vpack.c.b16 %v6000, %v5998
  %v6427 = vpack.c.b16 %v6001, %v5999
  %v6428 = vpack.c.b16 %v6004, %v6002
  %v6429 = vpack.c.b16 %v6005, %v6003
  %v6430 = vpack.c.b16 %v6008, %v6006
  %v6431 = vpack.c.b16 %v6009, %v6007
  %v6432 = vpack.c.b16 %v6012, %v6010
  %v6433 = vpack.c.b16 %v6013, %v6011
  %v6434 = vpack.c.b16 %v6016, %v6014
  %v6435 = vpack.c.b16 %v6017, %v6015
  %v6436 = vpack.c.b16 %v6020, %v6018
  %v6437 = vpack.c.b16 %v6021, %v6019
  %v6438 = vpack.c.b16 %v6024, %v6022
  %v6439 = vpack.c.b16 %v6025, %v6023
  %v6440 = vpack.c.b16 %v6028, %v6026
  %v6441 = vpack.c.b16 %v6029, %v6027
  %v6442 = vpack.c.b16 %v6032, %v6030
  %v6443 = vpack.c.b16 %v6033, %v6031
  %v6444 = vpack.c.b16 %v6036, %v6034
  %v6445 = vpack.c.b16 %v6037, %v6035
  %v6446 = vpack.c.b16 %v6040, %v6038
  %v6447 = vpack.c.b16 %v6041, %v6039
  %v6448 = vpack.c.b16 %v6044, %v6042
  %v6449 = vpack.c.b16 %v6045, %v6043
  %v6450 = vpack.c.b16 %v6048, %v6046
  %v6451 = vpack.c.b16 %v6049, %v6047
  %v6452 = vpack.c.b16 %v6052, %v6050
  %v6453 = vpack.c.b16 %v6053, %v6051
  %v6454 = vpack.c.b16 %v6056, %v6054
  %v6455 = vpack.c.b16 %v6057, %v6055
  %v6456 = vpack.c.b16 %v6060, %v6058
  %v6457 = vpack.c.b16 %v6061, %v6059
  %v6458 = vpack.c.b16 %v6064, %v6062
  %v6459 = vpack.c.b16 %v6065, %v6063
  %v6460 = vpack.c.b16 %v6068, %v6066
  %v6461 = vpack.c.b16 %v6069, %v6067
  %v6462 = vpack.c.b16 %v6072, %v6070
  %v6463 = vpack.c.b16 %v6073, %v6071
  %v6464 = vpack.c.b16 %v6076, %v6074
  %v6465 = vpack.c.b16 %v6077, %v6075
  %v6466 = vpack.c.b16 %v6080, %v6078
  %v6467 = vpack.c.b16 %v6081, %v6079
  %v6468 = vpack.c.b16 %v6084, %v6082
  %v6469 = vpack.c.b16 %v6085, %v6083
  %v6470 = vpack.c.b16 %v6088, %v6086
  %v6471 = vpack.c.b16 %v6089, %v6087
  %v6472 = vpack.c.b16 %v6092, %v6090
  %v6473 = vpack.c.b16 %v6093, %v6091
  %v6474 = vpack.c.b16 %v6096, %v6094
  %v6475 = vpack.c.b16 %v6097, %v6095
  %v6476 = vpack.c.b16 %v6100, %v6098
  %v6477 = vpack.c.b16 %v6101, %v6099
  %v6478 = vpack.c.b16 %v6104, %v6102
  %v6479 = vpack.c.b16 %v6105, %v6103
  %v6480 = vpack.c.b16 %v6108, %v6106
  %v6481 = vpack.c.b16 %v6109, %v6107
  %v6482 = vpack.c.b16 %v6112, %v6110
  %v6483 = vpack.c.b16 %v6113, %v6111
  %v6484 = vpack.c.b16 %v6116, %v6114
  %v6485 = vpack.c.b16 %v6117, %v6115
  %v6486 = vpack.c.b16 %v6120, %v6118
  %v6487 = vpack.c.b16 %v6121, %v6119
  %v6488 = vpack.c.b16 %v6124, %v6122
  %v6489 = vpack.c.b16 %v6125, %v6123
  %v6490 = vpack.c.b16 %v6128, %v6126
  %v6491 = vpack.c.b16 %v6129, %v6127
  %v6492 = vpack.c.b16 %v6132, %v6130
  %v6493 = vpack.c.b16 %v6133, %v6131
  %v6494 = vpack.c.b16 %v6136, %v6134
  %v6495 = vpack.c.b16 %v6137, %v6135
  %v6496 = vpack.c.b16 %v6140, %v6138
  %v6497 = vpack.c.b16 %v6141, %v6139
  %v6498 = vpack.c.b16 %v6144, %v6142
  %v6499 = vpack.c.b16 %v6145, %v6143
  %v6500 = vpack.c.b16 %v6148, %v6146
  %v6501 = vpack.c.b16 %v6149, %v6147
  %v6502 = vpack.c.b16 %v6152, %v6150
  %v6503 = vpack.c.b16 %v6153, %v6151
  %v6504 = vpack.c.b16 %v6156, %v6154
  %v6505 = vpack.c.b16 %v6157, %v6155
  %v6506 = vpack.c.b16 %v6160, %v6158
  %v6507 = vpack.c.b16 %v6161, %v6159
  %v6508 = vpack.c.b16 %v6164, %v6162
  %v6509 = vpack.c.b16 %v6165, %v6163
  %v6510 = vpack.c.b16 %v6168, %v6166
  %v6511 = vpack.c.b16 %v6169, %v6167
  %v6512 = vpack.c.b16 %v6172, %v6170
  %v6513 = vpack.c.b16 %v6173, %v6171
  %v6514 = vpack.c.b16 %v6176, %v6174
  %v6515 = vpack.c.b16 %v6177, %v6175
  %v6516 = vpack.c.b16 %v6180, %v6178
  %v6517 = vpack.c.b16 %v6181, %v6179
  %v6518 = vpack.c.b16 %v6184, %v6182
  %v6519 = vpack.c.b16 %v6185, %v6183
  %v6520 = vpack.c.b16 %v6188, %v6186
  %v6521 = vpack.c.b16 %v6189, %v6187
  %v6522 = vpack.c.b16 %v6192, %v6190
  %v6523 = vpack.c.b16 %v6193, %v6191
  %v6524 = vpack.c.b16 %v6196, %v6194
  %v6525 = vpack.c.b16 %v6197, %v6195
  %v6526 = vpack.c.b16 %v6200, %v6198
  %v6527 = vpack.c.b16 %v6201, %v6199
  %v6528 = vpack.c.b16 %v6204, %v6202
  %v6529 = vpack.c.b16 %v6205, %v6203
  %v6530 = vpack.c.b16 %v6208, %v6206
  %v6531 = vpack.c.b16 %v6209, %v6207
  %v6532 = vpack.c.b16 %v6212, %v6210
  %v6533 = vpack.c.b16 %v6213, %v6211
  %v6534 = vpack.c.b16 %v6216, %v6214
  %v6535 = vpack.c.b16 %v6217, %v6215
  %v6536 = vpack.c.b16 %v6220, %v6218
  %v6537 = vpack.c.b16 %v6221, %v6219
  %v6538 = vpack.c.b16 %v6224, %v6222
  %v6539 = vpack.c.b16 %v6225, %v6223
  %v6540 = vpack.c.b16 %v6228, %v6226
  %v6541 = vpack.c.b16 %v6229, %v6227
  %v6542 = vpack.c.b16 %v6232, %v6230
  %v6543 = vpack.c.b16 %v6233, %v6231
  %v6544 = vpack.c.b16 %v6236, %v6234
  %v6545 = vpack.c.b16 %v6237, %v6235
  %v6546 = vpack.c.b16 %v6240, %v6238
  %v6547 = vpack.c.b16 %v6241, %v6239
  %v6548 = vpack.c.b16 %v6244, %v6242
  %v6549 = vpack.c.b16 %v6245, %v6243
  %v6550 = vpack.c.b16 %v6248, %v6246
  %v6551 = vpack.c.b16 %v6249, %v6247
  %v6552 = vpack.c.b16 %v6252, %v6250
  %v6553 = vpack.c.b16 %v6253, %v6251
  %v6554 = vpack.c.b16 %v6256, %v6254
  %v6555 = vpack.c.b16 %v6257, %v6255
  %v6556 = vpack.c.b16 %v6260, %v6258
  %v6557 = vpack.c.b16 %v6261, %v6259
  %v6558 = vpack.c.b16 %v6264, %v6262
  %v6559 = vpack.c.b16 %v6265, %v6263
  %v6560 = vpack.c.b16 %v6268, %v6266
  %v6561 = vpack.c.b16 %v6269, %v6267
  %v6562 = vpack.c.b16 %v6272, %v6270
  %v6563 = vpack.c.b16 %v6273, %v6271
  %v6564 = vpack.c.b16 %v6276, %v6274
  %v6565 = vpack.c.b16 %v6277, %v6275
  %v6566 = vpack.c.b16 %v6280, %v6278
  %v6567 = vpack.c.b16 %v6281, %v6279
  %v6568 = vpack.c.b16 %v6284, %v6282
  %v6569 = vpack.c.b16 %v6285, %v6283
  %v6570 = vpack.c.b16 %v6288, %v6286
  %v6571 = vpack.c.b16 %v6289, %v6287
  %v6572 = vpack.c.b16 %v6292, %v6290
  %v6573 = vpack.c.b16 %v6293, %v6291
  %v6574 = vpack.c.b16 %v6296, %v6294
  %v6575 = vpack.c.b16 %v6297, %v6295
  %v6576 = vpack.c.b16 %v6300, %v6298
  %v6577 = vpack.c.b16 %v6301, %v6299
  %v6578 = vpack.c.b16 %v6304, %v6302
  %v6579 = vpack.c.b16 %v6305, %v6303
  %v6580 = vpack.c.b16 %v6308, %v6306
  %v6581 = vpack.c.b16 %v6309, %v6307
  %v6582 = vpack.c.b16 %v6312, %v6310
  %v6583 = vpack.c.b16 %v6313, %v6311
  %v6584 = vpack.c.b16 %v6316, %v6314
  %v6585 = vpack.c.b16 %v6317, %v6315
  %v6586 = vpack.c.b16 %v6320, %v6318
  %v6587 = vpack.c.b16 %v6321, %v6319
  %v6588 = vpack.c.b16 %v6324, %v6322
  %v6589 = vpack.c.b16 %v6325, %v6323
  %v6590 = vpack.c.b16 %v6328, %v6326
  %v6591 = vpack.c.b16 %v6329, %v6327
  %v6592 = vpack.c.b16 %v6332, %v6330
  %v6593 = vpack.c.b16 %v6333, %v6331
  %v6594 = vpack.c.b16 %v6336, %v6334
  %v6595 = vpack.c.b16 %v6337, %v6335
  %v6596 = vpack.c.b16 %v6340, %v6338
  %v6597 = vpack.c.b16 %v6341, %v6339
  %v6598 = vpack.c.b16 %v6344, %v6342
  %v6599 = vpack.c.b16 %v6345, %v6343
  %v6600 = vpack.c.b16 %v6348, %v6346
  %v6601 = vpack.c.b16 %v6349, %v6347
  %v6602 = vpack.c.b16 %v6352, %v6350
  %v6603 = vpack.c.b16 %v6353, %v6351
  %v6604 = vpack.c.b16 %v6356, %v6354
  %v6605 = vpack.c.b16 %v6357, %v6355
  %v6606 = vpack.c.b16 %v6360, %v6358
  %v6607 = vpack.c.b16 %v6361, %v6359
  %v6608 = vpack.c.b16 %v6364, %v6362
  %v6609 = vpack.c.b16 %v6365, %v6363
  %v6610 = vpack.c.b16 %v6368, %v6366
  %v6611 = vpack.c.b16 %v6369, %v6367
  %v6612 = vpack.c.b16 %v6372, %v6370
  %v6613 = vpack.c.b16 %v6373, %v6371
  %6854 = vmatpush.bf16.msra.mxu0 %v6388
  %6855 = vmatpush.bf16.msra.mxu0 %v6386
  %6856 = vmatpush.bf16.msra.mxu0 %v6384
  %6857 = vmatpush.bf16.msra.mxu0 %v6382
  %6858 = vmatpush.bf16.msra.mxu0 %v6380
  %6859 = vmatpush.bf16.msra.mxu0 %v6378
  %6860 = vmatpush.bf16.msra.mxu0 %v6376
  %6861 = vmatpush.bf16.msra.mxu0 %v6374
  %6862 = vmatmul.bf16.gmra.mxu0 %v4509
  %v6863 = vpop.f32.mrf.mxu0
  %v6864 = vadd.f32 %v5650, %v6863
  %v6865 = vpop.f32.mrf.mxu0
  %v6866 = vadd.f32 %v5650, %v6865
  %6867 = vmatmul.bf16.gmra.mxu0 %v4512
  %v6868 = vpop.f32.mrf.mxu0
  %v6869 = vadd.f32 %v5650, %v6868
  %v6870 = vpop.f32.mrf.mxu0
  %v6871 = vadd.f32 %v5650, %v6870
  %6872 = vmatmul.bf16.gmra.mxu0 %v4515
  %v6873 = vpop.f32.mrf.mxu0
  %v6874 = vadd.f32 %v5650, %v6873
  %v6875 = vpop.f32.mrf.mxu0
  %v6876 = vadd.f32 %v5650, %v6875
  %6877 = vmatmul.bf16.gmra.mxu0 %v4518
  %v6878 = vpop.f32.mrf.mxu0
  %v6879 = vadd.f32 %v5650, %v6878
  %v6880 = vpop.f32.mrf.mxu0
  %v6881 = vadd.f32 %v5650, %v6880
  %6882 = vmatmul.bf16.gmra.mxu0 %v4521
  %v6883 = vpop.f32.mrf.mxu0
  %v6884 = vadd.f32 %v5650, %v6883
  %v6885 = vpop.f32.mrf.mxu0
  %v6886 = vadd.f32 %v5650, %v6885
  %6887 = vmatmul.bf16.gmra.mxu0 %v4524
  %v6888 = vpop.f32.mrf.mxu0
  %v6889 = vadd.f32 %v5650, %v6888
  %v6890 = vpop.f32.mrf.mxu0
  %v6891 = vadd.f32 %v5650, %v6890
  %6892 = vmatmul.bf16.gmra.mxu0 %v4527
  %v6893 = vpop.f32.mrf.mxu0
  %v6894 = vadd.f32 %v5650, %v6893
  %v6895 = vpop.f32.mrf.mxu0
  %v6896 = vadd.f32 %v5650, %v6895
  %6897 = vmatmul.bf16.gmra.mxu0 %v4530
  %v6898 = vpop.f32.mrf.mxu0
  %v6899 = vadd.f32 %v5650, %v6898
  %v6900 = vpop.f32.mrf.mxu0
  %v6901 = vadd.f32 %v5650, %v6900
  %6902 = vmatmul.bf16.gmra.mxu0 %v4533
  %v6903 = vpop.f32.mrf.mxu0
  %v6904 = vadd.f32 %v5650, %v6903
  %v6905 = vpop.f32.mrf.mxu0
  %v6906 = vadd.f32 %v5650, %v6905
  %6907 = vmatmul.bf16.gmra.mxu0 %v4536
  %v6908 = vpop.f32.mrf.mxu0
  %v6909 = vadd.f32 %v5650, %v6908
  %v6910 = vpop.f32.mrf.mxu0
  %v6911 = vadd.f32 %v5650, %v6910
  %6912 = vmatmul.bf16.gmra.mxu0 %v4539
  %v6913 = vpop.f32.mrf.mxu0
  %v6914 = vadd.f32 %v5650, %v6913
  %v6915 = vpop.f32.mrf.mxu0
  %v6916 = vadd.f32 %v5650, %v6915
  %6917 = vmatmul.bf16.gmra.mxu0 %v4542
  %v6918 = vpop.f32.mrf.mxu0
  %v6919 = vadd.f32 %v5650, %v6918
  %v6920 = vpop.f32.mrf.mxu0
  %v6921 = vadd.f32 %v5650, %v6920
  %6922 = vmatmul.bf16.gmra.mxu0 %v4545
  %v6923 = vpop.f32.mrf.mxu0
  %v6924 = vadd.f32 %v5650, %v6923
  %v6925 = vpop.f32.mrf.mxu0
  %v6926 = vadd.f32 %v5650, %v6925
  %6927 = vmatmul.bf16.gmra.mxu0 %v4548
  %v6928 = vpop.f32.mrf.mxu0
  %v6929 = vadd.f32 %v5650, %v6928
  %v6930 = vpop.f32.mrf.mxu0
  %v6931 = vadd.f32 %v5650, %v6930
  %6932 = vmatmul.bf16.gmra.mxu0 %v4551
  %v6933 = vpop.f32.mrf.mxu0
  %v6934 = vadd.f32 %v5650, %v6933
  %v6935 = vpop.f32.mrf.mxu0
  %v6936 = vadd.f32 %v5650, %v6935
  %6937 = vmatmul.bf16.gmra.mxu0 %v4554
  %v6938 = vpop.f32.mrf.mxu0
  %v6939 = vadd.f32 %v5650, %v6938
  %v6940 = vpop.f32.mrf.mxu0
  %v6941 = vadd.f32 %v5650, %v6940
  %6942 = vdwg.mxu0
  %6943 = vmatpush.bf16.msra.mxu0 %v6404
  %6944 = vmatpush.bf16.msra.mxu0 %v6402
  %6945 = vmatpush.bf16.msra.mxu0 %v6400
  %6946 = vmatpush.bf16.msra.mxu0 %v6398
  %6947 = vmatpush.bf16.msra.mxu0 %v6396
  %6948 = vmatpush.bf16.msra.mxu0 %v6394
  %6949 = vmatpush.bf16.msra.mxu0 %v6392
  %6950 = vmatpush.bf16.msra.mxu0 %v6390
  %6951 = vmatmul.bf16.gmra.mxu0 %v4510
  %v6952 = vpop.f32.mrf.mxu0
  %v6953 = vadd.f32 %v6864, %v6952
  %v6954 = vpop.f32.mrf.mxu0
  %v6955 = vadd.f32 %v6866, %v6954
  %6956 = vmatmul.bf16.gmra.mxu0 %v4513
  %v6957 = vpop.f32.mrf.mxu0
  %v6958 = vadd.f32 %v6869, %v6957
  %v6959 = vpop.f32.mrf.mxu0
  %v6960 = vadd.f32 %v6871, %v6959
  %6961 = vmatmul.bf16.gmra.mxu0 %v4516
  %v6962 = vpop.f32.mrf.mxu0
  %v6963 = vadd.f32 %v6874, %v6962
  %v6964 = vpop.f32.mrf.mxu0
  %v6965 = vadd.f32 %v6876, %v6964
  %6966 = vmatmul.bf16.gmra.mxu0 %v4519
  %v6967 = vpop.f32.mrf.mxu0
  %v6968 = vadd.f32 %v6879, %v6967
  %v6969 = vpop.f32.mrf.mxu0
  %v6970 = vadd.f32 %v6881, %v6969
  %6971 = vmatmul.bf16.gmra.mxu0 %v4522
  %v6972 = vpop.f32.mrf.mxu0
  %v6973 = vadd.f32 %v6884, %v6972
  %v6974 = vpop.f32.mrf.mxu0
  %v6975 = vadd.f32 %v6886, %v6974
  %6976 = vmatmul.bf16.gmra.mxu0 %v4525
  %v6977 = vpop.f32.mrf.mxu0
  %v6978 = vadd.f32 %v6889, %v6977
  %v6979 = vpop.f32.mrf.mxu0
  %v6980 = vadd.f32 %v6891, %v6979
  %6981 = vmatmul.bf16.gmra.mxu0 %v4528
  %v6982 = vpop.f32.mrf.mxu0
  %v6983 = vadd.f32 %v6894, %v6982
  %v6984 = vpop.f32.mrf.mxu0
  %v6985 = vadd.f32 %v6896, %v6984
  %6986 = vmatmul.bf16.gmra.mxu0 %v4531
  %v6987 = vpop.f32.mrf.mxu0
  %v6988 = vadd.f32 %v6899, %v6987
  %v6989 = vpop.f32.mrf.mxu0
  %v6990 = vadd.f32 %v6901, %v6989
  %6991 = vmatmul.bf16.gmra.mxu0 %v4534
  %v6992 = vpop.f32.mrf.mxu0
  %v6993 = vadd.f32 %v6904, %v6992
  %v6994 = vpop.f32.mrf.mxu0
  %v6995 = vadd.f32 %v6906, %v6994
  %6996 = vmatmul.bf16.gmra.mxu0 %v4537
  %v6997 = vpop.f32.mrf.mxu0
  %v6998 = vadd.f32 %v6909, %v6997
  %v6999 = vpop.f32.mrf.mxu0
  %v7000 = vadd.f32 %v6911, %v6999
  %7001 = vmatmul.bf16.gmra.mxu0 %v4540
  %v7002 = vpop.f32.mrf.mxu0
  %v7003 = vadd.f32 %v6914, %v7002
  %v7004 = vpop.f32.mrf.mxu0
  %v7005 = vadd.f32 %v6916, %v7004
  %7006 = vmatmul.bf16.gmra.mxu0 %v4543
  %v7007 = vpop.f32.mrf.mxu0
  %v7008 = vadd.f32 %v6919, %v7007
  %v7009 = vpop.f32.mrf.mxu0
  %v7010 = vadd.f32 %v6921, %v7009
  %7011 = vmatmul.bf16.gmra.mxu0 %v4546
  %v7012 = vpop.f32.mrf.mxu0
  %v7013 = vadd.f32 %v6924, %v7012
  %v7014 = vpop.f32.mrf.mxu0
  %v7015 = vadd.f32 %v6926, %v7014
  %7016 = vmatmul.bf16.gmra.mxu0 %v4549
  %v7017 = vpop.f32.mrf.mxu0
  %v7018 = vadd.f32 %v6929, %v7017
  %v7019 = vpop.f32.mrf.mxu0
  %v7020 = vadd.f32 %v6931, %v7019
  %7021 = vmatmul.bf16.gmra.mxu0 %v4552
  %v7022 = vpop.f32.mrf.mxu0
  %v7023 = vadd.f32 %v6934, %v7022
  %v7024 = vpop.f32.mrf.mxu0
  %v7025 = vadd.f32 %v6936, %v7024
  %7026 = vmatmul.bf16.gmra.mxu0 %v4555
  %v7027 = vpop.f32.mrf.mxu0
  %v7028 = vadd.f32 %v6939, %v7027
  %v7029 = vpop.f32.mrf.mxu0
  %v7030 = vadd.f32 %v6941, %v7029
  %7031 = vdwg.mxu0
  %7032 = vmatpush.bf16.msra.mxu0 %v6420
  %7033 = vmatpush.bf16.msra.mxu0 %v6418
  %7034 = vmatpush.bf16.msra.mxu0 %v6416
  %7035 = vmatpush.bf16.msra.mxu0 %v6414
  %7036 = vmatpush.bf16.msra.mxu0 %v6412
  %7037 = vmatpush.bf16.msra.mxu0 %v6410
  %7038 = vmatpush.bf16.msra.mxu0 %v6408
  %7039 = vmatpush.bf16.msra.mxu0 %v6406
  %7040 = vmatmul.bf16.gmra.mxu0 %v4511
  %v7041 = vpop.f32.mrf.mxu0
  %v7042 = vadd.f32 %v6953, %v7041
  %v7043 = vpop.f32.mrf.mxu0
  %v7044 = vadd.f32 %v6955, %v7043
  %7045 = vmatmul.bf16.gmra.mxu0 %v4514
  %v7046 = vpop.f32.mrf.mxu0
  %v7047 = vadd.f32 %v6958, %v7046
  %v7048 = vpop.f32.mrf.mxu0
  %v7049 = vadd.f32 %v6960, %v7048
  %7050 = vmatmul.bf16.gmra.mxu0 %v4517
  %v7051 = vpop.f32.mrf.mxu0
  %v7052 = vadd.f32 %v6963, %v7051
  %v7053 = vpop.f32.mrf.mxu0
  %v7054 = vadd.f32 %v6965, %v7053
  %7055 = vmatmul.bf16.gmra.mxu0 %v4520
  %v7056 = vpop.f32.mrf.mxu0
  %v7057 = vadd.f32 %v6968, %v7056
  %v7058 = vpop.f32.mrf.mxu0
  %v7059 = vadd.f32 %v6970, %v7058
  %7060 = vmatmul.bf16.gmra.mxu0 %v4523
  %v7061 = vpop.f32.mrf.mxu0
  %v7062 = vadd.f32 %v6973, %v7061
  %v7063 = vpop.f32.mrf.mxu0
  %v7064 = vadd.f32 %v6975, %v7063
  %7065 = vmatmul.bf16.gmra.mxu0 %v4526
  %v7066 = vpop.f32.mrf.mxu0
  %v7067 = vadd.f32 %v6978, %v7066
  %v7068 = vpop.f32.mrf.mxu0
  %v7069 = vadd.f32 %v6980, %v7068
  %7070 = vmatmul.bf16.gmra.mxu0 %v4529
  %v7071 = vpop.f32.mrf.mxu0
  %v7072 = vadd.f32 %v6983, %v7071
  %v7073 = vpop.f32.mrf.mxu0
  %v7074 = vadd.f32 %v6985, %v7073
  %7075 = vmatmul.bf16.gmra.mxu0 %v4532
  %v7076 = vpop.f32.mrf.mxu0
  %v7077 = vadd.f32 %v6988, %v7076
  %v7078 = vpop.f32.mrf.mxu0
  %v7079 = vadd.f32 %v6990, %v7078
  %7080 = vmatmul.bf16.gmra.mxu0 %v4535
  %v7081 = vpop.f32.mrf.mxu0
  %v7082 = vadd.f32 %v6993, %v7081
  %v7083 = vpop.f32.mrf.mxu0
  %v7084 = vadd.f32 %v6995, %v7083
  %7085 = vmatmul.bf16.gmra.mxu0 %v4538
  %v7086 = vpop.f32.mrf.mxu0
  %v7087 = vadd.f32 %v6998, %v7086
  %v7088 = vpop.f32.mrf.mxu0
  %v7089 = vadd.f32 %v7000, %v7088
  %7090 = vmatmul.bf16.gmra.mxu0 %v4541
  %v7091 = vpop.f32.mrf.mxu0
  %v7092 = vadd.f32 %v7003, %v7091
  %v7093 = vpop.f32.mrf.mxu0
  %v7094 = vadd.f32 %v7005, %v7093
  %7095 = vmatmul.bf16.gmra.mxu0 %v4544
  %v7096 = vpop.f32.mrf.mxu0
  %v7097 = vadd.f32 %v7008, %v7096
  %v7098 = vpop.f32.mrf.mxu0
  %v7099 = vadd.f32 %v7010, %v7098
  %7100 = vmatmul.bf16.gmra.mxu0 %v4547
  %v7101 = vpop.f32.mrf.mxu0
  %v7102 = vadd.f32 %v7013, %v7101
  %v7103 = vpop.f32.mrf.mxu0
  %v7104 = vadd.f32 %v7015, %v7103
  %7105 = vmatmul.bf16.gmra.mxu0 %v4550
  %v7106 = vpop.f32.mrf.mxu0
  %v7107 = vadd.f32 %v7018, %v7106
  %v7108 = vpop.f32.mrf.mxu0
  %v7109 = vadd.f32 %v7020, %v7108
  %7110 = vmatmul.bf16.gmra.mxu0 %v4553
  %v7111 = vpop.f32.mrf.mxu0
  %v7112 = vadd.f32 %v7023, %v7111
  %v7113 = vpop.f32.mrf.mxu0
  %v7114 = vadd.f32 %v7025, %v7113
  %7115 = vmatmul.bf16.gmra.mxu0 %v4556
  %v7116 = vpop.f32.mrf.mxu0
  %v7117 = vadd.f32 %v7028, %v7116
  %v7118 = vpop.f32.mrf.mxu0
  %v7119 = vadd.f32 %v7030, %v7118
  %7120 = vdwg.mxu0
  %7121 = vmatpush.bf16.msra.mxu0 %v6436
  %7122 = vmatpush.bf16.msra.mxu0 %v6434
  %7123 = vmatpush.bf16.msra.mxu0 %v6432
  %7124 = vmatpush.bf16.msra.mxu0 %v6430
  %7125 = vmatpush.bf16.msra.mxu0 %v6428
  %7126 = vmatpush.bf16.msra.mxu0 %v6426
  %7127 = vmatpush.bf16.msra.mxu0 %v6424
  %7128 = vmatpush.bf16.msra.mxu0 %v6422
  %7129 = vmatmul.bf16.gmra.mxu0 %v4736
  %v7130 = vpop.f32.mrf.mxu0
  %v7131 = vadd.f32 %v7042, %v7130
  %v7132 = vpop.f32.mrf.mxu0
  %v7133 = vadd.f32 %v7044, %v7132
  %7134 = vmatmul.bf16.gmra.mxu0 %v4745
  %v7135 = vpop.f32.mrf.mxu0
  %v7136 = vadd.f32 %v7047, %v7135
  %v7137 = vpop.f32.mrf.mxu0
  %v7138 = vadd.f32 %v7049, %v7137
  %7139 = vmatmul.bf16.gmra.mxu0 %v4754
  %v7140 = vpop.f32.mrf.mxu0
  %v7141 = vadd.f32 %v7052, %v7140
  %v7142 = vpop.f32.mrf.mxu0
  %v7143 = vadd.f32 %v7054, %v7142
  %7144 = vmatmul.bf16.gmra.mxu0 %v4763
  %v7145 = vpop.f32.mrf.mxu0
  %v7146 = vadd.f32 %v7057, %v7145
  %v7147 = vpop.f32.mrf.mxu0
  %v7148 = vadd.f32 %v7059, %v7147
  %7149 = vmatmul.bf16.gmra.mxu0 %v4772
  %v7150 = vpop.f32.mrf.mxu0
  %v7151 = vadd.f32 %v7062, %v7150
  %v7152 = vpop.f32.mrf.mxu0
  %v7153 = vadd.f32 %v7064, %v7152
  %7154 = vmatmul.bf16.gmra.mxu0 %v4781
  %v7155 = vpop.f32.mrf.mxu0
  %v7156 = vadd.f32 %v7067, %v7155
  %v7157 = vpop.f32.mrf.mxu0
  %v7158 = vadd.f32 %v7069, %v7157
  %7159 = vmatmul.bf16.gmra.mxu0 %v4790
  %v7160 = vpop.f32.mrf.mxu0
  %v7161 = vadd.f32 %v7072, %v7160
  %v7162 = vpop.f32.mrf.mxu0
  %v7163 = vadd.f32 %v7074, %v7162
  %7164 = vmatmul.bf16.gmra.mxu0 %v4799
  %v7165 = vpop.f32.mrf.mxu0
  %v7166 = vadd.f32 %v7077, %v7165
  %v7167 = vpop.f32.mrf.mxu0
  %v7168 = vadd.f32 %v7079, %v7167
  %7169 = vmatmul.bf16.gmra.mxu0 %v4808
  %v7170 = vpop.f32.mrf.mxu0
  %v7171 = vadd.f32 %v7082, %v7170
  %v7172 = vpop.f32.mrf.mxu0
  %v7173 = vadd.f32 %v7084, %v7172
  %7174 = vmatmul.bf16.gmra.mxu0 %v4817
  %v7175 = vpop.f32.mrf.mxu0
  %v7176 = vadd.f32 %v7087, %v7175
  %v7177 = vpop.f32.mrf.mxu0
  %v7178 = vadd.f32 %v7089, %v7177
  %7179 = vmatmul.bf16.gmra.mxu0 %v4826
  %v7180 = vpop.f32.mrf.mxu0
  %v7181 = vadd.f32 %v7092, %v7180
  %v7182 = vpop.f32.mrf.mxu0
  %v7183 = vadd.f32 %v7094, %v7182
  %7184 = vmatmul.bf16.gmra.mxu0 %v4835
  %v7185 = vpop.f32.mrf.mxu0
  %v7186 = vadd.f32 %v7097, %v7185
  %v7187 = vpop.f32.mrf.mxu0
  %v7188 = vadd.f32 %v7099, %v7187
  %7189 = vmatmul.bf16.gmra.mxu0 %v4844
  %v7190 = vpop.f32.mrf.mxu0
  %v7191 = vadd.f32 %v7102, %v7190
  %v7192 = vpop.f32.mrf.mxu0
  %v7193 = vadd.f32 %v7104, %v7192
  %7194 = vmatmul.bf16.gmra.mxu0 %v4853
  %v7195 = vpop.f32.mrf.mxu0
  %v7196 = vadd.f32 %v7107, %v7195
  %v7197 = vpop.f32.mrf.mxu0
  %v7198 = vadd.f32 %v7109, %v7197
  %7199 = vmatmul.bf16.gmra.mxu0 %v4862
  %v7200 = vpop.f32.mrf.mxu0
  %v7201 = vadd.f32 %v7112, %v7200
  %v7202 = vpop.f32.mrf.mxu0
  %v7203 = vadd.f32 %v7114, %v7202
  %7204 = vmatmul.bf16.gmra.mxu0 %v4871
  %v7205 = vpop.f32.mrf.mxu0
  %v7206 = vadd.f32 %v7117, %v7205
  %v7207 = vpop.f32.mrf.mxu0
  %v7208 = vadd.f32 %v7119, %v7207
  %7209 = vdwg.mxu0
  %7210 = vmatpush.bf16.msra.mxu0 %v6452
  %7211 = vmatpush.bf16.msra.mxu0 %v6450
  %7212 = vmatpush.bf16.msra.mxu0 %v6448
  %7213 = vmatpush.bf16.msra.mxu0 %v6446
  %7214 = vmatpush.bf16.msra.mxu0 %v6444
  %7215 = vmatpush.bf16.msra.mxu0 %v6442
  %7216 = vmatpush.bf16.msra.mxu0 %v6440
  %7217 = vmatpush.bf16.msra.mxu0 %v6438
  %7218 = vmatmul.bf16.gmra.mxu0 %v4739
  %v7219 = vpop.f32.mrf.mxu0
  %v7220 = vadd.f32 %v7131, %v7219
  %v7221 = vpop.f32.mrf.mxu0
  %v7222 = vadd.f32 %v7133, %v7221
  %7223 = vmatmul.bf16.gmra.mxu0 %v4748
  %v7224 = vpop.f32.mrf.mxu0
  %v7225 = vadd.f32 %v7136, %v7224
  %v7226 = vpop.f32.mrf.mxu0
  %v7227 = vadd.f32 %v7138, %v7226
  %7228 = vmatmul.bf16.gmra.mxu0 %v4757
  %v7229 = vpop.f32.mrf.mxu0
  %v7230 = vadd.f32 %v7141, %v7229
  %v7231 = vpop.f32.mrf.mxu0
  %v7232 = vadd.f32 %v7143, %v7231
  %7233 = vmatmul.bf16.gmra.mxu0 %v4766
  %v7234 = vpop.f32.mrf.mxu0
  %v7235 = vadd.f32 %v7146, %v7234
  %v7236 = vpop.f32.mrf.mxu0
  %v7237 = vadd.f32 %v7148, %v7236
  %7238 = vmatmul.bf16.gmra.mxu0 %v4775
  %v7239 = vpop.f32.mrf.mxu0
  %v7240 = vadd.f32 %v7151, %v7239
  %v7241 = vpop.f32.mrf.mxu0
  %v7242 = vadd.f32 %v7153, %v7241
  %7243 = vmatmul.bf16.gmra.mxu0 %v4784
  %v7244 = vpop.f32.mrf.mxu0
  %v7245 = vadd.f32 %v7156, %v7244
  %v7246 = vpop.f32.mrf.mxu0
  %v7247 = vadd.f32 %v7158, %v7246
  %7248 = vmatmul.bf16.gmra.mxu0 %v4793
  %v7249 = vpop.f32.mrf.mxu0
  %v7250 = vadd.f32 %v7161, %v7249
  %v7251 = vpop.f32.mrf.mxu0
  %v7252 = vadd.f32 %v7163, %v7251
  %7253 = vmatmul.bf16.gmra.mxu0 %v4802
  %v7254 = vpop.f32.mrf.mxu0
  %v7255 = vadd.f32 %v7166, %v7254
  %v7256 = vpop.f32.mrf.mxu0
  %v7257 = vadd.f32 %v7168, %v7256
  %7258 = vmatmul.bf16.gmra.mxu0 %v4811
  %v7259 = vpop.f32.mrf.mxu0
  %v7260 = vadd.f32 %v7171, %v7259
  %v7261 = vpop.f32.mrf.mxu0
  %v7262 = vadd.f32 %v7173, %v7261
  %7263 = vmatmul.bf16.gmra.mxu0 %v4820
  %v7264 = vpop.f32.mrf.mxu0
  %v7265 = vadd.f32 %v7176, %v7264
  %v7266 = vpop.f32.mrf.mxu0
  %v7267 = vadd.f32 %v7178, %v7266
  %7268 = vmatmul.bf16.gmra.mxu0 %v4829
  %v7269 = vpop.f32.mrf.mxu0
  %v7270 = vadd.f32 %v7181, %v7269
  %v7271 = vpop.f32.mrf.mxu0
  %v7272 = vadd.f32 %v7183, %v7271
  %7273 = vmatmul.bf16.gmra.mxu0 %v4838
  %v7274 = vpop.f32.mrf.mxu0
  %v7275 = vadd.f32 %v7186, %v7274
  %v7276 = vpop.f32.mrf.mxu0
  %v7277 = vadd.f32 %v7188, %v7276
  %7278 = vmatmul.bf16.gmra.mxu0 %v4847
  %v7279 = vpop.f32.mrf.mxu0
  %v7280 = vadd.f32 %v7191, %v7279
  %v7281 = vpop.f32.mrf.mxu0
  %v7282 = vadd.f32 %v7193, %v7281
  %7283 = vmatmul.bf16.gmra.mxu0 %v4856
  %v7284 = vpop.f32.mrf.mxu0
  %v7285 = vadd.f32 %v7196, %v7284
  %v7286 = vpop.f32.mrf.mxu0
  %v7287 = vadd.f32 %v7198, %v7286
  %7288 = vmatmul.bf16.gmra.mxu0 %v4865
  %v7289 = vpop.f32.mrf.mxu0
  %v7290 = vadd.f32 %v7201, %v7289
  %v7291 = vpop.f32.mrf.mxu0
  %v7292 = vadd.f32 %v7203, %v7291
  %7293 = vmatmul.bf16.gmra.mxu0 %v4874
  %v7294 = vpop.f32.mrf.mxu0
  %v7295 = vadd.f32 %v7206, %v7294
  %v7296 = vpop.f32.mrf.mxu0
  %v7297 = vadd.f32 %v7208, %v7296
  %7298 = vdwg.mxu0
  %7299 = vmatpush.bf16.msra.mxu0 %v6468
  %7300 = vmatpush.bf16.msra.mxu0 %v6466
  %7301 = vmatpush.bf16.msra.mxu0 %v6464
  %7302 = vmatpush.bf16.msra.mxu0 %v6462
  %7303 = vmatpush.bf16.msra.mxu0 %v6460
  %7304 = vmatpush.bf16.msra.mxu0 %v6458
  %7305 = vmatpush.bf16.msra.mxu0 %v6456
  %7306 = vmatpush.bf16.msra.mxu0 %v6454
  %7307 = vmatmul.bf16.gmra.mxu0 %v4742
  %v7308 = vpop.f32.mrf.mxu0
  %v7309 = vadd.f32 %v7220, %v7308
  %v7310 = vpop.f32.mrf.mxu0
  %v7311 = vadd.f32 %v7222, %v7310
  %7312 = vmatmul.bf16.gmra.mxu0 %v4751
  %v7313 = vpop.f32.mrf.mxu0
  %v7314 = vadd.f32 %v7225, %v7313
  %v7315 = vpop.f32.mrf.mxu0
  %v7316 = vadd.f32 %v7227, %v7315
  %7317 = vmatmul.bf16.gmra.mxu0 %v4760
  %v7318 = vpop.f32.mrf.mxu0
  %v7319 = vadd.f32 %v7230, %v7318
  %v7320 = vpop.f32.mrf.mxu0
  %v7321 = vadd.f32 %v7232, %v7320
  %7322 = vmatmul.bf16.gmra.mxu0 %v4769
  %v7323 = vpop.f32.mrf.mxu0
  %v7324 = vadd.f32 %v7235, %v7323
  %v7325 = vpop.f32.mrf.mxu0
  %v7326 = vadd.f32 %v7237, %v7325
  %7327 = vmatmul.bf16.gmra.mxu0 %v4778
  %v7328 = vpop.f32.mrf.mxu0
  %v7329 = vadd.f32 %v7240, %v7328
  %v7330 = vpop.f32.mrf.mxu0
  %v7331 = vadd.f32 %v7242, %v7330
  %7332 = vmatmul.bf16.gmra.mxu0 %v4787
  %v7333 = vpop.f32.mrf.mxu0
  %v7334 = vadd.f32 %v7245, %v7333
  %v7335 = vpop.f32.mrf.mxu0
  %v7336 = vadd.f32 %v7247, %v7335
  %7337 = vmatmul.bf16.gmra.mxu0 %v4796
  %v7338 = vpop.f32.mrf.mxu0
  %v7339 = vadd.f32 %v7250, %v7338
  %v7340 = vpop.f32.mrf.mxu0
  %v7341 = vadd.f32 %v7252, %v7340
  %7342 = vmatmul.bf16.gmra.mxu0 %v4805
  %v7343 = vpop.f32.mrf.mxu0
  %v7344 = vadd.f32 %v7255, %v7343
  %v7345 = vpop.f32.mrf.mxu0
  %v7346 = vadd.f32 %v7257, %v7345
  %7347 = vmatmul.bf16.gmra.mxu0 %v4814
  %v7348 = vpop.f32.mrf.mxu0
  %v7349 = vadd.f32 %v7260, %v7348
  %v7350 = vpop.f32.mrf.mxu0
  %v7351 = vadd.f32 %v7262, %v7350
  %7352 = vmatmul.bf16.gmra.mxu0 %v4823
  %v7353 = vpop.f32.mrf.mxu0
  %v7354 = vadd.f32 %v7265, %v7353
  %v7355 = vpop.f32.mrf.mxu0
  %v7356 = vadd.f32 %v7267, %v7355
  %7357 = vmatmul.bf16.gmra.mxu0 %v4832
  %v7358 = vpop.f32.mrf.mxu0
  %v7359 = vadd.f32 %v7270, %v7358
  %v7360 = vpop.f32.mrf.mxu0
  %v7361 = vadd.f32 %v7272, %v7360
  %7362 = vmatmul.bf16.gmra.mxu0 %v4841
  %v7363 = vpop.f32.mrf.mxu0
  %v7364 = vadd.f32 %v7275, %v7363
  %v7365 = vpop.f32.mrf.mxu0
  %v7366 = vadd.f32 %v7277, %v7365
  %7367 = vmatmul.bf16.gmra.mxu0 %v4850
  %v7368 = vpop.f32.mrf.mxu0
  %v7369 = vadd.f32 %v7280, %v7368
  %v7370 = vpop.f32.mrf.mxu0
  %v7371 = vadd.f32 %v7282, %v7370
  %7372 = vmatmul.bf16.gmra.mxu0 %v4859
  %v7373 = vpop.f32.mrf.mxu0
  %v7374 = vadd.f32 %v7285, %v7373
  %v7375 = vpop.f32.mrf.mxu0
  %v7376 = vadd.f32 %v7287, %v7375
  %7377 = vmatmul.bf16.gmra.mxu0 %v4868
  %v7378 = vpop.f32.mrf.mxu0
  %v7379 = vadd.f32 %v7290, %v7378
  %v7380 = vpop.f32.mrf.mxu0
  %v7381 = vadd.f32 %v7292, %v7380
  %7382 = vmatmul.bf16.gmra.mxu0 %v4877
  %v7383 = vpop.f32.mrf.mxu0
  %v7384 = vadd.f32 %v7295, %v7383
  %v7385 = vpop.f32.mrf.mxu0
  %v7386 = vadd.f32 %v7297, %v7385
  %7387 = vdwg.mxu0
  %7388 = vmatpush.bf16.msra.mxu0 %v6484
  %7389 = vmatpush.bf16.msra.mxu0 %v6482
  %7390 = vmatpush.bf16.msra.mxu0 %v6480
  %7391 = vmatpush.bf16.msra.mxu0 %v6478
  %7392 = vmatpush.bf16.msra.mxu0 %v6476
  %7393 = vmatpush.bf16.msra.mxu0 %v6474
  %7394 = vmatpush.bf16.msra.mxu0 %v6472
  %7395 = vmatpush.bf16.msra.mxu0 %v6470
  %7396 = vmatmul.bf16.gmra.mxu0 %v4929
  %v7397 = vpop.f32.mrf.mxu0
  %v7398 = vadd.f32 %v7309, %v7397
  %v7399 = vpop.f32.mrf.mxu0
  %v7400 = vadd.f32 %v7311, %v7399
  %7401 = vmatmul.bf16.gmra.mxu0 %v4938
  %v7402 = vpop.f32.mrf.mxu0
  %v7403 = vadd.f32 %v7314, %v7402
  %v7404 = vpop.f32.mrf.mxu0
  %v7405 = vadd.f32 %v7316, %v7404
  %7406 = vmatmul.bf16.gmra.mxu0 %v4947
  %v7407 = vpop.f32.mrf.mxu0
  %v7408 = vadd.f32 %v7319, %v7407
  %v7409 = vpop.f32.mrf.mxu0
  %v7410 = vadd.f32 %v7321, %v7409
  %7411 = vmatmul.bf16.gmra.mxu0 %v4956
  %v7412 = vpop.f32.mrf.mxu0
  %v7413 = vadd.f32 %v7324, %v7412
  %v7414 = vpop.f32.mrf.mxu0
  %v7415 = vadd.f32 %v7326, %v7414
  %7416 = vmatmul.bf16.gmra.mxu0 %v4965
  %v7417 = vpop.f32.mrf.mxu0
  %v7418 = vadd.f32 %v7329, %v7417
  %v7419 = vpop.f32.mrf.mxu0
  %v7420 = vadd.f32 %v7331, %v7419
  %7421 = vmatmul.bf16.gmra.mxu0 %v4974
  %v7422 = vpop.f32.mrf.mxu0
  %v7423 = vadd.f32 %v7334, %v7422
  %v7424 = vpop.f32.mrf.mxu0
  %v7425 = vadd.f32 %v7336, %v7424
  %7426 = vmatmul.bf16.gmra.mxu0 %v4983
  %v7427 = vpop.f32.mrf.mxu0
  %v7428 = vadd.f32 %v7339, %v7427
  %v7429 = vpop.f32.mrf.mxu0
  %v7430 = vadd.f32 %v7341, %v7429
  %7431 = vmatmul.bf16.gmra.mxu0 %v4992
  %v7432 = vpop.f32.mrf.mxu0
  %v7433 = vadd.f32 %v7344, %v7432
  %v7434 = vpop.f32.mrf.mxu0
  %v7435 = vadd.f32 %v7346, %v7434
  %7436 = vmatmul.bf16.gmra.mxu0 %v5001
  %v7437 = vpop.f32.mrf.mxu0
  %v7438 = vadd.f32 %v7349, %v7437
  %v7439 = vpop.f32.mrf.mxu0
  %v7440 = vadd.f32 %v7351, %v7439
  %7441 = vmatmul.bf16.gmra.mxu0 %v5010
  %v7442 = vpop.f32.mrf.mxu0
  %v7443 = vadd.f32 %v7354, %v7442
  %v7444 = vpop.f32.mrf.mxu0
  %v7445 = vadd.f32 %v7356, %v7444
  %7446 = vmatmul.bf16.gmra.mxu0 %v5019
  %v7447 = vpop.f32.mrf.mxu0
  %v7448 = vadd.f32 %v7359, %v7447
  %v7449 = vpop.f32.mrf.mxu0
  %v7450 = vadd.f32 %v7361, %v7449
  %7451 = vmatmul.bf16.gmra.mxu0 %v5028
  %v7452 = vpop.f32.mrf.mxu0
  %v7453 = vadd.f32 %v7364, %v7452
  %v7454 = vpop.f32.mrf.mxu0
  %v7455 = vadd.f32 %v7366, %v7454
  %7456 = vmatmul.bf16.gmra.mxu0 %v5037
  %v7457 = vpop.f32.mrf.mxu0
  %v7458 = vadd.f32 %v7369, %v7457
  %v7459 = vpop.f32.mrf.mxu0
  %v7460 = vadd.f32 %v7371, %v7459
  %7461 = vmatmul.bf16.gmra.mxu0 %v5046
  %v7462 = vpop.f32.mrf.mxu0
  %v7463 = vadd.f32 %v7374, %v7462
  %v7464 = vpop.f32.mrf.mxu0
  %v7465 = vadd.f32 %v7376, %v7464
  %7466 = vmatmul.bf16.gmra.mxu0 %v5055
  %v7467 = vpop.f32.mrf.mxu0
  %v7468 = vadd.f32 %v7379, %v7467
  %v7469 = vpop.f32.mrf.mxu0
  %v7470 = vadd.f32 %v7381, %v7469
  %7471 = vmatmul.bf16.gmra.mxu0 %v5064
  %v7472 = vpop.f32.mrf.mxu0
  %v7473 = vadd.f32 %v7384, %v7472
  %v7474 = vpop.f32.mrf.mxu0
  %v7475 = vadd.f32 %v7386, %v7474
  %7476 = vdwg.mxu0
  %7477 = vmatpush.bf16.msra.mxu0 %v6500
  %7478 = vmatpush.bf16.msra.mxu0 %v6498
  %7479 = vmatpush.bf16.msra.mxu0 %v6496
  %7480 = vmatpush.bf16.msra.mxu0 %v6494
  %7481 = vmatpush.bf16.msra.mxu0 %v6492
  %7482 = vmatpush.bf16.msra.mxu0 %v6490
  %7483 = vmatpush.bf16.msra.mxu0 %v6488
  %7484 = vmatpush.bf16.msra.mxu0 %v6486
  %7485 = vmatmul.bf16.gmra.mxu0 %v4932
  %v7486 = vpop.f32.mrf.mxu0
  %v7487 = vadd.f32 %v7398, %v7486
  %v7488 = vpop.f32.mrf.mxu0
  %v7489 = vadd.f32 %v7400, %v7488
  %7490 = vmatmul.bf16.gmra.mxu0 %v4941
  %v7491 = vpop.f32.mrf.mxu0
  %v7492 = vadd.f32 %v7403, %v7491
  %v7493 = vpop.f32.mrf.mxu0
  %v7494 = vadd.f32 %v7405, %v7493
  %7495 = vmatmul.bf16.gmra.mxu0 %v4950
  %v7496 = vpop.f32.mrf.mxu0
  %v7497 = vadd.f32 %v7408, %v7496
  %v7498 = vpop.f32.mrf.mxu0
  %v7499 = vadd.f32 %v7410, %v7498
  %7500 = vmatmul.bf16.gmra.mxu0 %v4959
  %v7501 = vpop.f32.mrf.mxu0
  %v7502 = vadd.f32 %v7413, %v7501
  %v7503 = vpop.f32.mrf.mxu0
  %v7504 = vadd.f32 %v7415, %v7503
  %7505 = vmatmul.bf16.gmra.mxu0 %v4968
  %v7506 = vpop.f32.mrf.mxu0
  %v7507 = vadd.f32 %v7418, %v7506
  %v7508 = vpop.f32.mrf.mxu0
  %v7509 = vadd.f32 %v7420, %v7508
  %7510 = vmatmul.bf16.gmra.mxu0 %v4977
  %v7511 = vpop.f32.mrf.mxu0
  %v7512 = vadd.f32 %v7423, %v7511
  %v7513 = vpop.f32.mrf.mxu0
  %v7514 = vadd.f32 %v7425, %v7513
  %7515 = vmatmul.bf16.gmra.mxu0 %v4986
  %v7516 = vpop.f32.mrf.mxu0
  %v7517 = vadd.f32 %v7428, %v7516
  %v7518 = vpop.f32.mrf.mxu0
  %v7519 = vadd.f32 %v7430, %v7518
  %7520 = vmatmul.bf16.gmra.mxu0 %v4995
  %v7521 = vpop.f32.mrf.mxu0
  %v7522 = vadd.f32 %v7433, %v7521
  %v7523 = vpop.f32.mrf.mxu0
  %v7524 = vadd.f32 %v7435, %v7523
  %7525 = vmatmul.bf16.gmra.mxu0 %v5004
  %v7526 = vpop.f32.mrf.mxu0
  %v7527 = vadd.f32 %v7438, %v7526
  %v7528 = vpop.f32.mrf.mxu0
  %v7529 = vadd.f32 %v7440, %v7528
  %7530 = vmatmul.bf16.gmra.mxu0 %v5013
  %v7531 = vpop.f32.mrf.mxu0
  %v7532 = vadd.f32 %v7443, %v7531
  %v7533 = vpop.f32.mrf.mxu0
  %v7534 = vadd.f32 %v7445, %v7533
  %7535 = vmatmul.bf16.gmra.mxu0 %v5022
  %v7536 = vpop.f32.mrf.mxu0
  %v7537 = vadd.f32 %v7448, %v7536
  %v7538 = vpop.f32.mrf.mxu0
  %v7539 = vadd.f32 %v7450, %v7538
  %7540 = vmatmul.bf16.gmra.mxu0 %v5031
  %v7541 = vpop.f32.mrf.mxu0
  %v7542 = vadd.f32 %v7453, %v7541
  %v7543 = vpop.f32.mrf.mxu0
  %v7544 = vadd.f32 %v7455, %v7543
  %7545 = vmatmul.bf16.gmra.mxu0 %v5040
  %v7546 = vpop.f32.mrf.mxu0
  %v7547 = vadd.f32 %v7458, %v7546
  %v7548 = vpop.f32.mrf.mxu0
  %v7549 = vadd.f32 %v7460, %v7548
  %7550 = vmatmul.bf16.gmra.mxu0 %v5049
  %v7551 = vpop.f32.mrf.mxu0
  %v7552 = vadd.f32 %v7463, %v7551
  %v7553 = vpop.f32.mrf.mxu0
  %v7554 = vadd.f32 %v7465, %v7553
  %7555 = vmatmul.bf16.gmra.mxu0 %v5058
  %v7556 = vpop.f32.mrf.mxu0
  %v7557 = vadd.f32 %v7468, %v7556
  %v7558 = vpop.f32.mrf.mxu0
  %v7559 = vadd.f32 %v7470, %v7558
  %7560 = vmatmul.bf16.gmra.mxu0 %v5067
  %v7561 = vpop.f32.mrf.mxu0
  %v7562 = vadd.f32 %v7473, %v7561
  %v7563 = vpop.f32.mrf.mxu0
  %v7564 = vadd.f32 %v7475, %v7563
  %7565 = vdwg.mxu0
  %7566 = vmatpush.bf16.msra.mxu0 %v6516
  %7567 = vmatpush.bf16.msra.mxu0 %v6514
  %7568 = vmatpush.bf16.msra.mxu0 %v6512
  %7569 = vmatpush.bf16.msra.mxu0 %v6510
  %7570 = vmatpush.bf16.msra.mxu0 %v6508
  %7571 = vmatpush.bf16.msra.mxu0 %v6506
  %7572 = vmatpush.bf16.msra.mxu0 %v6504
  %7573 = vmatpush.bf16.msra.mxu0 %v6502
  %7574 = vmatmul.bf16.gmra.mxu0 %v4935
  %v7575 = vpop.f32.mrf.mxu0
  %v7576 = vadd.f32 %v7487, %v7575
  %v7577 = vpop.f32.mrf.mxu0
  %v7578 = vadd.f32 %v7489, %v7577
  %7579 = vmatmul.bf16.gmra.mxu0 %v4944
  %v7580 = vpop.f32.mrf.mxu0
  %v7581 = vadd.f32 %v7492, %v7580
  %v7582 = vpop.f32.mrf.mxu0
  %v7583 = vadd.f32 %v7494, %v7582
  %7584 = vmatmul.bf16.gmra.mxu0 %v4953
  %v7585 = vpop.f32.mrf.mxu0
  %v7586 = vadd.f32 %v7497, %v7585
  %v7587 = vpop.f32.mrf.mxu0
  %v7588 = vadd.f32 %v7499, %v7587
  %7589 = vmatmul.bf16.gmra.mxu0 %v4962
  %v7590 = vpop.f32.mrf.mxu0
  %v7591 = vadd.f32 %v7502, %v7590
  %v7592 = vpop.f32.mrf.mxu0
  %v7593 = vadd.f32 %v7504, %v7592
  %7594 = vmatmul.bf16.gmra.mxu0 %v4971
  %v7595 = vpop.f32.mrf.mxu0
  %v7596 = vadd.f32 %v7507, %v7595
  %v7597 = vpop.f32.mrf.mxu0
  %v7598 = vadd.f32 %v7509, %v7597
  %7599 = vmatmul.bf16.gmra.mxu0 %v4980
  %v7600 = vpop.f32.mrf.mxu0
  %v7601 = vadd.f32 %v7512, %v7600
  %v7602 = vpop.f32.mrf.mxu0
  %v7603 = vadd.f32 %v7514, %v7602
  %7604 = vmatmul.bf16.gmra.mxu0 %v4989
  %v7605 = vpop.f32.mrf.mxu0
  %v7606 = vadd.f32 %v7517, %v7605
  %v7607 = vpop.f32.mrf.mxu0
  %v7608 = vadd.f32 %v7519, %v7607
  %7609 = vmatmul.bf16.gmra.mxu0 %v4998
  %v7610 = vpop.f32.mrf.mxu0
  %v7611 = vadd.f32 %v7522, %v7610
  %v7612 = vpop.f32.mrf.mxu0
  %v7613 = vadd.f32 %v7524, %v7612
  %7614 = vmatmul.bf16.gmra.mxu0 %v5007
  %v7615 = vpop.f32.mrf.mxu0
  %v7616 = vadd.f32 %v7527, %v7615
  %v7617 = vpop.f32.mrf.mxu0
  %v7618 = vadd.f32 %v7529, %v7617
  %7619 = vmatmul.bf16.gmra.mxu0 %v5016
  %v7620 = vpop.f32.mrf.mxu0
  %v7621 = vadd.f32 %v7532, %v7620
  %v7622 = vpop.f32.mrf.mxu0
  %v7623 = vadd.f32 %v7534, %v7622
  %7624 = vmatmul.bf16.gmra.mxu0 %v5025
  %v7625 = vpop.f32.mrf.mxu0
  %v7626 = vadd.f32 %v7537, %v7625
  %v7627 = vpop.f32.mrf.mxu0
  %v7628 = vadd.f32 %v7539, %v7627
  %7629 = vmatmul.bf16.gmra.mxu0 %v5034
  %v7630 = vpop.f32.mrf.mxu0
  %v7631 = vadd.f32 %v7542, %v7630
  %v7632 = vpop.f32.mrf.mxu0
  %v7633 = vadd.f32 %v7544, %v7632
  %7634 = vmatmul.bf16.gmra.mxu0 %v5043
  %v7635 = vpop.f32.mrf.mxu0
  %v7636 = vadd.f32 %v7547, %v7635
  %v7637 = vpop.f32.mrf.mxu0
  %v7638 = vadd.f32 %v7549, %v7637
  %7639 = vmatmul.bf16.gmra.mxu0 %v5052
  %v7640 = vpop.f32.mrf.mxu0
  %v7641 = vadd.f32 %v7552, %v7640
  %v7642 = vpop.f32.mrf.mxu0
  %v7643 = vadd.f32 %v7554, %v7642
  %7644 = vmatmul.bf16.gmra.mxu0 %v5061
  %v7645 = vpop.f32.mrf.mxu0
  %v7646 = vadd.f32 %v7557, %v7645
  %v7647 = vpop.f32.mrf.mxu0
  %v7648 = vadd.f32 %v7559, %v7647
  %7649 = vmatmul.bf16.gmra.mxu0 %v5070
  %v7650 = vpop.f32.mrf.mxu0
  %v7651 = vadd.f32 %v7562, %v7650
  %v7652 = vpop.f32.mrf.mxu0
  %v7653 = vadd.f32 %v7564, %v7652
  %7654 = vdwg.mxu0
  %7655 = vmatpush.bf16.msra.mxu0 %v6532
  %7656 = vmatpush.bf16.msra.mxu0 %v6530
  %7657 = vmatpush.bf16.msra.mxu0 %v6528
  %7658 = vmatpush.bf16.msra.mxu0 %v6526
  %7659 = vmatpush.bf16.msra.mxu0 %v6524
  %7660 = vmatpush.bf16.msra.mxu0 %v6522
  %7661 = vmatpush.bf16.msra.mxu0 %v6520
  %7662 = vmatpush.bf16.msra.mxu0 %v6518
  %7663 = vmatmul.bf16.gmra.mxu0 %v5122
  %v7664 = vpop.f32.mrf.mxu0
  %v7665 = vadd.f32 %v7576, %v7664
  %v7666 = vpop.f32.mrf.mxu0
  %v7667 = vadd.f32 %v7578, %v7666
  %7668 = vmatmul.bf16.gmra.mxu0 %v5131
  %v7669 = vpop.f32.mrf.mxu0
  %v7670 = vadd.f32 %v7581, %v7669
  %v7671 = vpop.f32.mrf.mxu0
  %v7672 = vadd.f32 %v7583, %v7671
  %7673 = vmatmul.bf16.gmra.mxu0 %v5140
  %v7674 = vpop.f32.mrf.mxu0
  %v7675 = vadd.f32 %v7586, %v7674
  %v7676 = vpop.f32.mrf.mxu0
  %v7677 = vadd.f32 %v7588, %v7676
  %7678 = vmatmul.bf16.gmra.mxu0 %v5149
  %v7679 = vpop.f32.mrf.mxu0
  %v7680 = vadd.f32 %v7591, %v7679
  %v7681 = vpop.f32.mrf.mxu0
  %v7682 = vadd.f32 %v7593, %v7681
  %7683 = vmatmul.bf16.gmra.mxu0 %v5158
  %v7684 = vpop.f32.mrf.mxu0
  %v7685 = vadd.f32 %v7596, %v7684
  %v7686 = vpop.f32.mrf.mxu0
  %v7687 = vadd.f32 %v7598, %v7686
  %7688 = vmatmul.bf16.gmra.mxu0 %v5167
  %v7689 = vpop.f32.mrf.mxu0
  %v7690 = vadd.f32 %v7601, %v7689
  %v7691 = vpop.f32.mrf.mxu0
  %v7692 = vadd.f32 %v7603, %v7691
  %7693 = vmatmul.bf16.gmra.mxu0 %v5176
  %v7694 = vpop.f32.mrf.mxu0
  %v7695 = vadd.f32 %v7606, %v7694
  %v7696 = vpop.f32.mrf.mxu0
  %v7697 = vadd.f32 %v7608, %v7696
  %7698 = vmatmul.bf16.gmra.mxu0 %v5185
  %v7699 = vpop.f32.mrf.mxu0
  %v7700 = vadd.f32 %v7611, %v7699
  %v7701 = vpop.f32.mrf.mxu0
  %v7702 = vadd.f32 %v7613, %v7701
  %7703 = vmatmul.bf16.gmra.mxu0 %v5194
  %v7704 = vpop.f32.mrf.mxu0
  %v7705 = vadd.f32 %v7616, %v7704
  %v7706 = vpop.f32.mrf.mxu0
  %v7707 = vadd.f32 %v7618, %v7706
  %7708 = vmatmul.bf16.gmra.mxu0 %v5203
  %v7709 = vpop.f32.mrf.mxu0
  %v7710 = vadd.f32 %v7621, %v7709
  %v7711 = vpop.f32.mrf.mxu0
  %v7712 = vadd.f32 %v7623, %v7711
  %7713 = vmatmul.bf16.gmra.mxu0 %v5212
  %v7714 = vpop.f32.mrf.mxu0
  %v7715 = vadd.f32 %v7626, %v7714
  %v7716 = vpop.f32.mrf.mxu0
  %v7717 = vadd.f32 %v7628, %v7716
  %7718 = vmatmul.bf16.gmra.mxu0 %v5221
  %v7719 = vpop.f32.mrf.mxu0
  %v7720 = vadd.f32 %v7631, %v7719
  %v7721 = vpop.f32.mrf.mxu0
  %v7722 = vadd.f32 %v7633, %v7721
  %7723 = vmatmul.bf16.gmra.mxu0 %v5230
  %v7724 = vpop.f32.mrf.mxu0
  %v7725 = vadd.f32 %v7636, %v7724
  %v7726 = vpop.f32.mrf.mxu0
  %v7727 = vadd.f32 %v7638, %v7726
  %7728 = vmatmul.bf16.gmra.mxu0 %v5239
  %v7729 = vpop.f32.mrf.mxu0
  %v7730 = vadd.f32 %v7641, %v7729
  %v7731 = vpop.f32.mrf.mxu0
  %v7732 = vadd.f32 %v7643, %v7731
  %7733 = vmatmul.bf16.gmra.mxu0 %v5248
  %v7734 = vpop.f32.mrf.mxu0
  %v7735 = vadd.f32 %v7646, %v7734
  %v7736 = vpop.f32.mrf.mxu0
  %v7737 = vadd.f32 %v7648, %v7736
  %7738 = vmatmul.bf16.gmra.mxu0 %v5257
  %v7739 = vpop.f32.mrf.mxu0
  %v7740 = vadd.f32 %v7651, %v7739
  %v7741 = vpop.f32.mrf.mxu0
  %v7742 = vadd.f32 %v7653, %v7741
  %7743 = vdwg.mxu0
  %7744 = vmatpush.bf16.msra.mxu0 %v6548
  %7745 = vmatpush.bf16.msra.mxu0 %v6546
  %7746 = vmatpush.bf16.msra.mxu0 %v6544
  %7747 = vmatpush.bf16.msra.mxu0 %v6542
  %7748 = vmatpush.bf16.msra.mxu0 %v6540
  %7749 = vmatpush.bf16.msra.mxu0 %v6538
  %7750 = vmatpush.bf16.msra.mxu0 %v6536
  %7751 = vmatpush.bf16.msra.mxu0 %v6534
  %7752 = vmatmul.bf16.gmra.mxu0 %v5125
  %v7753 = vpop.f32.mrf.mxu0
  %v7754 = vadd.f32 %v7665, %v7753
  %v7755 = vpop.f32.mrf.mxu0
  %v7756 = vadd.f32 %v7667, %v7755
  %7757 = vmatmul.bf16.gmra.mxu0 %v5134
  %v7758 = vpop.f32.mrf.mxu0
  %v7759 = vadd.f32 %v7670, %v7758
  %v7760 = vpop.f32.mrf.mxu0
  %v7761 = vadd.f32 %v7672, %v7760
  %7762 = vmatmul.bf16.gmra.mxu0 %v5143
  %v7763 = vpop.f32.mrf.mxu0
  %v7764 = vadd.f32 %v7675, %v7763
  %v7765 = vpop.f32.mrf.mxu0
  %v7766 = vadd.f32 %v7677, %v7765
  %7767 = vmatmul.bf16.gmra.mxu0 %v5152
  %v7768 = vpop.f32.mrf.mxu0
  %v7769 = vadd.f32 %v7680, %v7768
  %v7770 = vpop.f32.mrf.mxu0
  %v7771 = vadd.f32 %v7682, %v7770
  %7772 = vmatmul.bf16.gmra.mxu0 %v5161
  %v7773 = vpop.f32.mrf.mxu0
  %v7774 = vadd.f32 %v7685, %v7773
  %v7775 = vpop.f32.mrf.mxu0
  %v7776 = vadd.f32 %v7687, %v7775
  %7777 = vmatmul.bf16.gmra.mxu0 %v5170
  %v7778 = vpop.f32.mrf.mxu0
  %v7779 = vadd.f32 %v7690, %v7778
  %v7780 = vpop.f32.mrf.mxu0
  %v7781 = vadd.f32 %v7692, %v7780
  %7782 = vmatmul.bf16.gmra.mxu0 %v5179
  %v7783 = vpop.f32.mrf.mxu0
  %v7784 = vadd.f32 %v7695, %v7783
  %v7785 = vpop.f32.mrf.mxu0
  %v7786 = vadd.f32 %v7697, %v7785
  %7787 = vmatmul.bf16.gmra.mxu0 %v5188
  %v7788 = vpop.f32.mrf.mxu0
  %v7789 = vadd.f32 %v7700, %v7788
  %v7790 = vpop.f32.mrf.mxu0
  %v7791 = vadd.f32 %v7702, %v7790
  %7792 = vmatmul.bf16.gmra.mxu0 %v5197
  %v7793 = vpop.f32.mrf.mxu0
  %v7794 = vadd.f32 %v7705, %v7793
  %v7795 = vpop.f32.mrf.mxu0
  %v7796 = vadd.f32 %v7707, %v7795
  %7797 = vmatmul.bf16.gmra.mxu0 %v5206
  %v7798 = vpop.f32.mrf.mxu0
  %v7799 = vadd.f32 %v7710, %v7798
  %v7800 = vpop.f32.mrf.mxu0
  %v7801 = vadd.f32 %v7712, %v7800
  %7802 = vmatmul.bf16.gmra.mxu0 %v5215
  %v7803 = vpop.f32.mrf.mxu0
  %v7804 = vadd.f32 %v7715, %v7803
  %v7805 = vpop.f32.mrf.mxu0
  %v7806 = vadd.f32 %v7717, %v7805
  %7807 = vmatmul.bf16.gmra.mxu0 %v5224
  %v7808 = vpop.f32.mrf.mxu0
  %v7809 = vadd.f32 %v7720, %v7808
  %v7810 = vpop.f32.mrf.mxu0
  %v7811 = vadd.f32 %v7722, %v7810
  %7812 = vmatmul.bf16.gmra.mxu0 %v5233
  %v7813 = vpop.f32.mrf.mxu0
  %v7814 = vadd.f32 %v7725, %v7813
  %v7815 = vpop.f32.mrf.mxu0
  %v7816 = vadd.f32 %v7727, %v7815
  %7817 = vmatmul.bf16.gmra.mxu0 %v5242
  %v7818 = vpop.f32.mrf.mxu0
  %v7819 = vadd.f32 %v7730, %v7818
  %v7820 = vpop.f32.mrf.mxu0
  %v7821 = vadd.f32 %v7732, %v7820
  %7822 = vmatmul.bf16.gmra.mxu0 %v5251
  %v7823 = vpop.f32.mrf.mxu0
  %v7824 = vadd.f32 %v7735, %v7823
  %v7825 = vpop.f32.mrf.mxu0
  %v7826 = vadd.f32 %v7737, %v7825
  %7827 = vmatmul.bf16.gmra.mxu0 %v5260
  %v7828 = vpop.f32.mrf.mxu0
  %v7829 = vadd.f32 %v7740, %v7828
  %v7830 = vpop.f32.mrf.mxu0
  %v7831 = vadd.f32 %v7742, %v7830
  %7832 = vdwg.mxu0
  %7833 = vmatpush.bf16.msra.mxu0 %v6564
  %7834 = vmatpush.bf16.msra.mxu0 %v6562
  %7835 = vmatpush.bf16.msra.mxu0 %v6560
  %7836 = vmatpush.bf16.msra.mxu0 %v6558
  %7837 = vmatpush.bf16.msra.mxu0 %v6556
  %7838 = vmatpush.bf16.msra.mxu0 %v6554
  %7839 = vmatpush.bf16.msra.mxu0 %v6552
  %7840 = vmatpush.bf16.msra.mxu0 %v6550
  %7841 = vmatmul.bf16.gmra.mxu0 %v5128
  %v7842 = vpop.f32.mrf.mxu0
  %v7843 = vadd.f32 %v7754, %v7842
  %v7844 = vpop.f32.mrf.mxu0
  %v7845 = vadd.f32 %v7756, %v7844
  %7846 = vmatmul.bf16.gmra.mxu0 %v5137
  %v7847 = vpop.f32.mrf.mxu0
  %v7848 = vadd.f32 %v7759, %v7847
  %v7849 = vpop.f32.mrf.mxu0
  %v7850 = vadd.f32 %v7761, %v7849
  %7851 = vmatmul.bf16.gmra.mxu0 %v5146
  %v7852 = vpop.f32.mrf.mxu0
  %v7853 = vadd.f32 %v7764, %v7852
  %v7854 = vpop.f32.mrf.mxu0
  %v7855 = vadd.f32 %v7766, %v7854
  %7856 = vmatmul.bf16.gmra.mxu0 %v5155
  %v7857 = vpop.f32.mrf.mxu0
  %v7858 = vadd.f32 %v7769, %v7857
  %v7859 = vpop.f32.mrf.mxu0
  %v7860 = vadd.f32 %v7771, %v7859
  %7861 = vmatmul.bf16.gmra.mxu0 %v5164
  %v7862 = vpop.f32.mrf.mxu0
  %v7863 = vadd.f32 %v7774, %v7862
  %v7864 = vpop.f32.mrf.mxu0
  %v7865 = vadd.f32 %v7776, %v7864
  %7866 = vmatmul.bf16.gmra.mxu0 %v5173
  %v7867 = vpop.f32.mrf.mxu0
  %v7868 = vadd.f32 %v7779, %v7867
  %v7869 = vpop.f32.mrf.mxu0
  %v7870 = vadd.f32 %v7781, %v7869
  %7871 = vmatmul.bf16.gmra.mxu0 %v5182
  %v7872 = vpop.f32.mrf.mxu0
  %v7873 = vadd.f32 %v7784, %v7872
  %v7874 = vpop.f32.mrf.mxu0
  %v7875 = vadd.f32 %v7786, %v7874
  %7876 = vmatmul.bf16.gmra.mxu0 %v5191
  %v7877 = vpop.f32.mrf.mxu0
  %v7878 = vadd.f32 %v7789, %v7877
  %v7879 = vpop.f32.mrf.mxu0
  %v7880 = vadd.f32 %v7791, %v7879
  %7881 = vmatmul.bf16.gmra.mxu0 %v5200
  %v7882 = vpop.f32.mrf.mxu0
  %v7883 = vadd.f32 %v7794, %v7882
  %v7884 = vpop.f32.mrf.mxu0
  %v7885 = vadd.f32 %v7796, %v7884
  %7886 = vmatmul.bf16.gmra.mxu0 %v5209
  %v7887 = vpop.f32.mrf.mxu0
  %v7888 = vadd.f32 %v7799, %v7887
  %v7889 = vpop.f32.mrf.mxu0
  %v7890 = vadd.f32 %v7801, %v7889
  %7891 = vmatmul.bf16.gmra.mxu0 %v5218
  %v7892 = vpop.f32.mrf.mxu0
  %v7893 = vadd.f32 %v7804, %v7892
  %v7894 = vpop.f32.mrf.mxu0
  %v7895 = vadd.f32 %v7806, %v7894
  %7896 = vmatmul.bf16.gmra.mxu0 %v5227
  %v7897 = vpop.f32.mrf.mxu0
  %v7898 = vadd.f32 %v7809, %v7897
  %v7899 = vpop.f32.mrf.mxu0
  %v7900 = vadd.f32 %v7811, %v7899
  %7901 = vmatmul.bf16.gmra.mxu0 %v5236
  %v7902 = vpop.f32.mrf.mxu0
  %v7903 = vadd.f32 %v7814, %v7902
  %v7904 = vpop.f32.mrf.mxu0
  %v7905 = vadd.f32 %v7816, %v7904
  %7906 = vmatmul.bf16.gmra.mxu0 %v5245
  %v7907 = vpop.f32.mrf.mxu0
  %v7908 = vadd.f32 %v7819, %v7907
  %v7909 = vpop.f32.mrf.mxu0
  %v7910 = vadd.f32 %v7821, %v7909
  %7911 = vmatmul.bf16.gmra.mxu0 %v5254
  %v7912 = vpop.f32.mrf.mxu0
  %v7913 = vadd.f32 %v7824, %v7912
  %v7914 = vpop.f32.mrf.mxu0
  %v7915 = vadd.f32 %v7826, %v7914
  %7916 = vmatmul.bf16.gmra.mxu0 %v5263
  %v7917 = vpop.f32.mrf.mxu0
  %v7918 = vadd.f32 %v7829, %v7917
  %v7919 = vpop.f32.mrf.mxu0
  %v7920 = vadd.f32 %v7831, %v7919
  %7921 = vdwg.mxu0
  %7922 = vmatpush.bf16.msra.mxu0 %v6580
  %7923 = vmatpush.bf16.msra.mxu0 %v6578
  %7924 = vmatpush.bf16.msra.mxu0 %v6576
  %7925 = vmatpush.bf16.msra.mxu0 %v6574
  %7926 = vmatpush.bf16.msra.mxu0 %v6572
  %7927 = vmatpush.bf16.msra.mxu0 %v6570
  %7928 = vmatpush.bf16.msra.mxu0 %v6568
  %7929 = vmatpush.bf16.msra.mxu0 %v6566
  %7930 = vmatmul.bf16.gmra.mxu0 %v5312
  %v7931 = vpop.f32.mrf.mxu0
  %v7932 = vadd.f32 %v7843, %v7931
  %v7933 = vpop.f32.mrf.mxu0
  %v7934 = vadd.f32 %v7845, %v7933
  %7935 = vmatmul.bf16.gmra.mxu0 %v5315
  %v7936 = vpop.f32.mrf.mxu0
  %v7937 = vadd.f32 %v7848, %v7936
  %v7938 = vpop.f32.mrf.mxu0
  %v7939 = vadd.f32 %v7850, %v7938
  %7940 = vmatmul.bf16.gmra.mxu0 %v5318
  %v7941 = vpop.f32.mrf.mxu0
  %v7942 = vadd.f32 %v7853, %v7941
  %v7943 = vpop.f32.mrf.mxu0
  %v7944 = vadd.f32 %v7855, %v7943
  %7945 = vmatmul.bf16.gmra.mxu0 %v5321
  %v7946 = vpop.f32.mrf.mxu0
  %v7947 = vadd.f32 %v7858, %v7946
  %v7948 = vpop.f32.mrf.mxu0
  %v7949 = vadd.f32 %v7860, %v7948
  %7950 = vmatmul.bf16.gmra.mxu0 %v5324
  %v7951 = vpop.f32.mrf.mxu0
  %v7952 = vadd.f32 %v7863, %v7951
  %v7953 = vpop.f32.mrf.mxu0
  %v7954 = vadd.f32 %v7865, %v7953
  %7955 = vmatmul.bf16.gmra.mxu0 %v5327
  %v7956 = vpop.f32.mrf.mxu0
  %v7957 = vadd.f32 %v7868, %v7956
  %v7958 = vpop.f32.mrf.mxu0
  %v7959 = vadd.f32 %v7870, %v7958
  %7960 = vmatmul.bf16.gmra.mxu0 %v5330
  %v7961 = vpop.f32.mrf.mxu0
  %v7962 = vadd.f32 %v7873, %v7961
  %v7963 = vpop.f32.mrf.mxu0
  %v7964 = vadd.f32 %v7875, %v7963
  %7965 = vmatmul.bf16.gmra.mxu0 %v5333
  %v7966 = vpop.f32.mrf.mxu0
  %v7967 = vadd.f32 %v7878, %v7966
  %v7968 = vpop.f32.mrf.mxu0
  %v7969 = vadd.f32 %v7880, %v7968
  %7970 = vmatmul.bf16.gmra.mxu0 %v5336
  %v7971 = vpop.f32.mrf.mxu0
  %v7972 = vadd.f32 %v7883, %v7971
  %v7973 = vpop.f32.mrf.mxu0
  %v7974 = vadd.f32 %v7885, %v7973
  %7975 = vmatmul.bf16.gmra.mxu0 %v5339
  %v7976 = vpop.f32.mrf.mxu0
  %v7977 = vadd.f32 %v7888, %v7976
  %v7978 = vpop.f32.mrf.mxu0
  %v7979 = vadd.f32 %v7890, %v7978
  %7980 = vmatmul.bf16.gmra.mxu0 %v5342
  %v7981 = vpop.f32.mrf.mxu0
  %v7982 = vadd.f32 %v7893, %v7981
  %v7983 = vpop.f32.mrf.mxu0
  %v7984 = vadd.f32 %v7895, %v7983
  %7985 = vmatmul.bf16.gmra.mxu0 %v5345
  %v7986 = vpop.f32.mrf.mxu0
  %v7987 = vadd.f32 %v7898, %v7986
  %v7988 = vpop.f32.mrf.mxu0
  %v7989 = vadd.f32 %v7900, %v7988
  %7990 = vmatmul.bf16.gmra.mxu0 %v5348
  %v7991 = vpop.f32.mrf.mxu0
  %v7992 = vadd.f32 %v7903, %v7991
  %v7993 = vpop.f32.mrf.mxu0
  %v7994 = vadd.f32 %v7905, %v7993
  %7995 = vmatmul.bf16.gmra.mxu0 %v5351
  %v7996 = vpop.f32.mrf.mxu0
  %v7997 = vadd.f32 %v7908, %v7996
  %v7998 = vpop.f32.mrf.mxu0
  %v7999 = vadd.f32 %v7910, %v7998
  %8000 = vmatmul.bf16.gmra.mxu0 %v5354
  %v8001 = vpop.f32.mrf.mxu0
  %v8002 = vadd.f32 %v7913, %v8001
  %v8003 = vpop.f32.mrf.mxu0
  %v8004 = vadd.f32 %v7915, %v8003
  %8005 = vmatmul.bf16.gmra.mxu0 %v5357
  %v8006 = vpop.f32.mrf.mxu0
  %v8007 = vadd.f32 %v7918, %v8006
  %v8008 = vpop.f32.mrf.mxu0
  %v8009 = vadd.f32 %v7920, %v8008
  %8010 = vdwg.mxu0
  %8011 = vmatpush.bf16.msra.mxu0 %v6596
  %8012 = vmatpush.bf16.msra.mxu0 %v6594
  %8013 = vmatpush.bf16.msra.mxu0 %v6592
  %8014 = vmatpush.bf16.msra.mxu0 %v6590
  %8015 = vmatpush.bf16.msra.mxu0 %v6588
  %8016 = vmatpush.bf16.msra.mxu0 %v6586
  %8017 = vmatpush.bf16.msra.mxu0 %v6584
  %8018 = vmatpush.bf16.msra.mxu0 %v6582
  %8019 = vmatmul.bf16.gmra.mxu0 %v5313
  %v8020 = vpop.f32.mrf.mxu0
  %v8021 = vadd.f32 %v7932, %v8020
  %v8022 = vpop.f32.mrf.mxu0
  %v8023 = vadd.f32 %v7934, %v8022
  %8024 = vmatmul.bf16.gmra.mxu0 %v5316
  %v8025 = vpop.f32.mrf.mxu0
  %v8026 = vadd.f32 %v7937, %v8025
  %v8027 = vpop.f32.mrf.mxu0
  %v8028 = vadd.f32 %v7939, %v8027
  %8029 = vmatmul.bf16.gmra.mxu0 %v5319
  %v8030 = vpop.f32.mrf.mxu0
  %v8031 = vadd.f32 %v7942, %v8030
  %v8032 = vpop.f32.mrf.mxu0
  %v8033 = vadd.f32 %v7944, %v8032
  %8034 = vmatmul.bf16.gmra.mxu0 %v5322
  %v8035 = vpop.f32.mrf.mxu0
  %v8036 = vadd.f32 %v7947, %v8035
  %v8037 = vpop.f32.mrf.mxu0
  %v8038 = vadd.f32 %v7949, %v8037
  %8039 = vmatmul.bf16.gmra.mxu0 %v5325
  %v8040 = vpop.f32.mrf.mxu0
  %v8041 = vadd.f32 %v7952, %v8040
  %v8042 = vpop.f32.mrf.mxu0
  %v8043 = vadd.f32 %v7954, %v8042
  %8044 = vmatmul.bf16.gmra.mxu0 %v5328
  %v8045 = vpop.f32.mrf.mxu0
  %v8046 = vadd.f32 %v7957, %v8045
  %v8047 = vpop.f32.mrf.mxu0
  %v8048 = vadd.f32 %v7959, %v8047
  %8049 = vmatmul.bf16.gmra.mxu0 %v5331
  %v8050 = vpop.f32.mrf.mxu0
  %v8051 = vadd.f32 %v7962, %v8050
  %v8052 = vpop.f32.mrf.mxu0
  %v8053 = vadd.f32 %v7964, %v8052
  %8054 = vmatmul.bf16.gmra.mxu0 %v5334
  %v8055 = vpop.f32.mrf.mxu0
  %v8056 = vadd.f32 %v7967, %v8055
  %v8057 = vpop.f32.mrf.mxu0
  %v8058 = vadd.f32 %v7969, %v8057
  %8059 = vmatmul.bf16.gmra.mxu0 %v5337
  %v8060 = vpop.f32.mrf.mxu0
  %v8061 = vadd.f32 %v7972, %v8060
  %v8062 = vpop.f32.mrf.mxu0
  %v8063 = vadd.f32 %v7974, %v8062
  %8064 = vmatmul.bf16.gmra.mxu0 %v5340
  %v8065 = vpop.f32.mrf.mxu0
  %v8066 = vadd.f32 %v7977, %v8065
  %v8067 = vpop.f32.mrf.mxu0
  %v8068 = vadd.f32 %v7979, %v8067
  %8069 = vmatmul.bf16.gmra.mxu0 %v5343
  %v8070 = vpop.f32.mrf.mxu0
  %v8071 = vadd.f32 %v7982, %v8070
  %v8072 = vpop.f32.mrf.mxu0
  %v8073 = vadd.f32 %v7984, %v8072
  %8074 = vmatmul.bf16.gmra.mxu0 %v5346
  %v8075 = vpop.f32.mrf.mxu0
  %v8076 = vadd.f32 %v7987, %v8075
  %v8077 = vpop.f32.mrf.mxu0
  %v8078 = vadd.f32 %v7989, %v8077
  %8079 = vmatmul.bf16.gmra.mxu0 %v5349
  %v8080 = vpop.f32.mrf.mxu0
  %v8081 = vadd.f32 %v7992, %v8080
  %v8082 = vpop.f32.mrf.mxu0
  %v8083 = vadd.f32 %v7994, %v8082
  %8084 = vmatmul.bf16.gmra.mxu0 %v5352
  %v8085 = vpop.f32.mrf.mxu0
  %v8086 = vadd.f32 %v7997, %v8085
  %v8087 = vpop.f32.mrf.mxu0
  %v8088 = vadd.f32 %v7999, %v8087
  %8089 = vmatmul.bf16.gmra.mxu0 %v5355
  %v8090 = vpop.f32.mrf.mxu0
  %v8091 = vadd.f32 %v8002, %v8090
  %v8092 = vpop.f32.mrf.mxu0
  %v8093 = vadd.f32 %v8004, %v8092
  %8094 = vmatmul.bf16.gmra.mxu0 %v5358
  %v8095 = vpop.f32.mrf.mxu0
  %v8096 = vadd.f32 %v8007, %v8095
  %v8097 = vpop.f32.mrf.mxu0
  %v8098 = vadd.f32 %v8009, %v8097
  %8099 = vdwg.mxu0
  %8100 = vmatpush.bf16.msra.mxu0 %v6612
  %8101 = vmatpush.bf16.msra.mxu0 %v6610
  %8102 = vmatpush.bf16.msra.mxu0 %v6608
  %8103 = vmatpush.bf16.msra.mxu0 %v6606
  %8104 = vmatpush.bf16.msra.mxu0 %v6604
  %8105 = vmatpush.bf16.msra.mxu0 %v6602
  %8106 = vmatpush.bf16.msra.mxu0 %v6600
  %8107 = vmatpush.bf16.msra.mxu0 %v6598
  %8108 = vmatmul.bf16.gmra.mxu0 %v5314
  %v8109 = vpop.f32.mrf.mxu0
  %v8110 = vadd.f32 %v8021, %v8109
  %v8111 = vpop.f32.mrf.mxu0
  %v8112 = vadd.f32 %v8023, %v8111
  %8113 = vmatmul.bf16.gmra.mxu0 %v5317
  %v8114 = vpop.f32.mrf.mxu0
  %v8115 = vadd.f32 %v8026, %v8114
  %v8116 = vpop.f32.mrf.mxu0
  %v8117 = vadd.f32 %v8028, %v8116
  %8118 = vmatmul.bf16.gmra.mxu0 %v5320
  %v8119 = vpop.f32.mrf.mxu0
  %v8120 = vadd.f32 %v8031, %v8119
  %v8121 = vpop.f32.mrf.mxu0
  %v8122 = vadd.f32 %v8033, %v8121
  %8123 = vmatmul.bf16.gmra.mxu0 %v5323
  %v8124 = vpop.f32.mrf.mxu0
  %v8125 = vadd.f32 %v8036, %v8124
  %v8126 = vpop.f32.mrf.mxu0
  %v8127 = vadd.f32 %v8038, %v8126
  %8128 = vmatmul.bf16.gmra.mxu0 %v5326
  %v8129 = vpop.f32.mrf.mxu0
  %v8130 = vadd.f32 %v8041, %v8129
  %v8131 = vpop.f32.mrf.mxu0
  %v8132 = vadd.f32 %v8043, %v8131
  %8133 = vmatmul.bf16.gmra.mxu0 %v5329
  %v8134 = vpop.f32.mrf.mxu0
  %v8135 = vadd.f32 %v8046, %v8134
  %v8136 = vpop.f32.mrf.mxu0
  %v8137 = vadd.f32 %v8048, %v8136
  %8138 = vmatmul.bf16.gmra.mxu0 %v5332
  %v8139 = vpop.f32.mrf.mxu0
  %v8140 = vadd.f32 %v8051, %v8139
  %v8141 = vpop.f32.mrf.mxu0
  %v8142 = vadd.f32 %v8053, %v8141
  %8143 = vmatmul.bf16.gmra.mxu0 %v5335
  %v8144 = vpop.f32.mrf.mxu0
  %v8145 = vadd.f32 %v8056, %v8144
  %v8146 = vpop.f32.mrf.mxu0
  %v8147 = vadd.f32 %v8058, %v8146
  %8148 = vmatmul.bf16.gmra.mxu0 %v5338
  %v8149 = vpop.f32.mrf.mxu0
  %v8150 = vadd.f32 %v8061, %v8149
  %v8151 = vpop.f32.mrf.mxu0
  %v8152 = vadd.f32 %v8063, %v8151
  %8153 = vmatmul.bf16.gmra.mxu0 %v5341
  %v8154 = vpop.f32.mrf.mxu0
  %v8155 = vadd.f32 %v8066, %v8154
  %v8156 = vpop.f32.mrf.mxu0
  %v8157 = vadd.f32 %v8068, %v8156
  %8158 = vmatmul.bf16.gmra.mxu0 %v5344
  %v8159 = vpop.f32.mrf.mxu0
  %v8160 = vadd.f32 %v8071, %v8159
  %v8161 = vpop.f32.mrf.mxu0
  %v8162 = vadd.f32 %v8073, %v8161
  %8163 = vmatmul.bf16.gmra.mxu0 %v5347
  %v8164 = vpop.f32.mrf.mxu0
  %v8165 = vadd.f32 %v8076, %v8164
  %v8166 = vpop.f32.mrf.mxu0
  %v8167 = vadd.f32 %v8078, %v8166
  %8168 = vmatmul.bf16.gmra.mxu0 %v5350
  %v8169 = vpop.f32.mrf.mxu0
  %v8170 = vadd.f32 %v8081, %v8169
  %v8171 = vpop.f32.mrf.mxu0
  %v8172 = vadd.f32 %v8083, %v8171
  %8173 = vmatmul.bf16.gmra.mxu0 %v5353
  %v8174 = vpop.f32.mrf.mxu0
  %v8175 = vadd.f32 %v8086, %v8174
  %v8176 = vpop.f32.mrf.mxu0
  %v8177 = vadd.f32 %v8088, %v8176
  %8178 = vmatmul.bf16.gmra.mxu0 %v5356
  %v8179 = vpop.f32.mrf.mxu0
  %v8180 = vadd.f32 %v8091, %v8179
  %v8181 = vpop.f32.mrf.mxu0
  %v8182 = vadd.f32 %v8093, %v8181
  %8183 = vmatmul.bf16.gmra.mxu0 %v5359
  %v8184 = vpop.f32.mrf.mxu0
  %v8185 = vadd.f32 %v8096, %v8184
  %v8186 = vpop.f32.mrf.mxu0
  %v8187 = vadd.f32 %v8098, %v8186
  %8188 = vdwg.mxu0
  %8189 = vmatpush.bf16.msra.mxu0 %v6389
  %8190 = vmatpush.bf16.msra.mxu0 %v6387
  %8191 = vmatpush.bf16.msra.mxu0 %v6385
  %8192 = vmatpush.bf16.msra.mxu0 %v6383
  %8193 = vmatpush.bf16.msra.mxu0 %v6381
  %8194 = vmatpush.bf16.msra.mxu0 %v6379
  %8195 = vmatpush.bf16.msra.mxu0 %v6377
  %8196 = vmatpush.bf16.msra.mxu0 %v6375
  %8197 = vmatmul.bf16.gmra.mxu0 %v4509
  %v8198 = vpop.f32.mrf.mxu0
  %v8199 = vadd.f32 %v5651, %v8198
  %v8200 = vpop.f32.mrf.mxu0
  %v8201 = vadd.f32 %v5651, %v8200
  %8202 = vmatmul.bf16.gmra.mxu0 %v4512
  %v8203 = vpop.f32.mrf.mxu0
  %v8204 = vadd.f32 %v5651, %v8203
  %v8205 = vpop.f32.mrf.mxu0
  %v8206 = vadd.f32 %v5651, %v8205
  %8207 = vmatmul.bf16.gmra.mxu0 %v4515
  %v8208 = vpop.f32.mrf.mxu0
  %v8209 = vadd.f32 %v5651, %v8208
  %v8210 = vpop.f32.mrf.mxu0
  %v8211 = vadd.f32 %v5651, %v8210
  %8212 = vmatmul.bf16.gmra.mxu0 %v4518
  %v8213 = vpop.f32.mrf.mxu0
  %v8214 = vadd.f32 %v5651, %v8213
  %v8215 = vpop.f32.mrf.mxu0
  %v8216 = vadd.f32 %v5651, %v8215
  %8217 = vmatmul.bf16.gmra.mxu0 %v4521
  %v8218 = vpop.f32.mrf.mxu0
  %v8219 = vadd.f32 %v5651, %v8218
  %v8220 = vpop.f32.mrf.mxu0
  %v8221 = vadd.f32 %v5651, %v8220
  %8222 = vmatmul.bf16.gmra.mxu0 %v4524
  %v8223 = vpop.f32.mrf.mxu0
  %v8224 = vadd.f32 %v5651, %v8223
  %v8225 = vpop.f32.mrf.mxu0
  %v8226 = vadd.f32 %v5651, %v8225
  %8227 = vmatmul.bf16.gmra.mxu0 %v4527
  %v8228 = vpop.f32.mrf.mxu0
  %v8229 = vadd.f32 %v5651, %v8228
  %v8230 = vpop.f32.mrf.mxu0
  %v8231 = vadd.f32 %v5651, %v8230
  %8232 = vmatmul.bf16.gmra.mxu0 %v4530
  %v8233 = vpop.f32.mrf.mxu0
  %v8234 = vadd.f32 %v5651, %v8233
  %v8235 = vpop.f32.mrf.mxu0
  %v8236 = vadd.f32 %v5651, %v8235
  %8237 = vmatmul.bf16.gmra.mxu0 %v4533
  %v8238 = vpop.f32.mrf.mxu0
  %v8239 = vadd.f32 %v5651, %v8238
  %v8240 = vpop.f32.mrf.mxu0
  %v8241 = vadd.f32 %v5651, %v8240
  %8242 = vmatmul.bf16.gmra.mxu0 %v4536
  %v8243 = vpop.f32.mrf.mxu0
  %v8244 = vadd.f32 %v5651, %v8243
  %v8245 = vpop.f32.mrf.mxu0
  %v8246 = vadd.f32 %v5651, %v8245
  %8247 = vmatmul.bf16.gmra.mxu0 %v4539
  %v8248 = vpop.f32.mrf.mxu0
  %v8249 = vadd.f32 %v5651, %v8248
  %v8250 = vpop.f32.mrf.mxu0
  %v8251 = vadd.f32 %v5651, %v8250
  %8252 = vmatmul.bf16.gmra.mxu0 %v4542
  %v8253 = vpop.f32.mrf.mxu0
  %v8254 = vadd.f32 %v5651, %v8253
  %v8255 = vpop.f32.mrf.mxu0
  %v8256 = vadd.f32 %v5651, %v8255
  %8257 = vmatmul.bf16.gmra.mxu0 %v4545
  %v8258 = vpop.f32.mrf.mxu0
  %v8259 = vadd.f32 %v5651, %v8258
  %v8260 = vpop.f32.mrf.mxu0
  %v8261 = vadd.f32 %v5651, %v8260
  %8262 = vmatmul.bf16.gmra.mxu0 %v4548
  %v8263 = vpop.f32.mrf.mxu0
  %v8264 = vadd.f32 %v5651, %v8263
  %v8265 = vpop.f32.mrf.mxu0
  %v8266 = vadd.f32 %v5651, %v8265
  %8267 = vmatmul.bf16.gmra.mxu0 %v4551
  %v8268 = vpop.f32.mrf.mxu0
  %v8269 = vadd.f32 %v5651, %v8268
  %v8270 = vpop.f32.mrf.mxu0
  %v8271 = vadd.f32 %v5651, %v8270
  %8272 = vmatmul.bf16.gmra.mxu0 %v4554
  %v8273 = vpop.f32.mrf.mxu0
  %v8274 = vadd.f32 %v5651, %v8273
  %v8275 = vpop.f32.mrf.mxu0
  %v8276 = vadd.f32 %v5651, %v8275
  %8277 = vdwg.mxu0
  %8278 = vmatpush.bf16.msra.mxu0 %v6405
  %8279 = vmatpush.bf16.msra.mxu0 %v6403
  %8280 = vmatpush.bf16.msra.mxu0 %v6401
  %8281 = vmatpush.bf16.msra.mxu0 %v6399
  %8282 = vmatpush.bf16.msra.mxu0 %v6397
  %8283 = vmatpush.bf16.msra.mxu0 %v6395
  %8284 = vmatpush.bf16.msra.mxu0 %v6393
  %8285 = vmatpush.bf16.msra.mxu0 %v6391
  %8286 = vmatmul.bf16.gmra.mxu0 %v4510
  %v8287 = vpop.f32.mrf.mxu0
  %v8288 = vadd.f32 %v8199, %v8287
  %v8289 = vpop.f32.mrf.mxu0
  %v8290 = vadd.f32 %v8201, %v8289
  %8291 = vmatmul.bf16.gmra.mxu0 %v4513
  %v8292 = vpop.f32.mrf.mxu0
  %v8293 = vadd.f32 %v8204, %v8292
  %v8294 = vpop.f32.mrf.mxu0
  %v8295 = vadd.f32 %v8206, %v8294
  %8296 = vmatmul.bf16.gmra.mxu0 %v4516
  %v8297 = vpop.f32.mrf.mxu0
  %v8298 = vadd.f32 %v8209, %v8297
  %v8299 = vpop.f32.mrf.mxu0
  %v8300 = vadd.f32 %v8211, %v8299
  %8301 = vmatmul.bf16.gmra.mxu0 %v4519
  %v8302 = vpop.f32.mrf.mxu0
  %v8303 = vadd.f32 %v8214, %v8302
  %v8304 = vpop.f32.mrf.mxu0
  %v8305 = vadd.f32 %v8216, %v8304
  %8306 = vmatmul.bf16.gmra.mxu0 %v4522
  %v8307 = vpop.f32.mrf.mxu0
  %v8308 = vadd.f32 %v8219, %v8307
  %v8309 = vpop.f32.mrf.mxu0
  %v8310 = vadd.f32 %v8221, %v8309
  %8311 = vmatmul.bf16.gmra.mxu0 %v4525
  %v8312 = vpop.f32.mrf.mxu0
  %v8313 = vadd.f32 %v8224, %v8312
  %v8314 = vpop.f32.mrf.mxu0
  %v8315 = vadd.f32 %v8226, %v8314
  %8316 = vmatmul.bf16.gmra.mxu0 %v4528
  %v8317 = vpop.f32.mrf.mxu0
  %v8318 = vadd.f32 %v8229, %v8317
  %v8319 = vpop.f32.mrf.mxu0
  %v8320 = vadd.f32 %v8231, %v8319
  %8321 = vmatmul.bf16.gmra.mxu0 %v4531
  %v8322 = vpop.f32.mrf.mxu0
  %v8323 = vadd.f32 %v8234, %v8322
  %v8324 = vpop.f32.mrf.mxu0
  %v8325 = vadd.f32 %v8236, %v8324
  %8326 = vmatmul.bf16.gmra.mxu0 %v4534
  %v8327 = vpop.f32.mrf.mxu0
  %v8328 = vadd.f32 %v8239, %v8327
  %v8329 = vpop.f32.mrf.mxu0
  %v8330 = vadd.f32 %v8241, %v8329
  %8331 = vmatmul.bf16.gmra.mxu0 %v4537
  %v8332 = vpop.f32.mrf.mxu0
  %v8333 = vadd.f32 %v8244, %v8332
  %v8334 = vpop.f32.mrf.mxu0
  %v8335 = vadd.f32 %v8246, %v8334
  %8336 = vmatmul.bf16.gmra.mxu0 %v4540
  %v8337 = vpop.f32.mrf.mxu0
  %v8338 = vadd.f32 %v8249, %v8337
  %v8339 = vpop.f32.mrf.mxu0
  %v8340 = vadd.f32 %v8251, %v8339
  %8341 = vmatmul.bf16.gmra.mxu0 %v4543
  %v8342 = vpop.f32.mrf.mxu0
  %v8343 = vadd.f32 %v8254, %v8342
  %v8344 = vpop.f32.mrf.mxu0
  %v8345 = vadd.f32 %v8256, %v8344
  %8346 = vmatmul.bf16.gmra.mxu0 %v4546
  %v8347 = vpop.f32.mrf.mxu0
  %v8348 = vadd.f32 %v8259, %v8347
  %v8349 = vpop.f32.mrf.mxu0
  %v8350 = vadd.f32 %v8261, %v8349
  %8351 = vmatmul.bf16.gmra.mxu0 %v4549
  %v8352 = vpop.f32.mrf.mxu0
  %v8353 = vadd.f32 %v8264, %v8352
  %v8354 = vpop.f32.mrf.mxu0
  %v8355 = vadd.f32 %v8266, %v8354
  %8356 = vmatmul.bf16.gmra.mxu0 %v4552
  %v8357 = vpop.f32.mrf.mxu0
  %v8358 = vadd.f32 %v8269, %v8357
  %v8359 = vpop.f32.mrf.mxu0
  %v8360 = vadd.f32 %v8271, %v8359
  %8361 = vmatmul.bf16.gmra.mxu0 %v4555
  %v8362 = vpop.f32.mrf.mxu0
  %v8363 = vadd.f32 %v8274, %v8362
  %v8364 = vpop.f32.mrf.mxu0
  %v8365 = vadd.f32 %v8276, %v8364
  %8366 = vdwg.mxu0
  %8367 = vmatpush.bf16.msra.mxu0 %v6421
  %8368 = vmatpush.bf16.msra.mxu0 %v6419
  %8369 = vmatpush.bf16.msra.mxu0 %v6417
  %8370 = vmatpush.bf16.msra.mxu0 %v6415
  %8371 = vmatpush.bf16.msra.mxu0 %v6413
  %8372 = vmatpush.bf16.msra.mxu0 %v6411
  %8373 = vmatpush.bf16.msra.mxu0 %v6409
  %8374 = vmatpush.bf16.msra.mxu0 %v6407
  %8375 = vmatmul.bf16.gmra.mxu0 %v4511
  %v8376 = vpop.f32.mrf.mxu0
  %v8377 = vadd.f32 %v8288, %v8376
  %v8378 = vpop.f32.mrf.mxu0
  %v8379 = vadd.f32 %v8290, %v8378
  %8380 = vmatmul.bf16.gmra.mxu0 %v4514
  %v8381 = vpop.f32.mrf.mxu0
  %v8382 = vadd.f32 %v8293, %v8381
  %v8383 = vpop.f32.mrf.mxu0
  %v8384 = vadd.f32 %v8295, %v8383
  %8385 = vmatmul.bf16.gmra.mxu0 %v4517
  %v8386 = vpop.f32.mrf.mxu0
  %v8387 = vadd.f32 %v8298, %v8386
  %v8388 = vpop.f32.mrf.mxu0
  %v8389 = vadd.f32 %v8300, %v8388
  %8390 = vmatmul.bf16.gmra.mxu0 %v4520
  %v8391 = vpop.f32.mrf.mxu0
  %v8392 = vadd.f32 %v8303, %v8391
  %v8393 = vpop.f32.mrf.mxu0
  %v8394 = vadd.f32 %v8305, %v8393
  %8395 = vmatmul.bf16.gmra.mxu0 %v4523
  %v8396 = vpop.f32.mrf.mxu0
  %v8397 = vadd.f32 %v8308, %v8396
  %v8398 = vpop.f32.mrf.mxu0
  %v8399 = vadd.f32 %v8310, %v8398
  %8400 = vmatmul.bf16.gmra.mxu0 %v4526
  %v8401 = vpop.f32.mrf.mxu0
  %v8402 = vadd.f32 %v8313, %v8401
  %v8403 = vpop.f32.mrf.mxu0
  %v8404 = vadd.f32 %v8315, %v8403
  %8405 = vmatmul.bf16.gmra.mxu0 %v4529
  %v8406 = vpop.f32.mrf.mxu0
  %v8407 = vadd.f32 %v8318, %v8406
  %v8408 = vpop.f32.mrf.mxu0
  %v8409 = vadd.f32 %v8320, %v8408
  %8410 = vmatmul.bf16.gmra.mxu0 %v4532
  %v8411 = vpop.f32.mrf.mxu0
  %v8412 = vadd.f32 %v8323, %v8411
  %v8413 = vpop.f32.mrf.mxu0
  %v8414 = vadd.f32 %v8325, %v8413
  %8415 = vmatmul.bf16.gmra.mxu0 %v4535
  %v8416 = vpop.f32.mrf.mxu0
  %v8417 = vadd.f32 %v8328, %v8416
  %v8418 = vpop.f32.mrf.mxu0
  %v8419 = vadd.f32 %v8330, %v8418
  %8420 = vmatmul.bf16.gmra.mxu0 %v4538
  %v8421 = vpop.f32.mrf.mxu0
  %v8422 = vadd.f32 %v8333, %v8421
  %v8423 = vpop.f32.mrf.mxu0
  %v8424 = vadd.f32 %v8335, %v8423
  %8425 = vmatmul.bf16.gmra.mxu0 %v4541
  %v8426 = vpop.f32.mrf.mxu0
  %v8427 = vadd.f32 %v8338, %v8426
  %v8428 = vpop.f32.mrf.mxu0
  %v8429 = vadd.f32 %v8340, %v8428
  %8430 = vmatmul.bf16.gmra.mxu0 %v4544
  %v8431 = vpop.f32.mrf.mxu0
  %v8432 = vadd.f32 %v8343, %v8431
  %v8433 = vpop.f32.mrf.mxu0
  %v8434 = vadd.f32 %v8345, %v8433
  %8435 = vmatmul.bf16.gmra.mxu0 %v4547
  %v8436 = vpop.f32.mrf.mxu0
  %v8437 = vadd.f32 %v8348, %v8436
  %v8438 = vpop.f32.mrf.mxu0
  %v8439 = vadd.f32 %v8350, %v8438
  %8440 = vmatmul.bf16.gmra.mxu0 %v4550
  %v8441 = vpop.f32.mrf.mxu0
  %v8442 = vadd.f32 %v8353, %v8441
  %v8443 = vpop.f32.mrf.mxu0
  %v8444 = vadd.f32 %v8355, %v8443
  %8445 = vmatmul.bf16.gmra.mxu0 %v4553
  %v8446 = vpop.f32.mrf.mxu0
  %v8447 = vadd.f32 %v8358, %v8446
  %v8448 = vpop.f32.mrf.mxu0
  %v8449 = vadd.f32 %v8360, %v8448
  %8450 = vmatmul.bf16.gmra.mxu0 %v4556
  %v8451 = vpop.f32.mrf.mxu0
  %v8452 = vadd.f32 %v8363, %v8451
  %v8453 = vpop.f32.mrf.mxu0
  %v8454 = vadd.f32 %v8365, %v8453
  %8455 = vdwg.mxu0
  %8456 = vmatpush.bf16.msra.mxu0 %v6437
  %8457 = vmatpush.bf16.msra.mxu0 %v6435
  %8458 = vmatpush.bf16.msra.mxu0 %v6433
  %8459 = vmatpush.bf16.msra.mxu0 %v6431
  %8460 = vmatpush.bf16.msra.mxu0 %v6429
  %8461 = vmatpush.bf16.msra.mxu0 %v6427
  %8462 = vmatpush.bf16.msra.mxu0 %v6425
  %8463 = vmatpush.bf16.msra.mxu0 %v6423
  %8464 = vmatmul.bf16.gmra.mxu0 %v4736
  %v8465 = vpop.f32.mrf.mxu0
  %v8466 = vadd.f32 %v8377, %v8465
  %v8467 = vpop.f32.mrf.mxu0
  %v8468 = vadd.f32 %v8379, %v8467
  %8469 = vmatmul.bf16.gmra.mxu0 %v4745
  %v8470 = vpop.f32.mrf.mxu0
  %v8471 = vadd.f32 %v8382, %v8470
  %v8472 = vpop.f32.mrf.mxu0
  %v8473 = vadd.f32 %v8384, %v8472
  %8474 = vmatmul.bf16.gmra.mxu0 %v4754
  %v8475 = vpop.f32.mrf.mxu0
  %v8476 = vadd.f32 %v8387, %v8475
  %v8477 = vpop.f32.mrf.mxu0
  %v8478 = vadd.f32 %v8389, %v8477
  %8479 = vmatmul.bf16.gmra.mxu0 %v4763
  %v8480 = vpop.f32.mrf.mxu0
  %v8481 = vadd.f32 %v8392, %v8480
  %v8482 = vpop.f32.mrf.mxu0
  %v8483 = vadd.f32 %v8394, %v8482
  %8484 = vmatmul.bf16.gmra.mxu0 %v4772
  %v8485 = vpop.f32.mrf.mxu0
  %v8486 = vadd.f32 %v8397, %v8485
  %v8487 = vpop.f32.mrf.mxu0
  %v8488 = vadd.f32 %v8399, %v8487
  %8489 = vmatmul.bf16.gmra.mxu0 %v4781
  %v8490 = vpop.f32.mrf.mxu0
  %v8491 = vadd.f32 %v8402, %v8490
  %v8492 = vpop.f32.mrf.mxu0
  %v8493 = vadd.f32 %v8404, %v8492
  %8494 = vmatmul.bf16.gmra.mxu0 %v4790
  %v8495 = vpop.f32.mrf.mxu0
  %v8496 = vadd.f32 %v8407, %v8495
  %v8497 = vpop.f32.mrf.mxu0
  %v8498 = vadd.f32 %v8409, %v8497
  %8499 = vmatmul.bf16.gmra.mxu0 %v4799
  %v8500 = vpop.f32.mrf.mxu0
  %v8501 = vadd.f32 %v8412, %v8500
  %v8502 = vpop.f32.mrf.mxu0
  %v8503 = vadd.f32 %v8414, %v8502
  %8504 = vmatmul.bf16.gmra.mxu0 %v4808
  %v8505 = vpop.f32.mrf.mxu0
  %v8506 = vadd.f32 %v8417, %v8505
  %v8507 = vpop.f32.mrf.mxu0
  %v8508 = vadd.f32 %v8419, %v8507
  %8509 = vmatmul.bf16.gmra.mxu0 %v4817
  %v8510 = vpop.f32.mrf.mxu0
  %v8511 = vadd.f32 %v8422, %v8510
  %v8512 = vpop.f32.mrf.mxu0
  %v8513 = vadd.f32 %v8424, %v8512
  %8514 = vmatmul.bf16.gmra.mxu0 %v4826
  %v8515 = vpop.f32.mrf.mxu0
  %v8516 = vadd.f32 %v8427, %v8515
  %v8517 = vpop.f32.mrf.mxu0
  %v8518 = vadd.f32 %v8429, %v8517
  %8519 = vmatmul.bf16.gmra.mxu0 %v4835
  %v8520 = vpop.f32.mrf.mxu0
  %v8521 = vadd.f32 %v8432, %v8520
  %v8522 = vpop.f32.mrf.mxu0
  %v8523 = vadd.f32 %v8434, %v8522
  %8524 = vmatmul.bf16.gmra.mxu0 %v4844
  %v8525 = vpop.f32.mrf.mxu0
  %v8526 = vadd.f32 %v8437, %v8525
  %v8527 = vpop.f32.mrf.mxu0
  %v8528 = vadd.f32 %v8439, %v8527
  %8529 = vmatmul.bf16.gmra.mxu0 %v4853
  %v8530 = vpop.f32.mrf.mxu0
  %v8531 = vadd.f32 %v8442, %v8530
  %v8532 = vpop.f32.mrf.mxu0
  %v8533 = vadd.f32 %v8444, %v8532
  %8534 = vmatmul.bf16.gmra.mxu0 %v4862
  %v8535 = vpop.f32.mrf.mxu0
  %v8536 = vadd.f32 %v8447, %v8535
  %v8537 = vpop.f32.mrf.mxu0
  %v8538 = vadd.f32 %v8449, %v8537
  %8539 = vmatmul.bf16.gmra.mxu0 %v4871
  %v8540 = vpop.f32.mrf.mxu0
  %v8541 = vadd.f32 %v8452, %v8540
  %v8542 = vpop.f32.mrf.mxu0
  %v8543 = vadd.f32 %v8454, %v8542
  %8544 = vdwg.mxu0
  %8545 = vmatpush.bf16.msra.mxu0 %v6453
  %8546 = vmatpush.bf16.msra.mxu0 %v6451
  %8547 = vmatpush.bf16.msra.mxu0 %v6449
  %8548 = vmatpush.bf16.msra.mxu0 %v6447
  %8549 = vmatpush.bf16.msra.mxu0 %v6445
  %8550 = vmatpush.bf16.msra.mxu0 %v6443
  %8551 = vmatpush.bf16.msra.mxu0 %v6441
  %8552 = vmatpush.bf16.msra.mxu0 %v6439
  %8553 = vmatmul.bf16.gmra.mxu0 %v4739
  %v8554 = vpop.f32.mrf.mxu0
  %v8555 = vadd.f32 %v8466, %v8554
  %v8556 = vpop.f32.mrf.mxu0
  %v8557 = vadd.f32 %v8468, %v8556
  %8558 = vmatmul.bf16.gmra.mxu0 %v4748
  %v8559 = vpop.f32.mrf.mxu0
  %v8560 = vadd.f32 %v8471, %v8559
  %v8561 = vpop.f32.mrf.mxu0
  %v8562 = vadd.f32 %v8473, %v8561
  %8563 = vmatmul.bf16.gmra.mxu0 %v4757
  %v8564 = vpop.f32.mrf.mxu0
  %v8565 = vadd.f32 %v8476, %v8564
  %v8566 = vpop.f32.mrf.mxu0
  %v8567 = vadd.f32 %v8478, %v8566
  %8568 = vmatmul.bf16.gmra.mxu0 %v4766
  %v8569 = vpop.f32.mrf.mxu0
  %v8570 = vadd.f32 %v8481, %v8569
  %v8571 = vpop.f32.mrf.mxu0
  %v8572 = vadd.f32 %v8483, %v8571
  %8573 = vmatmul.bf16.gmra.mxu0 %v4775
  %v8574 = vpop.f32.mrf.mxu0
  %v8575 = vadd.f32 %v8486, %v8574
  %v8576 = vpop.f32.mrf.mxu0
  %v8577 = vadd.f32 %v8488, %v8576
  %8578 = vmatmul.bf16.gmra.mxu0 %v4784
  %v8579 = vpop.f32.mrf.mxu0
  %v8580 = vadd.f32 %v8491, %v8579
  %v8581 = vpop.f32.mrf.mxu0
  %v8582 = vadd.f32 %v8493, %v8581
  %8583 = vmatmul.bf16.gmra.mxu0 %v4793
  %v8584 = vpop.f32.mrf.mxu0
  %v8585 = vadd.f32 %v8496, %v8584
  %v8586 = vpop.f32.mrf.mxu0
  %v8587 = vadd.f32 %v8498, %v8586
  %8588 = vmatmul.bf16.gmra.mxu0 %v4802
  %v8589 = vpop.f32.mrf.mxu0
  %v8590 = vadd.f32 %v8501, %v8589
  %v8591 = vpop.f32.mrf.mxu0
  %v8592 = vadd.f32 %v8503, %v8591
  %8593 = vmatmul.bf16.gmra.mxu0 %v4811
  %v8594 = vpop.f32.mrf.mxu0
  %v8595 = vadd.f32 %v8506, %v8594
  %v8596 = vpop.f32.mrf.mxu0
  %v8597 = vadd.f32 %v8508, %v8596
  %8598 = vmatmul.bf16.gmra.mxu0 %v4820
  %v8599 = vpop.f32.mrf.mxu0
  %v8600 = vadd.f32 %v8511, %v8599
  %v8601 = vpop.f32.mrf.mxu0
  %v8602 = vadd.f32 %v8513, %v8601
  %8603 = vmatmul.bf16.gmra.mxu0 %v4829
  %v8604 = vpop.f32.mrf.mxu0
  %v8605 = vadd.f32 %v8516, %v8604
  %v8606 = vpop.f32.mrf.mxu0
  %v8607 = vadd.f32 %v8518, %v8606
  %8608 = vmatmul.bf16.gmra.mxu0 %v4838
  %v8609 = vpop.f32.mrf.mxu0
  %v8610 = vadd.f32 %v8521, %v8609
  %v8611 = vpop.f32.mrf.mxu0
  %v8612 = vadd.f32 %v8523, %v8611
  %8613 = vmatmul.bf16.gmra.mxu0 %v4847
  %v8614 = vpop.f32.mrf.mxu0
  %v8615 = vadd.f32 %v8526, %v8614
  %v8616 = vpop.f32.mrf.mxu0
  %v8617 = vadd.f32 %v8528, %v8616
  %8618 = vmatmul.bf16.gmra.mxu0 %v4856
  %v8619 = vpop.f32.mrf.mxu0
  %v8620 = vadd.f32 %v8531, %v8619
  %v8621 = vpop.f32.mrf.mxu0
  %v8622 = vadd.f32 %v8533, %v8621
  %8623 = vmatmul.bf16.gmra.mxu0 %v4865
  %v8624 = vpop.f32.mrf.mxu0
  %v8625 = vadd.f32 %v8536, %v8624
  %v8626 = vpop.f32.mrf.mxu0
  %v8627 = vadd.f32 %v8538, %v8626
  %8628 = vmatmul.bf16.gmra.mxu0 %v4874
  %v8629 = vpop.f32.mrf.mxu0
  %v8630 = vadd.f32 %v8541, %v8629
  %v8631 = vpop.f32.mrf.mxu0
  %v8632 = vadd.f32 %v8543, %v8631
  %8633 = vdwg.mxu0
  %8634 = vmatpush.bf16.msra.mxu0 %v6469
  %8635 = vmatpush.bf16.msra.mxu0 %v6467
  %8636 = vmatpush.bf16.msra.mxu0 %v6465
  %8637 = vmatpush.bf16.msra.mxu0 %v6463
  %8638 = vmatpush.bf16.msra.mxu0 %v6461
  %8639 = vmatpush.bf16.msra.mxu0 %v6459
  %8640 = vmatpush.bf16.msra.mxu0 %v6457
  %8641 = vmatpush.bf16.msra.mxu0 %v6455
  %8642 = vmatmul.bf16.gmra.mxu0 %v4742
  %v8643 = vpop.f32.mrf.mxu0
  %v8644 = vadd.f32 %v8555, %v8643
  %v8645 = vpop.f32.mrf.mxu0
  %v8646 = vadd.f32 %v8557, %v8645
  %8647 = vmatmul.bf16.gmra.mxu0 %v4751
  %v8648 = vpop.f32.mrf.mxu0
  %v8649 = vadd.f32 %v8560, %v8648
  %v8650 = vpop.f32.mrf.mxu0
  %v8651 = vadd.f32 %v8562, %v8650
  %8652 = vmatmul.bf16.gmra.mxu0 %v4760
  %v8653 = vpop.f32.mrf.mxu0
  %v8654 = vadd.f32 %v8565, %v8653
  %v8655 = vpop.f32.mrf.mxu0
  %v8656 = vadd.f32 %v8567, %v8655
  %8657 = vmatmul.bf16.gmra.mxu0 %v4769
  %v8658 = vpop.f32.mrf.mxu0
  %v8659 = vadd.f32 %v8570, %v8658
  %v8660 = vpop.f32.mrf.mxu0
  %v8661 = vadd.f32 %v8572, %v8660
  %8662 = vmatmul.bf16.gmra.mxu0 %v4778
  %v8663 = vpop.f32.mrf.mxu0
  %v8664 = vadd.f32 %v8575, %v8663
  %v8665 = vpop.f32.mrf.mxu0
  %v8666 = vadd.f32 %v8577, %v8665
  %8667 = vmatmul.bf16.gmra.mxu0 %v4787
  %v8668 = vpop.f32.mrf.mxu0
  %v8669 = vadd.f32 %v8580, %v8668
  %v8670 = vpop.f32.mrf.mxu0
  %v8671 = vadd.f32 %v8582, %v8670
  %8672 = vmatmul.bf16.gmra.mxu0 %v4796
  %v8673 = vpop.f32.mrf.mxu0
  %v8674 = vadd.f32 %v8585, %v8673
  %v8675 = vpop.f32.mrf.mxu0
  %v8676 = vadd.f32 %v8587, %v8675
  %8677 = vmatmul.bf16.gmra.mxu0 %v4805
  %v8678 = vpop.f32.mrf.mxu0
  %v8679 = vadd.f32 %v8590, %v8678
  %v8680 = vpop.f32.mrf.mxu0
  %v8681 = vadd.f32 %v8592, %v8680
  %8682 = vmatmul.bf16.gmra.mxu0 %v4814
  %v8683 = vpop.f32.mrf.mxu0
  %v8684 = vadd.f32 %v8595, %v8683
  %v8685 = vpop.f32.mrf.mxu0
  %v8686 = vadd.f32 %v8597, %v8685
  %8687 = vmatmul.bf16.gmra.mxu0 %v4823
  %v8688 = vpop.f32.mrf.mxu0
  %v8689 = vadd.f32 %v8600, %v8688
  %v8690 = vpop.f32.mrf.mxu0
  %v8691 = vadd.f32 %v8602, %v8690
  %8692 = vmatmul.bf16.gmra.mxu0 %v4832
  %v8693 = vpop.f32.mrf.mxu0
  %v8694 = vadd.f32 %v8605, %v8693
  %v8695 = vpop.f32.mrf.mxu0
  %v8696 = vadd.f32 %v8607, %v8695
  %8697 = vmatmul.bf16.gmra.mxu0 %v4841
  %v8698 = vpop.f32.mrf.mxu0
  %v8699 = vadd.f32 %v8610, %v8698
  %v8700 = vpop.f32.mrf.mxu0
  %v8701 = vadd.f32 %v8612, %v8700
  %8702 = vmatmul.bf16.gmra.mxu0 %v4850
  %v8703 = vpop.f32.mrf.mxu0
  %v8704 = vadd.f32 %v8615, %v8703
  %v8705 = vpop.f32.mrf.mxu0
  %v8706 = vadd.f32 %v8617, %v8705
  %8707 = vmatmul.bf16.gmra.mxu0 %v4859
  %v8708 = vpop.f32.mrf.mxu0
  %v8709 = vadd.f32 %v8620, %v8708
  %v8710 = vpop.f32.mrf.mxu0
  %v8711 = vadd.f32 %v8622, %v8710
  %8712 = vmatmul.bf16.gmra.mxu0 %v4868
  %v8713 = vpop.f32.mrf.mxu0
  %v8714 = vadd.f32 %v8625, %v8713
  %v8715 = vpop.f32.mrf.mxu0
  %v8716 = vadd.f32 %v8627, %v8715
  %8717 = vmatmul.bf16.gmra.mxu0 %v4877
  %v8718 = vpop.f32.mrf.mxu0
  %v8719 = vadd.f32 %v8630, %v8718
  %v8720 = vpop.f32.mrf.mxu0
  %v8721 = vadd.f32 %v8632, %v8720
  %8722 = vdwg.mxu0
  %8723 = vmatpush.bf16.msra.mxu0 %v6485
  %8724 = vmatpush.bf16.msra.mxu0 %v6483
  %8725 = vmatpush.bf16.msra.mxu0 %v6481
  %8726 = vmatpush.bf16.msra.mxu0 %v6479
  %8727 = vmatpush.bf16.msra.mxu0 %v6477
  %8728 = vmatpush.bf16.msra.mxu0 %v6475
  %8729 = vmatpush.bf16.msra.mxu0 %v6473
  %8730 = vmatpush.bf16.msra.mxu0 %v6471
  %8731 = vmatmul.bf16.gmra.mxu0 %v4929
  %v8732 = vpop.f32.mrf.mxu0
  %v8733 = vadd.f32 %v8644, %v8732
  %v8734 = vpop.f32.mrf.mxu0
  %v8735 = vadd.f32 %v8646, %v8734
  %8736 = vmatmul.bf16.gmra.mxu0 %v4938
  %v8737 = vpop.f32.mrf.mxu0
  %v8738 = vadd.f32 %v8649, %v8737
  %v8739 = vpop.f32.mrf.mxu0
  %v8740 = vadd.f32 %v8651, %v8739
  %8741 = vmatmul.bf16.gmra.mxu0 %v4947
  %v8742 = vpop.f32.mrf.mxu0
  %v8743 = vadd.f32 %v8654, %v8742
  %v8744 = vpop.f32.mrf.mxu0
  %v8745 = vadd.f32 %v8656, %v8744
  %8746 = vmatmul.bf16.gmra.mxu0 %v4956
  %v8747 = vpop.f32.mrf.mxu0
  %v8748 = vadd.f32 %v8659, %v8747
  %v8749 = vpop.f32.mrf.mxu0
  %v8750 = vadd.f32 %v8661, %v8749
  %8751 = vmatmul.bf16.gmra.mxu0 %v4965
  %v8752 = vpop.f32.mrf.mxu0
  %v8753 = vadd.f32 %v8664, %v8752
  %v8754 = vpop.f32.mrf.mxu0
  %v8755 = vadd.f32 %v8666, %v8754
  %8756 = vmatmul.bf16.gmra.mxu0 %v4974
  %v8757 = vpop.f32.mrf.mxu0
  %v8758 = vadd.f32 %v8669, %v8757
  %v8759 = vpop.f32.mrf.mxu0
  %v8760 = vadd.f32 %v8671, %v8759
  %8761 = vmatmul.bf16.gmra.mxu0 %v4983
  %v8762 = vpop.f32.mrf.mxu0
  %v8763 = vadd.f32 %v8674, %v8762
  %v8764 = vpop.f32.mrf.mxu0
  %v8765 = vadd.f32 %v8676, %v8764
  %8766 = vmatmul.bf16.gmra.mxu0 %v4992
  %v8767 = vpop.f32.mrf.mxu0
  %v8768 = vadd.f32 %v8679, %v8767
  %v8769 = vpop.f32.mrf.mxu0
  %v8770 = vadd.f32 %v8681, %v8769
  %8771 = vmatmul.bf16.gmra.mxu0 %v5001
  %v8772 = vpop.f32.mrf.mxu0
  %v8773 = vadd.f32 %v8684, %v8772
  %v8774 = vpop.f32.mrf.mxu0
  %v8775 = vadd.f32 %v8686, %v8774
  %8776 = vmatmul.bf16.gmra.mxu0 %v5010
  %v8777 = vpop.f32.mrf.mxu0
  %v8778 = vadd.f32 %v8689, %v8777
  %v8779 = vpop.f32.mrf.mxu0
  %v8780 = vadd.f32 %v8691, %v8779
  %8781 = vmatmul.bf16.gmra.mxu0 %v5019
  %v8782 = vpop.f32.mrf.mxu0
  %v8783 = vadd.f32 %v8694, %v8782
  %v8784 = vpop.f32.mrf.mxu0
  %v8785 = vadd.f32 %v8696, %v8784
  %8786 = vmatmul.bf16.gmra.mxu0 %v5028
  %v8787 = vpop.f32.mrf.mxu0
  %v8788 = vadd.f32 %v8699, %v8787
  %v8789 = vpop.f32.mrf.mxu0
  %v8790 = vadd.f32 %v8701, %v8789
  %8791 = vmatmul.bf16.gmra.mxu0 %v5037
  %v8792 = vpop.f32.mrf.mxu0
  %v8793 = vadd.f32 %v8704, %v8792
  %v8794 = vpop.f32.mrf.mxu0
  %v8795 = vadd.f32 %v8706, %v8794
  %8796 = vmatmul.bf16.gmra.mxu0 %v5046
  %v8797 = vpop.f32.mrf.mxu0
  %v8798 = vadd.f32 %v8709, %v8797
  %v8799 = vpop.f32.mrf.mxu0
  %v8800 = vadd.f32 %v8711, %v8799
  %8801 = vmatmul.bf16.gmra.mxu0 %v5055
  %v8802 = vpop.f32.mrf.mxu0
  %v8803 = vadd.f32 %v8714, %v8802
  %v8804 = vpop.f32.mrf.mxu0
  %v8805 = vadd.f32 %v8716, %v8804
  %8806 = vmatmul.bf16.gmra.mxu0 %v5064
  %v8807 = vpop.f32.mrf.mxu0
  %v8808 = vadd.f32 %v8719, %v8807
  %v8809 = vpop.f32.mrf.mxu0
  %v8810 = vadd.f32 %v8721, %v8809
  %8811 = vdwg.mxu0
  %8812 = vmatpush.bf16.msra.mxu0 %v6501
  %8813 = vmatpush.bf16.msra.mxu0 %v6499
  %8814 = vmatpush.bf16.msra.mxu0 %v6497
  %8815 = vmatpush.bf16.msra.mxu0 %v6495
  %8816 = vmatpush.bf16.msra.mxu0 %v6493
  %8817 = vmatpush.bf16.msra.mxu0 %v6491
  %8818 = vmatpush.bf16.msra.mxu0 %v6489
  %8819 = vmatpush.bf16.msra.mxu0 %v6487
  %8820 = vmatmul.bf16.gmra.mxu0 %v4932
  %v8821 = vpop.f32.mrf.mxu0
  %v8822 = vadd.f32 %v8733, %v8821
  %v8823 = vpop.f32.mrf.mxu0
  %v8824 = vadd.f32 %v8735, %v8823
  %8825 = vmatmul.bf16.gmra.mxu0 %v4941
  %v8826 = vpop.f32.mrf.mxu0
  %v8827 = vadd.f32 %v8738, %v8826
  %v8828 = vpop.f32.mrf.mxu0
  %v8829 = vadd.f32 %v8740, %v8828
  %8830 = vmatmul.bf16.gmra.mxu0 %v4950
  %v8831 = vpop.f32.mrf.mxu0
  %v8832 = vadd.f32 %v8743, %v8831
  %v8833 = vpop.f32.mrf.mxu0
  %v8834 = vadd.f32 %v8745, %v8833
  %8835 = vmatmul.bf16.gmra.mxu0 %v4959
  %v8836 = vpop.f32.mrf.mxu0
  %v8837 = vadd.f32 %v8748, %v8836
  %v8838 = vpop.f32.mrf.mxu0
  %v8839 = vadd.f32 %v8750, %v8838
  %8840 = vmatmul.bf16.gmra.mxu0 %v4968
  %v8841 = vpop.f32.mrf.mxu0
  %v8842 = vadd.f32 %v8753, %v8841
  %v8843 = vpop.f32.mrf.mxu0
  %v8844 = vadd.f32 %v8755, %v8843
  %8845 = vmatmul.bf16.gmra.mxu0 %v4977
  %v8846 = vpop.f32.mrf.mxu0
  %v8847 = vadd.f32 %v8758, %v8846
  %v8848 = vpop.f32.mrf.mxu0
  %v8849 = vadd.f32 %v8760, %v8848
  %8850 = vmatmul.bf16.gmra.mxu0 %v4986
  %v8851 = vpop.f32.mrf.mxu0
  %v8852 = vadd.f32 %v8763, %v8851
  %v8853 = vpop.f32.mrf.mxu0
  %v8854 = vadd.f32 %v8765, %v8853
  %8855 = vmatmul.bf16.gmra.mxu0 %v4995
  %v8856 = vpop.f32.mrf.mxu0
  %v8857 = vadd.f32 %v8768, %v8856
  %v8858 = vpop.f32.mrf.mxu0
  %v8859 = vadd.f32 %v8770, %v8858
  %8860 = vmatmul.bf16.gmra.mxu0 %v5004
  %v8861 = vpop.f32.mrf.mxu0
  %v8862 = vadd.f32 %v8773, %v8861
  %v8863 = vpop.f32.mrf.mxu0
  %v8864 = vadd.f32 %v8775, %v8863
  %8865 = vmatmul.bf16.gmra.mxu0 %v5013
  %v8866 = vpop.f32.mrf.mxu0
  %v8867 = vadd.f32 %v8778, %v8866
  %v8868 = vpop.f32.mrf.mxu0
  %v8869 = vadd.f32 %v8780, %v8868
  %8870 = vmatmul.bf16.gmra.mxu0 %v5022
  %v8871 = vpop.f32.mrf.mxu0
  %v8872 = vadd.f32 %v8783, %v8871
  %v8873 = vpop.f32.mrf.mxu0
  %v8874 = vadd.f32 %v8785, %v8873
  %8875 = vmatmul.bf16.gmra.mxu0 %v5031
  %v8876 = vpop.f32.mrf.mxu0
  %v8877 = vadd.f32 %v8788, %v8876
  %v8878 = vpop.f32.mrf.mxu0
  %v8879 = vadd.f32 %v8790, %v8878
  %8880 = vmatmul.bf16.gmra.mxu0 %v5040
  %v8881 = vpop.f32.mrf.mxu0
  %v8882 = vadd.f32 %v8793, %v8881
  %v8883 = vpop.f32.mrf.mxu0
  %v8884 = vadd.f32 %v8795, %v8883
  %8885 = vmatmul.bf16.gmra.mxu0 %v5049
  %v8886 = vpop.f32.mrf.mxu0
  %v8887 = vadd.f32 %v8798, %v8886
  %v8888 = vpop.f32.mrf.mxu0
  %v8889 = vadd.f32 %v8800, %v8888
  %8890 = vmatmul.bf16.gmra.mxu0 %v5058
  %v8891 = vpop.f32.mrf.mxu0
  %v8892 = vadd.f32 %v8803, %v8891
  %v8893 = vpop.f32.mrf.mxu0
  %v8894 = vadd.f32 %v8805, %v8893
  %8895 = vmatmul.bf16.gmra.mxu0 %v5067
  %v8896 = vpop.f32.mrf.mxu0
  %v8897 = vadd.f32 %v8808, %v8896
  %v8898 = vpop.f32.mrf.mxu0
  %v8899 = vadd.f32 %v8810, %v8898
  %8900 = vdwg.mxu0
  %8901 = vmatpush.bf16.msra.mxu0 %v6517
  %8902 = vmatpush.bf16.msra.mxu0 %v6515
  %8903 = vmatpush.bf16.msra.mxu0 %v6513
  %8904 = vmatpush.bf16.msra.mxu0 %v6511
  %8905 = vmatpush.bf16.msra.mxu0 %v6509
  %8906 = vmatpush.bf16.msra.mxu0 %v6507
  %8907 = vmatpush.bf16.msra.mxu0 %v6505
  %8908 = vmatpush.bf16.msra.mxu0 %v6503
  %8909 = vmatmul.bf16.gmra.mxu0 %v4935
  %v8910 = vpop.f32.mrf.mxu0
  %v8911 = vadd.f32 %v8822, %v8910
  %v8912 = vpop.f32.mrf.mxu0
  %v8913 = vadd.f32 %v8824, %v8912
  %8914 = vmatmul.bf16.gmra.mxu0 %v4944
  %v8915 = vpop.f32.mrf.mxu0
  %v8916 = vadd.f32 %v8827, %v8915
  %v8917 = vpop.f32.mrf.mxu0
  %v8918 = vadd.f32 %v8829, %v8917
  %8919 = vmatmul.bf16.gmra.mxu0 %v4953
  %v8920 = vpop.f32.mrf.mxu0
  %v8921 = vadd.f32 %v8832, %v8920
  %v8922 = vpop.f32.mrf.mxu0
  %v8923 = vadd.f32 %v8834, %v8922
  %8924 = vmatmul.bf16.gmra.mxu0 %v4962
  %v8925 = vpop.f32.mrf.mxu0
  %v8926 = vadd.f32 %v8837, %v8925
  %v8927 = vpop.f32.mrf.mxu0
  %v8928 = vadd.f32 %v8839, %v8927
  %8929 = vmatmul.bf16.gmra.mxu0 %v4971
  %v8930 = vpop.f32.mrf.mxu0
  %v8931 = vadd.f32 %v8842, %v8930
  %v8932 = vpop.f32.mrf.mxu0
  %v8933 = vadd.f32 %v8844, %v8932
  %8934 = vmatmul.bf16.gmra.mxu0 %v4980
  %v8935 = vpop.f32.mrf.mxu0
  %v8936 = vadd.f32 %v8847, %v8935
  %v8937 = vpop.f32.mrf.mxu0
  %v8938 = vadd.f32 %v8849, %v8937
  %8939 = vmatmul.bf16.gmra.mxu0 %v4989
  %v8940 = vpop.f32.mrf.mxu0
  %v8941 = vadd.f32 %v8852, %v8940
  %v8942 = vpop.f32.mrf.mxu0
  %v8943 = vadd.f32 %v8854, %v8942
  %8944 = vmatmul.bf16.gmra.mxu0 %v4998
  %v8945 = vpop.f32.mrf.mxu0
  %v8946 = vadd.f32 %v8857, %v8945
  %v8947 = vpop.f32.mrf.mxu0
  %v8948 = vadd.f32 %v8859, %v8947
  %8949 = vmatmul.bf16.gmra.mxu0 %v5007
  %v8950 = vpop.f32.mrf.mxu0
  %v8951 = vadd.f32 %v8862, %v8950
  %v8952 = vpop.f32.mrf.mxu0
  %v8953 = vadd.f32 %v8864, %v8952
  %8954 = vmatmul.bf16.gmra.mxu0 %v5016
  %v8955 = vpop.f32.mrf.mxu0
  %v8956 = vadd.f32 %v8867, %v8955
  %v8957 = vpop.f32.mrf.mxu0
  %v8958 = vadd.f32 %v8869, %v8957
  %8959 = vmatmul.bf16.gmra.mxu0 %v5025
  %v8960 = vpop.f32.mrf.mxu0
  %v8961 = vadd.f32 %v8872, %v8960
  %v8962 = vpop.f32.mrf.mxu0
  %v8963 = vadd.f32 %v8874, %v8962
  %8964 = vmatmul.bf16.gmra.mxu0 %v5034
  %v8965 = vpop.f32.mrf.mxu0
  %v8966 = vadd.f32 %v8877, %v8965
  %v8967 = vpop.f32.mrf.mxu0
  %v8968 = vadd.f32 %v8879, %v8967
  %8969 = vmatmul.bf16.gmra.mxu0 %v5043
  %v8970 = vpop.f32.mrf.mxu0
  %v8971 = vadd.f32 %v8882, %v8970
  %v8972 = vpop.f32.mrf.mxu0
  %v8973 = vadd.f32 %v8884, %v8972
  %8974 = vmatmul.bf16.gmra.mxu0 %v5052
  %v8975 = vpop.f32.mrf.mxu0
  %v8976 = vadd.f32 %v8887, %v8975
  %v8977 = vpop.f32.mrf.mxu0
  %v8978 = vadd.f32 %v8889, %v8977
  %8979 = vmatmul.bf16.gmra.mxu0 %v5061
  %v8980 = vpop.f32.mrf.mxu0
  %v8981 = vadd.f32 %v8892, %v8980
  %v8982 = vpop.f32.mrf.mxu0
  %v8983 = vadd.f32 %v8894, %v8982
  %8984 = vmatmul.bf16.gmra.mxu0 %v5070
  %v8985 = vpop.f32.mrf.mxu0
  %v8986 = vadd.f32 %v8897, %v8985
  %v8987 = vpop.f32.mrf.mxu0
  %v8988 = vadd.f32 %v8899, %v8987
  %8989 = vdwg.mxu0
  %8990 = vmatpush.bf16.msra.mxu0 %v6533
  %8991 = vmatpush.bf16.msra.mxu0 %v6531
  %8992 = vmatpush.bf16.msra.mxu0 %v6529
  %8993 = vmatpush.bf16.msra.mxu0 %v6527
  %8994 = vmatpush.bf16.msra.mxu0 %v6525
  %8995 = vmatpush.bf16.msra.mxu0 %v6523
  %8996 = vmatpush.bf16.msra.mxu0 %v6521
  %8997 = vmatpush.bf16.msra.mxu0 %v6519
  %8998 = vmatmul.bf16.gmra.mxu0 %v5122
  %v8999 = vpop.f32.mrf.mxu0
  %v9000 = vadd.f32 %v8911, %v8999
  %v9001 = vpop.f32.mrf.mxu0
  %v9002 = vadd.f32 %v8913, %v9001
  %9003 = vmatmul.bf16.gmra.mxu0 %v5131
  %v9004 = vpop.f32.mrf.mxu0
  %v9005 = vadd.f32 %v8916, %v9004
  %v9006 = vpop.f32.mrf.mxu0
  %v9007 = vadd.f32 %v8918, %v9006
  %9008 = vmatmul.bf16.gmra.mxu0 %v5140
  %v9009 = vpop.f32.mrf.mxu0
  %v9010 = vadd.f32 %v8921, %v9009
  %v9011 = vpop.f32.mrf.mxu0
  %v9012 = vadd.f32 %v8923, %v9011
  %9013 = vmatmul.bf16.gmra.mxu0 %v5149
  %v9014 = vpop.f32.mrf.mxu0
  %v9015 = vadd.f32 %v8926, %v9014
  %v9016 = vpop.f32.mrf.mxu0
  %v9017 = vadd.f32 %v8928, %v9016
  %9018 = vmatmul.bf16.gmra.mxu0 %v5158
  %v9019 = vpop.f32.mrf.mxu0
  %v9020 = vadd.f32 %v8931, %v9019
  %v9021 = vpop.f32.mrf.mxu0
  %v9022 = vadd.f32 %v8933, %v9021
  %9023 = vmatmul.bf16.gmra.mxu0 %v5167
  %v9024 = vpop.f32.mrf.mxu0
  %v9025 = vadd.f32 %v8936, %v9024
  %v9026 = vpop.f32.mrf.mxu0
  %v9027 = vadd.f32 %v8938, %v9026
  %9028 = vmatmul.bf16.gmra.mxu0 %v5176
  %v9029 = vpop.f32.mrf.mxu0
  %v9030 = vadd.f32 %v8941, %v9029
  %v9031 = vpop.f32.mrf.mxu0
  %v9032 = vadd.f32 %v8943, %v9031
  %9033 = vmatmul.bf16.gmra.mxu0 %v5185
  %v9034 = vpop.f32.mrf.mxu0
  %v9035 = vadd.f32 %v8946, %v9034
  %v9036 = vpop.f32.mrf.mxu0
  %v9037 = vadd.f32 %v8948, %v9036
  %9038 = vmatmul.bf16.gmra.mxu0 %v5194
  %v9039 = vpop.f32.mrf.mxu0
  %v9040 = vadd.f32 %v8951, %v9039
  %v9041 = vpop.f32.mrf.mxu0
  %v9042 = vadd.f32 %v8953, %v9041
  %9043 = vmatmul.bf16.gmra.mxu0 %v5203
  %v9044 = vpop.f32.mrf.mxu0
  %v9045 = vadd.f32 %v8956, %v9044
  %v9046 = vpop.f32.mrf.mxu0
  %v9047 = vadd.f32 %v8958, %v9046
  %9048 = vmatmul.bf16.gmra.mxu0 %v5212
  %v9049 = vpop.f32.mrf.mxu0
  %v9050 = vadd.f32 %v8961, %v9049
  %v9051 = vpop.f32.mrf.mxu0
  %v9052 = vadd.f32 %v8963, %v9051
  %9053 = vmatmul.bf16.gmra.mxu0 %v5221
  %v9054 = vpop.f32.mrf.mxu0
  %v9055 = vadd.f32 %v8966, %v9054
  %v9056 = vpop.f32.mrf.mxu0
  %v9057 = vadd.f32 %v8968, %v9056
  %9058 = vmatmul.bf16.gmra.mxu0 %v5230
  %v9059 = vpop.f32.mrf.mxu0
  %v9060 = vadd.f32 %v8971, %v9059
  %v9061 = vpop.f32.mrf.mxu0
  %v9062 = vadd.f32 %v8973, %v9061
  %9063 = vmatmul.bf16.gmra.mxu0 %v5239
  %v9064 = vpop.f32.mrf.mxu0
  %v9065 = vadd.f32 %v8976, %v9064
  %v9066 = vpop.f32.mrf.mxu0
  %v9067 = vadd.f32 %v8978, %v9066
  %9068 = vmatmul.bf16.gmra.mxu0 %v5248
  %v9069 = vpop.f32.mrf.mxu0
  %v9070 = vadd.f32 %v8981, %v9069
  %v9071 = vpop.f32.mrf.mxu0
  %v9072 = vadd.f32 %v8983, %v9071
  %9073 = vmatmul.bf16.gmra.mxu0 %v5257
  %v9074 = vpop.f32.mrf.mxu0
  %v9075 = vadd.f32 %v8986, %v9074
  %v9076 = vpop.f32.mrf.mxu0
  %v9077 = vadd.f32 %v8988, %v9076
  %9078 = vdwg.mxu0
  %9079 = vmatpush.bf16.msra.mxu0 %v6549
  %9080 = vmatpush.bf16.msra.mxu0 %v6547
  %9081 = vmatpush.bf16.msra.mxu0 %v6545
  %9082 = vmatpush.bf16.msra.mxu0 %v6543
  %9083 = vmatpush.bf16.msra.mxu0 %v6541
  %9084 = vmatpush.bf16.msra.mxu0 %v6539
  %9085 = vmatpush.bf16.msra.mxu0 %v6537
  %9086 = vmatpush.bf16.msra.mxu0 %v6535
  %9087 = vmatmul.bf16.gmra.mxu0 %v5125
  %v9088 = vpop.f32.mrf.mxu0
  %v9089 = vadd.f32 %v9000, %v9088
  %v9090 = vpop.f32.mrf.mxu0
  %v9091 = vadd.f32 %v9002, %v9090
  %9092 = vmatmul.bf16.gmra.mxu0 %v5134
  %v9093 = vpop.f32.mrf.mxu0
  %v9094 = vadd.f32 %v9005, %v9093
  %v9095 = vpop.f32.mrf.mxu0
  %v9096 = vadd.f32 %v9007, %v9095
  %9097 = vmatmul.bf16.gmra.mxu0 %v5143
  %v9098 = vpop.f32.mrf.mxu0
  %v9099 = vadd.f32 %v9010, %v9098
  %v9100 = vpop.f32.mrf.mxu0
  %v9101 = vadd.f32 %v9012, %v9100
  %9102 = vmatmul.bf16.gmra.mxu0 %v5152
  %v9103 = vpop.f32.mrf.mxu0
  %v9104 = vadd.f32 %v9015, %v9103
  %v9105 = vpop.f32.mrf.mxu0
  %v9106 = vadd.f32 %v9017, %v9105
  %9107 = vmatmul.bf16.gmra.mxu0 %v5161
  %v9108 = vpop.f32.mrf.mxu0
  %v9109 = vadd.f32 %v9020, %v9108
  %v9110 = vpop.f32.mrf.mxu0
  %v9111 = vadd.f32 %v9022, %v9110
  %9112 = vmatmul.bf16.gmra.mxu0 %v5170
  %v9113 = vpop.f32.mrf.mxu0
  %v9114 = vadd.f32 %v9025, %v9113
  %v9115 = vpop.f32.mrf.mxu0
  %v9116 = vadd.f32 %v9027, %v9115
  %9117 = vmatmul.bf16.gmra.mxu0 %v5179
  %v9118 = vpop.f32.mrf.mxu0
  %v9119 = vadd.f32 %v9030, %v9118
  %v9120 = vpop.f32.mrf.mxu0
  %v9121 = vadd.f32 %v9032, %v9120
  %9122 = vmatmul.bf16.gmra.mxu0 %v5188
  %v9123 = vpop.f32.mrf.mxu0
  %v9124 = vadd.f32 %v9035, %v9123
  %v9125 = vpop.f32.mrf.mxu0
  %v9126 = vadd.f32 %v9037, %v9125
  %9127 = vmatmul.bf16.gmra.mxu0 %v5197
  %v9128 = vpop.f32.mrf.mxu0
  %v9129 = vadd.f32 %v9040, %v9128
  %v9130 = vpop.f32.mrf.mxu0
  %v9131 = vadd.f32 %v9042, %v9130
  %9132 = vmatmul.bf16.gmra.mxu0 %v5206
  %v9133 = vpop.f32.mrf.mxu0
  %v9134 = vadd.f32 %v9045, %v9133
  %v9135 = vpop.f32.mrf.mxu0
  %v9136 = vadd.f32 %v9047, %v9135
  %9137 = vmatmul.bf16.gmra.mxu0 %v5215
  %v9138 = vpop.f32.mrf.mxu0
  %v9139 = vadd.f32 %v9050, %v9138
  %v9140 = vpop.f32.mrf.mxu0
  %v9141 = vadd.f32 %v9052, %v9140
  %9142 = vmatmul.bf16.gmra.mxu0 %v5224
  %v9143 = vpop.f32.mrf.mxu0
  %v9144 = vadd.f32 %v9055, %v9143
  %v9145 = vpop.f32.mrf.mxu0
  %v9146 = vadd.f32 %v9057, %v9145
  %9147 = vmatmul.bf16.gmra.mxu0 %v5233
  %v9148 = vpop.f32.mrf.mxu0
  %v9149 = vadd.f32 %v9060, %v9148
  %v9150 = vpop.f32.mrf.mxu0
  %v9151 = vadd.f32 %v9062, %v9150
  %9152 = vmatmul.bf16.gmra.mxu0 %v5242
  %v9153 = vpop.f32.mrf.mxu0
  %v9154 = vadd.f32 %v9065, %v9153
  %v9155 = vpop.f32.mrf.mxu0
  %v9156 = vadd.f32 %v9067, %v9155
  %9157 = vmatmul.bf16.gmra.mxu0 %v5251
  %v9158 = vpop.f32.mrf.mxu0
  %v9159 = vadd.f32 %v9070, %v9158
  %v9160 = vpop.f32.mrf.mxu0
  %v9161 = vadd.f32 %v9072, %v9160
  %9162 = vmatmul.bf16.gmra.mxu0 %v5260
  %v9163 = vpop.f32.mrf.mxu0
  %v9164 = vadd.f32 %v9075, %v9163
  %v9165 = vpop.f32.mrf.mxu0
  %v9166 = vadd.f32 %v9077, %v9165
  %9167 = vdwg.mxu0
  %9168 = vmatpush.bf16.msra.mxu0 %v6565
  %9169 = vmatpush.bf16.msra.mxu0 %v6563
  %9170 = vmatpush.bf16.msra.mxu0 %v6561
  %9171 = vmatpush.bf16.msra.mxu0 %v6559
  %9172 = vmatpush.bf16.msra.mxu0 %v6557
  %9173 = vmatpush.bf16.msra.mxu0 %v6555
  %9174 = vmatpush.bf16.msra.mxu0 %v6553
  %9175 = vmatpush.bf16.msra.mxu0 %v6551
  %9176 = vmatmul.bf16.gmra.mxu0 %v5128
  %v9177 = vpop.f32.mrf.mxu0
  %v9178 = vadd.f32 %v9089, %v9177
  %v9179 = vpop.f32.mrf.mxu0
  %v9180 = vadd.f32 %v9091, %v9179
  %9181 = vmatmul.bf16.gmra.mxu0 %v5137
  %v9182 = vpop.f32.mrf.mxu0
  %v9183 = vadd.f32 %v9094, %v9182
  %v9184 = vpop.f32.mrf.mxu0
  %v9185 = vadd.f32 %v9096, %v9184
  %9186 = vmatmul.bf16.gmra.mxu0 %v5146
  %v9187 = vpop.f32.mrf.mxu0
  %v9188 = vadd.f32 %v9099, %v9187
  %v9189 = vpop.f32.mrf.mxu0
  %v9190 = vadd.f32 %v9101, %v9189
  %9191 = vmatmul.bf16.gmra.mxu0 %v5155
  %v9192 = vpop.f32.mrf.mxu0
  %v9193 = vadd.f32 %v9104, %v9192
  %v9194 = vpop.f32.mrf.mxu0
  %v9195 = vadd.f32 %v9106, %v9194
  %9196 = vmatmul.bf16.gmra.mxu0 %v5164
  %v9197 = vpop.f32.mrf.mxu0
  %v9198 = vadd.f32 %v9109, %v9197
  %v9199 = vpop.f32.mrf.mxu0
  %v9200 = vadd.f32 %v9111, %v9199
  %9201 = vmatmul.bf16.gmra.mxu0 %v5173
  %v9202 = vpop.f32.mrf.mxu0
  %v9203 = vadd.f32 %v9114, %v9202
  %v9204 = vpop.f32.mrf.mxu0
  %v9205 = vadd.f32 %v9116, %v9204
  %9206 = vmatmul.bf16.gmra.mxu0 %v5182
  %v9207 = vpop.f32.mrf.mxu0
  %v9208 = vadd.f32 %v9119, %v9207
  %v9209 = vpop.f32.mrf.mxu0
  %v9210 = vadd.f32 %v9121, %v9209
  %9211 = vmatmul.bf16.gmra.mxu0 %v5191
  %v9212 = vpop.f32.mrf.mxu0
  %v9213 = vadd.f32 %v9124, %v9212
  %v9214 = vpop.f32.mrf.mxu0
  %v9215 = vadd.f32 %v9126, %v9214
  %9216 = vmatmul.bf16.gmra.mxu0 %v5200
  %v9217 = vpop.f32.mrf.mxu0
  %v9218 = vadd.f32 %v9129, %v9217
  %v9219 = vpop.f32.mrf.mxu0
  %v9220 = vadd.f32 %v9131, %v9219
  %9221 = vmatmul.bf16.gmra.mxu0 %v5209
  %v9222 = vpop.f32.mrf.mxu0
  %v9223 = vadd.f32 %v9134, %v9222
  %v9224 = vpop.f32.mrf.mxu0
  %v9225 = vadd.f32 %v9136, %v9224
  %9226 = vmatmul.bf16.gmra.mxu0 %v5218
  %v9227 = vpop.f32.mrf.mxu0
  %v9228 = vadd.f32 %v9139, %v9227
  %v9229 = vpop.f32.mrf.mxu0
  %v9230 = vadd.f32 %v9141, %v9229
  %9231 = vmatmul.bf16.gmra.mxu0 %v5227
  %v9232 = vpop.f32.mrf.mxu0
  %v9233 = vadd.f32 %v9144, %v9232
  %v9234 = vpop.f32.mrf.mxu0
  %v9235 = vadd.f32 %v9146, %v9234
  %9236 = vmatmul.bf16.gmra.mxu0 %v5236
  %v9237 = vpop.f32.mrf.mxu0
  %v9238 = vadd.f32 %v9149, %v9237
  %v9239 = vpop.f32.mrf.mxu0
  %v9240 = vadd.f32 %v9151, %v9239
  %9241 = vmatmul.bf16.gmra.mxu0 %v5245
  %v9242 = vpop.f32.mrf.mxu0
  %v9243 = vadd.f32 %v9154, %v9242
  %v9244 = vpop.f32.mrf.mxu0
  %v9245 = vadd.f32 %v9156, %v9244
  %9246 = vmatmul.bf16.gmra.mxu0 %v5254
  %v9247 = vpop.f32.mrf.mxu0
  %v9248 = vadd.f32 %v9159, %v9247
  %v9249 = vpop.f32.mrf.mxu0
  %v9250 = vadd.f32 %v9161, %v9249
  %9251 = vmatmul.bf16.gmra.mxu0 %v5263
  %v9252 = vpop.f32.mrf.mxu0
  %v9253 = vadd.f32 %v9164, %v9252
  %v9254 = vpop.f32.mrf.mxu0
  %v9255 = vadd.f32 %v9166, %v9254
  %9256 = vdwg.mxu0
  %9257 = vmatpush.bf16.msra.mxu0 %v6581
  %9258 = vmatpush.bf16.msra.mxu0 %v6579
  %9259 = vmatpush.bf16.msra.mxu0 %v6577
  %9260 = vmatpush.bf16.msra.mxu0 %v6575
  %9261 = vmatpush.bf16.msra.mxu0 %v6573
  %9262 = vmatpush.bf16.msra.mxu0 %v6571
  %9263 = vmatpush.bf16.msra.mxu0 %v6569
  %9264 = vmatpush.bf16.msra.mxu0 %v6567
  %9265 = vmatmul.bf16.gmra.mxu0 %v5312
  %v9266 = vpop.f32.mrf.mxu0
  %v9267 = vadd.f32 %v9178, %v9266
  %v9268 = vpop.f32.mrf.mxu0
  %v9269 = vadd.f32 %v9180, %v9268
  %9270 = vmatmul.bf16.gmra.mxu0 %v5315
  %v9271 = vpop.f32.mrf.mxu0
  %v9272 = vadd.f32 %v9183, %v9271
  %v9273 = vpop.f32.mrf.mxu0
  %v9274 = vadd.f32 %v9185, %v9273
  %9275 = vmatmul.bf16.gmra.mxu0 %v5318
  %v9276 = vpop.f32.mrf.mxu0
  %v9277 = vadd.f32 %v9188, %v9276
  %v9278 = vpop.f32.mrf.mxu0
  %v9279 = vadd.f32 %v9190, %v9278
  %9280 = vmatmul.bf16.gmra.mxu0 %v5321
  %v9281 = vpop.f32.mrf.mxu0
  %v9282 = vadd.f32 %v9193, %v9281
  %v9283 = vpop.f32.mrf.mxu0
  %v9284 = vadd.f32 %v9195, %v9283
  %9285 = vmatmul.bf16.gmra.mxu0 %v5324
  %v9286 = vpop.f32.mrf.mxu0
  %v9287 = vadd.f32 %v9198, %v9286
  %v9288 = vpop.f32.mrf.mxu0
  %v9289 = vadd.f32 %v9200, %v9288
  %9290 = vmatmul.bf16.gmra.mxu0 %v5327
  %v9291 = vpop.f32.mrf.mxu0
  %v9292 = vadd.f32 %v9203, %v9291
  %v9293 = vpop.f32.mrf.mxu0
  %v9294 = vadd.f32 %v9205, %v9293
  %9295 = vmatmul.bf16.gmra.mxu0 %v5330
  %v9296 = vpop.f32.mrf.mxu0
  %v9297 = vadd.f32 %v9208, %v9296
  %v9298 = vpop.f32.mrf.mxu0
  %v9299 = vadd.f32 %v9210, %v9298
  %9300 = vmatmul.bf16.gmra.mxu0 %v5333
  %v9301 = vpop.f32.mrf.mxu0
  %v9302 = vadd.f32 %v9213, %v9301
  %v9303 = vpop.f32.mrf.mxu0
  %v9304 = vadd.f32 %v9215, %v9303
  %9305 = vmatmul.bf16.gmra.mxu0 %v5336
  %v9306 = vpop.f32.mrf.mxu0
  %v9307 = vadd.f32 %v9218, %v9306
  %v9308 = vpop.f32.mrf.mxu0
  %v9309 = vadd.f32 %v9220, %v9308
  %9310 = vmatmul.bf16.gmra.mxu0 %v5339
  %v9311 = vpop.f32.mrf.mxu0
  %v9312 = vadd.f32 %v9223, %v9311
  %v9313 = vpop.f32.mrf.mxu0
  %v9314 = vadd.f32 %v9225, %v9313
  %9315 = vmatmul.bf16.gmra.mxu0 %v5342
  %v9316 = vpop.f32.mrf.mxu0
  %v9317 = vadd.f32 %v9228, %v9316
  %v9318 = vpop.f32.mrf.mxu0
  %v9319 = vadd.f32 %v9230, %v9318
  %9320 = vmatmul.bf16.gmra.mxu0 %v5345
  %v9321 = vpop.f32.mrf.mxu0
  %v9322 = vadd.f32 %v9233, %v9321
  %v9323 = vpop.f32.mrf.mxu0
  %v9324 = vadd.f32 %v9235, %v9323
  %9325 = vmatmul.bf16.gmra.mxu0 %v5348
  %v9326 = vpop.f32.mrf.mxu0
  %v9327 = vadd.f32 %v9238, %v9326
  %v9328 = vpop.f32.mrf.mxu0
  %v9329 = vadd.f32 %v9240, %v9328
  %9330 = vmatmul.bf16.gmra.mxu0 %v5351
  %v9331 = vpop.f32.mrf.mxu0
  %v9332 = vadd.f32 %v9243, %v9331
  %v9333 = vpop.f32.mrf.mxu0
  %v9334 = vadd.f32 %v9245, %v9333
  %9335 = vmatmul.bf16.gmra.mxu0 %v5354
  %v9336 = vpop.f32.mrf.mxu0
  %v9337 = vadd.f32 %v9248, %v9336
  %v9338 = vpop.f32.mrf.mxu0
  %v9339 = vadd.f32 %v9250, %v9338
  %9340 = vmatmul.bf16.gmra.mxu0 %v5357
  %v9341 = vpop.f32.mrf.mxu0
  %v9342 = vadd.f32 %v9253, %v9341
  %v9343 = vpop.f32.mrf.mxu0
  %v9344 = vadd.f32 %v9255, %v9343
  %9345 = vdwg.mxu0
  %9346 = vmatpush.bf16.msra.mxu0 %v6597
  %9347 = vmatpush.bf16.msra.mxu0 %v6595
  %9348 = vmatpush.bf16.msra.mxu0 %v6593
  %9349 = vmatpush.bf16.msra.mxu0 %v6591
  %9350 = vmatpush.bf16.msra.mxu0 %v6589
  %9351 = vmatpush.bf16.msra.mxu0 %v6587
  %9352 = vmatpush.bf16.msra.mxu0 %v6585
  %9353 = vmatpush.bf16.msra.mxu0 %v6583
  %9354 = vmatmul.bf16.gmra.mxu0 %v5313
  %v9355 = vpop.f32.mrf.mxu0
  %v9356 = vadd.f32 %v9267, %v9355
  %v9357 = vpop.f32.mrf.mxu0
  %v9358 = vadd.f32 %v9269, %v9357
  %9359 = vmatmul.bf16.gmra.mxu0 %v5316
  %v9360 = vpop.f32.mrf.mxu0
  %v9361 = vadd.f32 %v9272, %v9360
  %v9362 = vpop.f32.mrf.mxu0
  %v9363 = vadd.f32 %v9274, %v9362
  %9364 = vmatmul.bf16.gmra.mxu0 %v5319
  %v9365 = vpop.f32.mrf.mxu0
  %v9366 = vadd.f32 %v9277, %v9365
  %v9367 = vpop.f32.mrf.mxu0
  %v9368 = vadd.f32 %v9279, %v9367
  %9369 = vmatmul.bf16.gmra.mxu0 %v5322
  %v9370 = vpop.f32.mrf.mxu0
  %v9371 = vadd.f32 %v9282, %v9370
  %v9372 = vpop.f32.mrf.mxu0
  %v9373 = vadd.f32 %v9284, %v9372
  %9374 = vmatmul.bf16.gmra.mxu0 %v5325
  %v9375 = vpop.f32.mrf.mxu0
  %v9376 = vadd.f32 %v9287, %v9375
  %v9377 = vpop.f32.mrf.mxu0
  %v9378 = vadd.f32 %v9289, %v9377
  %9379 = vmatmul.bf16.gmra.mxu0 %v5328
  %v9380 = vpop.f32.mrf.mxu0
  %v9381 = vadd.f32 %v9292, %v9380
  %v9382 = vpop.f32.mrf.mxu0
  %v9383 = vadd.f32 %v9294, %v9382
  %9384 = vmatmul.bf16.gmra.mxu0 %v5331
  %v9385 = vpop.f32.mrf.mxu0
  %v9386 = vadd.f32 %v9297, %v9385
  %v9387 = vpop.f32.mrf.mxu0
  %v9388 = vadd.f32 %v9299, %v9387
  %9389 = vmatmul.bf16.gmra.mxu0 %v5334
  %v9390 = vpop.f32.mrf.mxu0
  %v9391 = vadd.f32 %v9302, %v9390
  %v9392 = vpop.f32.mrf.mxu0
  %v9393 = vadd.f32 %v9304, %v9392
  %9394 = vmatmul.bf16.gmra.mxu0 %v5337
  %v9395 = vpop.f32.mrf.mxu0
  %v9396 = vadd.f32 %v9307, %v9395
  %v9397 = vpop.f32.mrf.mxu0
  %v9398 = vadd.f32 %v9309, %v9397
  %9399 = vmatmul.bf16.gmra.mxu0 %v5340
  %v9400 = vpop.f32.mrf.mxu0
  %v9401 = vadd.f32 %v9312, %v9400
  %v9402 = vpop.f32.mrf.mxu0
  %v9403 = vadd.f32 %v9314, %v9402
  %9404 = vmatmul.bf16.gmra.mxu0 %v5343
  %v9405 = vpop.f32.mrf.mxu0
  %v9406 = vadd.f32 %v9317, %v9405
  %v9407 = vpop.f32.mrf.mxu0
  %v9408 = vadd.f32 %v9319, %v9407
  %9409 = vmatmul.bf16.gmra.mxu0 %v5346
  %v9410 = vpop.f32.mrf.mxu0
  %v9411 = vadd.f32 %v9322, %v9410
  %v9412 = vpop.f32.mrf.mxu0
  %v9413 = vadd.f32 %v9324, %v9412
  %9414 = vmatmul.bf16.gmra.mxu0 %v5349
  %v9415 = vpop.f32.mrf.mxu0
  %v9416 = vadd.f32 %v9327, %v9415
  %v9417 = vpop.f32.mrf.mxu0
  %v9418 = vadd.f32 %v9329, %v9417
  %9419 = vmatmul.bf16.gmra.mxu0 %v5352
  %v9420 = vpop.f32.mrf.mxu0
  %v9421 = vadd.f32 %v9332, %v9420
  %v9422 = vpop.f32.mrf.mxu0
  %v9423 = vadd.f32 %v9334, %v9422
  %9424 = vmatmul.bf16.gmra.mxu0 %v5355
  %v9425 = vpop.f32.mrf.mxu0
  %v9426 = vadd.f32 %v9337, %v9425
  %v9427 = vpop.f32.mrf.mxu0
  %v9428 = vadd.f32 %v9339, %v9427
  %9429 = vmatmul.bf16.gmra.mxu0 %v5358
  %v9430 = vpop.f32.mrf.mxu0
  %v9431 = vadd.f32 %v9342, %v9430
  %v9432 = vpop.f32.mrf.mxu0
  %v9433 = vadd.f32 %v9344, %v9432
  %9434 = vdwg.mxu0
  %9435 = vmatpush.bf16.msra.mxu0 %v6613
  %9436 = vmatpush.bf16.msra.mxu0 %v6611
  %9437 = vmatpush.bf16.msra.mxu0 %v6609
  %9438 = vmatpush.bf16.msra.mxu0 %v6607
  %9439 = vmatpush.bf16.msra.mxu0 %v6605
  %9440 = vmatpush.bf16.msra.mxu0 %v6603
  %9441 = vmatpush.bf16.msra.mxu0 %v6601
  %9442 = vmatpush.bf16.msra.mxu0 %v6599
  %9443 = vmatmul.bf16.gmra.mxu0 %v5314
  %v9444 = vpop.f32.mrf.mxu0
  %v9445 = vadd.f32 %v9356, %v9444
  %v9446 = vpop.f32.mrf.mxu0
  %v9447 = vadd.f32 %v9358, %v9446
  %9448 = vmatmul.bf16.gmra.mxu0 %v5317
  %v9449 = vpop.f32.mrf.mxu0
  %v9450 = vadd.f32 %v9361, %v9449
  %v9451 = vpop.f32.mrf.mxu0
  %v9452 = vadd.f32 %v9363, %v9451
  %9453 = vmatmul.bf16.gmra.mxu0 %v5320
  %v9454 = vpop.f32.mrf.mxu0
  %v9455 = vadd.f32 %v9366, %v9454
  %v9456 = vpop.f32.mrf.mxu0
  %v9457 = vadd.f32 %v9368, %v9456
  %9458 = vmatmul.bf16.gmra.mxu0 %v5323
  %v9459 = vpop.f32.mrf.mxu0
  %v9460 = vadd.f32 %v9371, %v9459
  %v9461 = vpop.f32.mrf.mxu0
  %v9462 = vadd.f32 %v9373, %v9461
  %9463 = vmatmul.bf16.gmra.mxu0 %v5326
  %v9464 = vpop.f32.mrf.mxu0
  %v9465 = vadd.f32 %v9376, %v9464
  %v9466 = vpop.f32.mrf.mxu0
  %v9467 = vadd.f32 %v9378, %v9466
  %9468 = vmatmul.bf16.gmra.mxu0 %v5329
  %v9469 = vpop.f32.mrf.mxu0
  %v9470 = vadd.f32 %v9381, %v9469
  %v9471 = vpop.f32.mrf.mxu0
  %v9472 = vadd.f32 %v9383, %v9471
  %9473 = vmatmul.bf16.gmra.mxu0 %v5332
  %v9474 = vpop.f32.mrf.mxu0
  %v9475 = vadd.f32 %v9386, %v9474
  %v9476 = vpop.f32.mrf.mxu0
  %v9477 = vadd.f32 %v9388, %v9476
  %9478 = vmatmul.bf16.gmra.mxu0 %v5335
  %v9479 = vpop.f32.mrf.mxu0
  %v9480 = vadd.f32 %v9391, %v9479
  %v9481 = vpop.f32.mrf.mxu0
  %v9482 = vadd.f32 %v9393, %v9481
  %9483 = vmatmul.bf16.gmra.mxu0 %v5338
  %v9484 = vpop.f32.mrf.mxu0
  %v9485 = vadd.f32 %v9396, %v9484
  %v9486 = vpop.f32.mrf.mxu0
  %v9487 = vadd.f32 %v9398, %v9486
  %9488 = vmatmul.bf16.gmra.mxu0 %v5341
  %v9489 = vpop.f32.mrf.mxu0
  %v9490 = vadd.f32 %v9401, %v9489
  %v9491 = vpop.f32.mrf.mxu0
  %v9492 = vadd.f32 %v9403, %v9491
  %9493 = vmatmul.bf16.gmra.mxu0 %v5344
  %v9494 = vpop.f32.mrf.mxu0
  %v9495 = vadd.f32 %v9406, %v9494
  %v9496 = vpop.f32.mrf.mxu0
  %v9497 = vadd.f32 %v9408, %v9496
  %9498 = vmatmul.bf16.gmra.mxu0 %v5347
  %v9499 = vpop.f32.mrf.mxu0
  %v9500 = vadd.f32 %v9411, %v9499
  %v9501 = vpop.f32.mrf.mxu0
  %v9502 = vadd.f32 %v9413, %v9501
  %9503 = vmatmul.bf16.gmra.mxu0 %v5350
  %v9504 = vpop.f32.mrf.mxu0
  %v9505 = vadd.f32 %v9416, %v9504
  %v9506 = vpop.f32.mrf.mxu0
  %v9507 = vadd.f32 %v9418, %v9506
  %9508 = vmatmul.bf16.gmra.mxu0 %v5353
  %v9509 = vpop.f32.mrf.mxu0
  %v9510 = vadd.f32 %v9421, %v9509
  %v9511 = vpop.f32.mrf.mxu0
  %v9512 = vadd.f32 %v9423, %v9511
  %9513 = vmatmul.bf16.gmra.mxu0 %v5356
  %v9514 = vpop.f32.mrf.mxu0
  %v9515 = vadd.f32 %v9426, %v9514
  %v9516 = vpop.f32.mrf.mxu0
  %v9517 = vadd.f32 %v9428, %v9516
  %9518 = vmatmul.bf16.gmra.mxu0 %v5359
  %v9519 = vpop.f32.mrf.mxu0
  %v9520 = vadd.f32 %v9431, %v9519
  %v9521 = vpop.f32.mrf.mxu0
  %v9522 = vadd.f32 %v9433, %v9521
  %9523 = vdwg.mxu0
  %v9588 = vrot.slane %v8110, 2
  %v9589 = vrot.slane %v8112, 2
  %v9590 = vsel %vm418, %v9588, %v9589
  %v9591 = vrot.slane %v9445, 2
  %v9592 = vrot.slane %v9447, 2
  %v9593 = vsel %vm418, %v9591, %v9592
  %v9594 = vrot.slane %v8115, 2
  %v9595 = vsel %vm418, %v9589, %v9594
  %v9596 = vrot.slane %v9450, 2
  %v9597 = vsel %vm418, %v9592, %v9596
  %v9598 = vrot.slane %v8117, 2
  %v9599 = vsel %vm418, %v9594, %v9598
  %v9600 = vrot.slane %v9452, 2
  %v9601 = vsel %vm418, %v9596, %v9600
  %v9602 = vrot.slane %v8120, 2
  %v9603 = vsel %vm418, %v9598, %v9602
  %v9604 = vrot.slane %v9455, 2
  %v9605 = vsel %vm418, %v9600, %v9604
  %v9606 = vrot.slane %v8122, 2
  %v9607 = vsel %vm418, %v9602, %v9606
  %v9608 = vrot.slane %v9457, 2
  %v9609 = vsel %vm418, %v9604, %v9608
  %v9610 = vrot.slane %v8125, 2
  %v9611 = vsel %vm418, %v9606, %v9610
  %v9612 = vrot.slane %v9460, 2
  %v9613 = vsel %vm418, %v9608, %v9612
  %v9614 = vrot.slane %v8127, 2
  %v9615 = vsel %vm418, %v9610, %v9614
  %v9616 = vrot.slane %v9462, 2
  %v9617 = vsel %vm418, %v9612, %v9616
  %v9618 = vrot.slane %v8130, 2
  %v9619 = vsel %vm418, %v9614, %v9618
  %v9620 = vrot.slane %v9465, 2
  %v9621 = vsel %vm418, %v9616, %v9620
  %v9622 = vrot.slane %v8132, 2
  %v9623 = vsel %vm418, %v9618, %v9622
  %v9624 = vrot.slane %v9467, 2
  %v9625 = vsel %vm418, %v9620, %v9624
  %v9626 = vrot.slane %v8135, 2
  %v9627 = vsel %vm418, %v9622, %v9626
  %v9628 = vrot.slane %v9470, 2
  %v9629 = vsel %vm418, %v9624, %v9628
  %v9630 = vrot.slane %v8137, 2
  %v9631 = vsel %vm418, %v9626, %v9630
  %v9632 = vrot.slane %v9472, 2
  %v9633 = vsel %vm418, %v9628, %v9632
  %v9634 = vrot.slane %v8140, 2
  %v9635 = vsel %vm418, %v9630, %v9634
  %v9636 = vrot.slane %v9475, 2
  %v9637 = vsel %vm418, %v9632, %v9636
  %v9638 = vrot.slane %v8142, 2
  %v9639 = vsel %vm418, %v9634, %v9638
  %v9640 = vrot.slane %v9477, 2
  %v9641 = vsel %vm418, %v9636, %v9640
  %v9642 = vrot.slane %v8145, 2
  %v9643 = vsel %vm418, %v9638, %v9642
  %v9644 = vrot.slane %v9480, 2
  %v9645 = vsel %vm418, %v9640, %v9644
  %v9646 = vrot.slane %v8147, 2
  %v9647 = vsel %vm418, %v9642, %v9646
  %v9648 = vrot.slane %v9482, 2
  %v9649 = vsel %vm418, %v9644, %v9648
  %v9650 = vrot.slane %v8150, 2
  %v9651 = vsel %vm418, %v9646, %v9650
  %v9652 = vrot.slane %v9485, 2
  %v9653 = vsel %vm418, %v9648, %v9652
  %v9654 = vrot.slane %v8152, 2
  %v9655 = vsel %vm418, %v9650, %v9654
  %v9656 = vrot.slane %v9487, 2
  %v9657 = vsel %vm418, %v9652, %v9656
  %v9658 = vrot.slane %v8155, 2
  %v9659 = vsel %vm418, %v9654, %v9658
  %v9660 = vrot.slane %v9490, 2
  %v9661 = vsel %vm418, %v9656, %v9660
  %v9662 = vrot.slane %v8157, 2
  %v9663 = vsel %vm418, %v9658, %v9662
  %v9664 = vrot.slane %v9492, 2
  %v9665 = vsel %vm418, %v9660, %v9664
  %v9666 = vrot.slane %v8160, 2
  %v9667 = vsel %vm418, %v9662, %v9666
  %v9668 = vrot.slane %v9495, 2
  %v9669 = vsel %vm418, %v9664, %v9668
  %v9670 = vrot.slane %v8162, 2
  %v9671 = vsel %vm418, %v9666, %v9670
  %v9672 = vrot.slane %v9497, 2
  %v9673 = vsel %vm418, %v9668, %v9672
  %v9674 = vrot.slane %v8165, 2
  %v9675 = vsel %vm418, %v9670, %v9674
  %v9676 = vrot.slane %v9500, 2
  %v9677 = vsel %vm418, %v9672, %v9676
  %v9678 = vrot.slane %v8167, 2
  %v9679 = vsel %vm418, %v9674, %v9678
  %v9680 = vrot.slane %v9502, 2
  %v9681 = vsel %vm418, %v9676, %v9680
  %v9682 = vrot.slane %v8170, 2
  %v9683 = vsel %vm418, %v9678, %v9682
  %v9684 = vrot.slane %v9505, 2
  %v9685 = vsel %vm418, %v9680, %v9684
  %v9686 = vrot.slane %v8172, 2
  %v9687 = vsel %vm418, %v9682, %v9686
  %v9688 = vrot.slane %v9507, 2
  %v9689 = vsel %vm418, %v9684, %v9688
  %v9690 = vrot.slane %v8175, 2
  %v9691 = vsel %vm418, %v9686, %v9690
  %v9692 = vrot.slane %v9510, 2
  %v9693 = vsel %vm418, %v9688, %v9692
  %v9694 = vrot.slane %v8177, 2
  %v9695 = vsel %vm418, %v9690, %v9694
  %v9696 = vrot.slane %v9512, 2
  %v9697 = vsel %vm418, %v9692, %v9696
  %v9698 = vrot.slane %v8180, 2
  %v9699 = vsel %vm418, %v9694, %v9698
  %v9700 = vrot.slane %v9515, 2
  %v9701 = vsel %vm418, %v9696, %v9700
  %v9702 = vrot.slane %v8182, 2
  %v9703 = vsel %vm418, %v9698, %v9702
  %v9704 = vrot.slane %v9517, 2
  %v9705 = vsel %vm418, %v9700, %v9704
  %v9706 = vrot.slane %v8185, 2
  %v9707 = vsel %vm418, %v9702, %v9706
  %v9708 = vrot.slane %v9520, 2
  %v9709 = vsel %vm418, %v9704, %v9708
  %v9710 = vrot.slane %v8187, 2
  %v9711 = vsel %vm418, %v9706, %v9710
  %v9712 = vrot.slane %v9522, 2
  %v9713 = vsel %vm418, %v9708, %v9712
  %v9780 = vsel %vm418, %v9710, %v9588
  %v9781 = vsel %vm418, %v9712, %v9591
  %v9782 = vmax.f32 %v8110, %v9590
  %v9783 = vmax.f32 %v9445, %v9593
  %v9784 = vmax.f32 %v8112, %v9595
  %v9785 = vmax.f32 %v9447, %v9597
  %v9786 = vmax.f32 %v8115, %v9599
  %v9787 = vmax.f32 %v9450, %v9601
  %v9788 = vmax.f32 %v8117, %v9603
  %v9789 = vmax.f32 %v9452, %v9605
  %v9790 = vmax.f32 %v8120, %v9607
  %v9791 = vmax.f32 %v9455, %v9609
  %v9792 = vmax.f32 %v8122, %v9611
  %v9793 = vmax.f32 %v9457, %v9613
  %v9794 = vmax.f32 %v8125, %v9615
  %v9795 = vmax.f32 %v9460, %v9617
  %v9796 = vmax.f32 %v8127, %v9619
  %v9797 = vmax.f32 %v9462, %v9621
  %v9798 = vmax.f32 %v8130, %v9623
  %v9799 = vmax.f32 %v9465, %v9625
  %v9800 = vmax.f32 %v8132, %v9627
  %v9801 = vmax.f32 %v9467, %v9629
  %v9802 = vmax.f32 %v8135, %v9631
  %v9803 = vmax.f32 %v9470, %v9633
  %v9804 = vmax.f32 %v8137, %v9635
  %v9805 = vmax.f32 %v9472, %v9637
  %v9806 = vmax.f32 %v8140, %v9639
  %v9807 = vmax.f32 %v9475, %v9641
  %v9808 = vmax.f32 %v8142, %v9643
  %v9809 = vmax.f32 %v9477, %v9645
  %v9810 = vmax.f32 %v8145, %v9647
  %v9811 = vmax.f32 %v9480, %v9649
  %v9812 = vmax.f32 %v8147, %v9651
  %v9813 = vmax.f32 %v9482, %v9653
  %v9814 = vmax.f32 %v8150, %v9655
  %v9815 = vmax.f32 %v9485, %v9657
  %v9816 = vmax.f32 %v8152, %v9659
  %v9817 = vmax.f32 %v9487, %v9661
  %v9818 = vmax.f32 %v8155, %v9663
  %v9819 = vmax.f32 %v9490, %v9665
  %v9820 = vmax.f32 %v8157, %v9667
  %v9821 = vmax.f32 %v9492, %v9669
  %v9822 = vmax.f32 %v8160, %v9671
  %v9823 = vmax.f32 %v9495, %v9673
  %v9824 = vmax.f32 %v8162, %v9675
  %v9825 = vmax.f32 %v9497, %v9677
  %v9826 = vmax.f32 %v8165, %v9679
  %v9827 = vmax.f32 %v9500, %v9681
  %v9828 = vmax.f32 %v8167, %v9683
  %v9829 = vmax.f32 %v9502, %v9685
  %v9830 = vmax.f32 %v8170, %v9687
  %v9831 = vmax.f32 %v9505, %v9689
  %v9832 = vmax.f32 %v8172, %v9691
  %v9833 = vmax.f32 %v9507, %v9693
  %v9834 = vmax.f32 %v8175, %v9695
  %v9835 = vmax.f32 %v9510, %v9697
  %v9836 = vmax.f32 %v8177, %v9699
  %v9837 = vmax.f32 %v9512, %v9701
  %v9838 = vmax.f32 %v8180, %v9703
  %v9839 = vmax.f32 %v9515, %v9705
  %v9840 = vmax.f32 %v8182, %v9707
  %v9841 = vmax.f32 %v9517, %v9709
  %v9842 = vmax.f32 %v8185, %v9711
  %v9843 = vmax.f32 %v9520, %v9713
  %v9844 = vmax.f32 %v8187, %v9780
  %v9845 = vmax.f32 %v9522, %v9781
  %9910 = vrot.lane.b32.xlu0 %v9782, 96
  %v9911 = vpop.permute.xlu0 %9910
  %9912 = vrot.lane.b32.xlu0 %v9783, 96
  %v9913 = vpop.permute.xlu0 %9912
  %9914 = vrot.lane.b32.xlu0 %v9784, 96
  %v9915 = vpop.permute.xlu0 %9914
  %9916 = vrot.lane.b32.xlu0 %v9785, 96
  %v9917 = vpop.permute.xlu0 %9916
  %9918 = vrot.lane.b32.xlu0 %v9786, 96
  %v9919 = vpop.permute.xlu0 %9918
  %9920 = vrot.lane.b32.xlu0 %v9787, 96
  %v9921 = vpop.permute.xlu0 %9920
  %9922 = vrot.lane.b32.xlu0 %v9788, 96
  %v9923 = vpop.permute.xlu0 %9922
  %9924 = vrot.lane.b32.xlu0 %v9789, 96
  %v9925 = vpop.permute.xlu0 %9924
  %9926 = vrot.lane.b32.xlu0 %v9790, 96
  %v9927 = vpop.permute.xlu0 %9926
  %9928 = vrot.lane.b32.xlu0 %v9791, 96
  %v9929 = vpop.permute.xlu0 %9928
  %9930 = vrot.lane.b32.xlu0 %v9792, 96
  %v9931 = vpop.permute.xlu0 %9930
  %9932 = vrot.lane.b32.xlu0 %v9793, 96
  %v9933 = vpop.permute.xlu0 %9932
  %9934 = vrot.lane.b32.xlu0 %v9794, 96
  %v9935 = vpop.permute.xlu0 %9934
  %9936 = vrot.lane.b32.xlu0 %v9795, 96
  %v9937 = vpop.permute.xlu0 %9936
  %9938 = vrot.lane.b32.xlu0 %v9796, 96
  %v9939 = vpop.permute.xlu0 %9938
  %9940 = vrot.lane.b32.xlu0 %v9797, 96
  %v9941 = vpop.permute.xlu0 %9940
  %9942 = vrot.lane.b32.xlu0 %v9798, 96
  %v9943 = vpop.permute.xlu0 %9942
  %9944 = vrot.lane.b32.xlu0 %v9799, 96
  %v9945 = vpop.permute.xlu0 %9944
  %9946 = vrot.lane.b32.xlu0 %v9800, 96
  %v9947 = vpop.permute.xlu0 %9946
  %9948 = vrot.lane.b32.xlu0 %v9801, 96
  %v9949 = vpop.permute.xlu0 %9948
  %9950 = vrot.lane.b32.xlu0 %v9802, 96
  %v9951 = vpop.permute.xlu0 %9950
  %9952 = vrot.lane.b32.xlu0 %v9803, 96
  %v9953 = vpop.permute.xlu0 %9952
  %9954 = vrot.lane.b32.xlu0 %v9804, 96
  %v9955 = vpop.permute.xlu0 %9954
  %9956 = vrot.lane.b32.xlu0 %v9805, 96
  %v9957 = vpop.permute.xlu0 %9956
  %9958 = vrot.lane.b32.xlu0 %v9806, 96
  %v9959 = vpop.permute.xlu0 %9958
  %9960 = vrot.lane.b32.xlu0 %v9807, 96
  %v9961 = vpop.permute.xlu0 %9960
  %9962 = vrot.lane.b32.xlu0 %v9808, 96
  %v9963 = vpop.permute.xlu0 %9962
  %9964 = vrot.lane.b32.xlu0 %v9809, 96
  %v9965 = vpop.permute.xlu0 %9964
  %9966 = vrot.lane.b32.xlu0 %v9810, 96
  %v9967 = vpop.permute.xlu0 %9966
  %9968 = vrot.lane.b32.xlu0 %v9811, 96
  %v9969 = vpop.permute.xlu0 %9968
  %9970 = vrot.lane.b32.xlu0 %v9812, 96
  %v9971 = vpop.permute.xlu0 %9970
  %9972 = vrot.lane.b32.xlu0 %v9813, 96
  %v9973 = vpop.permute.xlu0 %9972
  %9974 = vrot.lane.b32.xlu0 %v9814, 96
  %v9975 = vpop.permute.xlu0 %9974
  %9976 = vrot.lane.b32.xlu0 %v9815, 96
  %v9977 = vpop.permute.xlu0 %9976
  %9978 = vrot.lane.b32.xlu0 %v9816, 96
  %v9979 = vpop.permute.xlu0 %9978
  %9980 = vrot.lane.b32.xlu0 %v9817, 96
  %v9981 = vpop.permute.xlu0 %9980
  %9982 = vrot.lane.b32.xlu0 %v9818, 96
  %v9983 = vpop.permute.xlu0 %9982
  %9984 = vrot.lane.b32.xlu0 %v9819, 96
  %v9985 = vpop.permute.xlu0 %9984
  %9986 = vrot.lane.b32.xlu0 %v9820, 96
  %v9987 = vpop.permute.xlu0 %9986
  %9988 = vrot.lane.b32.xlu0 %v9821, 96
  %v9989 = vpop.permute.xlu0 %9988
  %9990 = vrot.lane.b32.xlu0 %v9822, 96
  %v9991 = vpop.permute.xlu0 %9990
  %9992 = vrot.lane.b32.xlu0 %v9823, 96
  %v9993 = vpop.permute.xlu0 %9992
  %9994 = vrot.lane.b32.xlu0 %v9824, 96
  %v9995 = vpop.permute.xlu0 %9994
  %9996 = vrot.lane.b32.xlu0 %v9825, 96
  %v9997 = vpop.permute.xlu0 %9996
  %9998 = vrot.lane.b32.xlu0 %v9826, 96
  %v9999 = vpop.permute.xlu0 %9998
  %10000 = vrot.lane.b32.xlu0 %v9827, 96
  %v10001 = vpop.permute.xlu0 %10000
  %10002 = vrot.lane.b32.xlu0 %v9828, 96
  %v10003 = vpop.permute.xlu0 %10002
  %10004 = vrot.lane.b32.xlu0 %v9829, 96
  %v10005 = vpop.permute.xlu0 %10004
  %10006 = vrot.lane.b32.xlu0 %v9830, 96
  %v10007 = vpop.permute.xlu0 %10006
  %10008 = vrot.lane.b32.xlu0 %v9831, 96
  %v10009 = vpop.permute.xlu0 %10008
  %10010 = vrot.lane.b32.xlu0 %v9832, 96
  %v10011 = vpop.permute.xlu0 %10010
  %10012 = vrot.lane.b32.xlu0 %v9833, 96
  %v10013 = vpop.permute.xlu0 %10012
  %10014 = vrot.lane.b32.xlu0 %v9834, 96
  %v10015 = vpop.permute.xlu0 %10014
  %10016 = vrot.lane.b32.xlu0 %v9835, 96
  %v10017 = vpop.permute.xlu0 %10016
  %10018 = vrot.lane.b32.xlu0 %v9836, 96
  %v10019 = vpop.permute.xlu0 %10018
  %10020 = vrot.lane.b32.xlu0 %v9837, 96
  %v10021 = vpop.permute.xlu0 %10020
  %10022 = vrot.lane.b32.xlu0 %v9838, 96
  %v10023 = vpop.permute.xlu0 %10022
  %10024 = vrot.lane.b32.xlu0 %v9839, 96
  %v10025 = vpop.permute.xlu0 %10024
  %10026 = vrot.lane.b32.xlu0 %v9840, 96
  %v10027 = vpop.permute.xlu0 %10026
  %10028 = vrot.lane.b32.xlu0 %v9841, 96
  %v10029 = vpop.permute.xlu0 %10028
  %10030 = vrot.lane.b32.xlu0 %v9842, 96
  %v10031 = vpop.permute.xlu0 %10030
  %10032 = vrot.lane.b32.xlu0 %v9843, 96
  %v10033 = vpop.permute.xlu0 %10032
  %10034 = vrot.lane.b32.xlu0 %v9844, 96
  %v10035 = vpop.permute.xlu0 %10034
  %10036 = vrot.lane.b32.xlu0 %v9845, 96
  %v10037 = vpop.permute.xlu0 %10036
  %vm10038 = vcmask 785408
  %v10039 = vsel %vm10038, %v9911, %v9913
  %v10040 = vsel %vm10038, %v9915, %v9917
  %v10041 = vsel %vm10038, %v9919, %v9921
  %v10042 = vsel %vm10038, %v9923, %v9925
  %v10043 = vsel %vm10038, %v9927, %v9929
  %v10044 = vsel %vm10038, %v9931, %v9933
  %v10045 = vsel %vm10038, %v9935, %v9937
  %v10046 = vsel %vm10038, %v9939, %v9941
  %v10047 = vsel %vm10038, %v9943, %v9945
  %v10048 = vsel %vm10038, %v9947, %v9949
  %v10049 = vsel %vm10038, %v9951, %v9953
  %v10050 = vsel %vm10038, %v9955, %v9957
  %v10051 = vsel %vm10038, %v9959, %v9961
  %v10052 = vsel %vm10038, %v9963, %v9965
  %v10053 = vsel %vm10038, %v9967, %v9969
  %v10054 = vsel %vm10038, %v9971, %v9973
  %v10055 = vsel %vm10038, %v9975, %v9977
  %v10056 = vsel %vm10038, %v9979, %v9981
  %v10057 = vsel %vm10038, %v9983, %v9985
  %v10058 = vsel %vm10038, %v9987, %v9989
  %v10059 = vsel %vm10038, %v9991, %v9993
  %v10060 = vsel %vm10038, %v9995, %v9997
  %v10061 = vsel %vm10038, %v9999, %v10001
  %v10062 = vsel %vm10038, %v10003, %v10005
  %v10063 = vsel %vm10038, %v10007, %v10009
  %v10064 = vsel %vm10038, %v10011, %v10013
  %v10065 = vsel %vm10038, %v10015, %v10017
  %v10066 = vsel %vm10038, %v10019, %v10021
  %v10067 = vsel %vm10038, %v10023, %v10025
  %v10068 = vsel %vm10038, %v10027, %v10029
  %v10069 = vsel %vm10038, %v10031, %v10033
  %v10070 = vsel %vm10038, %v10035, %v10037
  %v10167 = vsel %vm10038, %v9913, %v9911
  %v10168 = vsel %vm10038, %v9917, %v9915
  %v10169 = vsel %vm10038, %v9921, %v9919
  %v10170 = vsel %vm10038, %v9925, %v9923
  %v10171 = vsel %vm10038, %v9929, %v9927
  %v10172 = vsel %vm10038, %v9933, %v9931
  %v10173 = vsel %vm10038, %v9937, %v9935
  %v10174 = vsel %vm10038, %v9941, %v9939
  %v10175 = vsel %vm10038, %v9945, %v9943
  %v10176 = vsel %vm10038, %v9949, %v9947
  %v10177 = vsel %vm10038, %v9953, %v9951
  %v10178 = vsel %vm10038, %v9957, %v9955
  %v10179 = vsel %vm10038, %v9961, %v9959
  %v10180 = vsel %vm10038, %v9965, %v9963
  %v10181 = vsel %vm10038, %v9969, %v9967
  %v10182 = vsel %vm10038, %v9973, %v9971
  %v10183 = vsel %vm10038, %v9977, %v9975
  %v10184 = vsel %vm10038, %v9981, %v9979
  %v10185 = vsel %vm10038, %v9985, %v9983
  %v10186 = vsel %vm10038, %v9989, %v9987
  %v10187 = vsel %vm10038, %v9993, %v9991
  %v10188 = vsel %vm10038, %v9997, %v9995
  %v10189 = vsel %vm10038, %v10001, %v9999
  %v10190 = vsel %vm10038, %v10005, %v10003
  %v10191 = vsel %vm10038, %v10009, %v10007
  %v10192 = vsel %vm10038, %v10013, %v10011
  %v10193 = vsel %vm10038, %v10017, %v10015
  %v10194 = vsel %vm10038, %v10021, %v10019
  %v10195 = vsel %vm10038, %v10025, %v10023
  %v10196 = vsel %vm10038, %v10029, %v10027
  %v10197 = vsel %vm10038, %v10033, %v10031
  %v10198 = vsel %vm10038, %v10037, %v10035
  %v10199 = vmax.f32 %v9782, %v10039
  %v10200 = vmax.f32 %v9783, %v10167
  %v10201 = vmax.f32 %v9784, %v10040
  %v10202 = vmax.f32 %v9785, %v10168
  %v10203 = vmax.f32 %v9786, %v10041
  %v10204 = vmax.f32 %v9787, %v10169
  %v10205 = vmax.f32 %v9788, %v10042
  %v10206 = vmax.f32 %v9789, %v10170
  %v10207 = vmax.f32 %v9790, %v10043
  %v10208 = vmax.f32 %v9791, %v10171
  %v10209 = vmax.f32 %v9792, %v10044
  %v10210 = vmax.f32 %v9793, %v10172
  %v10211 = vmax.f32 %v9794, %v10045
  %v10212 = vmax.f32 %v9795, %v10173
  %v10213 = vmax.f32 %v9796, %v10046
  %v10214 = vmax.f32 %v9797, %v10174
  %v10215 = vmax.f32 %v9798, %v10047
  %v10216 = vmax.f32 %v9799, %v10175
  %v10217 = vmax.f32 %v9800, %v10048
  %v10218 = vmax.f32 %v9801, %v10176
  %v10219 = vmax.f32 %v9802, %v10049
  %v10220 = vmax.f32 %v9803, %v10177
  %v10221 = vmax.f32 %v9804, %v10050
  %v10222 = vmax.f32 %v9805, %v10178
  %v10223 = vmax.f32 %v9806, %v10051
  %v10224 = vmax.f32 %v9807, %v10179
  %v10225 = vmax.f32 %v9808, %v10052
  %v10226 = vmax.f32 %v9809, %v10180
  %v10227 = vmax.f32 %v9810, %v10053
  %v10228 = vmax.f32 %v9811, %v10181
  %v10229 = vmax.f32 %v9812, %v10054
  %v10230 = vmax.f32 %v9813, %v10182
  %v10231 = vmax.f32 %v9814, %v10055
  %v10232 = vmax.f32 %v9815, %v10183
  %v10233 = vmax.f32 %v9816, %v10056
  %v10234 = vmax.f32 %v9817, %v10184
  %v10235 = vmax.f32 %v9818, %v10057
  %v10236 = vmax.f32 %v9819, %v10185
  %v10237 = vmax.f32 %v9820, %v10058
  %v10238 = vmax.f32 %v9821, %v10186
  %v10239 = vmax.f32 %v9822, %v10059
  %v10240 = vmax.f32 %v9823, %v10187
  %v10241 = vmax.f32 %v9824, %v10060
  %v10242 = vmax.f32 %v9825, %v10188
  %v10243 = vmax.f32 %v9826, %v10061
  %v10244 = vmax.f32 %v9827, %v10189
  %v10245 = vmax.f32 %v9828, %v10062
  %v10246 = vmax.f32 %v9829, %v10190
  %v10247 = vmax.f32 %v9830, %v10063
  %v10248 = vmax.f32 %v9831, %v10191
  %v10249 = vmax.f32 %v9832, %v10064
  %v10250 = vmax.f32 %v9833, %v10192
  %v10251 = vmax.f32 %v9834, %v10065
  %v10252 = vmax.f32 %v9835, %v10193
  %v10253 = vmax.f32 %v9836, %v10066
  %v10254 = vmax.f32 %v9837, %v10194
  %v10255 = vmax.f32 %v9838, %v10067
  %v10256 = vmax.f32 %v9839, %v10195
  %v10257 = vmax.f32 %v9840, %v10068
  %v10258 = vmax.f32 %v9841, %v10196
  %v10259 = vmax.f32 %v9842, %v10069
  %v10260 = vmax.f32 %v9843, %v10197
  %v10261 = vmax.f32 %v9844, %v10070
  %v10262 = vmax.f32 %v9845, %v10198
  %v10263 = vmax.f32 %v10199, 0.0
  %v10264 = vmax.f32 %v10200, 0.0
  %v10265 = vmax.f32 %v10201, 0.0
  %v10266 = vmax.f32 %v10202, 0.0
  %v10267 = vmax.f32 %v10203, 0.0
  %v10268 = vmax.f32 %v10204, 0.0
  %v10269 = vmax.f32 %v10205, 0.0
  %v10270 = vmax.f32 %v10206, 0.0
  %v10271 = vmax.f32 %v10207, 0.0
  %v10272 = vmax.f32 %v10208, 0.0
  %v10273 = vmax.f32 %v10209, 0.0
  %v10274 = vmax.f32 %v10210, 0.0
  %v10275 = vmax.f32 %v10211, 0.0
  %v10276 = vmax.f32 %v10212, 0.0
  %v10277 = vmax.f32 %v10213, 0.0
  %v10278 = vmax.f32 %v10214, 0.0
  %v10279 = vmax.f32 %v10215, 0.0
  %v10280 = vmax.f32 %v10216, 0.0
  %v10281 = vmax.f32 %v10217, 0.0
  %v10282 = vmax.f32 %v10218, 0.0
  %v10283 = vmax.f32 %v10219, 0.0
  %v10284 = vmax.f32 %v10220, 0.0
  %v10285 = vmax.f32 %v10221, 0.0
  %v10286 = vmax.f32 %v10222, 0.0
  %v10287 = vmax.f32 %v10223, 0.0
  %v10288 = vmax.f32 %v10224, 0.0
  %v10289 = vmax.f32 %v10225, 0.0
  %v10290 = vmax.f32 %v10226, 0.0
  %v10291 = vmax.f32 %v10227, 0.0
  %v10292 = vmax.f32 %v10228, 0.0
  %v10293 = vmax.f32 %v10229, 0.0
  %v10294 = vmax.f32 %v10230, 0.0
  %v10295 = vmax.f32 %v10231, 0.0
  %v10296 = vmax.f32 %v10232, 0.0
  %v10297 = vmax.f32 %v10233, 0.0
  %v10298 = vmax.f32 %v10234, 0.0
  %v10299 = vmax.f32 %v10235, 0.0
  %v10300 = vmax.f32 %v10236, 0.0
  %v10301 = vmax.f32 %v10237, 0.0
  %v10302 = vmax.f32 %v10238, 0.0
  %v10303 = vmax.f32 %v10239, 0.0
  %v10304 = vmax.f32 %v10240, 0.0
  %v10305 = vmax.f32 %v10241, 0.0
  %v10306 = vmax.f32 %v10242, 0.0
  %v10307 = vmax.f32 %v10243, 0.0
  %v10308 = vmax.f32 %v10244, 0.0
  %v10309 = vmax.f32 %v10245, 0.0
  %v10310 = vmax.f32 %v10246, 0.0
  %v10311 = vmax.f32 %v10247, 0.0
  %v10312 = vmax.f32 %v10248, 0.0
  %v10313 = vmax.f32 %v10249, 0.0
  %v10314 = vmax.f32 %v10250, 0.0
  %v10315 = vmax.f32 %v10251, 0.0
  %v10316 = vmax.f32 %v10252, 0.0
  %v10317 = vmax.f32 %v10253, 0.0
  %v10318 = vmax.f32 %v10254, 0.0
  %v10319 = vmax.f32 %v10255, 0.0
  %v10320 = vmax.f32 %v10256, 0.0
  %v10321 = vmax.f32 %v10257, 0.0
  %v10322 = vmax.f32 %v10258, 0.0
  %v10323 = vmax.f32 %v10259, 0.0
  %v10324 = vmax.f32 %v10260, 0.0
  %v10325 = vmax.f32 %v10261, 0.0
  %v10326 = vmax.f32 %v10262, 0.0
  %v10327 = vpack.c.bf16 %v10264, %v10263
  %v10328 = vpack.c.bf16 %v10266, %v10265
  %v10329 = vpack.c.bf16 %v10268, %v10267
  %v10330 = vpack.c.bf16 %v10270, %v10269
  %v10331 = vpack.c.bf16 %v10272, %v10271
  %v10332 = vpack.c.bf16 %v10274, %v10273
  %v10333 = vpack.c.bf16 %v10276, %v10275
  %v10334 = vpack.c.bf16 %v10278, %v10277
  %v10335 = vpack.c.bf16 %v10280, %v10279
  %v10336 = vpack.c.bf16 %v10282, %v10281
  %v10337 = vpack.c.bf16 %v10284, %v10283
  %v10338 = vpack.c.bf16 %v10286, %v10285
  %v10339 = vpack.c.bf16 %v10288, %v10287
  %v10340 = vpack.c.bf16 %v10290, %v10289
  %v10341 = vpack.c.bf16 %v10292, %v10291
  %v10342 = vpack.c.bf16 %v10294, %v10293
  %v10343 = vpack.c.bf16 %v10296, %v10295
  %v10344 = vpack.c.bf16 %v10298, %v10297
  %v10345 = vpack.c.bf16 %v10300, %v10299
  %v10346 = vpack.c.bf16 %v10302, %v10301
  %v10347 = vpack.c.bf16 %v10304, %v10303
  %v10348 = vpack.c.bf16 %v10306, %v10305
  %v10349 = vpack.c.bf16 %v10308, %v10307
  %v10350 = vpack.c.bf16 %v10310, %v10309
  %v10351 = vpack.c.bf16 %v10312, %v10311
  %v10352 = vpack.c.bf16 %v10314, %v10313
  %v10353 = vpack.c.bf16 %v10316, %v10315
  %v10354 = vpack.c.bf16 %v10318, %v10317
  %v10355 = vpack.c.bf16 %v10320, %v10319
  %v10356 = vpack.c.bf16 %v10322, %v10321
  %v10357 = vpack.c.bf16 %v10324, %v10323
  %v10358 = vpack.c.bf16 %v10326, %v10325
  %v10375 = vunpack.c.l.b16 %v10327
  %v10376 = vunpack.c.h.b16 %v10327
  %v10377 = vunpack.c.l.b16 %v10329
  %v10378 = vunpack.c.h.b16 %v10329
  %v10379 = vunpack.c.l.b16 %v10331
  %v10380 = vunpack.c.h.b16 %v10331
  %v10381 = vunpack.c.l.b16 %v10333
  %v10382 = vunpack.c.h.b16 %v10333
  %v10383 = vunpack.c.l.b16 %v10335
  %v10384 = vunpack.c.h.b16 %v10335
  %v10385 = vunpack.c.l.b16 %v10337
  %v10386 = vunpack.c.h.b16 %v10337
  %v10387 = vunpack.c.l.b16 %v10339
  %v10388 = vunpack.c.h.b16 %v10339
  %v10389 = vunpack.c.l.b16 %v10341
  %v10390 = vunpack.c.h.b16 %v10341
  %v10391 = vunpack.c.l.b16 %v10343
  %v10392 = vunpack.c.h.b16 %v10343
  %v10393 = vunpack.c.l.b16 %v10345
  %v10394 = vunpack.c.h.b16 %v10345
  %v10395 = vunpack.c.l.b16 %v10347
  %v10396 = vunpack.c.h.b16 %v10347
  %v10397 = vunpack.c.l.b16 %v10349
  %v10398 = vunpack.c.h.b16 %v10349
  %v10399 = vunpack.c.l.b16 %v10351
  %v10400 = vunpack.c.h.b16 %v10351
  %v10401 = vunpack.c.l.b16 %v10353
  %v10402 = vunpack.c.h.b16 %v10353
  %v10403 = vunpack.c.l.b16 %v10355
  %v10404 = vunpack.c.h.b16 %v10355
  %v10405 = vunpack.c.l.b16 %v10357
  %v10406 = vunpack.c.h.b16 %v10357
  %v10407 = vpack.c.b16 %v10375, %v10375
  %v10408 = vpack.c.b16 %v10376, %v10376
  %v10409 = vpack.c.b16 %v10377, %v10377
  %v10410 = vpack.c.b16 %v10378, %v10378
  %v10411 = vpack.c.b16 %v10379, %v10379
  %v10412 = vpack.c.b16 %v10380, %v10380
  %v10413 = vpack.c.b16 %v10381, %v10381
  %v10414 = vpack.c.b16 %v10382, %v10382
  %v10415 = vpack.c.b16 %v10383, %v10383
  %v10416 = vpack.c.b16 %v10384, %v10384
  %v10417 = vpack.c.b16 %v10385, %v10385
  %v10418 = vpack.c.b16 %v10386, %v10386
  %v10419 = vpack.c.b16 %v10387, %v10387
  %v10420 = vpack.c.b16 %v10388, %v10388
  %v10421 = vpack.c.b16 %v10389, %v10389
  %v10422 = vpack.c.b16 %v10390, %v10390
  %v10423 = vpack.c.b16 %v10391, %v10391
  %v10424 = vpack.c.b16 %v10392, %v10392
  %v10425 = vpack.c.b16 %v10393, %v10393
  %v10426 = vpack.c.b16 %v10394, %v10394
  %v10427 = vpack.c.b16 %v10395, %v10395
  %v10428 = vpack.c.b16 %v10396, %v10396
  %v10429 = vpack.c.b16 %v10397, %v10397
  %v10430 = vpack.c.b16 %v10398, %v10398
  %v10431 = vpack.c.b16 %v10399, %v10399
  %v10432 = vpack.c.b16 %v10400, %v10400
  %v10433 = vpack.c.b16 %v10401, %v10401
  %v10434 = vpack.c.b16 %v10402, %v10402
  %v10435 = vpack.c.b16 %v10403, %v10403
  %v10436 = vpack.c.b16 %v10404, %v10404
  %v10437 = vpack.c.b16 %v10405, %v10405
  %v10438 = vpack.c.b16 %v10406, %v10406
  %v10439 = vunpack.c.l.b16 %v10407
  %v10440 = vunpack.c.l.b16 %v10408
  %v10441 = vunpack.c.l.b16 %v10409
  %v10442 = vunpack.c.l.b16 %v10410
  %v10443 = vunpack.c.l.b16 %v10411
  %v10444 = vunpack.c.l.b16 %v10412
  %v10445 = vunpack.c.l.b16 %v10413
  %v10446 = vunpack.c.l.b16 %v10414
  %v10447 = vunpack.c.l.b16 %v10415
  %v10448 = vunpack.c.l.b16 %v10416
  %v10449 = vunpack.c.l.b16 %v10417
  %v10450 = vunpack.c.l.b16 %v10418
  %v10451 = vunpack.c.l.b16 %v10419
  %v10452 = vunpack.c.l.b16 %v10420
  %v10453 = vunpack.c.l.b16 %v10421
  %v10454 = vunpack.c.l.b16 %v10422
  %v10455 = vunpack.c.l.b16 %v10423
  %v10456 = vunpack.c.l.b16 %v10424
  %v10457 = vunpack.c.l.b16 %v10425
  %v10458 = vunpack.c.l.b16 %v10426
  %v10459 = vunpack.c.l.b16 %v10427
  %v10460 = vunpack.c.l.b16 %v10428
  %v10461 = vunpack.c.l.b16 %v10429
  %v10462 = vunpack.c.l.b16 %v10430
  %v10463 = vunpack.c.l.b16 %v10431
  %v10464 = vunpack.c.l.b16 %v10432
  %v10465 = vunpack.c.l.b16 %v10433
  %v10466 = vunpack.c.l.b16 %v10434
  %v10467 = vunpack.c.l.b16 %v10435
  %v10468 = vunpack.c.l.b16 %v10436
  %v10469 = vunpack.c.l.b16 %v10437
  %v10470 = vunpack.c.l.b16 %v10438
  %v10471 = vrot.slane %v10441, 7
  %vm10472 = vcmask 1041409
  %v10473 = vsel %vm10472, %v10471, %v10439
  %v10474 = vrot.slane %v10443, 6
  %vm10475 = vcmask 1042434
  %v10476 = vsel %vm10475, %v10474, %v10473
  %v10477 = vrot.slane %v10445, 5
  %vm10478 = vcmask 1043459
  %v10479 = vsel %vm10478, %v10477, %v10476
  %v10480 = vrot.slane %v10447, 4
  %vm10481 = vcmask 1044484
  %v10482 = vsel %vm10481, %v10480, %v10479
  %v10483 = vrot.slane %v10449, 3
  %vm10484 = vcmask 1045509
  %v10485 = vsel %vm10484, %v10483, %v10482
  %v10486 = vrot.slane %v10451, 2
  %vm10487 = vcmask 1046534
  %v10488 = vsel %vm10487, %v10486, %v10485
  %v10489 = vrot.slane %v10453, 1
  %vm10490 = vcmask 1047559
  %v10491 = vsel %vm10490, %v10489, %v10488
  %v10492 = vrot.slane %v10442, 7
  %v10493 = vsel %vm10472, %v10492, %v10440
  %v10494 = vrot.slane %v10444, 6
  %v10495 = vsel %vm10475, %v10494, %v10493
  %v10496 = vrot.slane %v10446, 5
  %v10497 = vsel %vm10478, %v10496, %v10495
  %v10498 = vrot.slane %v10448, 4
  %v10499 = vsel %vm10481, %v10498, %v10497
  %v10500 = vrot.slane %v10450, 3
  %v10501 = vsel %vm10484, %v10500, %v10499
  %v10502 = vrot.slane %v10452, 2
  %v10503 = vsel %vm10487, %v10502, %v10501
  %v10504 = vrot.slane %v10454, 1
  %v10505 = vsel %vm10490, %v10504, %v10503
  %v10506 = vrot.slane %v10457, 7
  %v10507 = vsel %vm10472, %v10506, %v10455
  %v10508 = vrot.slane %v10459, 6
  %v10509 = vsel %vm10475, %v10508, %v10507
  %v10510 = vrot.slane %v10461, 5
  %v10511 = vsel %vm10478, %v10510, %v10509
  %v10512 = vrot.slane %v10463, 4
  %v10513 = vsel %vm10481, %v10512, %v10511
  %v10514 = vrot.slane %v10465, 3
  %v10515 = vsel %vm10484, %v10514, %v10513
  %v10516 = vrot.slane %v10467, 2
  %v10517 = vsel %vm10487, %v10516, %v10515
  %v10518 = vrot.slane %v10469, 1
  %v10519 = vsel %vm10490, %v10518, %v10517
  %v10520 = vrot.slane %v10458, 7
  %v10521 = vsel %vm10472, %v10520, %v10456
  %v10522 = vrot.slane %v10460, 6
  %v10523 = vsel %vm10475, %v10522, %v10521
  %v10524 = vrot.slane %v10462, 5
  %v10525 = vsel %vm10478, %v10524, %v10523
  %v10526 = vrot.slane %v10464, 4
  %v10527 = vsel %vm10481, %v10526, %v10525
  %v10528 = vrot.slane %v10466, 3
  %v10529 = vsel %vm10484, %v10528, %v10527
  %v10530 = vrot.slane %v10468, 2
  %v10531 = vsel %vm10487, %v10530, %v10529
  %v10532 = vrot.slane %v10470, 1
  %v10533 = vsel %vm10490, %v10532, %v10531
  %v10534 = vpack.c.b16 %v10519, %v10491
  %v10535 = vpack.c.b16 %v10533, %v10505
  %v10538 = vrot.slane %v10439, 4
  %v10539 = vrot.slane %v10441, 3
  %v10540 = vsel %vm10472, %v10539, %v10538
  %v10541 = vrot.slane %v10443, 2
  %v10542 = vsel %vm10475, %v10541, %v10540
  %v10543 = vrot.slane %v10445, 1
  %v10544 = vsel %vm10478, %v10543, %v10542
  %v10545 = vsel %vm10481, %v10447, %v10544
  %v10546 = vrot.slane %v10449, 7
  %v10547 = vsel %vm10484, %v10546, %v10545
  %v10548 = vrot.slane %v10451, 6
  %v10549 = vsel %vm10487, %v10548, %v10547
  %v10550 = vrot.slane %v10453, 5
  %v10551 = vsel %vm10490, %v10550, %v10549
  %v10552 = vrot.slane %v10440, 4
  %v10553 = vrot.slane %v10442, 3
  %v10554 = vsel %vm10472, %v10553, %v10552
  %v10555 = vrot.slane %v10444, 2
  %v10556 = vsel %vm10475, %v10555, %v10554
  %v10557 = vrot.slane %v10446, 1
  %v10558 = vsel %vm10478, %v10557, %v10556
  %v10559 = vsel %vm10481, %v10448, %v10558
  %v10560 = vrot.slane %v10450, 7
  %v10561 = vsel %vm10484, %v10560, %v10559
  %v10562 = vrot.slane %v10452, 6
  %v10563 = vsel %vm10487, %v10562, %v10561
  %v10564 = vrot.slane %v10454, 5
  %v10565 = vsel %vm10490, %v10564, %v10563
  %v10566 = vrot.slane %v10455, 4
  %v10567 = vrot.slane %v10457, 3
  %v10568 = vsel %vm10472, %v10567, %v10566
  %v10569 = vrot.slane %v10459, 2
  %v10570 = vsel %vm10475, %v10569, %v10568
  %v10571 = vrot.slane %v10461, 1
  %v10572 = vsel %vm10478, %v10571, %v10570
  %v10573 = vsel %vm10481, %v10463, %v10572
  %v10574 = vrot.slane %v10465, 7
  %v10575 = vsel %vm10484, %v10574, %v10573
  %v10576 = vrot.slane %v10467, 6
  %v10577 = vsel %vm10487, %v10576, %v10575
  %v10578 = vrot.slane %v10469, 5
  %v10579 = vsel %vm10490, %v10578, %v10577
  %v10580 = vrot.slane %v10456, 4
  %v10581 = vrot.slane %v10458, 3
  %v10582 = vsel %vm10472, %v10581, %v10580
  %v10583 = vrot.slane %v10460, 2
  %v10584 = vsel %vm10475, %v10583, %v10582
  %v10585 = vrot.slane %v10462, 1
  %v10586 = vsel %vm10478, %v10585, %v10584
  %v10587 = vsel %vm10481, %v10464, %v10586
  %v10588 = vrot.slane %v10466, 7
  %v10589 = vsel %vm10484, %v10588, %v10587
  %v10590 = vrot.slane %v10468, 6
  %v10591 = vsel %vm10487, %v10590, %v10589
  %v10592 = vrot.slane %v10470, 5
  %v10593 = vsel %vm10490, %v10592, %v10591
  %v10594 = vpack.c.b16 %v10579, %v10551
  %v10595 = vpack.c.b16 %v10593, %v10565
  %v10614 = vunpack.c.l.b16 %v10328
  %v10615 = vunpack.c.h.b16 %v10328
  %v10616 = vunpack.c.l.b16 %v10330
  %v10617 = vunpack.c.h.b16 %v10330
  %v10618 = vunpack.c.l.b16 %v10332
  %v10619 = vunpack.c.h.b16 %v10332
  %v10620 = vunpack.c.l.b16 %v10334
  %v10621 = vunpack.c.h.b16 %v10334
  %v10622 = vunpack.c.l.b16 %v10336
  %v10623 = vunpack.c.h.b16 %v10336
  %v10624 = vunpack.c.l.b16 %v10338
  %v10625 = vunpack.c.h.b16 %v10338
  %v10626 = vunpack.c.l.b16 %v10340
  %v10627 = vunpack.c.h.b16 %v10340
  %v10628 = vunpack.c.l.b16 %v10342
  %v10629 = vunpack.c.h.b16 %v10342
  %v10630 = vunpack.c.l.b16 %v10344
  %v10631 = vunpack.c.h.b16 %v10344
  %v10632 = vunpack.c.l.b16 %v10346
  %v10633 = vunpack.c.h.b16 %v10346
  %v10634 = vunpack.c.l.b16 %v10348
  %v10635 = vunpack.c.h.b16 %v10348
  %v10636 = vunpack.c.l.b16 %v10350
  %v10637 = vunpack.c.h.b16 %v10350
  %v10638 = vunpack.c.l.b16 %v10352
  %v10639 = vunpack.c.h.b16 %v10352
  %v10640 = vunpack.c.l.b16 %v10354
  %v10641 = vunpack.c.h.b16 %v10354
  %v10642 = vunpack.c.l.b16 %v10356
  %v10643 = vunpack.c.h.b16 %v10356
  %v10644 = vunpack.c.l.b16 %v10358
  %v10645 = vunpack.c.h.b16 %v10358
  %v10646 = vpack.c.b16 %v10614, %v10614
  %v10647 = vpack.c.b16 %v10615, %v10615
  %v10648 = vpack.c.b16 %v10616, %v10616
  %v10649 = vpack.c.b16 %v10617, %v10617
  %v10650 = vpack.c.b16 %v10618, %v10618
  %v10651 = vpack.c.b16 %v10619, %v10619
  %v10652 = vpack.c.b16 %v10620, %v10620
  %v10653 = vpack.c.b16 %v10621, %v10621
  %v10654 = vpack.c.b16 %v10622, %v10622
  %v10655 = vpack.c.b16 %v10623, %v10623
  %v10656 = vpack.c.b16 %v10624, %v10624
  %v10657 = vpack.c.b16 %v10625, %v10625
  %v10658 = vpack.c.b16 %v10626, %v10626
  %v10659 = vpack.c.b16 %v10627, %v10627
  %v10660 = vpack.c.b16 %v10628, %v10628
  %v10661 = vpack.c.b16 %v10629, %v10629
  %v10662 = vpack.c.b16 %v10630, %v10630
  %v10663 = vpack.c.b16 %v10631, %v10631
  %v10664 = vpack.c.b16 %v10632, %v10632
  %v10665 = vpack.c.b16 %v10633, %v10633
  %v10666 = vpack.c.b16 %v10634, %v10634
  %v10667 = vpack.c.b16 %v10635, %v10635
  %v10668 = vpack.c.b16 %v10636, %v10636
  %v10669 = vpack.c.b16 %v10637, %v10637
  %v10670 = vpack.c.b16 %v10638, %v10638
  %v10671 = vpack.c.b16 %v10639, %v10639
  %v10672 = vpack.c.b16 %v10640, %v10640
  %v10673 = vpack.c.b16 %v10641, %v10641
  %v10674 = vpack.c.b16 %v10642, %v10642
  %v10675 = vpack.c.b16 %v10643, %v10643
  %v10676 = vpack.c.b16 %v10644, %v10644
  %v10677 = vpack.c.b16 %v10645, %v10645
  %v10678 = vunpack.c.l.b16 %v10646
  %v10679 = vunpack.c.l.b16 %v10647
  %v10680 = vunpack.c.l.b16 %v10648
  %v10681 = vunpack.c.l.b16 %v10649
  %v10682 = vunpack.c.l.b16 %v10650
  %v10683 = vunpack.c.l.b16 %v10651
  %v10684 = vunpack.c.l.b16 %v10652
  %v10685 = vunpack.c.l.b16 %v10653
  %v10686 = vunpack.c.l.b16 %v10654
  %v10687 = vunpack.c.l.b16 %v10655
  %v10688 = vunpack.c.l.b16 %v10656
  %v10689 = vunpack.c.l.b16 %v10657
  %v10690 = vunpack.c.l.b16 %v10658
  %v10691 = vunpack.c.l.b16 %v10659
  %v10692 = vunpack.c.l.b16 %v10660
  %v10693 = vunpack.c.l.b16 %v10661
  %v10694 = vunpack.c.l.b16 %v10662
  %v10695 = vunpack.c.l.b16 %v10663
  %v10696 = vunpack.c.l.b16 %v10664
  %v10697 = vunpack.c.l.b16 %v10665
  %v10698 = vunpack.c.l.b16 %v10666
  %v10699 = vunpack.c.l.b16 %v10667
  %v10700 = vunpack.c.l.b16 %v10668
  %v10701 = vunpack.c.l.b16 %v10669
  %v10702 = vunpack.c.l.b16 %v10670
  %v10703 = vunpack.c.l.b16 %v10671
  %v10704 = vunpack.c.l.b16 %v10672
  %v10705 = vunpack.c.l.b16 %v10673
  %v10706 = vunpack.c.l.b16 %v10674
  %v10707 = vunpack.c.l.b16 %v10675
  %v10708 = vunpack.c.l.b16 %v10676
  %v10709 = vunpack.c.l.b16 %v10677
  %v10710 = vrot.slane %v10680, 7
  %v10711 = vsel %vm10472, %v10710, %v10678
  %v10712 = vrot.slane %v10682, 6
  %v10713 = vsel %vm10475, %v10712, %v10711
  %v10714 = vrot.slane %v10684, 5
  %v10715 = vsel %vm10478, %v10714, %v10713
  %v10716 = vrot.slane %v10686, 4
  %v10717 = vsel %vm10481, %v10716, %v10715
  %v10718 = vrot.slane %v10688, 3
  %v10719 = vsel %vm10484, %v10718, %v10717
  %v10720 = vrot.slane %v10690, 2
  %v10721 = vsel %vm10487, %v10720, %v10719
  %v10722 = vrot.slane %v10692, 1
  %v10723 = vsel %vm10490, %v10722, %v10721
  %v10724 = vrot.slane %v10681, 7
  %v10725 = vsel %vm10472, %v10724, %v10679
  %v10726 = vrot.slane %v10683, 6
  %v10727 = vsel %vm10475, %v10726, %v10725
  %v10728 = vrot.slane %v10685, 5
  %v10729 = vsel %vm10478, %v10728, %v10727
  %v10730 = vrot.slane %v10687, 4
  %v10731 = vsel %vm10481, %v10730, %v10729
  %v10732 = vrot.slane %v10689, 3
  %v10733 = vsel %vm10484, %v10732, %v10731
  %v10734 = vrot.slane %v10691, 2
  %v10735 = vsel %vm10487, %v10734, %v10733
  %v10736 = vrot.slane %v10693, 1
  %v10737 = vsel %vm10490, %v10736, %v10735
  %v10738 = vrot.slane %v10696, 7
  %v10739 = vsel %vm10472, %v10738, %v10694
  %v10740 = vrot.slane %v10698, 6
  %v10741 = vsel %vm10475, %v10740, %v10739
  %v10742 = vrot.slane %v10700, 5
  %v10743 = vsel %vm10478, %v10742, %v10741
  %v10744 = vrot.slane %v10702, 4
  %v10745 = vsel %vm10481, %v10744, %v10743
  %v10746 = vrot.slane %v10704, 3
  %v10747 = vsel %vm10484, %v10746, %v10745
  %v10748 = vrot.slane %v10706, 2
  %v10749 = vsel %vm10487, %v10748, %v10747
  %v10750 = vrot.slane %v10708, 1
  %v10751 = vsel %vm10490, %v10750, %v10749
  %v10752 = vrot.slane %v10697, 7
  %v10753 = vsel %vm10472, %v10752, %v10695
  %v10754 = vrot.slane %v10699, 6
  %v10755 = vsel %vm10475, %v10754, %v10753
  %v10756 = vrot.slane %v10701, 5
  %v10757 = vsel %vm10478, %v10756, %v10755
  %v10758 = vrot.slane %v10703, 4
  %v10759 = vsel %vm10481, %v10758, %v10757
  %v10760 = vrot.slane %v10705, 3
  %v10761 = vsel %vm10484, %v10760, %v10759
  %v10762 = vrot.slane %v10707, 2
  %v10763 = vsel %vm10487, %v10762, %v10761
  %v10764 = vrot.slane %v10709, 1
  %v10765 = vsel %vm10490, %v10764, %v10763
  %v10766 = vpack.c.b16 %v10751, %v10723
  %v10767 = vpack.c.b16 %v10765, %v10737
  %v10770 = vrot.slane %v10678, 4
  %v10771 = vrot.slane %v10680, 3
  %v10772 = vsel %vm10472, %v10771, %v10770
  %v10773 = vrot.slane %v10682, 2
  %v10774 = vsel %vm10475, %v10773, %v10772
  %v10775 = vrot.slane %v10684, 1
  %v10776 = vsel %vm10478, %v10775, %v10774
  %v10777 = vsel %vm10481, %v10686, %v10776
  %v10778 = vrot.slane %v10688, 7
  %v10779 = vsel %vm10484, %v10778, %v10777
  %v10780 = vrot.slane %v10690, 6
  %v10781 = vsel %vm10487, %v10780, %v10779
  %v10782 = vrot.slane %v10692, 5
  %v10783 = vsel %vm10490, %v10782, %v10781
  %v10784 = vrot.slane %v10679, 4
  %v10785 = vrot.slane %v10681, 3
  %v10786 = vsel %vm10472, %v10785, %v10784
  %v10787 = vrot.slane %v10683, 2
  %v10788 = vsel %vm10475, %v10787, %v10786
  %v10789 = vrot.slane %v10685, 1
  %v10790 = vsel %vm10478, %v10789, %v10788
  %v10791 = vsel %vm10481, %v10687, %v10790
  %v10792 = vrot.slane %v10689, 7
  %v10793 = vsel %vm10484, %v10792, %v10791
  %v10794 = vrot.slane %v10691, 6
  %v10795 = vsel %vm10487, %v10794, %v10793
  %v10796 = vrot.slane %v10693, 5
  %v10797 = vsel %vm10490, %v10796, %v10795
  %v10798 = vrot.slane %v10694, 4
  %v10799 = vrot.slane %v10696, 3
  %v10800 = vsel %vm10472, %v10799, %v10798
  %v10801 = vrot.slane %v10698, 2
  %v10802 = vsel %vm10475, %v10801, %v10800
  %v10803 = vrot.slane %v10700, 1
  %v10804 = vsel %vm10478, %v10803, %v10802
  %v10805 = vsel %vm10481, %v10702, %v10804
  %v10806 = vrot.slane %v10704, 7
  %v10807 = vsel %vm10484, %v10806, %v10805
  %v10808 = vrot.slane %v10706, 6
  %v10809 = vsel %vm10487, %v10808, %v10807
  %v10810 = vrot.slane %v10708, 5
  %v10811 = vsel %vm10490, %v10810, %v10809
  %v10812 = vrot.slane %v10695, 4
  %v10813 = vrot.slane %v10697, 3
  %v10814 = vsel %vm10472, %v10813, %v10812
  %v10815 = vrot.slane %v10699, 2
  %v10816 = vsel %vm10475, %v10815, %v10814
  %v10817 = vrot.slane %v10701, 1
  %v10818 = vsel %vm10478, %v10817, %v10816
  %v10819 = vsel %vm10481, %v10703, %v10818
  %v10820 = vrot.slane %v10705, 7
  %v10821 = vsel %vm10484, %v10820, %v10819
  %v10822 = vrot.slane %v10707, 6
  %v10823 = vsel %vm10487, %v10822, %v10821
  %v10824 = vrot.slane %v10709, 5
  %v10825 = vsel %vm10490, %v10824, %v10823
  %v10826 = vpack.c.b16 %v10811, %v10783
  %v10827 = vpack.c.b16 %v10825, %v10797
  %v10830 = vld [vmem:[%s5] sm:$0xf]
  %v10831 = vld [vmem:[%s5 + $0x4] sm:$0xf]
  %v10832 = vld [vmem:[%s5 + $0x8] sm:$0xf]
  %v10833 = vld [vmem:[%s5 + $0xc] sm:$0xf]
  %v10834 = vld [vmem:[%s5 + $0x10] sm:$0xf]
  %v10835 = vld [vmem:[%s5 + $0x14] sm:$0xf]
  %v10836 = vld [vmem:[%s5 + $0x18] sm:$0xf]
  %v10837 = vld [vmem:[%s5 + $0x1c] sm:$0xf]
  %v10838 = vld [vmem:[%s5 + $0x20] sm:$0xf]
  %v10839 = vld [vmem:[%s5 + $0x24] sm:$0xf]
  %v10840 = vld [vmem:[%s5 + $0x28] sm:$0xf]
  %v10841 = vld [vmem:[%s5 + $0x2c] sm:$0xf]
  %v10842 = vld [vmem:[%s5 + $0x30] sm:$0xf]
  %v10843 = vld [vmem:[%s5 + $0x34] sm:$0xf]
  %v10844 = vld [vmem:[%s5 + $0x38] sm:$0xf]
  %v10845 = vld [vmem:[%s5 + $0x3c] sm:$0xf]
  %v10846 = vld [vmem:[%s5 + $0x40] sm:$0xf]
  %v10847 = vld [vmem:[%s5 + $0x44] sm:$0xf]
  %v10848 = vld [vmem:[%s5 + $0x48] sm:$0xf]
  %v10849 = vld [vmem:[%s5 + $0x4c] sm:$0xf]
  %v10850 = vld [vmem:[%s5 + $0x50] sm:$0xf]
  %v10851 = vld [vmem:[%s5 + $0x54] sm:$0xf]
  %v10852 = vld [vmem:[%s5 + $0x58] sm:$0xf]
  %v10853 = vld [vmem:[%s5 + $0x5c] sm:$0xf]
  %v10854 = vld [vmem:[%s5 + $0x60] sm:$0xf]
  %v10855 = vld [vmem:[%s5 + $0x64] sm:$0xf]
  %v10856 = vld [vmem:[%s5 + $0x68] sm:$0xf]
  %v10857 = vld [vmem:[%s5 + $0x6c] sm:$0xf]
  %v10858 = vld [vmem:[%s5 + $0x70] sm:$0xf]
  %v10859 = vld [vmem:[%s5 + $0x74] sm:$0xf]
  %v10860 = vld [vmem:[%s5 + $0x78] sm:$0xf]
  %v10861 = vld [vmem:[%s5 + $0x7c] sm:$0xf]
  %v10862 = vld [vmem:[%s5 + $0x80] sm:$0xf]
  %v10863 = vld [vmem:[%s5 + $0x84] sm:$0xf]
  %v10864 = vld [vmem:[%s5 + $0x88] sm:$0xf]
  %v10865 = vld [vmem:[%s5 + $0x8c] sm:$0xf]
  %v10866 = vld [vmem:[%s5 + $0x90] sm:$0xf]
  %v10867 = vld [vmem:[%s5 + $0x94] sm:$0xf]
  %v10868 = vld [vmem:[%s5 + $0x98] sm:$0xf]
  %v10869 = vld [vmem:[%s5 + $0x9c] sm:$0xf]
  %v10870 = vld [vmem:[%s5 + $0xa0] sm:$0xf]
  %v10871 = vld [vmem:[%s5 + $0xa4] sm:$0xf]
  %v10872 = vld [vmem:[%s5 + $0xa8] sm:$0xf]
  %v10873 = vld [vmem:[%s5 + $0xac] sm:$0xf]
  %v10874 = vld [vmem:[%s5 + $0xb0] sm:$0xf]
  %v10875 = vld [vmem:[%s5 + $0xb4] sm:$0xf]
  %v10876 = vld [vmem:[%s5 + $0xb8] sm:$0xf]
  %v10877 = vld [vmem:[%s5 + $0xbc] sm:$0xf]
  %v10878 = vld [vmem:[%s5 + $0xc0] sm:$0xf]
  %v10879 = vld [vmem:[%s5 + $0xc4] sm:$0xf]
  %v10880 = vld [vmem:[%s5 + $0xc8] sm:$0xf]
  %v10881 = vld [vmem:[%s5 + $0xcc] sm:$0xf]
  %v10882 = vld [vmem:[%s5 + $0xd0] sm:$0xf]
  %v10883 = vld [vmem:[%s5 + $0xd4] sm:$0xf]
  %v10884 = vld [vmem:[%s5 + $0xd8] sm:$0xf]
  %v10885 = vld [vmem:[%s5 + $0xdc] sm:$0xf]
  %v10886 = vld [vmem:[%s5 + $0xe0] sm:$0xf]
  %v10887 = vld [vmem:[%s5 + $0xe4] sm:$0xf]
  %v10888 = vld [vmem:[%s5 + $0xe8] sm:$0xf]
  %v10889 = vld [vmem:[%s5 + $0xec] sm:$0xf]
  %v10890 = vld [vmem:[%s5 + $0xf0] sm:$0xf]
  %v10891 = vld [vmem:[%s5 + $0xf4] sm:$0xf]
  %v10892 = vld [vmem:[%s5 + $0xf8] sm:$0xf]
  %v10893 = vld [vmem:[%s5 + $0xfc] sm:$0xf]
  %v10894 = vld [vmem:[%s5 + $0x100] sm:$0xf]
  %v10895 = vld [vmem:[%s5 + $0x104] sm:$0xf]
  %v10896 = vld [vmem:[%s5 + $0x108] sm:$0xf]
  %v10897 = vld [vmem:[%s5 + $0x10c] sm:$0xf]
  %v10898 = vld [vmem:[%s5 + $0x110] sm:$0xf]
  %v10899 = vld [vmem:[%s5 + $0x114] sm:$0xf]
  %v10900 = vld [vmem:[%s5 + $0x118] sm:$0xf]
  %v10901 = vld [vmem:[%s5 + $0x11c] sm:$0xf]
  %v10902 = vld [vmem:[%s5 + $0x120] sm:$0xf]
  %v10903 = vld [vmem:[%s5 + $0x124] sm:$0xf]
  %v10904 = vld [vmem:[%s5 + $0x128] sm:$0xf]
  %v10905 = vld [vmem:[%s5 + $0x12c] sm:$0xf]
  %v10906 = vld [vmem:[%s5 + $0x130] sm:$0xf]
  %v10907 = vld [vmem:[%s5 + $0x134] sm:$0xf]
  %v10908 = vld [vmem:[%s5 + $0x138] sm:$0xf]
  %v10909 = vld [vmem:[%s5 + $0x13c] sm:$0xf]
  %v10910 = vld [vmem:[%s5 + $0x140] sm:$0xf]
  %v10911 = vld [vmem:[%s5 + $0x144] sm:$0xf]
  %v10912 = vld [vmem:[%s5 + $0x148] sm:$0xf]
  %v10913 = vld [vmem:[%s5 + $0x14c] sm:$0xf]
  %v10914 = vld [vmem:[%s5 + $0x150] sm:$0xf]
  %v10915 = vld [vmem:[%s5 + $0x154] sm:$0xf]
  %v10916 = vld [vmem:[%s5 + $0x158] sm:$0xf]
  %v10917 = vld [vmem:[%s5 + $0x15c] sm:$0xf]
  %v10918 = vld [vmem:[%s5 + $0x160] sm:$0xf]
  %v10919 = vld [vmem:[%s5 + $0x164] sm:$0xf]
  %v10920 = vld [vmem:[%s5 + $0x168] sm:$0xf]
  %v10921 = vld [vmem:[%s5 + $0x16c] sm:$0xf]
  %v10922 = vld [vmem:[%s5 + $0x170] sm:$0xf]
  %v10923 = vld [vmem:[%s5 + $0x174] sm:$0xf]
  %v10924 = vld [vmem:[%s5 + $0x178] sm:$0xf]
  %v10925 = vld [vmem:[%s5 + $0x17c] sm:$0xf]
  %v10926 = vld [vmem:[%s5 + $0x180] sm:$0xf]
  %v10927 = vld [vmem:[%s5 + $0x184] sm:$0xf]
  %v10928 = vld [vmem:[%s5 + $0x188] sm:$0xf]
  %v10929 = vld [vmem:[%s5 + $0x18c] sm:$0xf]
  %v10930 = vld [vmem:[%s5 + $0x190] sm:$0xf]
  %v10931 = vld [vmem:[%s5 + $0x194] sm:$0xf]
  %v10932 = vld [vmem:[%s5 + $0x198] sm:$0xf]
  %v10933 = vld [vmem:[%s5 + $0x19c] sm:$0xf]
  %v10934 = vld [vmem:[%s5 + $0x1a0] sm:$0xf]
  %v10935 = vld [vmem:[%s5 + $0x1a4] sm:$0xf]
  %v10936 = vld [vmem:[%s5 + $0x1a8] sm:$0xf]
  %v10937 = vld [vmem:[%s5 + $0x1ac] sm:$0xf]
  %v10938 = vld [vmem:[%s5 + $0x1b0] sm:$0xf]
  %v10939 = vld [vmem:[%s5 + $0x1b4] sm:$0xf]
  %v10940 = vld [vmem:[%s5 + $0x1b8] sm:$0xf]
  %v10941 = vld [vmem:[%s5 + $0x1bc] sm:$0xf]
  %v10942 = vld [vmem:[%s5 + $0x1c0] sm:$0xf]
  %v10943 = vld [vmem:[%s5 + $0x1c4] sm:$0xf]
  %v10944 = vld [vmem:[%s5 + $0x1c8] sm:$0xf]
  %v10945 = vld [vmem:[%s5 + $0x1cc] sm:$0xf]
  %v10946 = vld [vmem:[%s5 + $0x1d0] sm:$0xf]
  %v10947 = vld [vmem:[%s5 + $0x1d4] sm:$0xf]
  %v10948 = vld [vmem:[%s5 + $0x1d8] sm:$0xf]
  %v10949 = vld [vmem:[%s5 + $0x1dc] sm:$0xf]
  %v10950 = vld [vmem:[%s5 + $0x1e0] sm:$0xf]
  %v10951 = vld [vmem:[%s5 + $0x1e4] sm:$0xf]
  %v10952 = vld [vmem:[%s5 + $0x1e8] sm:$0xf]
  %v10953 = vld [vmem:[%s5 + $0x1ec] sm:$0xf]
  %v10954 = vld [vmem:[%s5 + $0x1f0] sm:$0xf]
  %v10955 = vld [vmem:[%s5 + $0x1f4] sm:$0xf]
  %v10956 = vld [vmem:[%s5 + $0x1f8] sm:$0xf]
  %v10957 = vld [vmem:[%s5 + $0x1fc] sm:$0xf]
  %v10958 = vld [vmem:[%s6] sm:$0x1]
  %v10960 = vperm.slane %v10958, 0
  %v11090 = vunpack.c.l.b16 %v10830
  %v11091 = vunpack.c.l.b16 %v10831
  %v11092 = vunpack.c.l.b16 %v10832
  %v11093 = vunpack.c.l.b16 %v10833
  %v11094 = vunpack.c.l.b16 %v10834
  %v11095 = vunpack.c.l.b16 %v10835
  %v11096 = vunpack.c.l.b16 %v10836
  %v11097 = vunpack.c.l.b16 %v10837
  %v11098 = vunpack.c.l.b16 %v10838
  %v11099 = vunpack.c.l.b16 %v10839
  %v11100 = vunpack.c.l.b16 %v10840
  %v11101 = vunpack.c.l.b16 %v10841
  %v11102 = vunpack.c.l.b16 %v10842
  %v11103 = vunpack.c.l.b16 %v10843
  %v11104 = vunpack.c.l.b16 %v10844
  %v11105 = vunpack.c.l.b16 %v10845
  %v11106 = vunpack.c.l.b16 %v10846
  %v11107 = vunpack.c.l.b16 %v10847
  %v11108 = vunpack.c.l.b16 %v10848
  %v11109 = vunpack.c.l.b16 %v10849
  %v11110 = vunpack.c.l.b16 %v10850
  %v11111 = vunpack.c.l.b16 %v10851
  %v11112 = vunpack.c.l.b16 %v10852
  %v11113 = vunpack.c.l.b16 %v10853
  %v11114 = vunpack.c.l.b16 %v10854
  %v11115 = vunpack.c.l.b16 %v10855
  %v11116 = vunpack.c.l.b16 %v10856
  %v11117 = vunpack.c.l.b16 %v10857
  %v11118 = vunpack.c.l.b16 %v10858
  %v11119 = vunpack.c.l.b16 %v10859
  %v11120 = vunpack.c.l.b16 %v10860
  %v11121 = vunpack.c.l.b16 %v10861
  %v11122 = vunpack.c.l.b16 %v10862
  %v11123 = vunpack.c.l.b16 %v10863
  %v11124 = vunpack.c.l.b16 %v10864
  %v11125 = vunpack.c.l.b16 %v10865
  %v11126 = vunpack.c.l.b16 %v10866
  %v11127 = vunpack.c.l.b16 %v10867
  %v11128 = vunpack.c.l.b16 %v10868
  %v11129 = vunpack.c.l.b16 %v10869
  %v11130 = vunpack.c.l.b16 %v10870
  %v11131 = vunpack.c.l.b16 %v10871
  %v11132 = vunpack.c.l.b16 %v10872
  %v11133 = vunpack.c.l.b16 %v10873
  %v11134 = vunpack.c.l.b16 %v10874
  %v11135 = vunpack.c.l.b16 %v10875
  %v11136 = vunpack.c.l.b16 %v10876
  %v11137 = vunpack.c.l.b16 %v10877
  %v11138 = vunpack.c.l.b16 %v10878
  %v11139 = vunpack.c.l.b16 %v10879
  %v11140 = vunpack.c.l.b16 %v10880
  %v11141 = vunpack.c.l.b16 %v10881
  %v11142 = vunpack.c.l.b16 %v10882
  %v11143 = vunpack.c.l.b16 %v10883
  %v11144 = vunpack.c.l.b16 %v10884
  %v11145 = vunpack.c.l.b16 %v10885
  %v11146 = vunpack.c.l.b16 %v10886
  %v11147 = vunpack.c.l.b16 %v10887
  %v11148 = vunpack.c.l.b16 %v10888
  %v11149 = vunpack.c.l.b16 %v10889
  %v11150 = vunpack.c.l.b16 %v10890
  %v11151 = vunpack.c.l.b16 %v10891
  %v11152 = vunpack.c.l.b16 %v10892
  %v11153 = vunpack.c.l.b16 %v10893
  %v11154 = vunpack.c.l.b16 %v10894
  %v11155 = vunpack.c.l.b16 %v10895
  %v11156 = vunpack.c.l.b16 %v10896
  %v11157 = vunpack.c.l.b16 %v10897
  %v11158 = vunpack.c.l.b16 %v10898
  %v11159 = vunpack.c.l.b16 %v10899
  %v11160 = vunpack.c.l.b16 %v10900
  %v11161 = vunpack.c.l.b16 %v10901
  %v11162 = vunpack.c.l.b16 %v10902
  %v11163 = vunpack.c.l.b16 %v10903
  %v11164 = vunpack.c.l.b16 %v10904
  %v11165 = vunpack.c.l.b16 %v10905
  %v11166 = vunpack.c.l.b16 %v10906
  %v11167 = vunpack.c.l.b16 %v10907
  %v11168 = vunpack.c.l.b16 %v10908
  %v11169 = vunpack.c.l.b16 %v10909
  %v11170 = vunpack.c.l.b16 %v10910
  %v11171 = vunpack.c.l.b16 %v10911
  %v11172 = vunpack.c.l.b16 %v10912
  %v11173 = vunpack.c.l.b16 %v10913
  %v11174 = vunpack.c.l.b16 %v10914
  %v11175 = vunpack.c.l.b16 %v10915
  %v11176 = vunpack.c.l.b16 %v10916
  %v11177 = vunpack.c.l.b16 %v10917
  %v11178 = vunpack.c.l.b16 %v10918
  %v11179 = vunpack.c.l.b16 %v10919
  %v11180 = vunpack.c.l.b16 %v10920
  %v11181 = vunpack.c.l.b16 %v10921
  %v11182 = vunpack.c.l.b16 %v10922
  %v11183 = vunpack.c.l.b16 %v10923
  %v11184 = vunpack.c.l.b16 %v10924
  %v11185 = vunpack.c.l.b16 %v10925
  %v11186 = vunpack.c.l.b16 %v10926
  %v11187 = vunpack.c.l.b16 %v10927
  %v11188 = vunpack.c.l.b16 %v10928
  %v11189 = vunpack.c.l.b16 %v10929
  %v11190 = vunpack.c.l.b16 %v10930
  %v11191 = vunpack.c.l.b16 %v10931
  %v11192 = vunpack.c.l.b16 %v10932
  %v11193 = vunpack.c.l.b16 %v10933
  %v11194 = vunpack.c.l.b16 %v10934
  %v11195 = vunpack.c.l.b16 %v10935
  %v11196 = vunpack.c.l.b16 %v10936
  %v11197 = vunpack.c.l.b16 %v10937
  %v11198 = vunpack.c.l.b16 %v10938
  %v11199 = vunpack.c.l.b16 %v10939
  %v11200 = vunpack.c.l.b16 %v10940
  %v11201 = vunpack.c.l.b16 %v10941
  %v11202 = vunpack.c.l.b16 %v10942
  %v11203 = vunpack.c.l.b16 %v10943
  %v11204 = vunpack.c.l.b16 %v10944
  %v11205 = vunpack.c.l.b16 %v10945
  %v11206 = vunpack.c.l.b16 %v10946
  %v11207 = vunpack.c.l.b16 %v10947
  %v11208 = vunpack.c.l.b16 %v10948
  %v11209 = vunpack.c.l.b16 %v10949
  %v11210 = vunpack.c.l.b16 %v10950
  %v11211 = vunpack.c.l.b16 %v10951
  %v11212 = vunpack.c.l.b16 %v10952
  %v11213 = vunpack.c.l.b16 %v10953
  %v11214 = vunpack.c.l.b16 %v10954
  %v11215 = vunpack.c.l.b16 %v10955
  %v11216 = vunpack.c.l.b16 %v10956
  %v11217 = vunpack.c.l.b16 %v10957
  %v11218 = vpack.c.b16 %v11091, %v11090
  %v11219 = vpack.c.b16 %v11093, %v11092
  %v11220 = vpack.c.b16 %v11095, %v11094
  %v11221 = vpack.c.b16 %v11097, %v11096
  %v11222 = vpack.c.b16 %v11099, %v11098
  %v11223 = vpack.c.b16 %v11101, %v11100
  %v11224 = vpack.c.b16 %v11103, %v11102
  %v11225 = vpack.c.b16 %v11105, %v11104
  %v11226 = vpack.c.b16 %v11107, %v11106
  %v11227 = vpack.c.b16 %v11109, %v11108
  %v11228 = vpack.c.b16 %v11111, %v11110
  %v11229 = vpack.c.b16 %v11113, %v11112
  %v11230 = vpack.c.b16 %v11115, %v11114
  %v11231 = vpack.c.b16 %v11117, %v11116
  %v11232 = vpack.c.b16 %v11119, %v11118
  %v11233 = vpack.c.b16 %v11121, %v11120
  %v11234 = vpack.c.b16 %v11123, %v11122
  %v11235 = vpack.c.b16 %v11125, %v11124
  %v11236 = vpack.c.b16 %v11127, %v11126
  %v11237 = vpack.c.b16 %v11129, %v11128
  %v11238 = vpack.c.b16 %v11131, %v11130
  %v11239 = vpack.c.b16 %v11133, %v11132
  %v11240 = vpack.c.b16 %v11135, %v11134
  %v11241 = vpack.c.b16 %v11137, %v11136
  %v11242 = vpack.c.b16 %v11139, %v11138
  %v11243 = vpack.c.b16 %v11141, %v11140
  %v11244 = vpack.c.b16 %v11143, %v11142
  %v11245 = vpack.c.b16 %v11145, %v11144
  %v11246 = vpack.c.b16 %v11147, %v11146
  %v11247 = vpack.c.b16 %v11149, %v11148
  %v11248 = vpack.c.b16 %v11151, %v11150
  %v11249 = vpack.c.b16 %v11153, %v11152
  %v11250 = vpack.c.b16 %v11155, %v11154
  %v11251 = vpack.c.b16 %v11157, %v11156
  %v11252 = vpack.c.b16 %v11159, %v11158
  %v11253 = vpack.c.b16 %v11161, %v11160
  %v11254 = vpack.c.b16 %v11163, %v11162
  %v11255 = vpack.c.b16 %v11165, %v11164
  %v11256 = vpack.c.b16 %v11167, %v11166
  %v11257 = vpack.c.b16 %v11169, %v11168
  %v11258 = vpack.c.b16 %v11171, %v11170
  %v11259 = vpack.c.b16 %v11173, %v11172
  %v11260 = vpack.c.b16 %v11175, %v11174
  %v11261 = vpack.c.b16 %v11177, %v11176
  %v11262 = vpack.c.b16 %v11179, %v11178
  %v11263 = vpack.c.b16 %v11181, %v11180
  %v11264 = vpack.c.b16 %v11183, %v11182
  %v11265 = vpack.c.b16 %v11185, %v11184
  %v11266 = vpack.c.b16 %v11187, %v11186
  %v11267 = vpack.c.b16 %v11189, %v11188
  %v11268 = vpack.c.b16 %v11191, %v11190
  %v11269 = vpack.c.b16 %v11193, %v11192
  %v11270 = vpack.c.b16 %v11195, %v11194
  %v11271 = vpack.c.b16 %v11197, %v11196
  %v11272 = vpack.c.b16 %v11199, %v11198
  %v11273 = vpack.c.b16 %v11201, %v11200
  %v11274 = vpack.c.b16 %v11203, %v11202
  %v11275 = vpack.c.b16 %v11205, %v11204
  %v11276 = vpack.c.b16 %v11207, %v11206
  %v11277 = vpack.c.b16 %v11209, %v11208
  %v11278 = vpack.c.b16 %v11211, %v11210
  %v11279 = vpack.c.b16 %v11213, %v11212
  %v11280 = vpack.c.b16 %v11215, %v11214
  %v11281 = vpack.c.b16 %v11217, %v11216
  %11346 = vmatpush.bf16.msra.mxu0 %v11225
  %11347 = vmatpush.bf16.msra.mxu0 %v11224
  %11348 = vmatpush.bf16.msra.mxu0 %v11223
  %11349 = vmatpush.bf16.msra.mxu0 %v11222
  %11350 = vmatpush.bf16.msra.mxu0 %v11221
  %11351 = vmatpush.bf16.msra.mxu0 %v11220
  %11352 = vmatpush.bf16.msra.mxu0 %v11219
  %11353 = vmatpush.bf16.msra.mxu0 %v11218
  %11354 = vmatmul.bf16.gmra.mxu0 %v10534
  %v11355 = vpop.f32.mrf.mxu0
  %v11356 = vadd.f32 %v10960, %v11355
  %v11357 = vpop.f32.mrf.mxu0
  %v11358 = vadd.f32 %v10960, %v11357
  %11359 = vdwg.mxu0
  %11360 = vmatpush.bf16.msra.mxu0 %v11233
  %11361 = vmatpush.bf16.msra.mxu0 %v11232
  %11362 = vmatpush.bf16.msra.mxu0 %v11231
  %11363 = vmatpush.bf16.msra.mxu0 %v11230
  %11364 = vmatpush.bf16.msra.mxu0 %v11229
  %11365 = vmatpush.bf16.msra.mxu0 %v11228
  %11366 = vmatpush.bf16.msra.mxu0 %v11227
  %11367 = vmatpush.bf16.msra.mxu0 %v11226
  %11368 = vmatmul.bf16.gmra.mxu0 %v10535
  %v11369 = vpop.f32.mrf.mxu0
  %v11370 = vadd.f32 %v11356, %v11369
  %v11371 = vpop.f32.mrf.mxu0
  %v11372 = vadd.f32 %v11358, %v11371
  %11373 = vdwg.mxu0
  %11374 = vmatpush.bf16.msra.mxu0 %v11241
  %11375 = vmatpush.bf16.msra.mxu0 %v11240
  %11376 = vmatpush.bf16.msra.mxu0 %v11239
  %11377 = vmatpush.bf16.msra.mxu0 %v11238
  %11378 = vmatpush.bf16.msra.mxu0 %v11237
  %11379 = vmatpush.bf16.msra.mxu0 %v11236
  %11380 = vmatpush.bf16.msra.mxu0 %v11235
  %11381 = vmatpush.bf16.msra.mxu0 %v11234
  %11382 = vmatmul.bf16.gmra.mxu0 %v10594
  %v11383 = vpop.f32.mrf.mxu0
  %v11384 = vadd.f32 %v11370, %v11383
  %v11385 = vpop.f32.mrf.mxu0
  %v11386 = vadd.f32 %v11372, %v11385
  %11387 = vdwg.mxu0
  %11388 = vmatpush.bf16.msra.mxu0 %v11249
  %11389 = vmatpush.bf16.msra.mxu0 %v11248
  %11390 = vmatpush.bf16.msra.mxu0 %v11247
  %11391 = vmatpush.bf16.msra.mxu0 %v11246
  %11392 = vmatpush.bf16.msra.mxu0 %v11245
  %11393 = vmatpush.bf16.msra.mxu0 %v11244
  %11394 = vmatpush.bf16.msra.mxu0 %v11243
  %11395 = vmatpush.bf16.msra.mxu0 %v11242
  %11396 = vmatmul.bf16.gmra.mxu0 %v10595
  %v11397 = vpop.f32.mrf.mxu0
  %v11398 = vadd.f32 %v11384, %v11397
  %v11399 = vpop.f32.mrf.mxu0
  %v11400 = vadd.f32 %v11386, %v11399
  %11401 = vdwg.mxu0
  %11402 = vmatpush.bf16.msra.mxu0 %v11257
  %11403 = vmatpush.bf16.msra.mxu0 %v11256
  %11404 = vmatpush.bf16.msra.mxu0 %v11255
  %11405 = vmatpush.bf16.msra.mxu0 %v11254
  %11406 = vmatpush.bf16.msra.mxu0 %v11253
  %11407 = vmatpush.bf16.msra.mxu0 %v11252
  %11408 = vmatpush.bf16.msra.mxu0 %v11251
  %11409 = vmatpush.bf16.msra.mxu0 %v11250
  %11410 = vmatmul.bf16.gmra.mxu0 %v10766
  %v11411 = vpop.f32.mrf.mxu0
  %v11412 = vadd.f32 %v11398, %v11411
  %v11413 = vpop.f32.mrf.mxu0
  %v11414 = vadd.f32 %v11400, %v11413
  %11415 = vdwg.mxu0
  %11416 = vmatpush.bf16.msra.mxu0 %v11265
  %11417 = vmatpush.bf16.msra.mxu0 %v11264
  %11418 = vmatpush.bf16.msra.mxu0 %v11263
  %11419 = vmatpush.bf16.msra.mxu0 %v11262
  %11420 = vmatpush.bf16.msra.mxu0 %v11261
  %11421 = vmatpush.bf16.msra.mxu0 %v11260
  %11422 = vmatpush.bf16.msra.mxu0 %v11259
  %11423 = vmatpush.bf16.msra.mxu0 %v11258
  %11424 = vmatmul.bf16.gmra.mxu0 %v10767
  %v11425 = vpop.f32.mrf.mxu0
  %v11426 = vadd.f32 %v11412, %v11425
  %v11427 = vpop.f32.mrf.mxu0
  %v11428 = vadd.f32 %v11414, %v11427
  %11429 = vdwg.mxu0
  %11430 = vmatpush.bf16.msra.mxu0 %v11273
  %11431 = vmatpush.bf16.msra.mxu0 %v11272
  %11432 = vmatpush.bf16.msra.mxu0 %v11271
  %11433 = vmatpush.bf16.msra.mxu0 %v11270
  %11434 = vmatpush.bf16.msra.mxu0 %v11269
  %11435 = vmatpush.bf16.msra.mxu0 %v11268
  %11436 = vmatpush.bf16.msra.mxu0 %v11267
  %11437 = vmatpush.bf16.msra.mxu0 %v11266
  %11438 = vmatmul.bf16.gmra.mxu0 %v10826
  %v11439 = vpop.f32.mrf.mxu0
  %v11440 = vadd.f32 %v11426, %v11439
  %v11441 = vpop.f32.mrf.mxu0
  %v11442 = vadd.f32 %v11428, %v11441
  %11443 = vdwg.mxu0
  %11444 = vmatpush.bf16.msra.mxu0 %v11281
  %11445 = vmatpush.bf16.msra.mxu0 %v11280
  %11446 = vmatpush.bf16.msra.mxu0 %v11279
  %11447 = vmatpush.bf16.msra.mxu0 %v11278
  %11448 = vmatpush.bf16.msra.mxu0 %v11277
  %11449 = vmatpush.bf16.msra.mxu0 %v11276
  %11450 = vmatpush.bf16.msra.mxu0 %v11275
  %11451 = vmatpush.bf16.msra.mxu0 %v11274
  %11452 = vmatmul.bf16.gmra.mxu0 %v10827
  %v11453 = vpop.f32.mrf.mxu0
  %v11454 = vadd.f32 %v11440, %v11453
  %v11455 = vpop.f32.mrf.mxu0
  %v11456 = vadd.f32 %v11442, %v11455
  %11457 = vdwg.mxu0
  %v11458 = vmax.f32 %v11454, 0.0
  %v11459 = vmax.f32 %v11456, 0.0
  %v11460 = vpack.c.bf16 %v11459, %v11458
  %v11461 = vld [vmem:[%s7] sm:$0xf]
  %v11462 = vld [vmem:[%s7 + $0x4] sm:$0xf]
  %v11463 = vld [vmem:[%s7 + $0x8] sm:$0xf]
  %v11464 = vld [vmem:[%s7 + $0xc] sm:$0xf]
  %v11465 = vld [vmem:[%s7 + $0x10] sm:$0xf]
  %v11466 = vld [vmem:[%s7 + $0x14] sm:$0xf]
  %v11467 = vld [vmem:[%s7 + $0x18] sm:$0xf]
  %v11468 = vld [vmem:[%s7 + $0x1c] sm:$0xf]
  %v11469 = vld [vmem:[%s8] sm:$0x1]
  %v11471 = vperm.slane %v11469, 0
  %v11481 = vunpack.c.l.b16 %v11461
  %v11482 = vunpack.c.l.b16 %v11462
  %v11483 = vunpack.c.l.b16 %v11463
  %v11484 = vunpack.c.l.b16 %v11464
  %v11485 = vunpack.c.l.b16 %v11465
  %v11486 = vunpack.c.l.b16 %v11466
  %v11487 = vunpack.c.l.b16 %v11467
  %v11488 = vunpack.c.l.b16 %v11468
  %v11489 = vpack.c.b16 %v11482, %v11481
  %v11490 = vpack.c.b16 %v11484, %v11483
  %v11491 = vpack.c.b16 %v11486, %v11485
  %v11492 = vpack.c.b16 %v11488, %v11487
  %vm11497 = vcmask 523264
  %v11499 = vsel %vm11497, %v11460, 0
  %11501 = vmatpush.bf16.msra.mxu0 0
  %11502 = vmatpush.bf16.msra.mxu0 0
  %11503 = vmatpush.bf16.msra.mxu0 0
  %11504 = vmatpush.bf16.msra.mxu0 0
  %11505 = vmatpush.bf16.msra.mxu0 %v11492
  %11506 = vmatpush.bf16.msra.mxu0 %v11491
  %11507 = vmatpush.bf16.msra.mxu0 %v11490
  %11508 = vmatpush.bf16.msra.mxu0 %v11489
  %11509 = vmatmul.bf16.gmra.mxu0 %v11499
  %v11510 = vpop.f32.mrf.mxu0
  %v11511 = vadd.f32 %v11471, %v11510
  %v11512 = vpop.f32.mrf.mxu0
  %v11513 = vadd.f32 %v11471, %v11512
  %11514 = vdwg.mxu0
  %v11515 = vlaneseq
  %v11516 = vand.u32 %v11515, 127
  %vm11517 = vcmp.lt.s32.totalorder %v11516, 10
  %v11518 = vsel %vm11517, %v11511, -1e+30
  %v11519 = vsel %vm11517, %v11513, -1e+30
  %11520 = vmax.xlane.f32.xlu0 %v11518
  %v11521 = vpop.xlane.xlu0 %11520
  %11522 = vmax.xlane.f32.xlu0 %v11519
  %v11523 = vpop.xlane.xlu0 %11522
  %v11524 = vsub.f32 %v11518, %v11521
  %v11525 = vsub.f32 %v11519, %v11523
  %v11526 = vmul.f32 %v11524, 1.442695
  %v11527 = vpow.pop %v11526
  %v11528 = vmul.f32 %v11525, 1.442695
  %v11529 = vpow.pop %v11528
  %11530 = vadd.xlane.f32.xlu0 %v11527
  %v11531 = vpop.xlane.xlu0 %11530
  %11532 = vadd.xlane.f32.xlu0 %v11529
  %v11533 = vpop.xlane.xlu0 %11532
  %v11534 = vlog2.pop %v11531
  %v11535 = vmul.f32 %v11534, 0.6931472
  %v11536 = vlog2.pop %v11533
  %v11537 = vmul.f32 %v11536, 0.6931472
  %v11538 = vsub.f32 %v11524, %v11535
  %v11539 = vsub.f32 %v11525, %v11537
  %11540 = vst [vmem:[%s9] sm:$0xff] %v11538
  %11541 = vst [vmem:[%s9 + $0x8] sm:$0xff] %v11539
  // Predicated region
  $region38: #{mnist_net_dropout_forward.1} parent=0 // pred_check
    _
  $region39: #{mnist_net_dropout_forward.1} parent=0 // pred_check_branch
    %11543 = sbr.rel (0) target = $region41
  $region40: #{mnist_net_dropout_forward.1} parent=0 // pred_region
    _
  $region41: #{mnist_net_dropout_forward.1} parent=0 // pred_fallthru
    _
  // Predicated region
  $region42: #{mnist_net_dropout_forward.1} parent=0 // pred_check
    _
  $region43: #{mnist_net_dropout_forward.1} parent=0 // pred_check_branch
    %11545 = sbr.rel (0) target = $region45
  $region44: #{mnist_net_dropout_forward.1} parent=0 // pred_region
    _
  $region45: #{mnist_net_dropout_forward.1} parent=0 // pred_fallthru
    _

</llo_original>
